<compile_context>
chip_gen: v7x
topology: tpu7x:2x2x1
jax: 0.10.0
libtpu: 0.0.40
codegen_flags: <defaults>
</compile_context>

<pallas_src>
import functools
import math

import numpy as np

import jax
import jax.numpy as jnp
from jax.experimental import pallas as pl
from jax.experimental.pallas import tpu as pltpu


def _round_up(x, m):
    return (x + m - 1) // m * m


# ----------------------------------------------------------------------------
# Pallas kernel: one grid step == (one batch element, one output-pixel tile).
# ----------------------------------------------------------------------------
def _dcnv2_kernel(offm_ref, x_ref, base_ref, w2d_ref, shift_ref, out_ref,
                  cols_ref, *, K, C, H, W, dil, contract_w):
    # offm_ref : (1, 3*KK, P)    f32   precomputed offset/mask conv output
    # x_ref    : (1, C*A_k, A_c) bf16  input; A_c = larger spatial axis (MXU)
    # base_ref : (2, P)          f32   per-pixel top-left tap base coordinates
    # w2d_ref  : (OC, KK*C)      bf16  BN-folded deform-conv weights (tap-major)
    # shift_ref: (OC, 1)         f32   conv bias + BN shift, folded
    # out_ref  : (1, OC, P)
    # cols_ref : (KK*C, P)       bf16  scratch: modulated samples for all taps
    KK = K * K
    P = out_ref.shape[2]
    A_c = W if contract_w else H          # contracted spatial axis (MXU stage)
    A_k = H if contract_w else W          # kept spatial axis (VPU reduce stage)

    offm = offm_ref[0]                    # (3*KK, P) f32
    x_bf = x_ref[0]                       # (C*A_k, A_c) bf16 (cast in wrapper)

    base_y0 = base_ref[0:1, :]            # (1, P)  oh*stride - pad
    base_x0 = base_ref[1:2, :]            # (1, P)  ow*stride - pad

    # sigmoid of ALL mask rows at once (one EUP pass, no per-tap row sigmoids)
    m_all = jax.nn.sigmoid(offm[2 * KK:3 * KK, :])           # (KK, P)

    # row-index iotas for the separable one-hot gather (hoisted out of k-loop)
    hh = jax.lax.broadcasted_iota(jnp.int32, (H, P), 0)
    ww = jax.lax.broadcasted_iota(jnp.int32, (W, P), 0)

    # KK is tiny (e.g. 9): statically unrolled; each iteration's temporaries die
    # into cols_ref, which bounds live ranges.
    # TODO(synk): if a bundle dump shows vreg spills, switch to
    #             lax.fori_loop(0, KK, ..., unroll=True) with pl.ds row slices.
    for k in range(KK):
        kh, kw = divmod(k, K)
        # torchvision deform_conv2d convention on cat(o1, o2):
        #   dy_k = offset[2k], dx_k = offset[2k+1], mask_k = sigmoid(chunk3[k])
        dy = offm[2 * k:2 * k + 1, :]                         # (1, P)
        dx = offm[2 * k + 1:2 * k + 2, :]
        m = m_all[k:k + 1, :]

        py = base_y0 + float(kh * dil) + dy                   # (1, P) f32
        px = base_x0 + float(kw * dil) + dx

        in_y = (py > -1.0) & (py < float(H))
        in_x = (px > -1.0) & (px < float(W))

        yl_f = jnp.floor(py)
        xl_f = jnp.floor(px)
        ly = py - yl_f
        lx = px - xl_f
        yl = yl_f.astype(jnp.int32)
        xl = xl_f.astype(jnp.int32)
        yh = yl + 1
        xh = xl + 1

        # per-axis corner weights with factorised validity (product of the two
        # axes reproduces exactly the original 4-corner validity/weight logic)
        wy_l = jnp.where(in_y & (yl >= 0), 1.0 - ly, 0.0)
        wy_h = jnp.where(in_y & (yh <= H - 1), ly, 0.0)
        wx_l = jnp.where(in_x & (xl >= 0), 1.0 - lx, 0.0)
        wx_h = jnp.where(in_x & (xh <= W - 1), lx, 0.0)

        sel_y = (jnp.where(hh == jnp.clip(yl, 0, H - 1), wy_l, 0.0) +
                 jnp.where(hh == jnp.clip(yh, 0, H - 1), wy_h, 0.0))   # (H, P)
        sel_x = (jnp.where(ww == jnp.clip(xl, 0, W - 1), wx_l, 0.0) +
                 jnp.where(ww == jnp.clip(xh, 0, W - 1), wx_h, 0.0))   # (W, P)

        # fold the modulation mask into the (small, f32) stage-2 selection matrix
        if contract_w:
            sel_c, sel_k = sel_x, sel_y * m
        else:
            sel_c, sel_k = sel_y, sel_x * m

        # stage 1 (MXU): contract over the larger spatial axis A_c
        xw = jnp.dot(x_bf, sel_c.astype(jnp.bfloat16),
                     preferred_element_type=jnp.float32)               # (C*A_k, P)
        # stage 2 (VPU): weight by sel_k (mask folded in) and reduce over A_k
        samp = jnp.sum(xw.reshape(C, A_k, P) * sel_k[None, :, :], axis=1)  # (C, P)

        # C is padded to a multiple of 16 in the wrapper -> aligned full-tile
        # bf16 stores (no masked read-modify-write per tap).
        cols_ref[k * C:(k + 1) * C, :] = samp.astype(jnp.bfloat16)

    # ---- single fused output matmul: (OC, KK*C) @ (KK*C, P) on the MXU ------
    acc = jnp.dot(w2d_ref[...], cols_ref[...],
                  preferred_element_type=jnp.float32)                  # (OC, P)
    out = acc + shift_ref[...]          # conv bias + BatchNorm(eval) folded
    out = out * jax.nn.sigmoid(out)     # SiLU
    out_ref[0] = out.astype(out_ref.dtype)


# ----------------------------------------------------------------------------
# Wrapper (reshape / pad / constant index math / plain offset conv + pallas_call)
# ----------------------------------------------------------------------------
def dcnv2_forward(x, weight, bias, w_off, b_off, gamma, beta, run_mean, run_var,
                  *, stride=1, padding=None, dilation=1, eps=1e-5,
                  p_tile=None, out_dtype=jnp.float32):
    B, C, H, W = x.shape
    OC, _, K, _ = weight.shape
    KK = K * K

    # autopad, matching the PyTorch helper (handles dilation > 1 correctly)
    if padding is None:
        k_eff = dilation * (K - 1) + 1
        pad = k_eff // 2
    else:
        pad = padding
    # NOTE: the offset/mask conv below uses the same dilation as the deformable
    # conv (as in the numpy reference); the PyTorch module builds it with
    # dilation=1, which only yields a consistent geometry for dilation == 1.

    Ho = (H + 2 * pad - dilation * (K - 1) - 1) // stride + 1
    Wo = (W + 2 * pad - dilation * (K - 1) - 1) // stride + 1
    P = Ho * Wo

    # ---- tile / VMEM-limit selection (generation-aware, safe fallback) ------
    try:
        vmem_cap = int(pltpu.get_tpu_info().vmem_capacity_bytes)
    except Exception:                       # off-TPU tracing / older runtimes
        vmem_cap = 64 * 1024 * 1024
    if p_tile is None:
        # v5e/v6e (128 MiB VMEM): 512-wide tiles amortize per-grid-step overhead;
        # v7x (64 MiB/TC): 256 keeps the (C*A_k, pt) f32 xw temp within budget.
        p_tile = 512 if vmem_cap >= (96 << 20) else 256
    pt = min(p_tile, _round_up(P, 128))
    # keep >= 2 grid points at batch 1 so both v7x TensorCores get grid work
    if B == 1 and _round_up(P, pt) == pt and pt > 128:
        pt = _round_up(pt // 2, 128)
    P_pad = _round_up(P, pt)
    n_pt = P_pad // pt
    vmem_limit = int(min(vmem_cap * 3 // 4, 100 * 1024 * 1024))

    # ---- offset/mask conv hoisted out of the kernel (plain conv, f32) -------
    offm = jax.lax.conv_general_dilated(
        x, w_off.reshape(3 * KK, C, K, K),
        window_strides=(stride, stride),
        padding=((pad, pad), (pad, pad)),
        rhs_dilation=(dilation, dilation),
        dimension_numbers=("NCHW", "OIHW", "NCHW"),
    ) + b_off.reshape(1, 3 * KK, 1, 1)
    offm = offm.reshape(B, 3 * KK, P)
    offm = jnp.pad(offm, ((0, 0), (0, 0), (0, P_pad - P)))

    # ---- channel padding to a multiple of 16 (bf16 sublane tile) ------------
    # Free for realistic channel counts; guarantees aligned per-tap slab stores.
    Cp = _round_up(C, 16)
    if Cp != C:
        x_c = jnp.pad(x, ((0, 0), (0, Cp - C), (0, 0), (0, 0)))
        w_c = jnp.pad(weight, ((0, 0), (0, Cp - C), (0, 0), (0, 0)))
    else:
        x_c, w_c = x, weight

    # ---- input laid out so the LARGER spatial axis is the MXU contraction ---
    contract_w = W >= H
    if contract_w:
        x_lin = x_c.reshape(B, Cp * H, W).astype(jnp.bfloat16)
    else:
        x_lin = jnp.transpose(x_c, (0, 1, 3, 2)).reshape(B, Cp * W, H).astype(jnp.bfloat16)
    A_k = H if contract_w else W
    A_c = W if contract_w else H

    # ---- per-output-pixel base sampling coordinates of the top-left tap -----
    ho, wo = np.meshgrid(np.arange(Ho), np.arange(Wo), indexing="ij")
    base = np.zeros((2, P_pad), np.float32)
    base[0, :P] = (ho * stride - pad).reshape(-1)
    base[1, :P] = (wo * stride - pad).reshape(-1)
    base = jnp.asarray(base)

    # ---- fold BatchNorm (eval) into the deform-conv weights / a single shift
    scale = gamma / jnp.sqrt(run_var + eps)                   # (OC,)
    shift = (bias - run_mean) * scale + beta                  # (OC,)
    w2d = (jnp.transpose(w_c, (0, 2, 3, 1)).reshape(OC, KK * Cp)
           * scale[:, None]).astype(jnp.bfloat16)             # tap-major, lane-dense
    shift_col = shift.reshape(OC, 1).astype(jnp.float32)

    kernel = functools.partial(_dcnv2_kernel, K=K, C=Cp, H=H, W=W,
                               dil=dilation, contract_w=contract_w)

    out = pl.pallas_call(
        kernel,
        out_shape=jax.ShapeDtypeStruct((B, OC, P_pad), out_dtype),
        grid_spec=pltpu.PrefetchScalarGridSpec(
            num_scalar_prefetch=0,
            grid=(B, n_pt),
            in_specs=[
                pl.BlockSpec((1, 3 * KK, pt), lambda b, j: (b, 0, j)),    # offm
                pl.BlockSpec((1, Cp * A_k, A_c), lambda b, j: (b, 0, 0)), # x (bf16, resident)
                pl.BlockSpec((2, pt), lambda b, j: (0, j)),               # base coords
                pl.BlockSpec((OC, KK * Cp), lambda b, j: (0, 0)),         # W (BN-folded, bf16)
                pl.BlockSpec((OC, 1), lambda b, j: (0, 0)),               # shift
            ],
            out_specs=pl.BlockSpec((1, OC, pt), lambda b, j: (b, 0, j)),
            scratch_shapes=[pltpu.VMEM((KK * Cp, pt), jnp.bfloat16)],     # fused cols
        ),
        compiler_params=pltpu.CompilerParams(
            dimension_semantics=("parallel", "parallel"),
            vmem_limit_bytes=vmem_limit),
    )(offm, x_lin, base, w2d, shift_col)

    return out[:, :, :P].reshape(B, OC, Ho, Wo)


# ----------------------------------------------------------------------------
# Pure numpy (float64) reference of the same forward pass, for verification.
# ----------------------------------------------------------------------------
def dcnv2_reference_np(x, weight, bias, w_off, b_off, gamma, beta, run_mean,
                       run_var, *, stride=1, padding=None, dilation=1, eps=1e-5):
    x = np.asarray(x, np.float64)
    weight = np.asarray(weight, np.float64)
    bias = np.asarray(bias, np.float64)
    w_off = np.asarray(w_off, np.float64)
    b_off = np.asarray(b_off, np.float64)
    gamma = np.asarray(gamma, np.float64)
    beta = np.asarray(beta, np.float64)
    run_mean = np.asarray(run_mean, np.float64)
    run_var = np.asarray(run_var, np.float64)

    B, C, H, W = x.shape
    OC, _, K, _ = weight.shape
    KK = K * K
    if padding is None:
        k_eff = dilation * (K - 1) + 1
        pad = k_eff // 2
    else:
        pad = padding
    Ho = (H + 2 * pad - dilation * (K - 1) - 1) // stride + 1
    Wo = (W + 2 * pad - dilation * (K - 1) - 1) // stride + 1
    P = Ho * Wo

    xp = np.pad(x, ((0, 0), (0, 0), (pad, pad), (pad, pad)))
    cols = []
    for kh in range(K):
        for kw in range(K):
            h0, w0 = kh * dilation, kw * dilation
            cols.append(xp[:, :, h0:h0 + (Ho - 1) * stride + 1:stride,
                               w0:w0 + (Wo - 1) * stride + 1:stride])
    patches = np.stack(cols, axis=2).reshape(B, C * KK, P)
    offm = (np.einsum("oc,bcp->bop", w_off.reshape(3 * KK, C * KK), patches)
            + b_off[None, :, None])
    x_flat = x.reshape(B, C, H * W)

    ho, wo = np.meshgrid(np.arange(Ho), np.arange(Wo), indexing="ij")
    acc = np.zeros((B, OC, P), np.float64)
    for k in range(KK):
        kh, kw = divmod(k, K)
        base_y = (ho * stride - pad + kh * dilation).reshape(-1)[None, :]
        base_x = (wo * stride - pad + kw * dilation).reshape(-1)[None, :]
        dy = offm[:, 2 * k]
        dx = offm[:, 2 * k + 1]
        m = 1.0 / (1.0 + np.exp(-offm[:, 2 * KK + k]))
        py = base_y + dy
        px = base_x + dx
        in_range = (py > -1) & (py < H) & (px > -1) & (px < W)
        yl_f = np.floor(py)
        xl_f = np.floor(px)
        ly = py - yl_f
        lx = px - xl_f
        hy = 1.0 - ly
        hx = 1.0 - lx
        yl = yl_f.astype(np.int64)
        xl = xl_f.astype(np.int64)
        yh = yl + 1
        xh = xl + 1

        def corner(yi, xi, wgt):
            valid = (in_range & (yi >= 0) & (yi <= H - 1) &
                     (xi >= 0) & (xi <= W - 1))
            w_ = np.where(valid, wgt, 0.0)
            idx = np.clip(yi, 0, H - 1) * W + np.clip(xi, 0, W - 1)
            g = np.take_along_axis(
                x_flat, np.broadcast_to(idx[:, None, :], (B, C, P)), axis=2)
            return g * w_[:, None, :]

        samp = (corner(yl, xl, hy * hx) + corner(yl, xh, hy * lx) +
                corner(yh, xl, ly * hx) + corner(yh, xh, ly * lx))
        masked = samp * m[:, None, :]
        acc += np.einsum("oc,bcp->bop", weight[:, :, kh, kw], masked)

    scale = gamma / np.sqrt(run_var + eps)
    shift = (bias - run_mean) * scale + beta
    out = acc * scale[None, :, None] + shift[None, :, None]
    out = out * (1.0 / (1.0 + np.exp(-out)))
    return out.reshape(B, OC, Ho, Wo)


# ----------------------------------------------------------------------------
if __name__ == "__main__":
    B, C_in, H, W = 2, 4, 16, 16
    C_out, K = 8, 3

    key = jax.random.PRNGKey(0)
    ks = jax.random.split(key, 9)

    x = jax.random.normal(ks[0], (B, C_in, H, W), jnp.float32)

    # Parameter shapes follow DCNv2.__init__ (groups=1, deformable_groups=1).
    # reset_parameters() zeroes conv_offset_mask, which would make offsets
    # trivially 0 — use small random values instead so the deformable sampling
    # path is actually exercised (forward semantics unchanged).
    std = 1.0 / math.sqrt(C_in * K * K)
    weight = jax.random.uniform(ks[1], (C_out, C_in, K, K), jnp.float32, -std, std)
    bias = 0.1 * jax.random.normal(ks[2], (C_out,), jnp.float32)
    w_off = 0.05 * jax.random.normal(ks[3], (3 * K * K, C_in, K, K), jnp.float32)
    b_off = 0.05 * jax.random.normal(ks[4], (3 * K * K,), jnp.float32)
    gamma = 1.0 + 0.1 * jax.random.normal(ks[5], (C_out,), jnp.float32)
    beta = 0.1 * jax.random.normal(ks[6], (C_out,), jnp.float32)
    run_mean = 0.1 * jax.random.normal(ks[7], (C_out,), jnp.float32)
    run_var = 1.0 + 0.1 * jax.random.uniform(ks[8], (C_out,), jnp.float32)

    out = dcnv2_forward(x, weight, bias, w_off, b_off, gamma, beta,
                        run_mean, run_var)
    out = jax.block_until_ready(out)
    assert out.shape == (B, C_out, H, W)

    ref = dcnv2_reference_np(x, weight, bias, w_off, b_off, gamma, beta,
                             run_mean, run_var)
    np.testing.assert_allclose(np.asarray(out, np.float64), ref,
                               rtol=3e-2, atol=3e-2)
    print("KERNEL_OK")
</pallas_src>

<mosaic_0001>
module attributes {stable_mosaic.version = 11 : i64} {
  func.func @_dcnv2_kernel(%arg0: i32, %arg1: i32, %arg2: memref<1x27x256xf32, #tpu.memory_space<vmem>>, %arg3: memref<1x256x16xbf16, #tpu.memory_space<vmem>>, %arg4: memref<2x256xf32, #tpu.memory_space<vmem>>, %arg5: memref<8x144xbf16, #tpu.memory_space<vmem>>, %arg6: memref<8x1xf32, #tpu.memory_space<vmem>>, %arg7: memref<1x8x256xf32, #tpu.memory_space<vmem>>, %arg8: memref<144x256xbf16, #tpu.memory_space<vmem>>) attributes {dimension_semantics = [#tpu.dimension_semantics<parallel>, #tpu.dimension_semantics<parallel>], iteration_bounds = array<i64: 2, 1>, scalar_prefetch = 0 : i64, scratch_operands = 1 : i64, tpu.core_type = #tpu.core_type<tc>, window_params = [{transform_indices = @transform_0, window_bounds = array<i64: 1, 27, 256>}, {transform_indices = @transform_1, window_bounds = array<i64: 1, 256, 16>}, {transform_indices = @transform_2, window_bounds = array<i64: 2, 256>}, {pipeline_mode = #tpu.pipeline_mode<synchronous>, transform_indices = @transform_3, window_bounds = array<i64: 8, 144>}, {pipeline_mode = #tpu.pipeline_mode<synchronous>, transform_indices = @transform_4, window_bounds = array<i64: 8, 1>}, {transform_indices = @transform_5, window_bounds = array<i64: 1, 8, 256>}]} {
    %c0 = arith.constant 0 : index
    %c0_0 = arith.constant 0 : index
    %c0_1 = arith.constant 0 : index
    %0 = vector.load %arg2[%c0, %c0_0, %c0_1] : memref<1x27x256xf32, #tpu.memory_space<vmem>>, vector<1x27x256xf32>
    %1 = vector.shape_cast %0 : vector<1x27x256xf32> to vector<27x256xf32>
    %c0_2 = arith.constant 0 : index
    %c0_3 = arith.constant 0 : index
    %c0_4 = arith.constant 0 : index
    %2 = vector.load %arg3[%c0_2, %c0_3, %c0_4] : memref<1x256x16xbf16, #tpu.memory_space<vmem>>, vector<1x256x16xbf16>
    %3 = vector.shape_cast %2 : vector<1x256x16xbf16> to vector<256x16xbf16>
    %c0_5 = arith.constant 0 : index
    %c0_6 = arith.constant 0 : index
    %4 = vector.load %arg4[%c0_5, %c0_6] : memref<2x256xf32, #tpu.memory_space<vmem>>, vector<1x256xf32>
    %c1 = arith.constant 1 : index
    %c0_7 = arith.constant 0 : index
    %5 = vector.load %arg4[%c1, %c0_7] : memref<2x256xf32, #tpu.memory_space<vmem>>, vector<1x256xf32>
    %6 = vector.extract_strided_slice %1 {offsets = [18, 0], sizes = [9, 256], strides = [1, 1]} : vector<27x256xf32> to vector<9x256xf32>
    %7 = arith.negf %6 : vector<9x256xf32>
    %8 = math.exp %7 : vector<9x256xf32>
    %cst = arith.constant 1.000000e+00 : f32
    %9 = vector.broadcast %cst : f32 to vector<9x256xf32>
    %10 = arith.addf %9, %8 : vector<9x256xf32>
    %11 = arith.divf %9, %10 : vector<9x256xf32>
    %12 = tpu.iota {dimensions = array<i32: 0>} : vector<16x256xi32>
    %13 = tpu.iota {dimensions = array<i32: 0>} : vector<16x256xi32>
    %14 = vector.extract_strided_slice %1 {offsets = [0, 0], sizes = [1, 256], strides = [1, 1]} : vector<27x256xf32> to vector<1x256xf32>
    %15 = vector.extract_strided_slice %1 {offsets = [1, 0], sizes = [1, 256], strides = [1, 1]} : vector<27x256xf32> to vector<1x256xf32>
    %16 = vector.extract_strided_slice %11 {offsets = [0, 0], sizes = [1, 256], strides = [1, 1]} : vector<9x256xf32> to vector<1x256xf32>
    %cst_8 = arith.constant 0.000000e+00 : f32
    %17 = vector.broadcast %cst_8 : f32 to vector<1x256xf32>
    %18 = arith.addf %4, %17 : vector<1x256xf32>
    %19 = arith.addf %18, %14 : vector<1x256xf32>
    %cst_9 = arith.constant 0.000000e+00 : f32
    %20 = vector.broadcast %cst_9 : f32 to vector<1x256xf32>
    %21 = arith.addf %5, %20 : vector<1x256xf32>
    %22 = arith.addf %21, %15 : vector<1x256xf32>
    %cst_10 = arith.constant -1.000000e+00 : f32
    %23 = vector.broadcast %cst_10 : f32 to vector<1x256xf32>
    %24 = arith.cmpf ogt, %19, %23 : vector<1x256xf32>
    %cst_11 = arith.constant 1.600000e+01 : f32
    %25 = vector.broadcast %cst_11 : f32 to vector<1x256xf32>
    %26 = arith.cmpf olt, %19, %25 : vector<1x256xf32>
    %27 = arith.andi %24, %26 : vector<1x256xi1>
    %cst_12 = arith.constant -1.000000e+00 : f32
    %28 = vector.broadcast %cst_12 : f32 to vector<1x256xf32>
    %29 = arith.cmpf ogt, %22, %28 : vector<1x256xf32>
    %cst_13 = arith.constant 1.600000e+01 : f32
    %30 = vector.broadcast %cst_13 : f32 to vector<1x256xf32>
    %31 = arith.cmpf olt, %22, %30 : vector<1x256xf32>
    %32 = arith.andi %29, %31 : vector<1x256xi1>
    %33 = math.floor %19 : vector<1x256xf32>
    %34 = math.floor %22 : vector<1x256xf32>
    %35 = arith.subf %19, %33 : vector<1x256xf32>
    %36 = arith.subf %22, %34 : vector<1x256xf32>
    %37 = arith.fptosi %33 : vector<1x256xf32> to vector<1x256xi32>
    %38 = arith.fptosi %34 : vector<1x256xf32> to vector<1x256xi32>
    %c1_i32 = arith.constant 1 : i32
    %39 = vector.broadcast %c1_i32 : i32 to vector<1x256xi32>
    %40 = arith.addi %37, %39 : vector<1x256xi32>
    %c1_i32_14 = arith.constant 1 : i32
    %41 = vector.broadcast %c1_i32_14 : i32 to vector<1x256xi32>
    %42 = arith.addi %38, %41 : vector<1x256xi32>
    %c0_i32 = arith.constant 0 : i32
    %43 = vector.broadcast %c0_i32 : i32 to vector<1x256xi32>
    %44 = arith.cmpi sge, %37, %43 : vector<1x256xi32>
    %45 = arith.andi %27, %44 : vector<1x256xi1>
    %cst_15 = arith.constant 1.000000e+00 : f32
    %46 = vector.broadcast %cst_15 : f32 to vector<1x256xf32>
    %47 = arith.subf %46, %35 : vector<1x256xf32>
    %cst_16 = arith.constant 0.000000e+00 : f32
    %48 = vector.broadcast %cst_16 : f32 to vector<1x256xf32>
    %49 = arith.select %45, %47, %48 : vector<1x256xi1>, vector<1x256xf32>
    %c15_i32 = arith.constant 15 : i32
    %50 = vector.broadcast %c15_i32 : i32 to vector<1x256xi32>
    %51 = arith.cmpi sle, %40, %50 : vector<1x256xi32>
    %52 = arith.andi %27, %51 : vector<1x256xi1>
    %cst_17 = arith.constant 0.000000e+00 : f32
    %53 = vector.broadcast %cst_17 : f32 to vector<1x256xf32>
    %54 = arith.select %52, %35, %53 : vector<1x256xi1>, vector<1x256xf32>
    %c0_i32_18 = arith.constant 0 : i32
    %55 = vector.broadcast %c0_i32_18 : i32 to vector<1x256xi32>
    %56 = arith.cmpi sge, %38, %55 : vector<1x256xi32>
    %57 = arith.andi %32, %56 : vector<1x256xi1>
    %cst_19 = arith.constant 1.000000e+00 : f32
    %58 = vector.broadcast %cst_19 : f32 to vector<1x256xf32>
    %59 = arith.subf %58, %36 : vector<1x256xf32>
    %cst_20 = arith.constant 0.000000e+00 : f32
    %60 = vector.broadcast %cst_20 : f32 to vector<1x256xf32>
    %61 = arith.select %57, %59, %60 : vector<1x256xi1>, vector<1x256xf32>
    %c15_i32_21 = arith.constant 15 : i32
    %62 = vector.broadcast %c15_i32_21 : i32 to vector<1x256xi32>
    %63 = arith.cmpi sle, %42, %62 : vector<1x256xi32>
    %64 = arith.andi %32, %63 : vector<1x256xi1>
    %cst_22 = arith.constant 0.000000e+00 : f32
    %65 = vector.broadcast %cst_22 : f32 to vector<1x256xf32>
    %66 = arith.select %64, %36, %65 : vector<1x256xi1>, vector<1x256xf32>
    %c0_i32_23 = arith.constant 0 : i32
    %c15_i32_24 = arith.constant 15 : i32
    %67 = vector.broadcast %c0_i32_23 : i32 to vector<1x256xi32>
    %68 = arith.maxsi %67, %37 : vector<1x256xi32>
    %69 = vector.broadcast %c15_i32_24 : i32 to vector<1x256xi32>
    %70 = arith.minsi %69, %68 : vector<1x256xi32>
    %71 = vector.broadcast %70 : vector<1x256xi32> to vector<16x256xi32>
    %72 = arith.cmpi eq, %12, %71 : vector<16x256xi32>
    %cst_25 = arith.constant 0.000000e+00 : f32
    %73 = vector.shape_cast %49 : vector<1x256xf32> to vector<1x256xf32>
    %74 = vector.broadcast %73 : vector<1x256xf32> to vector<16x256xf32>
    %75 = vector.broadcast %cst_25 : f32 to vector<16x256xf32>
    %76 = arith.select %72, %74, %75 : vector<16x256xi1>, vector<16x256xf32>
    %c0_i32_26 = arith.constant 0 : i32
    %c15_i32_27 = arith.constant 15 : i32
    %77 = vector.broadcast %c0_i32_26 : i32 to vector<1x256xi32>
    %78 = arith.maxsi %77, %40 : vector<1x256xi32>
    %79 = vector.broadcast %c15_i32_27 : i32 to vector<1x256xi32>
    %80 = arith.minsi %79, %78 : vector<1x256xi32>
    %81 = vector.broadcast %80 : vector<1x256xi32> to vector<16x256xi32>
    %82 = arith.cmpi eq, %12, %81 : vector<16x256xi32>
    %cst_28 = arith.constant 0.000000e+00 : f32
    %83 = vector.shape_cast %54 : vector<1x256xf32> to vector<1x256xf32>
    %84 = vector.broadcast %83 : vector<1x256xf32> to vector<16x256xf32>
    %85 = vector.broadcast %cst_28 : f32 to vector<16x256xf32>
    %86 = arith.select %82, %84, %85 : vector<16x256xi1>, vector<16x256xf32>
    %87 = arith.addf %76, %86 : vector<16x256xf32>
    %c0_i32_29 = arith.constant 0 : i32
    %c15_i32_30 = arith.constant 15 : i32
    %88 = vector.broadcast %c0_i32_29 : i32 to vector<1x256xi32>
    %89 = arith.maxsi %88, %38 : vector<1x256xi32>
    %90 = vector.broadcast %c15_i32_30 : i32 to vector<1x256xi32>
    %91 = arith.minsi %90, %89 : vector<1x256xi32>
    %92 = vector.broadcast %91 : vector<1x256xi32> to vector<16x256xi32>
    %93 = arith.cmpi eq, %13, %92 : vector<16x256xi32>
    %cst_31 = arith.constant 0.000000e+00 : f32
    %94 = vector.shape_cast %61 : vector<1x256xf32> to vector<1x256xf32>
    %95 = vector.broadcast %94 : vector<1x256xf32> to vector<16x256xf32>
    %96 = vector.broadcast %cst_31 : f32 to vector<16x256xf32>
    %97 = arith.select %93, %95, %96 : vector<16x256xi1>, vector<16x256xf32>
    %c0_i32_32 = arith.constant 0 : i32
    %c15_i32_33 = arith.constant 15 : i32
    %98 = vector.broadcast %c0_i32_32 : i32 to vector<1x256xi32>
    %99 = arith.maxsi %98, %42 : vector<1x256xi32>
    %100 = vector.broadcast %c15_i32_33 : i32 to vector<1x256xi32>
    %101 = arith.minsi %100, %99 : vector<1x256xi32>
    %102 = vector.broadcast %101 : vector<1x256xi32> to vector<16x256xi32>
    %103 = arith.cmpi eq, %13, %102 : vector<16x256xi32>
    %cst_34 = arith.constant 0.000000e+00 : f32
    %104 = vector.shape_cast %66 : vector<1x256xf32> to vector<1x256xf32>
    %105 = vector.broadcast %104 : vector<1x256xf32> to vector<16x256xf32>
    %106 = vector.broadcast %cst_34 : f32 to vector<16x256xf32>
    %107 = arith.select %103, %105, %106 : vector<16x256xi1>, vector<16x256xf32>
    %108 = arith.addf %97, %107 : vector<16x256xf32>
    %109 = vector.broadcast %16 : vector<1x256xf32> to vector<16x256xf32>
    %110 = arith.mulf %87, %109 : vector<16x256xf32>
    %111 = arith.truncf %108 : vector<16x256xf32> to vector<16x256xbf16>
    %cst_35 = arith.constant dense<0.000000e+00> : vector<256x256xf32>
    %112 = tpu.matmul %3, %111, %cst_35 {dimension_numbers = #tpu.dot_dimension_numbers<[1], [0], [0], [1], [0, 0, 1, 1], [], []>} : vector<256x16xbf16>, vector<16x256xbf16>, vector<256x256xf32> -> vector<256x256xf32>
    %113 = vector.shape_cast %112 : vector<256x256xf32> to vector<16x16x256xf32>
    %114 = vector.shape_cast %110 : vector<16x256xf32> to vector<1x16x256xf32>
    %115 = vector.broadcast %114 : vector<1x16x256xf32> to vector<16x16x256xf32>
    %116 = arith.mulf %113, %115 : vector<16x16x256xf32>
    %cst_36 = arith.constant dense<0.000000e+00> : vector<16x256xf32>
    %117 = vector.multi_reduction <add>, %116, %cst_36 [1] : vector<16x16x256xf32> to vector<16x256xf32>
    %118 = arith.truncf %117 : vector<16x256xf32> to vector<16x256xbf16>
    %c0_37 = arith.constant 0 : index
    %c0_38 = arith.constant 0 : index
    %119 = vector.load %arg8[%c0_37, %c0_38] : memref<144x256xbf16, #tpu.memory_space<vmem>>, vector<16x256xbf16>
    tpu.vector_store %arg8[%c0_37, %c0_38], %118 {strides = array<i32>} : memref<144x256xbf16, #tpu.memory_space<vmem>>, vector<16x256xbf16>,
    %120 = vector.extract_strided_slice %1 {offsets = [2, 0], sizes = [1, 256], strides = [1, 1]} : vector<27x256xf32> to vector<1x256xf32>
    %121 = vector.extract_strided_slice %1 {offsets = [3, 0], sizes = [1, 256], strides = [1, 1]} : vector<27x256xf32> to vector<1x256xf32>
    %122 = vector.extract_strided_slice %11 {offsets = [1, 0], sizes = [1, 256], strides = [1, 1]} : vector<9x256xf32> to vector<1x256xf32>
    %cst_39 = arith.constant 0.000000e+00 : f32
    %123 = vector.broadcast %cst_39 : f32 to vector<1x256xf32>
    %124 = arith.addf %4, %123 : vector<1x256xf32>
    %125 = arith.addf %124, %120 : vector<1x256xf32>
    %cst_40 = arith.constant 1.000000e+00 : f32
    %126 = vector.broadcast %cst_40 : f32 to vector<1x256xf32>
    %127 = arith.addf %5, %126 : vector<1x256xf32>
    %128 = arith.addf %127, %121 : vector<1x256xf32>
    %cst_41 = arith.constant -1.000000e+00 : f32
    %129 = vector.broadcast %cst_41 : f32 to vector<1x256xf32>
    %130 = arith.cmpf ogt, %125, %129 : vector<1x256xf32>
    %cst_42 = arith.constant 1.600000e+01 : f32
    %131 = vector.broadcast %cst_42 : f32 to vector<1x256xf32>
    %132 = arith.cmpf olt, %125, %131 : vector<1x256xf32>
    %133 = arith.andi %130, %132 : vector<1x256xi1>
    %cst_43 = arith.constant -1.000000e+00 : f32
    %134 = vector.broadcast %cst_43 : f32 to vector<1x256xf32>
    %135 = arith.cmpf ogt, %128, %134 : vector<1x256xf32>
    %cst_44 = arith.constant 1.600000e+01 : f32
    %136 = vector.broadcast %cst_44 : f32 to vector<1x256xf32>
    %137 = arith.cmpf olt, %128, %136 : vector<1x256xf32>
    %138 = arith.andi %135, %137 : vector<1x256xi1>
    %139 = math.floor %125 : vector<1x256xf32>
    %140 = math.floor %128 : vector<1x256xf32>
    %141 = arith.subf %125, %139 : vector<1x256xf32>
    %142 = arith.subf %128, %140 : vector<1x256xf32>
    %143 = arith.fptosi %139 : vector<1x256xf32> to vector<1x256xi32>
    %144 = arith.fptosi %140 : vector<1x256xf32> to vector<1x256xi32>
    %c1_i32_45 = arith.constant 1 : i32
    %145 = vector.broadcast %c1_i32_45 : i32 to vector<1x256xi32>
    %146 = arith.addi %143, %145 : vector<1x256xi32>
    %c1_i32_46 = arith.constant 1 : i32
    %147 = vector.broadcast %c1_i32_46 : i32 to vector<1x256xi32>
    %148 = arith.addi %144, %147 : vector<1x256xi32>
    %c0_i32_47 = arith.constant 0 : i32
    %149 = vector.broadcast %c0_i32_47 : i32 to vector<1x256xi32>
    %150 = arith.cmpi sge, %143, %149 : vector<1x256xi32>
    %151 = arith.andi %133, %150 : vector<1x256xi1>
    %cst_48 = arith.constant 1.000000e+00 : f32
    %152 = vector.broadcast %cst_48 : f32 to vector<1x256xf32>
    %153 = arith.subf %152, %141 : vector<1x256xf32>
    %cst_49 = arith.constant 0.000000e+00 : f32
    %154 = vector.broadcast %cst_49 : f32 to vector<1x256xf32>
    %155 = arith.select %151, %153, %154 : vector<1x256xi1>, vector<1x256xf32>
    %c15_i32_50 = arith.constant 15 : i32
    %156 = vector.broadcast %c15_i32_50 : i32 to vector<1x256xi32>
    %157 = arith.cmpi sle, %146, %156 : vector<1x256xi32>
    %158 = arith.andi %133, %157 : vector<1x256xi1>
    %cst_51 = arith.constant 0.000000e+00 : f32
    %159 = vector.broadcast %cst_51 : f32 to vector<1x256xf32>
    %160 = arith.select %158, %141, %159 : vector<1x256xi1>, vector<1x256xf32>
    %c0_i32_52 = arith.constant 0 : i32
    %161 = vector.broadcast %c0_i32_52 : i32 to vector<1x256xi32>
    %162 = arith.cmpi sge, %144, %161 : vector<1x256xi32>
    %163 = arith.andi %138, %162 : vector<1x256xi1>
    %cst_53 = arith.constant 1.000000e+00 : f32
    %164 = vector.broadcast %cst_53 : f32 to vector<1x256xf32>
    %165 = arith.subf %164, %142 : vector<1x256xf32>
    %cst_54 = arith.constant 0.000000e+00 : f32
    %166 = vector.broadcast %cst_54 : f32 to vector<1x256xf32>
    %167 = arith.select %163, %165, %166 : vector<1x256xi1>, vector<1x256xf32>
    %c15_i32_55 = arith.constant 15 : i32
    %168 = vector.broadcast %c15_i32_55 : i32 to vector<1x256xi32>
    %169 = arith.cmpi sle, %148, %168 : vector<1x256xi32>
    %170 = arith.andi %138, %169 : vector<1x256xi1>
    %cst_56 = arith.constant 0.000000e+00 : f32
    %171 = vector.broadcast %cst_56 : f32 to vector<1x256xf32>
    %172 = arith.select %170, %142, %171 : vector<1x256xi1>, vector<1x256xf32>
    %c0_i32_57 = arith.constant 0 : i32
    %c15_i32_58 = arith.constant 15 : i32
    %173 = vector.broadcast %c0_i32_57 : i32 to vector<1x256xi32>
    %174 = arith.maxsi %173, %143 : vector<1x256xi32>
    %175 = vector.broadcast %c15_i32_58 : i32 to vector<1x256xi32>
    %176 = arith.minsi %175, %174 : vector<1x256xi32>
    %177 = vector.broadcast %176 : vector<1x256xi32> to vector<16x256xi32>
    %178 = arith.cmpi eq, %12, %177 : vector<16x256xi32>
    %cst_59 = arith.constant 0.000000e+00 : f32
    %179 = vector.shape_cast %155 : vector<1x256xf32> to vector<1x256xf32>
    %180 = vector.broadcast %179 : vector<1x256xf32> to vector<16x256xf32>
    %181 = vector.broadcast %cst_59 : f32 to vector<16x256xf32>
    %182 = arith.select %178, %180, %181 : vector<16x256xi1>, vector<16x256xf32>
    %c0_i32_60 = arith.constant 0 : i32
    %c15_i32_61 = arith.constant 15 : i32
    %183 = vector.broadcast %c0_i32_60 : i32 to vector<1x256xi32>
    %184 = arith.maxsi %183, %146 : vector<1x256xi32>
    %185 = vector.broadcast %c15_i32_61 : i32 to vector<1x256xi32>
    %186 = arith.minsi %185, %184 : vector<1x256xi32>
    %187 = vector.broadcast %186 : vector<1x256xi32> to vector<16x256xi32>
    %188 = arith.cmpi eq, %12, %187 : vector<16x256xi32>
    %cst_62 = arith.constant 0.000000e+00 : f32
    %189 = vector.shape_cast %160 : vector<1x256xf32> to vector<1x256xf32>
    %190 = vector.broadcast %189 : vector<1x256xf32> to vector<16x256xf32>
    %191 = vector.broadcast %cst_62 : f32 to vector<16x256xf32>
    %192 = arith.select %188, %190, %191 : vector<16x256xi1>, vector<16x256xf32>
    %193 = arith.addf %182, %192 : vector<16x256xf32>
    %c0_i32_63 = arith.constant 0 : i32
    %c15_i32_64 = arith.constant 15 : i32
    %194 = vector.broadcast %c0_i32_63 : i32 to vector<1x256xi32>
    %195 = arith.maxsi %194, %144 : vector<1x256xi32>
    %196 = vector.broadcast %c15_i32_64 : i32 to vector<1x256xi32>
    %197 = arith.minsi %196, %195 : vector<1x256xi32>
    %198 = vector.broadcast %197 : vector<1x256xi32> to vector<16x256xi32>
    %199 = arith.cmpi eq, %13, %198 : vector<16x256xi32>
    %cst_65 = arith.constant 0.000000e+00 : f32
    %200 = vector.shape_cast %167 : vector<1x256xf32> to vector<1x256xf32>
    %201 = vector.broadcast %200 : vector<1x256xf32> to vector<16x256xf32>
    %202 = vector.broadcast %cst_65 : f32 to vector<16x256xf32>
    %203 = arith.select %199, %201, %202 : vector<16x256xi1>, vector<16x256xf32>
    %c0_i32_66 = arith.constant 0 : i32
    %c15_i32_67 = arith.constant 15 : i32
    %204 = vector.broadcast %c0_i32_66 : i32 to vector<1x256xi32>
    %205 = arith.maxsi %204, %148 : vector<1x256xi32>
    %206 = vector.broadcast %c15_i32_67 : i32 to vector<1x256xi32>
    %207 = arith.minsi %206, %205 : vector<1x256xi32>
    %208 = vector.broadcast %207 : vector<1x256xi32> to vector<16x256xi32>
    %209 = arith.cmpi eq, %13, %208 : vector<16x256xi32>
    %cst_68 = arith.constant 0.000000e+00 : f32
    %210 = vector.shape_cast %172 : vector<1x256xf32> to vector<1x256xf32>
    %211 = vector.broadcast %210 : vector<1x256xf32> to vector<16x256xf32>
    %212 = vector.broadcast %cst_68 : f32 to vector<16x256xf32>
    %213 = arith.select %209, %211, %212 : vector<16x256xi1>, vector<16x256xf32>
    %214 = arith.addf %203, %213 : vector<16x256xf32>
    %215 = vector.broadcast %122 : vector<1x256xf32> to vector<16x256xf32>
    %216 = arith.mulf %193, %215 : vector<16x256xf32>
    %217 = arith.truncf %214 : vector<16x256xf32> to vector<16x256xbf16>
    %cst_69 = arith.constant dense<0.000000e+00> : vector<256x256xf32>
    %218 = tpu.matmul %3, %217, %cst_69 {dimension_numbers = #tpu.dot_dimension_numbers<[1], [0], [0], [1], [0, 0, 1, 1], [], []>} : vector<256x16xbf16>, vector<16x256xbf16>, vector<256x256xf32> -> vector<256x256xf32>
    %219 = vector.shape_cast %218 : vector<256x256xf32> to vector<16x16x256xf32>
    %220 = vector.shape_cast %216 : vector<16x256xf32> to vector<1x16x256xf32>
    %221 = vector.broadcast %220 : vector<1x16x256xf32> to vector<16x16x256xf32>
    %222 = arith.mulf %219, %221 : vector<16x16x256xf32>
    %cst_70 = arith.constant dense<0.000000e+00> : vector<16x256xf32>
    %223 = vector.multi_reduction <add>, %222, %cst_70 [1] : vector<16x16x256xf32> to vector<16x256xf32>
    %224 = arith.truncf %223 : vector<16x256xf32> to vector<16x256xbf16>
    %c16 = arith.constant 16 : index
    %c0_71 = arith.constant 0 : index
    %225 = vector.load %arg8[%c16, %c0_71] : memref<144x256xbf16, #tpu.memory_space<vmem>>, vector<16x256xbf16>
    tpu.vector_store %arg8[%c16, %c0_71], %224 {strides = array<i32>} : memref<144x256xbf16, #tpu.memory_space<vmem>>, vector<16x256xbf16>,
    %226 = vector.extract_strided_slice %1 {offsets = [4, 0], sizes = [1, 256], strides = [1, 1]} : vector<27x256xf32> to vector<1x256xf32>
    %227 = vector.extract_strided_slice %1 {offsets = [5, 0], sizes = [1, 256], strides = [1, 1]} : vector<27x256xf32> to vector<1x256xf32>
    %228 = vector.extract_strided_slice %11 {offsets = [2, 0], sizes = [1, 256], strides = [1, 1]} : vector<9x256xf32> to vector<1x256xf32>
    %cst_72 = arith.constant 0.000000e+00 : f32
    %229 = vector.broadcast %cst_72 : f32 to vector<1x256xf32>
    %230 = arith.addf %4, %229 : vector<1x256xf32>
    %231 = arith.addf %230, %226 : vector<1x256xf32>
    %cst_73 = arith.constant 2.000000e+00 : f32
    %232 = vector.broadcast %cst_73 : f32 to vector<1x256xf32>
    %233 = arith.addf %5, %232 : vector<1x256xf32>
    %234 = arith.addf %233, %227 : vector<1x256xf32>
    %cst_74 = arith.constant -1.000000e+00 : f32
    %235 = vector.broadcast %cst_74 : f32 to vector<1x256xf32>
    %236 = arith.cmpf ogt, %231, %235 : vector<1x256xf32>
    %cst_75 = arith.constant 1.600000e+01 : f32
    %237 = vector.broadcast %cst_75 : f32 to vector<1x256xf32>
    %238 = arith.cmpf olt, %231, %237 : vector<1x256xf32>
    %239 = arith.andi %236, %238 : vector<1x256xi1>
    %cst_76 = arith.constant -1.000000e+00 : f32
    %240 = vector.broadcast %cst_76 : f32 to vector<1x256xf32>
    %241 = arith.cmpf ogt, %234, %240 : vector<1x256xf32>
    %cst_77 = arith.constant 1.600000e+01 : f32
    %242 = vector.broadcast %cst_77 : f32 to vector<1x256xf32>
    %243 = arith.cmpf olt, %234, %242 : vector<1x256xf32>
    %244 = arith.andi %241, %243 : vector<1x256xi1>
    %245 = math.floor %231 : vector<1x256xf32>
    %246 = math.floor %234 : vector<1x256xf32>
    %247 = arith.subf %231, %245 : vector<1x256xf32>
    %248 = arith.subf %234, %246 : vector<1x256xf32>
    %249 = arith.fptosi %245 : vector<1x256xf32> to vector<1x256xi32>
    %250 = arith.fptosi %246 : vector<1x256xf32> to vector<1x256xi32>
    %c1_i32_78 = arith.constant 1 : i32
    %251 = vector.broadcast %c1_i32_78 : i32 to vector<1x256xi32>
    %252 = arith.addi %249, %251 : vector<1x256xi32>
    %c1_i32_79 = arith.constant 1 : i32
    %253 = vector.broadcast %c1_i32_79 : i32 to vector<1x256xi32>
    %254 = arith.addi %250, %253 : vector<1x256xi32>
    %c0_i32_80 = arith.constant 0 : i32
    %255 = vector.broadcast %c0_i32_80 : i32 to vector<1x256xi32>
    %256 = arith.cmpi sge, %249, %255 : vector<1x256xi32>
    %257 = arith.andi %239, %256 : vector<1x256xi1>
    %cst_81 = arith.constant 1.000000e+00 : f32
    %258 = vector.broadcast %cst_81 : f32 to vector<1x256xf32>
    %259 = arith.subf %258, %247 : vector<1x256xf32>
    %cst_82 = arith.constant 0.000000e+00 : f32
    %260 = vector.broadcast %cst_82 : f32 to vector<1x256xf32>
    %261 = arith.select %257, %259, %260 : vector<1x256xi1>, vector<1x256xf32>
    %c15_i32_83 = arith.constant 15 : i32
    %262 = vector.broadcast %c15_i32_83 : i32 to vector<1x256xi32>
    %263 = arith.cmpi sle, %252, %262 : vector<1x256xi32>
    %264 = arith.andi %239, %263 : vector<1x256xi1>
    %cst_84 = arith.constant 0.000000e+00 : f32
    %265 = vector.broadcast %cst_84 : f32 to vector<1x256xf32>
    %266 = arith.select %264, %247, %265 : vector<1x256xi1>, vector<1x256xf32>
    %c0_i32_85 = arith.constant 0 : i32
    %267 = vector.broadcast %c0_i32_85 : i32 to vector<1x256xi32>
    %268 = arith.cmpi sge, %250, %267 : vector<1x256xi32>
    %269 = arith.andi %244, %268 : vector<1x256xi1>
    %cst_86 = arith.constant 1.000000e+00 : f32
    %270 = vector.broadcast %cst_86 : f32 to vector<1x256xf32>
    %271 = arith.subf %270, %248 : vector<1x256xf32>
    %cst_87 = arith.constant 0.000000e+00 : f32
    %272 = vector.broadcast %cst_87 : f32 to vector<1x256xf32>
    %273 = arith.select %269, %271, %272 : vector<1x256xi1>, vector<1x256xf32>
    %c15_i32_88 = arith.constant 15 : i32
    %274 = vector.broadcast %c15_i32_88 : i32 to vector<1x256xi32>
    %275 = arith.cmpi sle, %254, %274 : vector<1x256xi32>
    %276 = arith.andi %244, %275 : vector<1x256xi1>
    %cst_89 = arith.constant 0.000000e+00 : f32
    %277 = vector.broadcast %cst_89 : f32 to vector<1x256xf32>
    %278 = arith.select %276, %248, %277 : vector<1x256xi1>, vector<1x256xf32>
    %c0_i32_90 = arith.constant 0 : i32
    %c15_i32_91 = arith.constant 15 : i32
    %279 = vector.broadcast %c0_i32_90 : i32 to vector<1x256xi32>
    %280 = arith.maxsi %279, %249 : vector<1x256xi32>
    %281 = vector.broadcast %c15_i32_91 : i32 to vector<1x256xi32>
    %282 = arith.minsi %281, %280 : vector<1x256xi32>
    %283 = vector.broadcast %282 : vector<1x256xi32> to vector<16x256xi32>
    %284 = arith.cmpi eq, %12, %283 : vector<16x256xi32>
    %cst_92 = arith.constant 0.000000e+00 : f32
    %285 = vector.shape_cast %261 : vector<1x256xf32> to vector<1x256xf32>
    %286 = vector.broadcast %285 : vector<1x256xf32> to vector<16x256xf32>
    %287 = vector.broadcast %cst_92 : f32 to vector<16x256xf32>
    %288 = arith.select %284, %286, %287 : vector<16x256xi1>, vector<16x256xf32>
    %c0_i32_93 = arith.constant 0 : i32
    %c15_i32_94 = arith.constant 15 : i32
    %289 = vector.broadcast %c0_i32_93 : i32 to vector<1x256xi32>
    %290 = arith.maxsi %289, %252 : vector<1x256xi32>
    %291 = vector.broadcast %c15_i32_94 : i32 to vector<1x256xi32>
    %292 = arith.minsi %291, %290 : vector<1x256xi32>
    %293 = vector.broadcast %292 : vector<1x256xi32> to vector<16x256xi32>
    %294 = arith.cmpi eq, %12, %293 : vector<16x256xi32>
    %cst_95 = arith.constant 0.000000e+00 : f32
    %295 = vector.shape_cast %266 : vector<1x256xf32> to vector<1x256xf32>
    %296 = vector.broadcast %295 : vector<1x256xf32> to vector<16x256xf32>
    %297 = vector.broadcast %cst_95 : f32 to vector<16x256xf32>
    %298 = arith.select %294, %296, %297 : vector<16x256xi1>, vector<16x256xf32>
    %299 = arith.addf %288, %298 : vector<16x256xf32>
    %c0_i32_96 = arith.constant 0 : i32
    %c15_i32_97 = arith.constant 15 : i32
    %300 = vector.broadcast %c0_i32_96 : i32 to vector<1x256xi32>
    %301 = arith.maxsi %300, %250 : vector<1x256xi32>
    %302 = vector.broadcast %c15_i32_97 : i32 to vector<1x256xi32>
    %303 = arith.minsi %302, %301 : vector<1x256xi32>
    %304 = vector.broadcast %303 : vector<1x256xi32> to vector<16x256xi32>
    %305 = arith.cmpi eq, %13, %304 : vector<16x256xi32>
    %cst_98 = arith.constant 0.000000e+00 : f32
    %306 = vector.shape_cast %273 : vector<1x256xf32> to vector<1x256xf32>
    %307 = vector.broadcast %306 : vector<1x256xf32> to vector<16x256xf32>
    %308 = vector.broadcast %cst_98 : f32 to vector<16x256xf32>
    %309 = arith.select %305, %307, %308 : vector<16x256xi1>, vector<16x256xf32>
    %c0_i32_99 = arith.constant 0 : i32
    %c15_i32_100 = arith.constant 15 : i32
    %310 = vector.broadcast %c0_i32_99 : i32 to vector<1x256xi32>
    %311 = arith.maxsi %310, %254 : vector<1x256xi32>
    %312 = vector.broadcast %c15_i32_100 : i32 to vector<1x256xi32>
    %313 = arith.minsi %312, %311 : vector<1x256xi32>
    %314 = vector.broadcast %313 : vector<1x256xi32> to vector<16x256xi32>
    %315 = arith.cmpi eq, %13, %314 : vector<16x256xi32>
    %cst_101 = arith.constant 0.000000e+00 : f32
    %316 = vector.shape_cast %278 : vector<1x256xf32> to vector<1x256xf32>
    %317 = vector.broadcast %316 : vector<1x256xf32> to vector<16x256xf32>
    %318 = vector.broadcast %cst_101 : f32 to vector<16x256xf32>
    %319 = arith.select %315, %317, %318 : vector<16x256xi1>, vector<16x256xf32>
    %320 = arith.addf %309, %319 : vector<16x256xf32>
    %321 = vector.broadcast %228 : vector<1x256xf32> to vector<16x256xf32>
    %322 = arith.mulf %299, %321 : vector<16x256xf32>
    %323 = arith.truncf %320 : vector<16x256xf32> to vector<16x256xbf16>
    %cst_102 = arith.constant dense<0.000000e+00> : vector<256x256xf32>
    %324 = tpu.matmul %3, %323, %cst_102 {dimension_numbers = #tpu.dot_dimension_numbers<[1], [0], [0], [1], [0, 0, 1, 1], [], []>} : vector<256x16xbf16>, vector<16x256xbf16>, vector<256x256xf32> -> vector<256x256xf32>
    %325 = vector.shape_cast %324 : vector<256x256xf32> to vector<16x16x256xf32>
    %326 = vector.shape_cast %322 : vector<16x256xf32> to vector<1x16x256xf32>
    %327 = vector.broadcast %326 : vector<1x16x256xf32> to vector<16x16x256xf32>
    %328 = arith.mulf %325, %327 : vector<16x16x256xf32>
    %cst_103 = arith.constant dense<0.000000e+00> : vector<16x256xf32>
    %329 = vector.multi_reduction <add>, %328, %cst_103 [1] : vector<16x16x256xf32> to vector<16x256xf32>
    %330 = arith.truncf %329 : vector<16x256xf32> to vector<16x256xbf16>
    %c32 = arith.constant 32 : index
    %c0_104 = arith.constant 0 : index
    %331 = vector.load %arg8[%c32, %c0_104] : memref<144x256xbf16, #tpu.memory_space<vmem>>, vector<16x256xbf16>
    tpu.vector_store %arg8[%c32, %c0_104], %330 {strides = array<i32>} : memref<144x256xbf16, #tpu.memory_space<vmem>>, vector<16x256xbf16>,
    %332 = vector.extract_strided_slice %1 {offsets = [6, 0], sizes = [1, 256], strides = [1, 1]} : vector<27x256xf32> to vector<1x256xf32>
    %333 = vector.extract_strided_slice %1 {offsets = [7, 0], sizes = [1, 256], strides = [1, 1]} : vector<27x256xf32> to vector<1x256xf32>
    %334 = vector.extract_strided_slice %11 {offsets = [3, 0], sizes = [1, 256], strides = [1, 1]} : vector<9x256xf32> to vector<1x256xf32>
    %cst_105 = arith.constant 1.000000e+00 : f32
    %335 = vector.broadcast %cst_105 : f32 to vector<1x256xf32>
    %336 = arith.addf %4, %335 : vector<1x256xf32>
    %337 = arith.addf %336, %332 : vector<1x256xf32>
    %cst_106 = arith.constant 0.000000e+00 : f32
    %338 = vector.broadcast %cst_106 : f32 to vector<1x256xf32>
    %339 = arith.addf %5, %338 : vector<1x256xf32>
    %340 = arith.addf %339, %333 : vector<1x256xf32>
    %cst_107 = arith.constant -1.000000e+00 : f32
    %341 = vector.broadcast %cst_107 : f32 to vector<1x256xf32>
    %342 = arith.cmpf ogt, %337, %341 : vector<1x256xf32>
    %cst_108 = arith.constant 1.600000e+01 : f32
    %343 = vector.broadcast %cst_108 : f32 to vector<1x256xf32>
    %344 = arith.cmpf olt, %337, %343 : vector<1x256xf32>
    %345 = arith.andi %342, %344 : vector<1x256xi1>
    %cst_109 = arith.constant -1.000000e+00 : f32
    %346 = vector.broadcast %cst_109 : f32 to vector<1x256xf32>
    %347 = arith.cmpf ogt, %340, %346 : vector<1x256xf32>
    %cst_110 = arith.constant 1.600000e+01 : f32
    %348 = vector.broadcast %cst_110 : f32 to vector<1x256xf32>
    %349 = arith.cmpf olt, %340, %348 : vector<1x256xf32>
    %350 = arith.andi %347, %349 : vector<1x256xi1>
    %351 = math.floor %337 : vector<1x256xf32>
    %352 = math.floor %340 : vector<1x256xf32>
    %353 = arith.subf %337, %351 : vector<1x256xf32>
    %354 = arith.subf %340, %352 : vector<1x256xf32>
    %355 = arith.fptosi %351 : vector<1x256xf32> to vector<1x256xi32>
    %356 = arith.fptosi %352 : vector<1x256xf32> to vector<1x256xi32>
    %c1_i32_111 = arith.constant 1 : i32
    %357 = vector.broadcast %c1_i32_111 : i32 to vector<1x256xi32>
    %358 = arith.addi %355, %357 : vector<1x256xi32>
    %c1_i32_112 = arith.constant 1 : i32
    %359 = vector.broadcast %c1_i32_112 : i32 to vector<1x256xi32>
    %360 = arith.addi %356, %359 : vector<1x256xi32>
    %c0_i32_113 = arith.constant 0 : i32
    %361 = vector.broadcast %c0_i32_113 : i32 to vector<1x256xi32>
    %362 = arith.cmpi sge, %355, %361 : vector<1x256xi32>
    %363 = arith.andi %345, %362 : vector<1x256xi1>
    %cst_114 = arith.constant 1.000000e+00 : f32
    %364 = vector.broadcast %cst_114 : f32 to vector<1x256xf32>
    %365 = arith.subf %364, %353 : vector<1x256xf32>
    %cst_115 = arith.constant 0.000000e+00 : f32
    %366 = vector.broadcast %cst_115 : f32 to vector<1x256xf32>
    %367 = arith.select %363, %365, %366 : vector<1x256xi1>, vector<1x256xf32>
    %c15_i32_116 = arith.constant 15 : i32
    %368 = vector.broadcast %c15_i32_116 : i32 to vector<1x256xi32>
    %369 = arith.cmpi sle, %358, %368 : vector<1x256xi32>
    %370 = arith.andi %345, %369 : vector<1x256xi1>
    %cst_117 = arith.constant 0.000000e+00 : f32
    %371 = vector.broadcast %cst_117 : f32 to vector<1x256xf32>
    %372 = arith.select %370, %353, %371 : vector<1x256xi1>, vector<1x256xf32>
    %c0_i32_118 = arith.constant 0 : i32
    %373 = vector.broadcast %c0_i32_118 : i32 to vector<1x256xi32>
    %374 = arith.cmpi sge, %356, %373 : vector<1x256xi32>
    %375 = arith.andi %350, %374 : vector<1x256xi1>
    %cst_119 = arith.constant 1.000000e+00 : f32
    %376 = vector.broadcast %cst_119 : f32 to vector<1x256xf32>
    %377 = arith.subf %376, %354 : vector<1x256xf32>
    %cst_120 = arith.constant 0.000000e+00 : f32
    %378 = vector.broadcast %cst_120 : f32 to vector<1x256xf32>
    %379 = arith.select %375, %377, %378 : vector<1x256xi1>, vector<1x256xf32>
    %c15_i32_121 = arith.constant 15 : i32
    %380 = vector.broadcast %c15_i32_121 : i32 to vector<1x256xi32>
    %381 = arith.cmpi sle, %360, %380 : vector<1x256xi32>
    %382 = arith.andi %350, %381 : vector<1x256xi1>
    %cst_122 = arith.constant 0.000000e+00 : f32
    %383 = vector.broadcast %cst_122 : f32 to vector<1x256xf32>
    %384 = arith.select %382, %354, %383 : vector<1x256xi1>, vector<1x256xf32>
    %c0_i32_123 = arith.constant 0 : i32
    %c15_i32_124 = arith.constant 15 : i32
    %385 = vector.broadcast %c0_i32_123 : i32 to vector<1x256xi32>
    %386 = arith.maxsi %385, %355 : vector<1x256xi32>
    %387 = vector.broadcast %c15_i32_124 : i32 to vector<1x256xi32>
    %388 = arith.minsi %387, %386 : vector<1x256xi32>
    %389 = vector.broadcast %388 : vector<1x256xi32> to vector<16x256xi32>
    %390 = arith.cmpi eq, %12, %389 : vector<16x256xi32>
    %cst_125 = arith.constant 0.000000e+00 : f32
    %391 = vector.shape_cast %367 : vector<1x256xf32> to vector<1x256xf32>
    %392 = vector.broadcast %391 : vector<1x256xf32> to vector<16x256xf32>
    %393 = vector.broadcast %cst_125 : f32 to vector<16x256xf32>
    %394 = arith.select %390, %392, %393 : vector<16x256xi1>, vector<16x256xf32>
    %c0_i32_126 = arith.constant 0 : i32
    %c15_i32_127 = arith.constant 15 : i32
    %395 = vector.broadcast %c0_i32_126 : i32 to vector<1x256xi32>
    %396 = arith.maxsi %395, %358 : vector<1x256xi32>
    %397 = vector.broadcast %c15_i32_127 : i32 to vector<1x256xi32>
    %398 = arith.minsi %397, %396 : vector<1x256xi32>
    %399 = vector.broadcast %398 : vector<1x256xi32> to vector<16x256xi32>
    %400 = arith.cmpi eq, %12, %399 : vector<16x256xi32>
    %cst_128 = arith.constant 0.000000e+00 : f32
    %401 = vector.shape_cast %372 : vector<1x256xf32> to vector<1x256xf32>
    %402 = vector.broadcast %401 : vector<1x256xf32> to vector<16x256xf32>
    %403 = vector.broadcast %cst_128 : f32 to vector<16x256xf32>
    %404 = arith.select %400, %402, %403 : vector<16x256xi1>, vector<16x256xf32>
    %405 = arith.addf %394, %404 : vector<16x256xf32>
    %c0_i32_129 = arith.constant 0 : i32
    %c15_i32_130 = arith.constant 15 : i32
    %406 = vector.broadcast %c0_i32_129 : i32 to vector<1x256xi32>
    %407 = arith.maxsi %406, %356 : vector<1x256xi32>
    %408 = vector.broadcast %c15_i32_130 : i32 to vector<1x256xi32>
    %409 = arith.minsi %408, %407 : vector<1x256xi32>
    %410 = vector.broadcast %409 : vector<1x256xi32> to vector<16x256xi32>
    %411 = arith.cmpi eq, %13, %410 : vector<16x256xi32>
    %cst_131 = arith.constant 0.000000e+00 : f32
    %412 = vector.shape_cast %379 : vector<1x256xf32> to vector<1x256xf32>
    %413 = vector.broadcast %412 : vector<1x256xf32> to vector<16x256xf32>
    %414 = vector.broadcast %cst_131 : f32 to vector<16x256xf32>
    %415 = arith.select %411, %413, %414 : vector<16x256xi1>, vector<16x256xf32>
    %c0_i32_132 = arith.constant 0 : i32
    %c15_i32_133 = arith.constant 15 : i32
    %416 = vector.broadcast %c0_i32_132 : i32 to vector<1x256xi32>
    %417 = arith.maxsi %416, %360 : vector<1x256xi32>
    %418 = vector.broadcast %c15_i32_133 : i32 to vector<1x256xi32>
    %419 = arith.minsi %418, %417 : vector<1x256xi32>
    %420 = vector.broadcast %419 : vector<1x256xi32> to vector<16x256xi32>
    %421 = arith.cmpi eq, %13, %420 : vector<16x256xi32>
    %cst_134 = arith.constant 0.000000e+00 : f32
    %422 = vector.shape_cast %384 : vector<1x256xf32> to vector<1x256xf32>
    %423 = vector.broadcast %422 : vector<1x256xf32> to vector<16x256xf32>
    %424 = vector.broadcast %cst_134 : f32 to vector<16x256xf32>
    %425 = arith.select %421, %423, %424 : vector<16x256xi1>, vector<16x256xf32>
    %426 = arith.addf %415, %425 : vector<16x256xf32>
    %427 = vector.broadcast %334 : vector<1x256xf32> to vector<16x256xf32>
    %428 = arith.mulf %405, %427 : vector<16x256xf32>
    %429 = arith.truncf %426 : vector<16x256xf32> to vector<16x256xbf16>
    %cst_135 = arith.constant dense<0.000000e+00> : vector<256x256xf32>
    %430 = tpu.matmul %3, %429, %cst_135 {dimension_numbers = #tpu.dot_dimension_numbers<[1], [0], [0], [1], [0, 0, 1, 1], [], []>} : vector<256x16xbf16>, vector<16x256xbf16>, vector<256x256xf32> -> vector<256x256xf32>
    %431 = vector.shape_cast %430 : vector<256x256xf32> to vector<16x16x256xf32>
    %432 = vector.shape_cast %428 : vector<16x256xf32> to vector<1x16x256xf32>
    %433 = vector.broadcast %432 : vector<1x16x256xf32> to vector<16x16x256xf32>
    %434 = arith.mulf %431, %433 : vector<16x16x256xf32>
    %cst_136 = arith.constant dense<0.000000e+00> : vector<16x256xf32>
    %435 = vector.multi_reduction <add>, %434, %cst_136 [1] : vector<16x16x256xf32> to vector<16x256xf32>
    %436 = arith.truncf %435 : vector<16x256xf32> to vector<16x256xbf16>
    %c48 = arith.constant 48 : index
    %c0_137 = arith.constant 0 : index
    %437 = vector.load %arg8[%c48, %c0_137] : memref<144x256xbf16, #tpu.memory_space<vmem>>, vector<16x256xbf16>
    tpu.vector_store %arg8[%c48, %c0_137], %436 {strides = array<i32>} : memref<144x256xbf16, #tpu.memory_space<vmem>>, vector<16x256xbf16>,
    %438 = vector.extract_strided_slice %1 {offsets = [8, 0], sizes = [1, 256], strides = [1, 1]} : vector<27x256xf32> to vector<1x256xf32>
    %439 = vector.extract_strided_slice %1 {offsets = [9, 0], sizes = [1, 256], strides = [1, 1]} : vector<27x256xf32> to vector<1x256xf32>
    %440 = vector.extract_strided_slice %11 {offsets = [4, 0], sizes = [1, 256], strides = [1, 1]} : vector<9x256xf32> to vector<1x256xf32>
    %cst_138 = arith.constant 1.000000e+00 : f32
    %441 = vector.broadcast %cst_138 : f32 to vector<1x256xf32>
    %442 = arith.addf %4, %441 : vector<1x256xf32>
    %443 = arith.addf %442, %438 : vector<1x256xf32>
    %cst_139 = arith.constant 1.000000e+00 : f32
    %444 = vector.broadcast %cst_139 : f32 to vector<1x256xf32>
    %445 = arith.addf %5, %444 : vector<1x256xf32>
    %446 = arith.addf %445, %439 : vector<1x256xf32>
    %cst_140 = arith.constant -1.000000e+00 : f32
    %447 = vector.broadcast %cst_140 : f32 to vector<1x256xf32>
    %448 = arith.cmpf ogt, %443, %447 : vector<1x256xf32>
    %cst_141 = arith.constant 1.600000e+01 : f32
    %449 = vector.broadcast %cst_141 : f32 to vector<1x256xf32>
    %450 = arith.cmpf olt, %443, %449 : vector<1x256xf32>
    %451 = arith.andi %448, %450 : vector<1x256xi1>
    %cst_142 = arith.constant -1.000000e+00 : f32
    %452 = vector.broadcast %cst_142 : f32 to vector<1x256xf32>
    %453 = arith.cmpf ogt, %446, %452 : vector<1x256xf32>
    %cst_143 = arith.constant 1.600000e+01 : f32
    %454 = vector.broadcast %cst_143 : f32 to vector<1x256xf32>
    %455 = arith.cmpf olt, %446, %454 : vector<1x256xf32>
    %456 = arith.andi %453, %455 : vector<1x256xi1>
    %457 = math.floor %443 : vector<1x256xf32>
    %458 = math.floor %446 : vector<1x256xf32>
    %459 = arith.subf %443, %457 : vector<1x256xf32>
    %460 = arith.subf %446, %458 : vector<1x256xf32>
    %461 = arith.fptosi %457 : vector<1x256xf32> to vector<1x256xi32>
    %462 = arith.fptosi %458 : vector<1x256xf32> to vector<1x256xi32>
    %c1_i32_144 = arith.constant 1 : i32
    %463 = vector.broadcast %c1_i32_144 : i32 to vector<1x256xi32>
    %464 = arith.addi %461, %463 : vector<1x256xi32>
    %c1_i32_145 = arith.constant 1 : i32
    %465 = vector.broadcast %c1_i32_145 : i32 to vector<1x256xi32>
    %466 = arith.addi %462, %465 : vector<1x256xi32>
    %c0_i32_146 = arith.constant 0 : i32
    %467 = vector.broadcast %c0_i32_146 : i32 to vector<1x256xi32>
    %468 = arith.cmpi sge, %461, %467 : vector<1x256xi32>
    %469 = arith.andi %451, %468 : vector<1x256xi1>
    %cst_147 = arith.constant 1.000000e+00 : f32
    %470 = vector.broadcast %cst_147 : f32 to vector<1x256xf32>
    %471 = arith.subf %470, %459 : vector<1x256xf32>
    %cst_148 = arith.constant 0.000000e+00 : f32
    %472 = vector.broadcast %cst_148 : f32 to vector<1x256xf32>
    %473 = arith.select %469, %471, %472 : vector<1x256xi1>, vector<1x256xf32>
    %c15_i32_149 = arith.constant 15 : i32
    %474 = vector.broadcast %c15_i32_149 : i32 to vector<1x256xi32>
    %475 = arith.cmpi sle, %464, %474 : vector<1x256xi32>
    %476 = arith.andi %451, %475 : vector<1x256xi1>
    %cst_150 = arith.constant 0.000000e+00 : f32
    %477 = vector.broadcast %cst_150 : f32 to vector<1x256xf32>
    %478 = arith.select %476, %459, %477 : vector<1x256xi1>, vector<1x256xf32>
    %c0_i32_151 = arith.constant 0 : i32
    %479 = vector.broadcast %c0_i32_151 : i32 to vector<1x256xi32>
    %480 = arith.cmpi sge, %462, %479 : vector<1x256xi32>
    %481 = arith.andi %456, %480 : vector<1x256xi1>
    %cst_152 = arith.constant 1.000000e+00 : f32
    %482 = vector.broadcast %cst_152 : f32 to vector<1x256xf32>
    %483 = arith.subf %482, %460 : vector<1x256xf32>
    %cst_153 = arith.constant 0.000000e+00 : f32
    %484 = vector.broadcast %cst_153 : f32 to vector<1x256xf32>
    %485 = arith.select %481, %483, %484 : vector<1x256xi1>, vector<1x256xf32>
    %c15_i32_154 = arith.constant 15 : i32
    %486 = vector.broadcast %c15_i32_154 : i32 to vector<1x256xi32>
    %487 = arith.cmpi sle, %466, %486 : vector<1x256xi32>
    %488 = arith.andi %456, %487 : vector<1x256xi1>
    %cst_155 = arith.constant 0.000000e+00 : f32
    %489 = vector.broadcast %cst_155 : f32 to vector<1x256xf32>
    %490 = arith.select %488, %460, %489 : vector<1x256xi1>, vector<1x256xf32>
    %c0_i32_156 = arith.constant 0 : i32
    %c15_i32_157 = arith.constant 15 : i32
    %491 = vector.broadcast %c0_i32_156 : i32 to vector<1x256xi32>
    %492 = arith.maxsi %491, %461 : vector<1x256xi32>
    %493 = vector.broadcast %c15_i32_157 : i32 to vector<1x256xi32>
    %494 = arith.minsi %493, %492 : vector<1x256xi32>
    %495 = vector.broadcast %494 : vector<1x256xi32> to vector<16x256xi32>
    %496 = arith.cmpi eq, %12, %495 : vector<16x256xi32>
    %cst_158 = arith.constant 0.000000e+00 : f32
    %497 = vector.shape_cast %473 : vector<1x256xf32> to vector<1x256xf32>
    %498 = vector.broadcast %497 : vector<1x256xf32> to vector<16x256xf32>
    %499 = vector.broadcast %cst_158 : f32 to vector<16x256xf32>
    %500 = arith.select %496, %498, %499 : vector<16x256xi1>, vector<16x256xf32>
    %c0_i32_159 = arith.constant 0 : i32
    %c15_i32_160 = arith.constant 15 : i32
    %501 = vector.broadcast %c0_i32_159 : i32 to vector<1x256xi32>
    %502 = arith.maxsi %501, %464 : vector<1x256xi32>
    %503 = vector.broadcast %c15_i32_160 : i32 to vector<1x256xi32>
    %504 = arith.minsi %503, %502 : vector<1x256xi32>
    %505 = vector.broadcast %504 : vector<1x256xi32> to vector<16x256xi32>
    %506 = arith.cmpi eq, %12, %505 : vector<16x256xi32>
    %cst_161 = arith.constant 0.000000e+00 : f32
    %507 = vector.shape_cast %478 : vector<1x256xf32> to vector<1x256xf32>
    %508 = vector.broadcast %507 : vector<1x256xf32> to vector<16x256xf32>
    %509 = vector.broadcast %cst_161 : f32 to vector<16x256xf32>
    %510 = arith.select %506, %508, %509 : vector<16x256xi1>, vector<16x256xf32>
    %511 = arith.addf %500, %510 : vector<16x256xf32>
    %c0_i32_162 = arith.constant 0 : i32
    %c15_i32_163 = arith.constant 15 : i32
    %512 = vector.broadcast %c0_i32_162 : i32 to vector<1x256xi32>
    %513 = arith.maxsi %512, %462 : vector<1x256xi32>
    %514 = vector.broadcast %c15_i32_163 : i32 to vector<1x256xi32>
    %515 = arith.minsi %514, %513 : vector<1x256xi32>
    %516 = vector.broadcast %515 : vector<1x256xi32> to vector<16x256xi32>
    %517 = arith.cmpi eq, %13, %516 : vector<16x256xi32>
    %cst_164 = arith.constant 0.000000e+00 : f32
    %518 = vector.shape_cast %485 : vector<1x256xf32> to vector<1x256xf32>
    %519 = vector.broadcast %518 : vector<1x256xf32> to vector<16x256xf32>
    %520 = vector.broadcast %cst_164 : f32 to vector<16x256xf32>
    %521 = arith.select %517, %519, %520 : vector<16x256xi1>, vector<16x256xf32>
    %c0_i32_165 = arith.constant 0 : i32
    %c15_i32_166 = arith.constant 15 : i32
    %522 = vector.broadcast %c0_i32_165 : i32 to vector<1x256xi32>
    %523 = arith.maxsi %522, %466 : vector<1x256xi32>
    %524 = vector.broadcast %c15_i32_166 : i32 to vector<1x256xi32>
    %525 = arith.minsi %524, %523 : vector<1x256xi32>
    %526 = vector.broadcast %525 : vector<1x256xi32> to vector<16x256xi32>
    %527 = arith.cmpi eq, %13, %526 : vector<16x256xi32>
    %cst_167 = arith.constant 0.000000e+00 : f32
    %528 = vector.shape_cast %490 : vector<1x256xf32> to vector<1x256xf32>
    %529 = vector.broadcast %528 : vector<1x256xf32> to vector<16x256xf32>
    %530 = vector.broadcast %cst_167 : f32 to vector<16x256xf32>
    %531 = arith.select %527, %529, %530 : vector<16x256xi1>, vector<16x256xf32>
    %532 = arith.addf %521, %531 : vector<16x256xf32>
    %533 = vector.broadcast %440 : vector<1x256xf32> to vector<16x256xf32>
    %534 = arith.mulf %511, %533 : vector<16x256xf32>
    %535 = arith.truncf %532 : vector<16x256xf32> to vector<16x256xbf16>
    %cst_168 = arith.constant dense<0.000000e+00> : vector<256x256xf32>
    %536 = tpu.matmul %3, %535, %cst_168 {dimension_numbers = #tpu.dot_dimension_numbers<[1], [0], [0], [1], [0, 0, 1, 1], [], []>} : vector<256x16xbf16>, vector<16x256xbf16>, vector<256x256xf32> -> vector<256x256xf32>
    %537 = vector.shape_cast %536 : vector<256x256xf32> to vector<16x16x256xf32>
    %538 = vector.shape_cast %534 : vector<16x256xf32> to vector<1x16x256xf32>
    %539 = vector.broadcast %538 : vector<1x16x256xf32> to vector<16x16x256xf32>
    %540 = arith.mulf %537, %539 : vector<16x16x256xf32>
    %cst_169 = arith.constant dense<0.000000e+00> : vector<16x256xf32>
    %541 = vector.multi_reduction <add>, %540, %cst_169 [1] : vector<16x16x256xf32> to vector<16x256xf32>
    %542 = arith.truncf %541 : vector<16x256xf32> to vector<16x256xbf16>
    %c64 = arith.constant 64 : index
    %c0_170 = arith.constant 0 : index
    %543 = vector.load %arg8[%c64, %c0_170] : memref<144x256xbf16, #tpu.memory_space<vmem>>, vector<16x256xbf16>
    tpu.vector_store %arg8[%c64, %c0_170], %542 {strides = array<i32>} : memref<144x256xbf16, #tpu.memory_space<vmem>>, vector<16x256xbf16>,
    %544 = vector.extract_strided_slice %1 {offsets = [10, 0], sizes = [1, 256], strides = [1, 1]} : vector<27x256xf32> to vector<1x256xf32>
    %545 = vector.extract_strided_slice %1 {offsets = [11, 0], sizes = [1, 256], strides = [1, 1]} : vector<27x256xf32> to vector<1x256xf32>
    %546 = vector.extract_strided_slice %11 {offsets = [5, 0], sizes = [1, 256], strides = [1, 1]} : vector<9x256xf32> to vector<1x256xf32>
    %cst_171 = arith.constant 1.000000e+00 : f32
    %547 = vector.broadcast %cst_171 : f32 to vector<1x256xf32>
    %548 = arith.addf %4, %547 : vector<1x256xf32>
    %549 = arith.addf %548, %544 : vector<1x256xf32>
    %cst_172 = arith.constant 2.000000e+00 : f32
    %550 = vector.broadcast %cst_172 : f32 to vector<1x256xf32>
    %551 = arith.addf %5, %550 : vector<1x256xf32>
    %552 = arith.addf %551, %545 : vector<1x256xf32>
    %cst_173 = arith.constant -1.000000e+00 : f32
    %553 = vector.broadcast %cst_173 : f32 to vector<1x256xf32>
    %554 = arith.cmpf ogt, %549, %553 : vector<1x256xf32>
    %cst_174 = arith.constant 1.600000e+01 : f32
    %555 = vector.broadcast %cst_174 : f32 to vector<1x256xf32>
    %556 = arith.cmpf olt, %549, %555 : vector<1x256xf32>
    %557 = arith.andi %554, %556 : vector<1x256xi1>
    %cst_175 = arith.constant -1.000000e+00 : f32
    %558 = vector.broadcast %cst_175 : f32 to vector<1x256xf32>
    %559 = arith.cmpf ogt, %552, %558 : vector<1x256xf32>
    %cst_176 = arith.constant 1.600000e+01 : f32
    %560 = vector.broadcast %cst_176 : f32 to vector<1x256xf32>
    %561 = arith.cmpf olt, %552, %560 : vector<1x256xf32>
    %562 = arith.andi %559, %561 : vector<1x256xi1>
    %563 = math.floor %549 : vector<1x256xf32>
    %564 = math.floor %552 : vector<1x256xf32>
    %565 = arith.subf %549, %563 : vector<1x256xf32>
    %566 = arith.subf %552, %564 : vector<1x256xf32>
    %567 = arith.fptosi %563 : vector<1x256xf32> to vector<1x256xi32>
    %568 = arith.fptosi %564 : vector<1x256xf32> to vector<1x256xi32>
    %c1_i32_177 = arith.constant 1 : i32
    %569 = vector.broadcast %c1_i32_177 : i32 to vector<1x256xi32>
    %570 = arith.addi %567, %569 : vector<1x256xi32>
    %c1_i32_178 = arith.constant 1 : i32
    %571 = vector.broadcast %c1_i32_178 : i32 to vector<1x256xi32>
    %572 = arith.addi %568, %571 : vector<1x256xi32>
    %c0_i32_179 = arith.constant 0 : i32
    %573 = vector.broadcast %c0_i32_179 : i32 to vector<1x256xi32>
    %574 = arith.cmpi sge, %567, %573 : vector<1x256xi32>
    %575 = arith.andi %557, %574 : vector<1x256xi1>
    %cst_180 = arith.constant 1.000000e+00 : f32
    %576 = vector.broadcast %cst_180 : f32 to vector<1x256xf32>
    %577 = arith.subf %576, %565 : vector<1x256xf32>
    %cst_181 = arith.constant 0.000000e+00 : f32
    %578 = vector.broadcast %cst_181 : f32 to vector<1x256xf32>
    %579 = arith.select %575, %577, %578 : vector<1x256xi1>, vector<1x256xf32>
    %c15_i32_182 = arith.constant 15 : i32
    %580 = vector.broadcast %c15_i32_182 : i32 to vector<1x256xi32>
    %581 = arith.cmpi sle, %570, %580 : vector<1x256xi32>
    %582 = arith.andi %557, %581 : vector<1x256xi1>
    %cst_183 = arith.constant 0.000000e+00 : f32
    %583 = vector.broadcast %cst_183 : f32 to vector<1x256xf32>
    %584 = arith.select %582, %565, %583 : vector<1x256xi1>, vector<1x256xf32>
    %c0_i32_184 = arith.constant 0 : i32
    %585 = vector.broadcast %c0_i32_184 : i32 to vector<1x256xi32>
    %586 = arith.cmpi sge, %568, %585 : vector<1x256xi32>
    %587 = arith.andi %562, %586 : vector<1x256xi1>
    %cst_185 = arith.constant 1.000000e+00 : f32
    %588 = vector.broadcast %cst_185 : f32 to vector<1x256xf32>
    %589 = arith.subf %588, %566 : vector<1x256xf32>
    %cst_186 = arith.constant 0.000000e+00 : f32
    %590 = vector.broadcast %cst_186 : f32 to vector<1x256xf32>
    %591 = arith.select %587, %589, %590 : vector<1x256xi1>, vector<1x256xf32>
    %c15_i32_187 = arith.constant 15 : i32
    %592 = vector.broadcast %c15_i32_187 : i32 to vector<1x256xi32>
    %593 = arith.cmpi sle, %572, %592 : vector<1x256xi32>
    %594 = arith.andi %562, %593 : vector<1x256xi1>
    %cst_188 = arith.constant 0.000000e+00 : f32
    %595 = vector.broadcast %cst_188 : f32 to vector<1x256xf32>
    %596 = arith.select %594, %566, %595 : vector<1x256xi1>, vector<1x256xf32>
    %c0_i32_189 = arith.constant 0 : i32
    %c15_i32_190 = arith.constant 15 : i32
    %597 = vector.broadcast %c0_i32_189 : i32 to vector<1x256xi32>
    %598 = arith.maxsi %597, %567 : vector<1x256xi32>
    %599 = vector.broadcast %c15_i32_190 : i32 to vector<1x256xi32>
    %600 = arith.minsi %599, %598 : vector<1x256xi32>
    %601 = vector.broadcast %600 : vector<1x256xi32> to vector<16x256xi32>
    %602 = arith.cmpi eq, %12, %601 : vector<16x256xi32>
    %cst_191 = arith.constant 0.000000e+00 : f32
    %603 = vector.shape_cast %579 : vector<1x256xf32> to vector<1x256xf32>
    %604 = vector.broadcast %603 : vector<1x256xf32> to vector<16x256xf32>
    %605 = vector.broadcast %cst_191 : f32 to vector<16x256xf32>
    %606 = arith.select %602, %604, %605 : vector<16x256xi1>, vector<16x256xf32>
    %c0_i32_192 = arith.constant 0 : i32
    %c15_i32_193 = arith.constant 15 : i32
    %607 = vector.broadcast %c0_i32_192 : i32 to vector<1x256xi32>
    %608 = arith.maxsi %607, %570 : vector<1x256xi32>
    %609 = vector.broadcast %c15_i32_193 : i32 to vector<1x256xi32>
    %610 = arith.minsi %609, %608 : vector<1x256xi32>
    %611 = vector.broadcast %610 : vector<1x256xi32> to vector<16x256xi32>
    %612 = arith.cmpi eq, %12, %611 : vector<16x256xi32>
    %cst_194 = arith.constant 0.000000e+00 : f32
    %613 = vector.shape_cast %584 : vector<1x256xf32> to vector<1x256xf32>
    %614 = vector.broadcast %613 : vector<1x256xf32> to vector<16x256xf32>
    %615 = vector.broadcast %cst_194 : f32 to vector<16x256xf32>
    %616 = arith.select %612, %614, %615 : vector<16x256xi1>, vector<16x256xf32>
    %617 = arith.addf %606, %616 : vector<16x256xf32>
    %c0_i32_195 = arith.constant 0 : i32
    %c15_i32_196 = arith.constant 15 : i32
    %618 = vector.broadcast %c0_i32_195 : i32 to vector<1x256xi32>
    %619 = arith.maxsi %618, %568 : vector<1x256xi32>
    %620 = vector.broadcast %c15_i32_196 : i32 to vector<1x256xi32>
    %621 = arith.minsi %620, %619 : vector<1x256xi32>
    %622 = vector.broadcast %621 : vector<1x256xi32> to vector<16x256xi32>
    %623 = arith.cmpi eq, %13, %622 : vector<16x256xi32>
    %cst_197 = arith.constant 0.000000e+00 : f32
    %624 = vector.shape_cast %591 : vector<1x256xf32> to vector<1x256xf32>
    %625 = vector.broadcast %624 : vector<1x256xf32> to vector<16x256xf32>
    %626 = vector.broadcast %cst_197 : f32 to vector<16x256xf32>
    %627 = arith.select %623, %625, %626 : vector<16x256xi1>, vector<16x256xf32>
    %c0_i32_198 = arith.constant 0 : i32
    %c15_i32_199 = arith.constant 15 : i32
    %628 = vector.broadcast %c0_i32_198 : i32 to vector<1x256xi32>
    %629 = arith.maxsi %628, %572 : vector<1x256xi32>
    %630 = vector.broadcast %c15_i32_199 : i32 to vector<1x256xi32>
    %631 = arith.minsi %630, %629 : vector<1x256xi32>
    %632 = vector.broadcast %631 : vector<1x256xi32> to vector<16x256xi32>
    %633 = arith.cmpi eq, %13, %632 : vector<16x256xi32>
    %cst_200 = arith.constant 0.000000e+00 : f32
    %634 = vector.shape_cast %596 : vector<1x256xf32> to vector<1x256xf32>
    %635 = vector.broadcast %634 : vector<1x256xf32> to vector<16x256xf32>
    %636 = vector.broadcast %cst_200 : f32 to vector<16x256xf32>
    %637 = arith.select %633, %635, %636 : vector<16x256xi1>, vector<16x256xf32>
    %638 = arith.addf %627, %637 : vector<16x256xf32>
    %639 = vector.broadcast %546 : vector<1x256xf32> to vector<16x256xf32>
    %640 = arith.mulf %617, %639 : vector<16x256xf32>
    %641 = arith.truncf %638 : vector<16x256xf32> to vector<16x256xbf16>
    %cst_201 = arith.constant dense<0.000000e+00> : vector<256x256xf32>
    %642 = tpu.matmul %3, %641, %cst_201 {dimension_numbers = #tpu.dot_dimension_numbers<[1], [0], [0], [1], [0, 0, 1, 1], [], []>} : vector<256x16xbf16>, vector<16x256xbf16>, vector<256x256xf32> -> vector<256x256xf32>
    %643 = vector.shape_cast %642 : vector<256x256xf32> to vector<16x16x256xf32>
    %644 = vector.shape_cast %640 : vector<16x256xf32> to vector<1x16x256xf32>
    %645 = vector.broadcast %644 : vector<1x16x256xf32> to vector<16x16x256xf32>
    %646 = arith.mulf %643, %645 : vector<16x16x256xf32>
    %cst_202 = arith.constant dense<0.000000e+00> : vector<16x256xf32>
    %647 = vector.multi_reduction <add>, %646, %cst_202 [1] : vector<16x16x256xf32> to vector<16x256xf32>
    %648 = arith.truncf %647 : vector<16x256xf32> to vector<16x256xbf16>
    %c80 = arith.constant 80 : index
    %c0_203 = arith.constant 0 : index
    %649 = vector.load %arg8[%c80, %c0_203] : memref<144x256xbf16, #tpu.memory_space<vmem>>, vector<16x256xbf16>
    tpu.vector_store %arg8[%c80, %c0_203], %648 {strides = array<i32>} : memref<144x256xbf16, #tpu.memory_space<vmem>>, vector<16x256xbf16>,
    %650 = vector.extract_strided_slice %1 {offsets = [12, 0], sizes = [1, 256], strides = [1, 1]} : vector<27x256xf32> to vector<1x256xf32>
    %651 = vector.extract_strided_slice %1 {offsets = [13, 0], sizes = [1, 256], strides = [1, 1]} : vector<27x256xf32> to vector<1x256xf32>
    %652 = vector.extract_strided_slice %11 {offsets = [6, 0], sizes = [1, 256], strides = [1, 1]} : vector<9x256xf32> to vector<1x256xf32>
    %cst_204 = arith.constant 2.000000e+00 : f32
    %653 = vector.broadcast %cst_204 : f32 to vector<1x256xf32>
    %654 = arith.addf %4, %653 : vector<1x256xf32>
    %655 = arith.addf %654, %650 : vector<1x256xf32>
    %cst_205 = arith.constant 0.000000e+00 : f32
    %656 = vector.broadcast %cst_205 : f32 to vector<1x256xf32>
    %657 = arith.addf %5, %656 : vector<1x256xf32>
    %658 = arith.addf %657, %651 : vector<1x256xf32>
    %cst_206 = arith.constant -1.000000e+00 : f32
    %659 = vector.broadcast %cst_206 : f32 to vector<1x256xf32>
    %660 = arith.cmpf ogt, %655, %659 : vector<1x256xf32>
    %cst_207 = arith.constant 1.600000e+01 : f32
    %661 = vector.broadcast %cst_207 : f32 to vector<1x256xf32>
    %662 = arith.cmpf olt, %655, %661 : vector<1x256xf32>
    %663 = arith.andi %660, %662 : vector<1x256xi1>
    %cst_208 = arith.constant -1.000000e+00 : f32
    %664 = vector.broadcast %cst_208 : f32 to vector<1x256xf32>
    %665 = arith.cmpf ogt, %658, %664 : vector<1x256xf32>
    %cst_209 = arith.constant 1.600000e+01 : f32
    %666 = vector.broadcast %cst_209 : f32 to vector<1x256xf32>
    %667 = arith.cmpf olt, %658, %666 : vector<1x256xf32>
    %668 = arith.andi %665, %667 : vector<1x256xi1>
    %669 = math.floor %655 : vector<1x256xf32>
    %670 = math.floor %658 : vector<1x256xf32>
    %671 = arith.subf %655, %669 : vector<1x256xf32>
    %672 = arith.subf %658, %670 : vector<1x256xf32>
    %673 = arith.fptosi %669 : vector<1x256xf32> to vector<1x256xi32>
    %674 = arith.fptosi %670 : vector<1x256xf32> to vector<1x256xi32>
    %c1_i32_210 = arith.constant 1 : i32
    %675 = vector.broadcast %c1_i32_210 : i32 to vector<1x256xi32>
    %676 = arith.addi %673, %675 : vector<1x256xi32>
    %c1_i32_211 = arith.constant 1 : i32
    %677 = vector.broadcast %c1_i32_211 : i32 to vector<1x256xi32>
    %678 = arith.addi %674, %677 : vector<1x256xi32>
    %c0_i32_212 = arith.constant 0 : i32
    %679 = vector.broadcast %c0_i32_212 : i32 to vector<1x256xi32>
    %680 = arith.cmpi sge, %673, %679 : vector<1x256xi32>
    %681 = arith.andi %663, %680 : vector<1x256xi1>
    %cst_213 = arith.constant 1.000000e+00 : f32
    %682 = vector.broadcast %cst_213 : f32 to vector<1x256xf32>
    %683 = arith.subf %682, %671 : vector<1x256xf32>
    %cst_214 = arith.constant 0.000000e+00 : f32
    %684 = vector.broadcast %cst_214 : f32 to vector<1x256xf32>
    %685 = arith.select %681, %683, %684 : vector<1x256xi1>, vector<1x256xf32>
    %c15_i32_215 = arith.constant 15 : i32
    %686 = vector.broadcast %c15_i32_215 : i32 to vector<1x256xi32>
    %687 = arith.cmpi sle, %676, %686 : vector<1x256xi32>
    %688 = arith.andi %663, %687 : vector<1x256xi1>
    %cst_216 = arith.constant 0.000000e+00 : f32
    %689 = vector.broadcast %cst_216 : f32 to vector<1x256xf32>
    %690 = arith.select %688, %671, %689 : vector<1x256xi1>, vector<1x256xf32>
    %c0_i32_217 = arith.constant 0 : i32
    %691 = vector.broadcast %c0_i32_217 : i32 to vector<1x256xi32>
    %692 = arith.cmpi sge, %674, %691 : vector<1x256xi32>
    %693 = arith.andi %668, %692 : vector<1x256xi1>
    %cst_218 = arith.constant 1.000000e+00 : f32
    %694 = vector.broadcast %cst_218 : f32 to vector<1x256xf32>
    %695 = arith.subf %694, %672 : vector<1x256xf32>
    %cst_219 = arith.constant 0.000000e+00 : f32
    %696 = vector.broadcast %cst_219 : f32 to vector<1x256xf32>
    %697 = arith.select %693, %695, %696 : vector<1x256xi1>, vector<1x256xf32>
    %c15_i32_220 = arith.constant 15 : i32
    %698 = vector.broadcast %c15_i32_220 : i32 to vector<1x256xi32>
    %699 = arith.cmpi sle, %678, %698 : vector<1x256xi32>
    %700 = arith.andi %668, %699 : vector<1x256xi1>
    %cst_221 = arith.constant 0.000000e+00 : f32
    %701 = vector.broadcast %cst_221 : f32 to vector<1x256xf32>
    %702 = arith.select %700, %672, %701 : vector<1x256xi1>, vector<1x256xf32>
    %c0_i32_222 = arith.constant 0 : i32
    %c15_i32_223 = arith.constant 15 : i32
    %703 = vector.broadcast %c0_i32_222 : i32 to vector<1x256xi32>
    %704 = arith.maxsi %703, %673 : vector<1x256xi32>
    %705 = vector.broadcast %c15_i32_223 : i32 to vector<1x256xi32>
    %706 = arith.minsi %705, %704 : vector<1x256xi32>
    %707 = vector.broadcast %706 : vector<1x256xi32> to vector<16x256xi32>
    %708 = arith.cmpi eq, %12, %707 : vector<16x256xi32>
    %cst_224 = arith.constant 0.000000e+00 : f32
    %709 = vector.shape_cast %685 : vector<1x256xf32> to vector<1x256xf32>
    %710 = vector.broadcast %709 : vector<1x256xf32> to vector<16x256xf32>
    %711 = vector.broadcast %cst_224 : f32 to vector<16x256xf32>
    %712 = arith.select %708, %710, %711 : vector<16x256xi1>, vector<16x256xf32>
    %c0_i32_225 = arith.constant 0 : i32
    %c15_i32_226 = arith.constant 15 : i32
    %713 = vector.broadcast %c0_i32_225 : i32 to vector<1x256xi32>
    %714 = arith.maxsi %713, %676 : vector<1x256xi32>
    %715 = vector.broadcast %c15_i32_226 : i32 to vector<1x256xi32>
    %716 = arith.minsi %715, %714 : vector<1x256xi32>
    %717 = vector.broadcast %716 : vector<1x256xi32> to vector<16x256xi32>
    %718 = arith.cmpi eq, %12, %717 : vector<16x256xi32>
    %cst_227 = arith.constant 0.000000e+00 : f32
    %719 = vector.shape_cast %690 : vector<1x256xf32> to vector<1x256xf32>
    %720 = vector.broadcast %719 : vector<1x256xf32> to vector<16x256xf32>
    %721 = vector.broadcast %cst_227 : f32 to vector<16x256xf32>
    %722 = arith.select %718, %720, %721 : vector<16x256xi1>, vector<16x256xf32>
    %723 = arith.addf %712, %722 : vector<16x256xf32>
    %c0_i32_228 = arith.constant 0 : i32
    %c15_i32_229 = arith.constant 15 : i32
    %724 = vector.broadcast %c0_i32_228 : i32 to vector<1x256xi32>
    %725 = arith.maxsi %724, %674 : vector<1x256xi32>
    %726 = vector.broadcast %c15_i32_229 : i32 to vector<1x256xi32>
    %727 = arith.minsi %726, %725 : vector<1x256xi32>
    %728 = vector.broadcast %727 : vector<1x256xi32> to vector<16x256xi32>
    %729 = arith.cmpi eq, %13, %728 : vector<16x256xi32>
    %cst_230 = arith.constant 0.000000e+00 : f32
    %730 = vector.shape_cast %697 : vector<1x256xf32> to vector<1x256xf32>
    %731 = vector.broadcast %730 : vector<1x256xf32> to vector<16x256xf32>
    %732 = vector.broadcast %cst_230 : f32 to vector<16x256xf32>
    %733 = arith.select %729, %731, %732 : vector<16x256xi1>, vector<16x256xf32>
    %c0_i32_231 = arith.constant 0 : i32
    %c15_i32_232 = arith.constant 15 : i32
    %734 = vector.broadcast %c0_i32_231 : i32 to vector<1x256xi32>
    %735 = arith.maxsi %734, %678 : vector<1x256xi32>
    %736 = vector.broadcast %c15_i32_232 : i32 to vector<1x256xi32>
    %737 = arith.minsi %736, %735 : vector<1x256xi32>
    %738 = vector.broadcast %737 : vector<1x256xi32> to vector<16x256xi32>
    %739 = arith.cmpi eq, %13, %738 : vector<16x256xi32>
    %cst_233 = arith.constant 0.000000e+00 : f32
    %740 = vector.shape_cast %702 : vector<1x256xf32> to vector<1x256xf32>
    %741 = vector.broadcast %740 : vector<1x256xf32> to vector<16x256xf32>
    %742 = vector.broadcast %cst_233 : f32 to vector<16x256xf32>
    %743 = arith.select %739, %741, %742 : vector<16x256xi1>, vector<16x256xf32>
    %744 = arith.addf %733, %743 : vector<16x256xf32>
    %745 = vector.broadcast %652 : vector<1x256xf32> to vector<16x256xf32>
    %746 = arith.mulf %723, %745 : vector<16x256xf32>
    %747 = arith.truncf %744 : vector<16x256xf32> to vector<16x256xbf16>
    %cst_234 = arith.constant dense<0.000000e+00> : vector<256x256xf32>
    %748 = tpu.matmul %3, %747, %cst_234 {dimension_numbers = #tpu.dot_dimension_numbers<[1], [0], [0], [1], [0, 0, 1, 1], [], []>} : vector<256x16xbf16>, vector<16x256xbf16>, vector<256x256xf32> -> vector<256x256xf32>
    %749 = vector.shape_cast %748 : vector<256x256xf32> to vector<16x16x256xf32>
    %750 = vector.shape_cast %746 : vector<16x256xf32> to vector<1x16x256xf32>
    %751 = vector.broadcast %750 : vector<1x16x256xf32> to vector<16x16x256xf32>
    %752 = arith.mulf %749, %751 : vector<16x16x256xf32>
    %cst_235 = arith.constant dense<0.000000e+00> : vector<16x256xf32>
    %753 = vector.multi_reduction <add>, %752, %cst_235 [1] : vector<16x16x256xf32> to vector<16x256xf32>
    %754 = arith.truncf %753 : vector<16x256xf32> to vector<16x256xbf16>
    %c96 = arith.constant 96 : index
    %c0_236 = arith.constant 0 : index
    %755 = vector.load %arg8[%c96, %c0_236] : memref<144x256xbf16, #tpu.memory_space<vmem>>, vector<16x256xbf16>
    tpu.vector_store %arg8[%c96, %c0_236], %754 {strides = array<i32>} : memref<144x256xbf16, #tpu.memory_space<vmem>>, vector<16x256xbf16>,
    %756 = vector.extract_strided_slice %1 {offsets = [14, 0], sizes = [1, 256], strides = [1, 1]} : vector<27x256xf32> to vector<1x256xf32>
    %757 = vector.extract_strided_slice %1 {offsets = [15, 0], sizes = [1, 256], strides = [1, 1]} : vector<27x256xf32> to vector<1x256xf32>
    %758 = vector.extract_strided_slice %11 {offsets = [7, 0], sizes = [1, 256], strides = [1, 1]} : vector<9x256xf32> to vector<1x256xf32>
    %cst_237 = arith.constant 2.000000e+00 : f32
    %759 = vector.broadcast %cst_237 : f32 to vector<1x256xf32>
    %760 = arith.addf %4, %759 : vector<1x256xf32>
    %761 = arith.addf %760, %756 : vector<1x256xf32>
    %cst_238 = arith.constant 1.000000e+00 : f32
    %762 = vector.broadcast %cst_238 : f32 to vector<1x256xf32>
    %763 = arith.addf %5, %762 : vector<1x256xf32>
    %764 = arith.addf %763, %757 : vector<1x256xf32>
    %cst_239 = arith.constant -1.000000e+00 : f32
    %765 = vector.broadcast %cst_239 : f32 to vector<1x256xf32>
    %766 = arith.cmpf ogt, %761, %765 : vector<1x256xf32>
    %cst_240 = arith.constant 1.600000e+01 : f32
    %767 = vector.broadcast %cst_240 : f32 to vector<1x256xf32>
    %768 = arith.cmpf olt, %761, %767 : vector<1x256xf32>
    %769 = arith.andi %766, %768 : vector<1x256xi1>
    %cst_241 = arith.constant -1.000000e+00 : f32
    %770 = vector.broadcast %cst_241 : f32 to vector<1x256xf32>
    %771 = arith.cmpf ogt, %764, %770 : vector<1x256xf32>
    %cst_242 = arith.constant 1.600000e+01 : f32
    %772 = vector.broadcast %cst_242 : f32 to vector<1x256xf32>
    %773 = arith.cmpf olt, %764, %772 : vector<1x256xf32>
    %774 = arith.andi %771, %773 : vector<1x256xi1>
    %775 = math.floor %761 : vector<1x256xf32>
    %776 = math.floor %764 : vector<1x256xf32>
    %777 = arith.subf %761, %775 : vector<1x256xf32>
    %778 = arith.subf %764, %776 : vector<1x256xf32>
    %779 = arith.fptosi %775 : vector<1x256xf32> to vector<1x256xi32>
    %780 = arith.fptosi %776 : vector<1x256xf32> to vector<1x256xi32>
    %c1_i32_243 = arith.constant 1 : i32
    %781 = vector.broadcast %c1_i32_243 : i32 to vector<1x256xi32>
    %782 = arith.addi %779, %781 : vector<1x256xi32>
    %c1_i32_244 = arith.constant 1 : i32
    %783 = vector.broadcast %c1_i32_244 : i32 to vector<1x256xi32>
    %784 = arith.addi %780, %783 : vector<1x256xi32>
    %c0_i32_245 = arith.constant 0 : i32
    %785 = vector.broadcast %c0_i32_245 : i32 to vector<1x256xi32>
    %786 = arith.cmpi sge, %779, %785 : vector<1x256xi32>
    %787 = arith.andi %769, %786 : vector<1x256xi1>
    %cst_246 = arith.constant 1.000000e+00 : f32
    %788 = vector.broadcast %cst_246 : f32 to vector<1x256xf32>
    %789 = arith.subf %788, %777 : vector<1x256xf32>
    %cst_247 = arith.constant 0.000000e+00 : f32
    %790 = vector.broadcast %cst_247 : f32 to vector<1x256xf32>
    %791 = arith.select %787, %789, %790 : vector<1x256xi1>, vector<1x256xf32>
    %c15_i32_248 = arith.constant 15 : i32
    %792 = vector.broadcast %c15_i32_248 : i32 to vector<1x256xi32>
    %793 = arith.cmpi sle, %782, %792 : vector<1x256xi32>
    %794 = arith.andi %769, %793 : vector<1x256xi1>
    %cst_249 = arith.constant 0.000000e+00 : f32
    %795 = vector.broadcast %cst_249 : f32 to vector<1x256xf32>
    %796 = arith.select %794, %777, %795 : vector<1x256xi1>, vector<1x256xf32>
    %c0_i32_250 = arith.constant 0 : i32
    %797 = vector.broadcast %c0_i32_250 : i32 to vector<1x256xi32>
    %798 = arith.cmpi sge, %780, %797 : vector<1x256xi32>
    %799 = arith.andi %774, %798 : vector<1x256xi1>
    %cst_251 = arith.constant 1.000000e+00 : f32
    %800 = vector.broadcast %cst_251 : f32 to vector<1x256xf32>
    %801 = arith.subf %800, %778 : vector<1x256xf32>
    %cst_252 = arith.constant 0.000000e+00 : f32
    %802 = vector.broadcast %cst_252 : f32 to vector<1x256xf32>
    %803 = arith.select %799, %801, %802 : vector<1x256xi1>, vector<1x256xf32>
    %c15_i32_253 = arith.constant 15 : i32
    %804 = vector.broadcast %c15_i32_253 : i32 to vector<1x256xi32>
    %805 = arith.cmpi sle, %784, %804 : vector<1x256xi32>
    %806 = arith.andi %774, %805 : vector<1x256xi1>
    %cst_254 = arith.constant 0.000000e+00 : f32
    %807 = vector.broadcast %cst_254 : f32 to vector<1x256xf32>
    %808 = arith.select %806, %778, %807 : vector<1x256xi1>, vector<1x256xf32>
    %c0_i32_255 = arith.constant 0 : i32
    %c15_i32_256 = arith.constant 15 : i32
    %809 = vector.broadcast %c0_i32_255 : i32 to vector<1x256xi32>
    %810 = arith.maxsi %809, %779 : vector<1x256xi32>
    %811 = vector.broadcast %c15_i32_256 : i32 to vector<1x256xi32>
    %812 = arith.minsi %811, %810 : vector<1x256xi32>
    %813 = vector.broadcast %812 : vector<1x256xi32> to vector<16x256xi32>
    %814 = arith.cmpi eq, %12, %813 : vector<16x256xi32>
    %cst_257 = arith.constant 0.000000e+00 : f32
    %815 = vector.shape_cast %791 : vector<1x256xf32> to vector<1x256xf32>
    %816 = vector.broadcast %815 : vector<1x256xf32> to vector<16x256xf32>
    %817 = vector.broadcast %cst_257 : f32 to vector<16x256xf32>
    %818 = arith.select %814, %816, %817 : vector<16x256xi1>, vector<16x256xf32>
    %c0_i32_258 = arith.constant 0 : i32
    %c15_i32_259 = arith.constant 15 : i32
    %819 = vector.broadcast %c0_i32_258 : i32 to vector<1x256xi32>
    %820 = arith.maxsi %819, %782 : vector<1x256xi32>
    %821 = vector.broadcast %c15_i32_259 : i32 to vector<1x256xi32>
    %822 = arith.minsi %821, %820 : vector<1x256xi32>
    %823 = vector.broadcast %822 : vector<1x256xi32> to vector<16x256xi32>
    %824 = arith.cmpi eq, %12, %823 : vector<16x256xi32>
    %cst_260 = arith.constant 0.000000e+00 : f32
    %825 = vector.shape_cast %796 : vector<1x256xf32> to vector<1x256xf32>
    %826 = vector.broadcast %825 : vector<1x256xf32> to vector<16x256xf32>
    %827 = vector.broadcast %cst_260 : f32 to vector<16x256xf32>
    %828 = arith.select %824, %826, %827 : vector<16x256xi1>, vector<16x256xf32>
    %829 = arith.addf %818, %828 : vector<16x256xf32>
    %c0_i32_261 = arith.constant 0 : i32
    %c15_i32_262 = arith.constant 15 : i32
    %830 = vector.broadcast %c0_i32_261 : i32 to vector<1x256xi32>
    %831 = arith.maxsi %830, %780 : vector<1x256xi32>
    %832 = vector.broadcast %c15_i32_262 : i32 to vector<1x256xi32>
    %833 = arith.minsi %832, %831 : vector<1x256xi32>
    %834 = vector.broadcast %833 : vector<1x256xi32> to vector<16x256xi32>
    %835 = arith.cmpi eq, %13, %834 : vector<16x256xi32>
    %cst_263 = arith.constant 0.000000e+00 : f32
    %836 = vector.shape_cast %803 : vector<1x256xf32> to vector<1x256xf32>
    %837 = vector.broadcast %836 : vector<1x256xf32> to vector<16x256xf32>
    %838 = vector.broadcast %cst_263 : f32 to vector<16x256xf32>
    %839 = arith.select %835, %837, %838 : vector<16x256xi1>, vector<16x256xf32>
    %c0_i32_264 = arith.constant 0 : i32
    %c15_i32_265 = arith.constant 15 : i32
    %840 = vector.broadcast %c0_i32_264 : i32 to vector<1x256xi32>
    %841 = arith.maxsi %840, %784 : vector<1x256xi32>
    %842 = vector.broadcast %c15_i32_265 : i32 to vector<1x256xi32>
    %843 = arith.minsi %842, %841 : vector<1x256xi32>
    %844 = vector.broadcast %843 : vector<1x256xi32> to vector<16x256xi32>
    %845 = arith.cmpi eq, %13, %844 : vector<16x256xi32>
    %cst_266 = arith.constant 0.000000e+00 : f32
    %846 = vector.shape_cast %808 : vector<1x256xf32> to vector<1x256xf32>
    %847 = vector.broadcast %846 : vector<1x256xf32> to vector<16x256xf32>
    %848 = vector.broadcast %cst_266 : f32 to vector<16x256xf32>
    %849 = arith.select %845, %847, %848 : vector<16x256xi1>, vector<16x256xf32>
    %850 = arith.addf %839, %849 : vector<16x256xf32>
    %851 = vector.broadcast %758 : vector<1x256xf32> to vector<16x256xf32>
    %852 = arith.mulf %829, %851 : vector<16x256xf32>
    %853 = arith.truncf %850 : vector<16x256xf32> to vector<16x256xbf16>
    %cst_267 = arith.constant dense<0.000000e+00> : vector<256x256xf32>
    %854 = tpu.matmul %3, %853, %cst_267 {dimension_numbers = #tpu.dot_dimension_numbers<[1], [0], [0], [1], [0, 0, 1, 1], [], []>} : vector<256x16xbf16>, vector<16x256xbf16>, vector<256x256xf32> -> vector<256x256xf32>
    %855 = vector.shape_cast %854 : vector<256x256xf32> to vector<16x16x256xf32>
    %856 = vector.shape_cast %852 : vector<16x256xf32> to vector<1x16x256xf32>
    %857 = vector.broadcast %856 : vector<1x16x256xf32> to vector<16x16x256xf32>
    %858 = arith.mulf %855, %857 : vector<16x16x256xf32>
    %cst_268 = arith.constant dense<0.000000e+00> : vector<16x256xf32>
    %859 = vector.multi_reduction <add>, %858, %cst_268 [1] : vector<16x16x256xf32> to vector<16x256xf32>
    %860 = arith.truncf %859 : vector<16x256xf32> to vector<16x256xbf16>
    %c112 = arith.constant 112 : index
    %c0_269 = arith.constant 0 : index
    %861 = vector.load %arg8[%c112, %c0_269] : memref<144x256xbf16, #tpu.memory_space<vmem>>, vector<16x256xbf16>
    tpu.vector_store %arg8[%c112, %c0_269], %860 {strides = array<i32>} : memref<144x256xbf16, #tpu.memory_space<vmem>>, vector<16x256xbf16>,
    %862 = vector.extract_strided_slice %1 {offsets = [16, 0], sizes = [1, 256], strides = [1, 1]} : vector<27x256xf32> to vector<1x256xf32>
    %863 = vector.extract_strided_slice %1 {offsets = [17, 0], sizes = [1, 256], strides = [1, 1]} : vector<27x256xf32> to vector<1x256xf32>
    %864 = vector.extract_strided_slice %11 {offsets = [8, 0], sizes = [1, 256], strides = [1, 1]} : vector<9x256xf32> to vector<1x256xf32>
    %cst_270 = arith.constant 2.000000e+00 : f32
    %865 = vector.broadcast %cst_270 : f32 to vector<1x256xf32>
    %866 = arith.addf %4, %865 : vector<1x256xf32>
    %867 = arith.addf %866, %862 : vector<1x256xf32>
    %cst_271 = arith.constant 2.000000e+00 : f32
    %868 = vector.broadcast %cst_271 : f32 to vector<1x256xf32>
    %869 = arith.addf %5, %868 : vector<1x256xf32>
    %870 = arith.addf %869, %863 : vector<1x256xf32>
    %cst_272 = arith.constant -1.000000e+00 : f32
    %871 = vector.broadcast %cst_272 : f32 to vector<1x256xf32>
    %872 = arith.cmpf ogt, %867, %871 : vector<1x256xf32>
    %cst_273 = arith.constant 1.600000e+01 : f32
    %873 = vector.broadcast %cst_273 : f32 to vector<1x256xf32>
    %874 = arith.cmpf olt, %867, %873 : vector<1x256xf32>
    %875 = arith.andi %872, %874 : vector<1x256xi1>
    %cst_274 = arith.constant -1.000000e+00 : f32
    %876 = vector.broadcast %cst_274 : f32 to vector<1x256xf32>
    %877 = arith.cmpf ogt, %870, %876 : vector<1x256xf32>
    %cst_275 = arith.constant 1.600000e+01 : f32
    %878 = vector.broadcast %cst_275 : f32 to vector<1x256xf32>
    %879 = arith.cmpf olt, %870, %878 : vector<1x256xf32>
    %880 = arith.andi %877, %879 : vector<1x256xi1>
    %881 = math.floor %867 : vector<1x256xf32>
    %882 = math.floor %870 : vector<1x256xf32>
    %883 = arith.subf %867, %881 : vector<1x256xf32>
    %884 = arith.subf %870, %882 : vector<1x256xf32>
    %885 = arith.fptosi %881 : vector<1x256xf32> to vector<1x256xi32>
    %886 = arith.fptosi %882 : vector<1x256xf32> to vector<1x256xi32>
    %c1_i32_276 = arith.constant 1 : i32
    %887 = vector.broadcast %c1_i32_276 : i32 to vector<1x256xi32>
    %888 = arith.addi %885, %887 : vector<1x256xi32>
    %c1_i32_277 = arith.constant 1 : i32
    %889 = vector.broadcast %c1_i32_277 : i32 to vector<1x256xi32>
    %890 = arith.addi %886, %889 : vector<1x256xi32>
    %c0_i32_278 = arith.constant 0 : i32
    %891 = vector.broadcast %c0_i32_278 : i32 to vector<1x256xi32>
    %892 = arith.cmpi sge, %885, %891 : vector<1x256xi32>
    %893 = arith.andi %875, %892 : vector<1x256xi1>
    %cst_279 = arith.constant 1.000000e+00 : f32
    %894 = vector.broadcast %cst_279 : f32 to vector<1x256xf32>
    %895 = arith.subf %894, %883 : vector<1x256xf32>
    %cst_280 = arith.constant 0.000000e+00 : f32
    %896 = vector.broadcast %cst_280 : f32 to vector<1x256xf32>
    %897 = arith.select %893, %895, %896 : vector<1x256xi1>, vector<1x256xf32>
    %c15_i32_281 = arith.constant 15 : i32
    %898 = vector.broadcast %c15_i32_281 : i32 to vector<1x256xi32>
    %899 = arith.cmpi sle, %888, %898 : vector<1x256xi32>
    %900 = arith.andi %875, %899 : vector<1x256xi1>
    %cst_282 = arith.constant 0.000000e+00 : f32
    %901 = vector.broadcast %cst_282 : f32 to vector<1x256xf32>
    %902 = arith.select %900, %883, %901 : vector<1x256xi1>, vector<1x256xf32>
    %c0_i32_283 = arith.constant 0 : i32
    %903 = vector.broadcast %c0_i32_283 : i32 to vector<1x256xi32>
    %904 = arith.cmpi sge, %886, %903 : vector<1x256xi32>
    %905 = arith.andi %880, %904 : vector<1x256xi1>
    %cst_284 = arith.constant 1.000000e+00 : f32
    %906 = vector.broadcast %cst_284 : f32 to vector<1x256xf32>
    %907 = arith.subf %906, %884 : vector<1x256xf32>
    %cst_285 = arith.constant 0.000000e+00 : f32
    %908 = vector.broadcast %cst_285 : f32 to vector<1x256xf32>
    %909 = arith.select %905, %907, %908 : vector<1x256xi1>, vector<1x256xf32>
    %c15_i32_286 = arith.constant 15 : i32
    %910 = vector.broadcast %c15_i32_286 : i32 to vector<1x256xi32>
    %911 = arith.cmpi sle, %890, %910 : vector<1x256xi32>
    %912 = arith.andi %880, %911 : vector<1x256xi1>
    %cst_287 = arith.constant 0.000000e+00 : f32
    %913 = vector.broadcast %cst_287 : f32 to vector<1x256xf32>
    %914 = arith.select %912, %884, %913 : vector<1x256xi1>, vector<1x256xf32>
    %c0_i32_288 = arith.constant 0 : i32
    %c15_i32_289 = arith.constant 15 : i32
    %915 = vector.broadcast %c0_i32_288 : i32 to vector<1x256xi32>
    %916 = arith.maxsi %915, %885 : vector<1x256xi32>
    %917 = vector.broadcast %c15_i32_289 : i32 to vector<1x256xi32>
    %918 = arith.minsi %917, %916 : vector<1x256xi32>
    %919 = vector.broadcast %918 : vector<1x256xi32> to vector<16x256xi32>
    %920 = arith.cmpi eq, %12, %919 : vector<16x256xi32>
    %cst_290 = arith.constant 0.000000e+00 : f32
    %921 = vector.shape_cast %897 : vector<1x256xf32> to vector<1x256xf32>
    %922 = vector.broadcast %921 : vector<1x256xf32> to vector<16x256xf32>
    %923 = vector.broadcast %cst_290 : f32 to vector<16x256xf32>
    %924 = arith.select %920, %922, %923 : vector<16x256xi1>, vector<16x256xf32>
    %c0_i32_291 = arith.constant 0 : i32
    %c15_i32_292 = arith.constant 15 : i32
    %925 = vector.broadcast %c0_i32_291 : i32 to vector<1x256xi32>
    %926 = arith.maxsi %925, %888 : vector<1x256xi32>
    %927 = vector.broadcast %c15_i32_292 : i32 to vector<1x256xi32>
    %928 = arith.minsi %927, %926 : vector<1x256xi32>
    %929 = vector.broadcast %928 : vector<1x256xi32> to vector<16x256xi32>
    %930 = arith.cmpi eq, %12, %929 : vector<16x256xi32>
    %cst_293 = arith.constant 0.000000e+00 : f32
    %931 = vector.shape_cast %902 : vector<1x256xf32> to vector<1x256xf32>
    %932 = vector.broadcast %931 : vector<1x256xf32> to vector<16x256xf32>
    %933 = vector.broadcast %cst_293 : f32 to vector<16x256xf32>
    %934 = arith.select %930, %932, %933 : vector<16x256xi1>, vector<16x256xf32>
    %935 = arith.addf %924, %934 : vector<16x256xf32>
    %c0_i32_294 = arith.constant 0 : i32
    %c15_i32_295 = arith.constant 15 : i32
    %936 = vector.broadcast %c0_i32_294 : i32 to vector<1x256xi32>
    %937 = arith.maxsi %936, %886 : vector<1x256xi32>
    %938 = vector.broadcast %c15_i32_295 : i32 to vector<1x256xi32>
    %939 = arith.minsi %938, %937 : vector<1x256xi32>
    %940 = vector.broadcast %939 : vector<1x256xi32> to vector<16x256xi32>
    %941 = arith.cmpi eq, %13, %940 : vector<16x256xi32>
    %cst_296 = arith.constant 0.000000e+00 : f32
    %942 = vector.shape_cast %909 : vector<1x256xf32> to vector<1x256xf32>
    %943 = vector.broadcast %942 : vector<1x256xf32> to vector<16x256xf32>
    %944 = vector.broadcast %cst_296 : f32 to vector<16x256xf32>
    %945 = arith.select %941, %943, %944 : vector<16x256xi1>, vector<16x256xf32>
    %c0_i32_297 = arith.constant 0 : i32
    %c15_i32_298 = arith.constant 15 : i32
    %946 = vector.broadcast %c0_i32_297 : i32 to vector<1x256xi32>
    %947 = arith.maxsi %946, %890 : vector<1x256xi32>
    %948 = vector.broadcast %c15_i32_298 : i32 to vector<1x256xi32>
    %949 = arith.minsi %948, %947 : vector<1x256xi32>
    %950 = vector.broadcast %949 : vector<1x256xi32> to vector<16x256xi32>
    %951 = arith.cmpi eq, %13, %950 : vector<16x256xi32>
    %cst_299 = arith.constant 0.000000e+00 : f32
    %952 = vector.shape_cast %914 : vector<1x256xf32> to vector<1x256xf32>
    %953 = vector.broadcast %952 : vector<1x256xf32> to vector<16x256xf32>
    %954 = vector.broadcast %cst_299 : f32 to vector<16x256xf32>
    %955 = arith.select %951, %953, %954 : vector<16x256xi1>, vector<16x256xf32>
    %956 = arith.addf %945, %955 : vector<16x256xf32>
    %957 = vector.broadcast %864 : vector<1x256xf32> to vector<16x256xf32>
    %958 = arith.mulf %935, %957 : vector<16x256xf32>
    %959 = arith.truncf %956 : vector<16x256xf32> to vector<16x256xbf16>
    %cst_300 = arith.constant dense<0.000000e+00> : vector<256x256xf32>
    %960 = tpu.matmul %3, %959, %cst_300 {dimension_numbers = #tpu.dot_dimension_numbers<[1], [0], [0], [1], [0, 0, 1, 1], [], []>} : vector<256x16xbf16>, vector<16x256xbf16>, vector<256x256xf32> -> vector<256x256xf32>
    %961 = vector.shape_cast %960 : vector<256x256xf32> to vector<16x16x256xf32>
    %962 = vector.shape_cast %958 : vector<16x256xf32> to vector<1x16x256xf32>
    %963 = vector.broadcast %962 : vector<1x16x256xf32> to vector<16x16x256xf32>
    %964 = arith.mulf %961, %963 : vector<16x16x256xf32>
    %cst_301 = arith.constant dense<0.000000e+00> : vector<16x256xf32>
    %965 = vector.multi_reduction <add>, %964, %cst_301 [1] : vector<16x16x256xf32> to vector<16x256xf32>
    %966 = arith.truncf %965 : vector<16x256xf32> to vector<16x256xbf16>
    %c128 = arith.constant 128 : index
    %c0_302 = arith.constant 0 : index
    %967 = vector.load %arg8[%c128, %c0_302] : memref<144x256xbf16, #tpu.memory_space<vmem>>, vector<16x256xbf16>
    tpu.vector_store %arg8[%c128, %c0_302], %966 {strides = array<i32>} : memref<144x256xbf16, #tpu.memory_space<vmem>>, vector<16x256xbf16>,
    %c0_303 = arith.constant 0 : index
    %c0_304 = arith.constant 0 : index
    %968 = vector.load %arg5[%c0_303, %c0_304] : memref<8x144xbf16, #tpu.memory_space<vmem>>, vector<8x144xbf16>
    %c0_305 = arith.constant 0 : index
    %c0_306 = arith.constant 0 : index
    %969 = vector.load %arg8[%c0_305, %c0_306] : memref<144x256xbf16, #tpu.memory_space<vmem>>, vector<144x256xbf16>
    %cst_307 = arith.constant dense<0.000000e+00> : vector<8x256xf32>
    %970 = tpu.matmul %968, %969, %cst_307 {dimension_numbers = #tpu.dot_dimension_numbers<[1], [0], [0], [1], [0, 0, 1, 1], [], []>} : vector<8x144xbf16>, vector<144x256xbf16>, vector<8x256xf32> -> vector<8x256xf32>
    %c0_308 = arith.constant 0 : index
    %c0_309 = arith.constant 0 : index
    %971 = vector.load %arg6[%c0_308, %c0_309] : memref<8x1xf32, #tpu.memory_space<vmem>>, vector<8x1xf32>
    %972 = vector.broadcast %971 : vector<8x1xf32> to vector<8x256xf32>
    %973 = arith.addf %970, %972 : vector<8x256xf32>
    %974 = arith.negf %973 : vector<8x256xf32>
    %975 = math.exp %974 : vector<8x256xf32>
    %cst_310 = arith.constant 1.000000e+00 : f32
    %976 = vector.broadcast %cst_310 : f32 to vector<8x256xf32>
    %977 = arith.addf %976, %975 : vector<8x256xf32>
    %978 = arith.divf %976, %977 : vector<8x256xf32>
    %979 = arith.mulf %973, %978 : vector<8x256xf32>
    %c0_311 = arith.constant 0 : index
    %c0_312 = arith.constant 0 : index
    %c0_313 = arith.constant 0 : index
    %980 = vector.load %arg7[%c0_311, %c0_312, %c0_313] : memref<1x8x256xf32, #tpu.memory_space<vmem>>, vector<1x8x256xf32>
    %981 = vector.shape_cast %980 : vector<1x8x256xf32> to vector<8x256xf32>
    %982 = vector.shape_cast %979 : vector<8x256xf32> to vector<1x8x256xf32>
    tpu.vector_store %arg7[%c0_311, %c0_312, %c0_313], %982 {strides = array<i32>} : memref<1x8x256xf32, #tpu.memory_space<vmem>>, vector<1x8x256xf32>,
    return
  }
  func.func @transform_0(%arg0: i32, %arg1: i32) -> (i32, i32, i32) {
    %c0_i32 = arith.constant 0 : i32
    %c0_i32_0 = arith.constant 0 : i32
    return %arg0, %c0_i32, %arg1 : i32, i32, i32
  }
  func.func @transform_1(%arg0: i32, %arg1: i32) -> (i32, i32, i32) {
    %c0_i32 = arith.constant 0 : i32
    %c0_i32_0 = arith.constant 0 : i32
    %c0_i32_1 = arith.constant 0 : i32
    return %arg0, %c0_i32, %c0_i32_0 : i32, i32, i32
  }
  func.func @transform_2(%arg0: i32, %arg1: i32) -> (i32, i32) {
    %c0_i32 = arith.constant 0 : i32
    %c0_i32_0 = arith.constant 0 : i32
    return %c0_i32, %arg1 : i32, i32
  }
  func.func @transform_3(%arg0: i32, %arg1: i32) -> (i32, i32) {
    %c0_i32 = arith.constant 0 : i32
    %c0_i32_0 = arith.constant 0 : i32
    %c0_i32_1 = arith.constant 0 : i32
    return %c0_i32, %c0_i32_0 : i32, i32
  }
  func.func @transform_4(%arg0: i32, %arg1: i32) -> (i32, i32) {
    %c0_i32 = arith.constant 0 : i32
    %c0_i32_0 = arith.constant 0 : i32
    %c0_i32_1 = arith.constant 0 : i32
    return %c0_i32, %c0_i32_0 : i32, i32
  }
  func.func @transform_5(%arg0: i32, %arg1: i32) -> (i32, i32, i32) {
    %c0_i32 = arith.constant 0 : i32
    %c0_i32_0 = arith.constant 0 : i32
    return %arg0, %c0_i32, %arg1 : i32, i32, i32
  }
}

</mosaic_0001>

<llo_original>
// kernel: tpu_custom_call.1
$region0: #{tpu_custom_call.1}
  #allocation0 [shape = 'u32[]', space=smem, size = 0x4, offset = 0x4, fixed_abs, tag = 'smem constant byte address 0x4 - core index']
  #allocation1 [shape = 'u32[144,128]{1,0:T(1,128)}', space=vmem, size = 0x12000, scoped, tag = 'internal scratch']
  #allocation2 [shape = 'bf16[144,256]{1,0:T(16,128)(2,1)}', space=vmem, size = 0x12000, scoped, tag = 'scratch operand']
  %s0 = inlined_call_operand.vmem [shape: f32[2,27,256], index: 0, kind: input, shape index: {}]
  %s1 = inlined_call_operand.vmem [shape: bf16[2,256,16], index: 1, kind: input, shape index: {}]
  %s2 = inlined_call_operand.vmem [shape: f32[2,256], index: 2, kind: input, shape index: {}]
  %s3 = inlined_call_operand.vmem [shape: bf16[8,144], index: 3, kind: input, shape index: {}]
  %s4 = inlined_call_operand.vmem [shape: f32[8,1], index: 4, kind: input, shape index: {}]
  %s5 = inlined_call_operand.hbm [shape: f32[2,8,256], index: 5, kind: output, shape index: {}]
  %s6 = sld [smem:[#allocation0]]
  $region53: #{tpu_custom_call.1} parent=0
    _
  %s8 = ssub.s32 1, %s6
  %s9 = scalar_select 0, %s8, %s6
  $region1: #{tpu_custom_call.1} parent=0
    #allocation3 [shape = 'u8[16384]{0}', space=vmem, size = 0x4000, scoped, tag = 'output window, operand 0']
    #allocation4 [shape = 's32[2]{0}', space=sflag, size = 0x8, scoped, tag = 'scoped memory for tpu_custom_call.1']
    %10 = vsyncpa [#allocation4], 0
    %s11 = scalar_lea.sflag [#allocation4], 1
    %12 = vsyncpa %s11, 0
    loop: start=0, step=1, limit=4
    $region2: #{tpu_custom_call.1} parent=1 // loop_pre_header
      _
    $region3: #{tpu_custom_call.1} parent=1 // loop_header
      %s14 = sphi 0, %s18
      %p15 = scmp.ge.s32.totalorder %s14, 4
      %s21 = sphi 0, %s33
      %s22 = sphi 0, %s29
      %s23 = sphi 0, %s21
      %s24 = sphi 0, %s22
      %s25 = sphi 0, %s23
      %s26 = sphi 0, %s24
      %s38 = sphi 0, %s40
      %s41 = sphi 0, %s38
      %s42 = sphi 0, %s41
      %s58 = sphi 0, %s42
      %s64 = sphi 0, %s66
      %s67 = sphi 0, %s64
      %s68 = sphi 0, %s67
      %s84 = sphi 0, %s68
      %s90 = sphi 0, %s92
      %s93 = sphi 0, %s90
      %s94 = sphi 0, %s93
      %s110 = sphi 0, %s94
      %s114 = sphi 0, %s114
      %s116 = sphi 0, %s114
      %s117 = sphi 0, %s116
      %s131 = sphi 0, %s117
      %s135 = sphi 0, %s135
      %s137 = sphi 0, %s135
      %s138 = sphi 0, %s137
      %s152 = sphi 0, %s138
      %s160 = sphi 0, %s162
      %s163 = sphi 0, %s160
      %s164 = sphi 0, %s163
      %s180 = sphi 0, %s164
    $region4: #{tpu_custom_call.1} parent=1 // loop_header_branch
      %17 = sbr.rel (%p15) target = $region8
    $region5: #{tpu_custom_call.1} parent=1 // loop_body
      %s19 = ssub.s32 %s14, 1
      %s20 = ssub.s32 %s14, 2
      %s27 = sadd.s32 1, %s22
      %p28 = scmp.ge.s32.totalorder %s27, 1
      %s29 = scalar_select %p28, 0, %s27
      %s30 = sadd.s32 1, %s21
      %s31 = scalar_select %p28, %s30, %s21
      %p32 = scmp.ge.s32.totalorder %s31, 2
      %s33 = scalar_select %p32, 0, %s31
      %s34 = ssub.s32 %s21, %s33
      %s35 = ssub.s32 %s22, %s29
      %s36 = sor.u32 %s34, %s35
      %p37 = scmp.eq.s32.totalorder %s36, 0
      %s39 = sadd.s32 %s38, 1
      %s40 = scalar_select %p37, %s38, %s39
      %p43 = pneg %p37
      %p44 = scmp.eq.s32.totalorder %s14, 1
      %p45 = por %p43, %p44
      %p46 = scmp.ne.s32.totalorder %s38, %s41
      %p47 = scmp.eq.s32.totalorder %s14, 0
      %p48 = por %p46, %p47
      %p49 = scmp.ne.s32.totalorder %s38, %s41
      %p50 = scmp.eq.s32.totalorder %s19, 1
      %p51 = por %p49, %p50
      %p52 = scmp.ne.s32.totalorder %s41, %s42
      %p53 = scmp.eq.s32.totalorder %s19, 0
      %p54 = por %p52, %p53
      %p55 = scmp.ne.s32.totalorder %s41, %s42
      %p56 = scmp.eq.s32.totalorder %s20, 1
      %p57 = por %p55, %p56
      %p59 = scmp.ne.s32.totalorder %s42, %s58
      %p60 = scmp.eq.s32.totalorder %s20, 0
      %p61 = por %p59, %p60
      %s62 = ssub.s32 %s21, %s33
      %p63 = scmp.eq.s32.totalorder %s62, 0
      %s65 = sadd.s32 %s64, 1
      %s66 = scalar_select %p63, %s64, %s65
      %p69 = pneg %p63
      %p70 = scmp.eq.s32.totalorder %s14, 1
      %p71 = por %p69, %p70
      %p72 = scmp.ne.s32.totalorder %s64, %s67
      %p73 = scmp.eq.s32.totalorder %s14, 0
      %p74 = por %p72, %p73
      %p75 = scmp.ne.s32.totalorder %s64, %s67
      %p76 = scmp.eq.s32.totalorder %s19, 1
      %p77 = por %p75, %p76
      %p78 = scmp.ne.s32.totalorder %s67, %s68
      %p79 = scmp.eq.s32.totalorder %s19, 0
      %p80 = por %p78, %p79
      %p81 = scmp.ne.s32.totalorder %s67, %s68
      %p82 = scmp.eq.s32.totalorder %s20, 1
      %p83 = por %p81, %p82
      %p85 = scmp.ne.s32.totalorder %s68, %s84
      %p86 = scmp.eq.s32.totalorder %s20, 0
      %p87 = por %p85, %p86
      %s88 = ssub.s32 %s22, %s29
      %p89 = scmp.eq.s32.totalorder %s88, 0
      %s91 = sadd.s32 %s90, 1
      %s92 = scalar_select %p89, %s90, %s91
      %p95 = pneg %p89
      %p96 = scmp.eq.s32.totalorder %s14, 1
      %p97 = por %p95, %p96
      %p98 = scmp.ne.s32.totalorder %s90, %s93
      %p99 = scmp.eq.s32.totalorder %s14, 0
      %p100 = por %p98, %p99
      %p101 = scmp.ne.s32.totalorder %s90, %s93
      %p102 = scmp.eq.s32.totalorder %s19, 1
      %p103 = por %p101, %p102
      %p104 = scmp.ne.s32.totalorder %s93, %s94
      %p105 = scmp.eq.s32.totalorder %s19, 0
      %p106 = por %p104, %p105
      %p107 = scmp.ne.s32.totalorder %s93, %s94
      %p108 = scmp.eq.s32.totalorder %s20, 1
      %p109 = por %p107, %p108
      %p111 = scmp.ne.s32.totalorder %s94, %s110
      %p112 = scmp.eq.s32.totalorder %s20, 0
      %p113 = por %p111, %p112
      %s115 = sadd.s32 %s114, 1
      %p118 = scmp.eq.s32.totalorder %s14, 1
      %p119 = scmp.ne.s32.totalorder %s114, %s116
      %p120 = scmp.eq.s32.totalorder %s14, 0
      %p121 = por %p119, %p120
      %p122 = scmp.ne.s32.totalorder %s114, %s116
      %p123 = scmp.eq.s32.totalorder %s19, 1
      %p124 = por %p122, %p123
      %p125 = scmp.ne.s32.totalorder %s116, %s117
      %p126 = scmp.eq.s32.totalorder %s19, 0
      %p127 = por %p125, %p126
      %p128 = scmp.ne.s32.totalorder %s116, %s117
      %p129 = scmp.eq.s32.totalorder %s20, 1
      %p130 = por %p128, %p129
      %p132 = scmp.ne.s32.totalorder %s117, %s131
      %p133 = scmp.eq.s32.totalorder %s20, 0
      %p134 = por %p132, %p133
      %s136 = sadd.s32 %s135, 1
      %p139 = scmp.eq.s32.totalorder %s14, 1
      %p140 = scmp.ne.s32.totalorder %s135, %s137
      %p141 = scmp.eq.s32.totalorder %s14, 0
      %p142 = por %p140, %p141
      %p143 = scmp.ne.s32.totalorder %s135, %s137
      %p144 = scmp.eq.s32.totalorder %s19, 1
      %p145 = por %p143, %p144
      %p146 = scmp.ne.s32.totalorder %s137, %s138
      %p147 = scmp.eq.s32.totalorder %s19, 0
      %p148 = por %p146, %p147
      %p149 = scmp.ne.s32.totalorder %s137, %s138
      %p150 = scmp.eq.s32.totalorder %s20, 1
      %p151 = por %p149, %p150
      %p153 = scmp.ne.s32.totalorder %s138, %s152
      %p154 = scmp.eq.s32.totalorder %s20, 0
      %p155 = por %p153, %p154
      %s156 = ssub.s32 %s21, %s33
      %s157 = ssub.s32 %s22, %s29
      %s158 = sor.u32 %s156, %s157
      %p159 = scmp.eq.s32.totalorder %s158, 0
      %s161 = sadd.s32 %s160, 1
      %s162 = scalar_select %p159, %s160, %s161
      %p165 = pneg %p159
      %p166 = scmp.eq.s32.totalorder %s14, 1
      %p167 = por %p165, %p166
      %p168 = scmp.ne.s32.totalorder %s160, %s163
      %p169 = scmp.eq.s32.totalorder %s14, 0
      %p170 = por %p168, %p169
      %p171 = scmp.ne.s32.totalorder %s160, %s163
      %p172 = scmp.eq.s32.totalorder %s19, 1
      %p173 = por %p171, %p172
      %p174 = scmp.ne.s32.totalorder %s163, %s164
      %p175 = scmp.eq.s32.totalorder %s19, 0
      %p176 = por %p174, %p175
      %p177 = scmp.ne.s32.totalorder %s163, %s164
      %p178 = scmp.eq.s32.totalorder %s20, 1
      %p179 = por %p177, %p178
      %p181 = scmp.ne.s32.totalorder %s164, %s180
      %p182 = scmp.eq.s32.totalorder %s20, 0
      %p183 = por %p181, %p182
      %p184 = scmp.le.s32.totalorder 1, %s14
      %p185 = scmp.lt.s32.totalorder %s14, 3
      %p186 = pnand %p184, %p185
      %p187 = pneg %p186
      // Predicated region
      $region9: #{tpu_custom_call.1} parent=5 // pred_check
        _
      $region10: #{tpu_custom_call.1} parent=5 // pred_check_branch
        %189 = sbr.rel (%p186) target = $region12
      $region11: #{tpu_custom_call.1} parent=5 // pred_region
        %s190 = ssub.s32 %s14, 1
        // Predicated region
        $region13: #{tpu_custom_call.1} parent=11 // pred_check
          %p191 = pneg %p106
        $region14: #{tpu_custom_call.1} parent=11 // pred_check_branch
          %193 = sbr.rel (%p191) target = $region16
        $region15: #{tpu_custom_call.1} parent=11 // pred_region
          %s194 = smul.u32 2, %s24
          %p195 = scmp.lt.s32.totalorder %s194, 1
          %s196 = scalar_select %p195, %s194, 1
          %s197 = smul.addr %s196, 2
          %s198 = scalar_lea.vmem %s2, %s197
          %s199 = smul.u32 2, %s24
        $region16: #{tpu_custom_call.1} parent=11 // pred_fallthru
          _
        // Predicated region
        $region17: #{tpu_custom_call.1} parent=11 // pred_check
          %p200 = pneg %p127
        $region18: #{tpu_custom_call.1} parent=11 // pred_check_branch
          %202 = sbr.rel (%p200) target = $region20
        $region19: #{tpu_custom_call.1} parent=11 // pred_region
          _
        $region20: #{tpu_custom_call.1} parent=11 // pred_fallthru
          _
        // Predicated region
        $region21: #{tpu_custom_call.1} parent=11 // pred_check
          %p203 = pneg %p148
        $region22: #{tpu_custom_call.1} parent=11 // pred_check_branch
          %205 = sbr.rel (%p203) target = $region24
        $region23: #{tpu_custom_call.1} parent=11 // pred_region
          _
        $region24: #{tpu_custom_call.1} parent=11 // pred_fallthru
          _
      $region12: #{tpu_custom_call.1} parent=5 // pred_fallthru
        _
      %p206 = scmp.lt.s32.totalorder %s14, 2
      // Predicated region
      $region25: #{tpu_custom_call.1} parent=5 // pred_check
        %p207 = pneg %p206
      $region26: #{tpu_custom_call.1} parent=5 // pred_check_branch
        %209 = sbr.rel (%p207) target = $region28
      $region27: #{tpu_custom_call.1} parent=5 // pred_region
        // Predicated region
        $region29: #{tpu_custom_call.1} parent=27 // pred_check
          %p210 = pneg %p48
        $region30: #{tpu_custom_call.1} parent=27 // pred_check_branch
          %212 = sbr.rel (%p210) target = $region32
        $region31: #{tpu_custom_call.1} parent=27 // pred_region
          %s213 = smul.u32 2, %s22
          %p214 = scmp.lt.s32.totalorder %s21, 1
          %s215 = scalar_select %p214, %s21, 1
          %p216 = scmp.lt.s32.totalorder %s213, 1
          %s217 = scalar_select %p216, %s213, 1
          %s218 = smul.addr %s215, 8
          %s219 = sadd.s32 %s217, %s218
          %s220 = smul.addr %s219, 8
          %s221 = scalar_lea.vmem %s0, %s220
          %s222 = smul.u32 2, %s22
        $region32: #{tpu_custom_call.1} parent=27 // pred_fallthru
          _
        // Predicated region
        $region33: #{tpu_custom_call.1} parent=27 // pred_check
          %p223 = pneg %p74
        $region34: #{tpu_custom_call.1} parent=27 // pred_check_branch
          %225 = sbr.rel (%p223) target = $region36
        $region35: #{tpu_custom_call.1} parent=27 // pred_region
          %p226 = scmp.lt.s32.totalorder %s21, 1
          %s227 = scalar_select %p226, %s21, 1
          %s228 = smul.addr %s227, 32
          %s229 = smul.addr %s228, 4
          %s230 = scalar_lea.vmem %s1, %s229
        $region36: #{tpu_custom_call.1} parent=27 // pred_fallthru
          _
      $region28: #{tpu_custom_call.1} parent=5 // pred_fallthru
        _
      %p231 = scmp.le.s32.totalorder 1, %s14
      %p232 = scmp.lt.s32.totalorder %s14, 3
      %p233 = pnand %p231, %p232
      %p234 = pneg %p233
      // Predicated region
      $region37: #{tpu_custom_call.1} parent=5 // pred_check
        _
      $region38: #{tpu_custom_call.1} parent=5 // pred_check_branch
        %236 = sbr.rel (%p233) target = $region40
      $region39: #{tpu_custom_call.1} parent=5 // pred_region
        %s237 = ssub.s32 %s14, 1
        %s238 = smul.u32 2, %s24
        %p239 = scmp.lt.s32.totalorder %s23, 1
        %s240 = scalar_select %p239, %s23, 1
        %p241 = scmp.lt.s32.totalorder %s238, 1
        %s242 = scalar_select %p241, %s238, 1
        %s243 = smul.addr %s240, 8
        %s244 = sadd.s32 %s242, %s243
        %s245 = smul.addr %s244, 8
        %s246 = scalar_lea.vmem %s0, %s245
        %p247 = pneg %p54
        %p248 = pneg %p51
        %p249 = scmp.lt.s32.totalorder %s23, 1
        %s250 = scalar_select %p249, %s23, 1
        %s251 = smul.addr %s250, 32
        %s252 = smul.addr %s251, 4
        %s253 = scalar_lea.vmem %s1, %s252
        %p254 = pneg %p80
        %p255 = pneg %p77
        %s256 = smul.u32 2, %s24
        %p257 = scmp.lt.s32.totalorder %s256, 1
        %s258 = scalar_select %p257, %s256, 1
        %s259 = smul.addr %s258, 2
        %s260 = scalar_lea.vmem %s2, %s259
        %p261 = pneg %p106
        %p262 = pneg %p103
        %p263 = pneg %p127
        %p264 = pneg %p124
        %p265 = pneg %p148
        %p266 = pneg %p145
        %p267 = pneg %p176
        %p268 = pneg %p173
        %s269 = sand.u32 %s163, 1
        %s270 = scalar_lea.sflag [#allocation4], %s269
        %s271 = sand.u32 %s163, 1
        %s272 = smul.addr %s271, 16
        %s273 = scalar_lea.vmem [#allocation3], %s272
        %s274 = smul.u32 2, %s24
        %p275 = scmp.lt.s32.totalorder %s23, 1
        %s276 = scalar_select %p275, %s23, 1
        %p277 = scmp.lt.s32.totalorder %s274, 1
        %s278 = scalar_select %p277, %s274, 1
        %s279 = smul.addr %s276, 8
        %s280 = sadd.s32 %s278, %s279
        %s281 = smul.addr %s280, 8
        %s282 = scalar_lea.vmem %s0, %s281
        %s283 = smul.u32 2, %s24
        %p284 = scmp.lt.s32.totalorder %s23, 1
        %s285 = scalar_select %p284, %s23, 1
        %s286 = smul.addr %s285, 32
        %s287 = smul.addr %s286, 4
        %s288 = scalar_lea.vmem %s1, %s287
        %s289 = smul.u32 2, %s24
        %p290 = scmp.lt.s32.totalorder %s289, 1
        %s291 = scalar_select %p290, %s289, 1
        %s292 = smul.addr %s291, 2
        %s293 = scalar_lea.vmem %s2, %s292
        %s294 = smul.u32 2, %s24
        %s295 = smul.u32 2, %s24
        %v297 = vld [vmem:[%s282] sm:$0xff]
        %v298 = vld [vmem:[%s282 + $0x8] sm:$0xff]
        %v299 = vld [vmem:[%s282 + $0x10] sm:$0xff]
        %v300 = vld [vmem:[%s282 + $0x18] sm:$0xff]
        %v301 = vld [vmem:[%s282 + $0x20] sm:$0xff]
        %v302 = vld [vmem:[%s282 + $0x28] sm:$0xff]
        %v303 = vld [vmem:[%s282 + $0x30] sm:$0x7]
        %v304 = vld [vmem:[%s282 + $0x38] sm:$0x7]
        %v305 = vld [vmem:[%s288] sm:$0xf]
        %v306 = vld [vmem:[%s288 + $0x4] sm:$0xf]
        %v307 = vld [vmem:[%s288 + $0x8] sm:$0xf]
        %v308 = vld [vmem:[%s288 + $0xc] sm:$0xf]
        %v309 = vld [vmem:[%s288 + $0x10] sm:$0xf]
        %v310 = vld [vmem:[%s288 + $0x14] sm:$0xf]
        %v311 = vld [vmem:[%s288 + $0x18] sm:$0xf]
        %v312 = vld [vmem:[%s288 + $0x1c] sm:$0xf]
        %v313 = vld [vmem:[%s288 + $0x20] sm:$0xf]
        %v314 = vld [vmem:[%s288 + $0x24] sm:$0xf]
        %v315 = vld [vmem:[%s288 + $0x28] sm:$0xf]
        %v316 = vld [vmem:[%s288 + $0x2c] sm:$0xf]
        %v317 = vld [vmem:[%s288 + $0x30] sm:$0xf]
        %v318 = vld [vmem:[%s288 + $0x34] sm:$0xf]
        %v319 = vld [vmem:[%s288 + $0x38] sm:$0xf]
        %v320 = vld [vmem:[%s288 + $0x3c] sm:$0xf]
        %v321 = vld [vmem:[%s288 + $0x40] sm:$0xf]
        %v322 = vld [vmem:[%s288 + $0x44] sm:$0xf]
        %v323 = vld [vmem:[%s288 + $0x48] sm:$0xf]
        %v324 = vld [vmem:[%s288 + $0x4c] sm:$0xf]
        %v325 = vld [vmem:[%s288 + $0x50] sm:$0xf]
        %v326 = vld [vmem:[%s288 + $0x54] sm:$0xf]
        %v327 = vld [vmem:[%s288 + $0x58] sm:$0xf]
        %v328 = vld [vmem:[%s288 + $0x5c] sm:$0xf]
        %v329 = vld [vmem:[%s288 + $0x60] sm:$0xf]
        %v330 = vld [vmem:[%s288 + $0x64] sm:$0xf]
        %v331 = vld [vmem:[%s288 + $0x68] sm:$0xf]
        %v332 = vld [vmem:[%s288 + $0x6c] sm:$0xf]
        %v333 = vld [vmem:[%s288 + $0x70] sm:$0xf]
        %v334 = vld [vmem:[%s288 + $0x74] sm:$0xf]
        %v335 = vld [vmem:[%s288 + $0x78] sm:$0xf]
        %v336 = vld [vmem:[%s288 + $0x7c] sm:$0xf]
        %v337 = vld [vmem:[%s293] ss:$2 sm:$0x3]
        %s338 = scalar_lea.vmem %s293, 1
        %v339 = vld [vmem:[%s338] ss:$2 sm:$0x3]
        %v340 = vxor.u32 %v301, 2147483648
        %v341 = vxor.u32 %v302, 2147483648
        %v342 = vxor.u32 %v303, 2147483648
        %v343 = vxor.u32 %v304, 2147483648
        %v344 = vmul.f32 %v340, 1.442695
        %v345 = vpow.pop %v344
        %v346 = vmul.f32 %v341, 1.442695
        %v347 = vpow.pop %v346
        %v348 = vmul.f32 %v342, 1.442695
        %v349 = vpow.pop %v348
        %v350 = vmul.f32 %v343, 1.442695
        %v351 = vpow.pop %v350
        %v352 = vadd.f32 %v345, 1.0
        %v353 = vadd.f32 %v347, 1.0
        %v354 = vadd.f32 %v349, 1.0
        %v355 = vadd.f32 %v351, 1.0
        %v356 = vrcp.pop %v352
        %v357 = vmul.f32 1.0, %v356
        %v358 = vrcp.pop %v353
        %v359 = vmul.f32 1.0, %v358
        %v360 = vrcp.pop %v354
        %v361 = vmul.f32 1.0, %v360
        %v362 = vrcp.pop %v355
        %v363 = vmul.f32 1.0, %v362
        %v364 = vlaneseq
        %v365 = vshrl.u32 %v364, 7
        %v366 = vadd.s32 %v365, 8
        %v367 = vadd.f32 %v337, 0.0
        %v370 = vcombine.low %v297, %v298
        %v372 = vunpack.c.l.s4 1966171168
        %v373 = vunpack.c.0.s8 %v372
        %v374 = vlaneseq
        %v375 = vshrl.u32 %v374, 7
        %v376 = vsub.s32 %v373, %v375
        %v377 = vrot.slane %v370, %v376
        %v379 = vunpack.c.l.s4 1966171168
        %v380 = vunpack.c.0.s8 %v379
        %v381 = vlaneseq
        %v382 = vshrl.u32 %v381, 7
        %v383 = vsub.s32 %v380, %v382
        %v384 = vrot.slane %v377, %v383
        %v386 = vadd.f32 %v367, %v384
        %v387 = vadd.f32 %v339, 0.0
        %v388 = vcombine.high %v377, %v377
        %v390 = vunpack.c.l.s4 1966171168
        %v391 = vunpack.c.0.s8 %v390
        %v392 = vlaneseq
        %v393 = vshrl.u32 %v392, 7
        %v394 = vsub.s32 %v391, %v393
        %v395 = vrot.slane %v388, %v394
        %v397 = vadd.f32 %v387, %v395
        %vm398 = vcmp.gt.f32.partialorder %v386, -1.0
        %vm399 = vcmp.lt.f32.partialorder %v386, 16.0
        %vm400 = vmand %vm398, %vm399
        %vm401 = vcmp.gt.f32.partialorder %v397, -1.0
        %vm402 = vcmp.lt.f32.partialorder %v397, 16.0
        %vm403 = vmand %vm401, %vm402
        %v404 = vfloor.f32 %v386
        %v405 = vfloor.f32 %v397
        %v406 = vsub.f32 %v386, %v404
        %v407 = vsub.f32 %v397, %v405
        %v408 = vcvt.f32.s32.to.zero.pseudo %v404
        %v409 = vcvt.f32.s32.to.zero.pseudo %v405
        %v410 = vadd.s32 %v408, 1
        %v411 = vadd.s32 %v409, 1
        %vm412 = vcmp.ge.s32.totalorder %v408, 0
        %vm413 = vmand %vm400, %vm412
        %v414 = vsub.f32 1.0, %v406
        %v415 = vsel %vm413, %v414, 0.0
        %vm416 = vcmp.le.s32.totalorder %v410, 15
        %vm417 = vmand %vm400, %vm416
        %v418 = vsel %vm417, %v406, 0.0
        %vm419 = vcmp.ge.s32.totalorder %v409, 0
        %vm420 = vmand %vm403, %vm419
        %v421 = vsub.f32 1.0, %v407
        %v422 = vsel %vm420, %v421, 0.0
        %vm423 = vcmp.le.s32.totalorder %v411, 15
        %vm424 = vmand %vm403, %vm423
        %v425 = vsel %vm424, %v407, 0.0
        %vm426 = vcmp.gt.s32.totalorder %v408, 0
        %v427 = vsel %vm426, %v408, 0
        %vm428 = vcmp.lt.s32.totalorder %v427, 15
        %v429 = vsel %vm428, %v427, 15
        %v430 = vlaneseq
        %v431 = vshrl.u32 %v430, 7
        %v432 = vsub.s32 0, %v431
        %v433 = vrot.slane %v429, %v432
        %v434 = vlaneseq
        %v435 = vshrl.u32 %v434, 7
        %v436 = vsub.s32 1, %v435
        %v437 = vrot.slane %v429, %v436
        %vm438 = vcmp.eq.s32.totalorder %v365, %v433
        %vm439 = vcmp.eq.s32.totalorder %v365, %v437
        %vm440 = vcmp.eq.s32.totalorder %v366, %v433
        %vm441 = vcmp.eq.s32.totalorder %v366, %v437
        %v443 = vlaneseq
        %v444 = vshrl.u32 %v443, 7
        %v445 = vsub.s32 0, %v444
        %v446 = vrot.slane %v415, %v445
        %v447 = vlaneseq
        %v448 = vshrl.u32 %v447, 7
        %v449 = vsub.s32 1, %v448
        %v450 = vrot.slane %v415, %v449
        %v453 = vsel %vm438, %v446, 0.0
        %v454 = vsel %vm439, %v450, 0.0
        %v455 = vsel %vm440, %v446, 0.0
        %v456 = vsel %vm441, %v450, 0.0
        %vm457 = vcmp.gt.s32.totalorder %v410, 0
        %v458 = vsel %vm457, %v410, 0
        %vm459 = vcmp.lt.s32.totalorder %v458, 15
        %v460 = vsel %vm459, %v458, 15
        %v461 = vlaneseq
        %v462 = vshrl.u32 %v461, 7
        %v463 = vsub.s32 0, %v462
        %v464 = vrot.slane %v460, %v463
        %v465 = vlaneseq
        %v466 = vshrl.u32 %v465, 7
        %v467 = vsub.s32 1, %v466
        %v468 = vrot.slane %v460, %v467
        %vm469 = vcmp.eq.s32.totalorder %v365, %v464
        %vm470 = vcmp.eq.s32.totalorder %v365, %v468
        %vm471 = vcmp.eq.s32.totalorder %v366, %v464
        %vm472 = vcmp.eq.s32.totalorder %v366, %v468
        %v474 = vlaneseq
        %v475 = vshrl.u32 %v474, 7
        %v476 = vsub.s32 0, %v475
        %v477 = vrot.slane %v418, %v476
        %v478 = vlaneseq
        %v479 = vshrl.u32 %v478, 7
        %v480 = vsub.s32 1, %v479
        %v481 = vrot.slane %v418, %v480
        %v484 = vsel %vm469, %v477, 0.0
        %v485 = vsel %vm470, %v481, 0.0
        %v486 = vsel %vm471, %v477, 0.0
        %v487 = vsel %vm472, %v481, 0.0
        %v488 = vadd.f32 %v453, %v484
        %v489 = vadd.f32 %v454, %v485
        %v490 = vadd.f32 %v455, %v486
        %v491 = vadd.f32 %v456, %v487
        %vm492 = vcmp.gt.s32.totalorder %v409, 0
        %v493 = vsel %vm492, %v409, 0
        %vm494 = vcmp.lt.s32.totalorder %v493, 15
        %v495 = vsel %vm494, %v493, 15
        %v496 = vlaneseq
        %v497 = vshrl.u32 %v496, 7
        %v498 = vsub.s32 0, %v497
        %v499 = vrot.slane %v495, %v498
        %v500 = vlaneseq
        %v501 = vshrl.u32 %v500, 7
        %v502 = vsub.s32 1, %v501
        %v503 = vrot.slane %v495, %v502
        %vm504 = vcmp.eq.s32.totalorder %v365, %v499
        %vm505 = vcmp.eq.s32.totalorder %v365, %v503
        %vm506 = vcmp.eq.s32.totalorder %v366, %v499
        %vm507 = vcmp.eq.s32.totalorder %v366, %v503
        %v509 = vlaneseq
        %v510 = vshrl.u32 %v509, 7
        %v511 = vsub.s32 0, %v510
        %v512 = vrot.slane %v422, %v511
        %v513 = vlaneseq
        %v514 = vshrl.u32 %v513, 7
        %v515 = vsub.s32 1, %v514
        %v516 = vrot.slane %v422, %v515
        %v519 = vsel %vm504, %v512, 0.0
        %v520 = vsel %vm505, %v516, 0.0
        %v521 = vsel %vm506, %v512, 0.0
        %v522 = vsel %vm507, %v516, 0.0
        %vm523 = vcmp.gt.s32.totalorder %v411, 0
        %v524 = vsel %vm523, %v411, 0
        %vm525 = vcmp.lt.s32.totalorder %v524, 15
        %v526 = vsel %vm525, %v524, 15
        %v527 = vlaneseq
        %v528 = vshrl.u32 %v527, 7
        %v529 = vsub.s32 0, %v528
        %v530 = vrot.slane %v526, %v529
        %v531 = vlaneseq
        %v532 = vshrl.u32 %v531, 7
        %v533 = vsub.s32 1, %v532
        %v534 = vrot.slane %v526, %v533
        %vm535 = vcmp.eq.s32.totalorder %v365, %v530
        %vm536 = vcmp.eq.s32.totalorder %v365, %v534
        %vm537 = vcmp.eq.s32.totalorder %v366, %v530
        %vm538 = vcmp.eq.s32.totalorder %v366, %v534
        %v540 = vlaneseq
        %v541 = vshrl.u32 %v540, 7
        %v542 = vsub.s32 0, %v541
        %v543 = vrot.slane %v425, %v542
        %v544 = vlaneseq
        %v545 = vshrl.u32 %v544, 7
        %v546 = vsub.s32 1, %v545
        %v547 = vrot.slane %v425, %v546
        %v550 = vsel %vm535, %v543, 0.0
        %v551 = vsel %vm536, %v547, 0.0
        %v552 = vsel %vm537, %v543, 0.0
        %v553 = vsel %vm538, %v547, 0.0
        %v554 = vadd.f32 %v519, %v550
        %v555 = vadd.f32 %v520, %v551
        %v556 = vadd.f32 %v521, %v552
        %v557 = vadd.f32 %v522, %v553
        %v558 = vlaneseq
        %v559 = vshrl.u32 %v558, 7
        %v560 = vsub.s32 2, %v559
        %v561 = vrot.slane %v357, %v560
        %v562 = vlaneseq
        %v563 = vshrl.u32 %v562, 7
        %v564 = vsub.s32 2, %v563
        %v565 = vrot.slane %v359, %v564
        %v566 = vmul.f32 %v488, %v561
        %v567 = vmul.f32 %v489, %v565
        %v568 = vmul.f32 %v490, %v561
        %v569 = vmul.f32 %v491, %v565
        %v570 = vpack.c.bf16 %v556, %v554
        %v571 = vpack.c.bf16 %v557, %v555
        %v604 = vunpack.c.l.b16 %v305
        %v605 = vunpack.c.l.b16 %v306
        %v606 = vunpack.c.l.b16 %v307
        %v607 = vunpack.c.l.b16 %v308
        %v608 = vunpack.c.l.b16 %v309
        %v609 = vunpack.c.l.b16 %v310
        %v610 = vunpack.c.l.b16 %v311
        %v611 = vunpack.c.l.b16 %v312
        %v612 = vunpack.c.l.b16 %v313
        %v613 = vunpack.c.l.b16 %v314
        %v614 = vunpack.c.l.b16 %v315
        %v615 = vunpack.c.l.b16 %v316
        %v616 = vunpack.c.l.b16 %v317
        %v617 = vunpack.c.l.b16 %v318
        %v618 = vunpack.c.l.b16 %v319
        %v619 = vunpack.c.l.b16 %v320
        %v620 = vunpack.c.l.b16 %v321
        %v621 = vunpack.c.l.b16 %v322
        %v622 = vunpack.c.l.b16 %v323
        %v623 = vunpack.c.l.b16 %v324
        %v624 = vunpack.c.l.b16 %v325
        %v625 = vunpack.c.l.b16 %v326
        %v626 = vunpack.c.l.b16 %v327
        %v627 = vunpack.c.l.b16 %v328
        %v628 = vunpack.c.l.b16 %v329
        %v629 = vunpack.c.l.b16 %v330
        %v630 = vunpack.c.l.b16 %v331
        %v631 = vunpack.c.l.b16 %v332
        %v632 = vunpack.c.l.b16 %v333
        %v633 = vunpack.c.l.b16 %v334
        %v634 = vunpack.c.l.b16 %v335
        %v635 = vunpack.c.l.b16 %v336
        %v636 = vpack.c.b16 %v605, %v604
        %v637 = vpack.c.b16 %v607, %v606
        %v638 = vpack.c.b16 %v609, %v608
        %v639 = vpack.c.b16 %v611, %v610
        %v640 = vpack.c.b16 %v613, %v612
        %v641 = vpack.c.b16 %v615, %v614
        %v642 = vpack.c.b16 %v617, %v616
        %v643 = vpack.c.b16 %v619, %v618
        %v644 = vpack.c.b16 %v621, %v620
        %v645 = vpack.c.b16 %v623, %v622
        %v646 = vpack.c.b16 %v625, %v624
        %v647 = vpack.c.b16 %v627, %v626
        %v648 = vpack.c.b16 %v629, %v628
        %v649 = vpack.c.b16 %v631, %v630
        %v650 = vpack.c.b16 %v633, %v632
        %v651 = vpack.c.b16 %v635, %v634
        %vm652 = vcmask 130048
        %v654 = vsel %vm652, %v636, 0
        %v657 = vsel %vm652, %v637, 0
        %v660 = vsel %vm652, %v638, 0
        %v663 = vsel %vm652, %v639, 0
        %v666 = vsel %vm652, %v640, 0
        %v669 = vsel %vm652, %v641, 0
        %v672 = vsel %vm652, %v642, 0
        %v675 = vsel %vm652, %v643, 0
        %v678 = vsel %vm652, %v644, 0
        %v681 = vsel %vm652, %v645, 0
        %v684 = vsel %vm652, %v646, 0
        %v687 = vsel %vm652, %v647, 0
        %v690 = vsel %vm652, %v648, 0
        %v693 = vsel %vm652, %v649, 0
        %v696 = vsel %vm652, %v650, 0
        %v699 = vsel %vm652, %v651, 0
        %701 = vmatprep.subr.bf16.mxu0 %v571
        %702 = vmatpush1.bf16.msra.mxu0 %v570
        %703 = vmatprep.subr.bf16.mxu0 0
        %704 = vmatpush1.bf16.msra.mxu0 0
        %705 = vmatprep.subr.bf16.mxu0 0
        %706 = vmatpush1.bf16.msra.mxu0 0
        %707 = vmatprep.subr.bf16.mxu0 0
        %708 = vmatpush1.bf16.msra.mxu0 0
        %709 = vmatprep.subr.bf16.mxu0 0
        %710 = vmatpush1.bf16.msra.mxu0 0
        %711 = vmatprep.subr.bf16.mxu0 0
        %712 = vmatpush1.bf16.msra.mxu0 0
        %713 = vmatprep.subr.bf16.mxu0 0
        %714 = vmatpush1.bf16.msra.mxu0 0
        %715 = vmatprep.subr.bf16.mxu0 0
        %716 = vmatpush1.bf16.msra.mxu0 0
        %717 = vmatprep.subr.bf16.mxu0 0
        %718 = vmatpush1.bf16.msra.mxu0 0
        %719 = vmatprep.subr.bf16.mxu0 0
        %720 = vmatpush1.bf16.msra.mxu0 0
        %721 = vmatprep.subr.bf16.mxu0 0
        %722 = vmatpush1.bf16.msra.mxu0 0
        %723 = vmatprep.subr.bf16.mxu0 0
        %724 = vmatpush1.bf16.msra.mxu0 0
        %725 = vmatprep.subr.bf16.mxu0 0
        %726 = vmatpush1.bf16.msra.mxu0 0
        %727 = vmatprep.subr.bf16.mxu0 0
        %728 = vmatpush1.bf16.msra.mxu0 0
        %729 = vmatprep.subr.bf16.mxu0 0
        %730 = vmatpush1.bf16.msra.mxu0 0
        %731 = vmatprep.subr.bf16.mxu0 0
        %732 = vmatpush1.bf16.msra.mxu0 0
        %733 = vmatprep.mubr.bf16.mxu0 0
        %734 = vmatmul.mubr.bf16.gmra.mrb[0].mxu0 %v654
        %v735 = vpop.f32.mrb[0].mxu0
        %v736 = vadd.f32 0.0, %v735
        %v737 = vpop.f32.mrb[0].mxu0
        %v738 = vadd.f32 0.0, %v737
        %v739 = vpop.f32.mrb[0].mxu0
        %v740 = vadd.f32 0.0, %v739
        %v741 = vpop.f32.mrb[0].mxu0
        %v742 = vadd.f32 0.0, %v741
        %743 = vmatprep.mubr.bf16.mxu0 0
        %744 = vmatmul.mubr.bf16.gmra.mrb[0].mxu0 %v657
        %v745 = vpop.f32.mrb[0].mxu0
        %v746 = vadd.f32 0.0, %v745
        %v747 = vpop.f32.mrb[0].mxu0
        %v748 = vadd.f32 0.0, %v747
        %v749 = vpop.f32.mrb[0].mxu0
        %v750 = vadd.f32 0.0, %v749
        %v751 = vpop.f32.mrb[0].mxu0
        %v752 = vadd.f32 0.0, %v751
        %753 = vmatprep.mubr.bf16.mxu0 0
        %754 = vmatmul.mubr.bf16.gmra.mrb[0].mxu0 %v660
        %v755 = vpop.f32.mrb[0].mxu0
        %v756 = vadd.f32 0.0, %v755
        %v757 = vpop.f32.mrb[0].mxu0
        %v758 = vadd.f32 0.0, %v757
        %v759 = vpop.f32.mrb[0].mxu0
        %v760 = vadd.f32 0.0, %v759
        %v761 = vpop.f32.mrb[0].mxu0
        %v762 = vadd.f32 0.0, %v761
        %763 = vmatprep.mubr.bf16.mxu0 0
        %764 = vmatmul.mubr.bf16.gmra.mrb[0].mxu0 %v663
        %v765 = vpop.f32.mrb[0].mxu0
        %v766 = vadd.f32 0.0, %v765
        %v767 = vpop.f32.mrb[0].mxu0
        %v768 = vadd.f32 0.0, %v767
        %v769 = vpop.f32.mrb[0].mxu0
        %v770 = vadd.f32 0.0, %v769
        %v771 = vpop.f32.mrb[0].mxu0
        %v772 = vadd.f32 0.0, %v771
        %773 = vmatprep.mubr.bf16.mxu0 0
        %774 = vmatmul.mubr.bf16.gmra.mrb[0].mxu0 %v666
        %v775 = vpop.f32.mrb[0].mxu0
        %v776 = vadd.f32 0.0, %v775
        %v777 = vpop.f32.mrb[0].mxu0
        %v778 = vadd.f32 0.0, %v777
        %v779 = vpop.f32.mrb[0].mxu0
        %v780 = vadd.f32 0.0, %v779
        %v781 = vpop.f32.mrb[0].mxu0
        %v782 = vadd.f32 0.0, %v781
        %783 = vmatprep.mubr.bf16.mxu0 0
        %784 = vmatmul.mubr.bf16.gmra.mrb[0].mxu0 %v669
        %v785 = vpop.f32.mrb[0].mxu0
        %v786 = vadd.f32 0.0, %v785
        %v787 = vpop.f32.mrb[0].mxu0
        %v788 = vadd.f32 0.0, %v787
        %v789 = vpop.f32.mrb[0].mxu0
        %v790 = vadd.f32 0.0, %v789
        %v791 = vpop.f32.mrb[0].mxu0
        %v792 = vadd.f32 0.0, %v791
        %793 = vmatprep.mubr.bf16.mxu0 0
        %794 = vmatmul.mubr.bf16.gmra.mrb[0].mxu0 %v672
        %v795 = vpop.f32.mrb[0].mxu0
        %v796 = vadd.f32 0.0, %v795
        %v797 = vpop.f32.mrb[0].mxu0
        %v798 = vadd.f32 0.0, %v797
        %v799 = vpop.f32.mrb[0].mxu0
        %v800 = vadd.f32 0.0, %v799
        %v801 = vpop.f32.mrb[0].mxu0
        %v802 = vadd.f32 0.0, %v801
        %803 = vmatprep.mubr.bf16.mxu0 0
        %804 = vmatmul.mubr.bf16.gmra.mrb[0].mxu0 %v675
        %v805 = vpop.f32.mrb[0].mxu0
        %v806 = vadd.f32 0.0, %v805
        %v807 = vpop.f32.mrb[0].mxu0
        %v808 = vadd.f32 0.0, %v807
        %v809 = vpop.f32.mrb[0].mxu0
        %v810 = vadd.f32 0.0, %v809
        %v811 = vpop.f32.mrb[0].mxu0
        %v812 = vadd.f32 0.0, %v811
        %813 = vmatprep.mubr.bf16.mxu0 0
        %814 = vmatmul.mubr.bf16.gmra.mrb[0].mxu0 %v678
        %v815 = vpop.f32.mrb[0].mxu0
        %v816 = vadd.f32 0.0, %v815
        %v817 = vpop.f32.mrb[0].mxu0
        %v818 = vadd.f32 0.0, %v817
        %v819 = vpop.f32.mrb[0].mxu0
        %v820 = vadd.f32 0.0, %v819
        %v821 = vpop.f32.mrb[0].mxu0
        %v822 = vadd.f32 0.0, %v821
        %823 = vmatprep.mubr.bf16.mxu0 0
        %824 = vmatmul.mubr.bf16.gmra.mrb[0].mxu0 %v681
        %v825 = vpop.f32.mrb[0].mxu0
        %v826 = vadd.f32 0.0, %v825
        %v827 = vpop.f32.mrb[0].mxu0
        %v828 = vadd.f32 0.0, %v827
        %v829 = vpop.f32.mrb[0].mxu0
        %v830 = vadd.f32 0.0, %v829
        %v831 = vpop.f32.mrb[0].mxu0
        %v832 = vadd.f32 0.0, %v831
        %833 = vmatprep.mubr.bf16.mxu0 0
        %834 = vmatmul.mubr.bf16.gmra.mrb[0].mxu0 %v684
        %v835 = vpop.f32.mrb[0].mxu0
        %v836 = vadd.f32 0.0, %v835
        %v837 = vpop.f32.mrb[0].mxu0
        %v838 = vadd.f32 0.0, %v837
        %v839 = vpop.f32.mrb[0].mxu0
        %v840 = vadd.f32 0.0, %v839
        %v841 = vpop.f32.mrb[0].mxu0
        %v842 = vadd.f32 0.0, %v841
        %843 = vmatprep.mubr.bf16.mxu0 0
        %844 = vmatmul.mubr.bf16.gmra.mrb[0].mxu0 %v687
        %v845 = vpop.f32.mrb[0].mxu0
        %v846 = vadd.f32 0.0, %v845
        %v847 = vpop.f32.mrb[0].mxu0
        %v848 = vadd.f32 0.0, %v847
        %v849 = vpop.f32.mrb[0].mxu0
        %v850 = vadd.f32 0.0, %v849
        %v851 = vpop.f32.mrb[0].mxu0
        %v852 = vadd.f32 0.0, %v851
        %853 = vmatprep.mubr.bf16.mxu0 0
        %854 = vmatmul.mubr.bf16.gmra.mrb[0].mxu0 %v690
        %v855 = vpop.f32.mrb[0].mxu0
        %v856 = vadd.f32 0.0, %v855
        %v857 = vpop.f32.mrb[0].mxu0
        %v858 = vadd.f32 0.0, %v857
        %v859 = vpop.f32.mrb[0].mxu0
        %v860 = vadd.f32 0.0, %v859
        %v861 = vpop.f32.mrb[0].mxu0
        %v862 = vadd.f32 0.0, %v861
        %863 = vmatprep.mubr.bf16.mxu0 0
        %864 = vmatmul.mubr.bf16.gmra.mrb[0].mxu0 %v693
        %v865 = vpop.f32.mrb[0].mxu0
        %v866 = vadd.f32 0.0, %v865
        %v867 = vpop.f32.mrb[0].mxu0
        %v868 = vadd.f32 0.0, %v867
        %v869 = vpop.f32.mrb[0].mxu0
        %v870 = vadd.f32 0.0, %v869
        %v871 = vpop.f32.mrb[0].mxu0
        %v872 = vadd.f32 0.0, %v871
        %873 = vmatprep.mubr.bf16.mxu0 0
        %874 = vmatmul.mubr.bf16.gmra.mrb[0].mxu0 %v696
        %v875 = vpop.f32.mrb[0].mxu0
        %v876 = vadd.f32 0.0, %v875
        %v877 = vpop.f32.mrb[0].mxu0
        %v878 = vadd.f32 0.0, %v877
        %v879 = vpop.f32.mrb[0].mxu0
        %v880 = vadd.f32 0.0, %v879
        %v881 = vpop.f32.mrb[0].mxu0
        %v882 = vadd.f32 0.0, %v881
        %883 = vmatprep.mubr.bf16.mxu0 0
        %884 = vmatmul.mubr.bf16.gmra.mrb[0].mxu0 %v699
        %v885 = vpop.f32.mrb[0].mxu0
        %v886 = vadd.f32 0.0, %v885
        %v887 = vpop.f32.mrb[0].mxu0
        %v888 = vadd.f32 0.0, %v887
        %v889 = vpop.f32.mrb[0].mxu0
        %v890 = vadd.f32 0.0, %v889
        %v891 = vpop.f32.mrb[0].mxu0
        %v892 = vadd.f32 0.0, %v891
        %893 = vdwg.mxu0
        %v894 = vmul.f32 %v736, %v566
        %v895 = vmul.f32 %v738, %v567
        %v896 = vmul.f32 %v740, %v568
        %v897 = vmul.f32 %v742, %v569
        %v898 = vmul.f32 %v746, %v566
        %v899 = vmul.f32 %v748, %v567
        %v900 = vmul.f32 %v750, %v568
        %v901 = vmul.f32 %v752, %v569
        %v902 = vmul.f32 %v756, %v566
        %v903 = vmul.f32 %v758, %v567
        %v904 = vmul.f32 %v760, %v568
        %v905 = vmul.f32 %v762, %v569
        %v906 = vmul.f32 %v766, %v566
        %v907 = vmul.f32 %v768, %v567
        %v908 = vmul.f32 %v770, %v568
        %v909 = vmul.f32 %v772, %v569
        %v910 = vmul.f32 %v776, %v566
        %v911 = vmul.f32 %v778, %v567
        %v912 = vmul.f32 %v780, %v568
        %v913 = vmul.f32 %v782, %v569
        %v914 = vmul.f32 %v786, %v566
        %v915 = vmul.f32 %v788, %v567
        %v916 = vmul.f32 %v790, %v568
        %v917 = vmul.f32 %v792, %v569
        %v918 = vmul.f32 %v796, %v566
        %v919 = vmul.f32 %v798, %v567
        %v920 = vmul.f32 %v800, %v568
        %v921 = vmul.f32 %v802, %v569
        %v922 = vmul.f32 %v806, %v566
        %v923 = vmul.f32 %v808, %v567
        %v924 = vmul.f32 %v810, %v568
        %v925 = vmul.f32 %v812, %v569
        %v926 = vmul.f32 %v816, %v566
        %v927 = vmul.f32 %v818, %v567
        %v928 = vmul.f32 %v820, %v568
        %v929 = vmul.f32 %v822, %v569
        %v930 = vmul.f32 %v826, %v566
        %v931 = vmul.f32 %v828, %v567
        %v932 = vmul.f32 %v830, %v568
        %v933 = vmul.f32 %v832, %v569
        %v934 = vmul.f32 %v836, %v566
        %v935 = vmul.f32 %v838, %v567
        %v936 = vmul.f32 %v840, %v568
        %v937 = vmul.f32 %v842, %v569
        %v938 = vmul.f32 %v846, %v566
        %v939 = vmul.f32 %v848, %v567
        %v940 = vmul.f32 %v850, %v568
        %v941 = vmul.f32 %v852, %v569
        %v942 = vmul.f32 %v856, %v566
        %v943 = vmul.f32 %v858, %v567
        %v944 = vmul.f32 %v860, %v568
        %v945 = vmul.f32 %v862, %v569
        %v946 = vmul.f32 %v866, %v566
        %v947 = vmul.f32 %v868, %v567
        %v948 = vmul.f32 %v870, %v568
        %v949 = vmul.f32 %v872, %v569
        %v950 = vmul.f32 %v876, %v566
        %v951 = vmul.f32 %v878, %v567
        %v952 = vmul.f32 %v880, %v568
        %v953 = vmul.f32 %v882, %v569
        %v954 = vmul.f32 %v886, %v566
        %v955 = vmul.f32 %v888, %v567
        %v956 = vmul.f32 %v890, %v568
        %v957 = vmul.f32 %v892, %v569
        %v958 = vadd.f32 %v894, %v896
        %v959 = vrot.slane %v958, 4
        %v960 = vadd.f32 %v958, %v959
        %v961 = vrot.slane %v960, 2
        %v962 = vadd.f32 %v960, %v961
        %v963 = vrot.slane %v962, 1
        %v964 = vadd.f32 %v962, %v963
        %v965 = vadd.f32 %v895, %v897
        %v966 = vrot.slane %v965, 4
        %v967 = vadd.f32 %v965, %v966
        %v968 = vrot.slane %v967, 2
        %v969 = vadd.f32 %v967, %v968
        %v970 = vrot.slane %v969, 1
        %v971 = vadd.f32 %v969, %v970
        %v972 = vadd.f32 %v898, %v900
        %v973 = vrot.slane %v972, 4
        %v974 = vadd.f32 %v972, %v973
        %v975 = vrot.slane %v974, 2
        %v976 = vadd.f32 %v974, %v975
        %v977 = vrot.slane %v976, 1
        %v978 = vadd.f32 %v976, %v977
        %v979 = vadd.f32 %v899, %v901
        %v980 = vrot.slane %v979, 4
        %v981 = vadd.f32 %v979, %v980
        %v982 = vrot.slane %v981, 2
        %v983 = vadd.f32 %v981, %v982
        %v984 = vrot.slane %v983, 1
        %v985 = vadd.f32 %v983, %v984
        %v986 = vadd.f32 %v902, %v904
        %v987 = vrot.slane %v986, 4
        %v988 = vadd.f32 %v986, %v987
        %v989 = vrot.slane %v988, 2
        %v990 = vadd.f32 %v988, %v989
        %v991 = vrot.slane %v990, 1
        %v992 = vadd.f32 %v990, %v991
        %v993 = vadd.f32 %v903, %v905
        %v994 = vrot.slane %v993, 4
        %v995 = vadd.f32 %v993, %v994
        %v996 = vrot.slane %v995, 2
        %v997 = vadd.f32 %v995, %v996
        %v998 = vrot.slane %v997, 1
        %v999 = vadd.f32 %v997, %v998
        %v1000 = vadd.f32 %v906, %v908
        %v1001 = vrot.slane %v1000, 4
        %v1002 = vadd.f32 %v1000, %v1001
        %v1003 = vrot.slane %v1002, 2
        %v1004 = vadd.f32 %v1002, %v1003
        %v1005 = vrot.slane %v1004, 1
        %v1006 = vadd.f32 %v1004, %v1005
        %v1007 = vadd.f32 %v907, %v909
        %v1008 = vrot.slane %v1007, 4
        %v1009 = vadd.f32 %v1007, %v1008
        %v1010 = vrot.slane %v1009, 2
        %v1011 = vadd.f32 %v1009, %v1010
        %v1012 = vrot.slane %v1011, 1
        %v1013 = vadd.f32 %v1011, %v1012
        %v1014 = vadd.f32 %v910, %v912
        %v1015 = vrot.slane %v1014, 4
        %v1016 = vadd.f32 %v1014, %v1015
        %v1017 = vrot.slane %v1016, 2
        %v1018 = vadd.f32 %v1016, %v1017
        %v1019 = vrot.slane %v1018, 1
        %v1020 = vadd.f32 %v1018, %v1019
        %v1021 = vadd.f32 %v911, %v913
        %v1022 = vrot.slane %v1021, 4
        %v1023 = vadd.f32 %v1021, %v1022
        %v1024 = vrot.slane %v1023, 2
        %v1025 = vadd.f32 %v1023, %v1024
        %v1026 = vrot.slane %v1025, 1
        %v1027 = vadd.f32 %v1025, %v1026
        %v1028 = vadd.f32 %v914, %v916
        %v1029 = vrot.slane %v1028, 4
        %v1030 = vadd.f32 %v1028, %v1029
        %v1031 = vrot.slane %v1030, 2
        %v1032 = vadd.f32 %v1030, %v1031
        %v1033 = vrot.slane %v1032, 1
        %v1034 = vadd.f32 %v1032, %v1033
        %v1035 = vadd.f32 %v915, %v917
        %v1036 = vrot.slane %v1035, 4
        %v1037 = vadd.f32 %v1035, %v1036
        %v1038 = vrot.slane %v1037, 2
        %v1039 = vadd.f32 %v1037, %v1038
        %v1040 = vrot.slane %v1039, 1
        %v1041 = vadd.f32 %v1039, %v1040
        %v1042 = vadd.f32 %v918, %v920
        %v1043 = vrot.slane %v1042, 4
        %v1044 = vadd.f32 %v1042, %v1043
        %v1045 = vrot.slane %v1044, 2
        %v1046 = vadd.f32 %v1044, %v1045
        %v1047 = vrot.slane %v1046, 1
        %v1048 = vadd.f32 %v1046, %v1047
        %v1049 = vadd.f32 %v919, %v921
        %v1050 = vrot.slane %v1049, 4
        %v1051 = vadd.f32 %v1049, %v1050
        %v1052 = vrot.slane %v1051, 2
        %v1053 = vadd.f32 %v1051, %v1052
        %v1054 = vrot.slane %v1053, 1
        %v1055 = vadd.f32 %v1053, %v1054
        %v1056 = vadd.f32 %v922, %v924
        %v1057 = vrot.slane %v1056, 4
        %v1058 = vadd.f32 %v1056, %v1057
        %v1059 = vrot.slane %v1058, 2
        %v1060 = vadd.f32 %v1058, %v1059
        %v1061 = vrot.slane %v1060, 1
        %v1062 = vadd.f32 %v1060, %v1061
        %v1063 = vadd.f32 %v923, %v925
        %v1064 = vrot.slane %v1063, 4
        %v1065 = vadd.f32 %v1063, %v1064
        %v1066 = vrot.slane %v1065, 2
        %v1067 = vadd.f32 %v1065, %v1066
        %v1068 = vrot.slane %v1067, 1
        %v1069 = vadd.f32 %v1067, %v1068
        %v1070 = vadd.f32 %v926, %v928
        %v1071 = vrot.slane %v1070, 4
        %v1072 = vadd.f32 %v1070, %v1071
        %v1073 = vrot.slane %v1072, 2
        %v1074 = vadd.f32 %v1072, %v1073
        %v1075 = vrot.slane %v1074, 1
        %v1076 = vadd.f32 %v1074, %v1075
        %v1077 = vadd.f32 %v927, %v929
        %v1078 = vrot.slane %v1077, 4
        %v1079 = vadd.f32 %v1077, %v1078
        %v1080 = vrot.slane %v1079, 2
        %v1081 = vadd.f32 %v1079, %v1080
        %v1082 = vrot.slane %v1081, 1
        %v1083 = vadd.f32 %v1081, %v1082
        %v1084 = vadd.f32 %v930, %v932
        %v1085 = vrot.slane %v1084, 4
        %v1086 = vadd.f32 %v1084, %v1085
        %v1087 = vrot.slane %v1086, 2
        %v1088 = vadd.f32 %v1086, %v1087
        %v1089 = vrot.slane %v1088, 1
        %v1090 = vadd.f32 %v1088, %v1089
        %v1091 = vadd.f32 %v931, %v933
        %v1092 = vrot.slane %v1091, 4
        %v1093 = vadd.f32 %v1091, %v1092
        %v1094 = vrot.slane %v1093, 2
        %v1095 = vadd.f32 %v1093, %v1094
        %v1096 = vrot.slane %v1095, 1
        %v1097 = vadd.f32 %v1095, %v1096
        %v1098 = vadd.f32 %v934, %v936
        %v1099 = vrot.slane %v1098, 4
        %v1100 = vadd.f32 %v1098, %v1099
        %v1101 = vrot.slane %v1100, 2
        %v1102 = vadd.f32 %v1100, %v1101
        %v1103 = vrot.slane %v1102, 1
        %v1104 = vadd.f32 %v1102, %v1103
        %v1105 = vadd.f32 %v935, %v937
        %v1106 = vrot.slane %v1105, 4
        %v1107 = vadd.f32 %v1105, %v1106
        %v1108 = vrot.slane %v1107, 2
        %v1109 = vadd.f32 %v1107, %v1108
        %v1110 = vrot.slane %v1109, 1
        %v1111 = vadd.f32 %v1109, %v1110
        %v1112 = vadd.f32 %v938, %v940
        %v1113 = vrot.slane %v1112, 4
        %v1114 = vadd.f32 %v1112, %v1113
        %v1115 = vrot.slane %v1114, 2
        %v1116 = vadd.f32 %v1114, %v1115
        %v1117 = vrot.slane %v1116, 1
        %v1118 = vadd.f32 %v1116, %v1117
        %v1119 = vadd.f32 %v939, %v941
        %v1120 = vrot.slane %v1119, 4
        %v1121 = vadd.f32 %v1119, %v1120
        %v1122 = vrot.slane %v1121, 2
        %v1123 = vadd.f32 %v1121, %v1122
        %v1124 = vrot.slane %v1123, 1
        %v1125 = vadd.f32 %v1123, %v1124
        %v1126 = vadd.f32 %v942, %v944
        %v1127 = vrot.slane %v1126, 4
        %v1128 = vadd.f32 %v1126, %v1127
        %v1129 = vrot.slane %v1128, 2
        %v1130 = vadd.f32 %v1128, %v1129
        %v1131 = vrot.slane %v1130, 1
        %v1132 = vadd.f32 %v1130, %v1131
        %v1133 = vadd.f32 %v943, %v945
        %v1134 = vrot.slane %v1133, 4
        %v1135 = vadd.f32 %v1133, %v1134
        %v1136 = vrot.slane %v1135, 2
        %v1137 = vadd.f32 %v1135, %v1136
        %v1138 = vrot.slane %v1137, 1
        %v1139 = vadd.f32 %v1137, %v1138
        %v1140 = vadd.f32 %v946, %v948
        %v1141 = vrot.slane %v1140, 4
        %v1142 = vadd.f32 %v1140, %v1141
        %v1143 = vrot.slane %v1142, 2
        %v1144 = vadd.f32 %v1142, %v1143
        %v1145 = vrot.slane %v1144, 1
        %v1146 = vadd.f32 %v1144, %v1145
        %v1147 = vadd.f32 %v947, %v949
        %v1148 = vrot.slane %v1147, 4
        %v1149 = vadd.f32 %v1147, %v1148
        %v1150 = vrot.slane %v1149, 2
        %v1151 = vadd.f32 %v1149, %v1150
        %v1152 = vrot.slane %v1151, 1
        %v1153 = vadd.f32 %v1151, %v1152
        %v1154 = vadd.f32 %v950, %v952
        %v1155 = vrot.slane %v1154, 4
        %v1156 = vadd.f32 %v1154, %v1155
        %v1157 = vrot.slane %v1156, 2
        %v1158 = vadd.f32 %v1156, %v1157
        %v1159 = vrot.slane %v1158, 1
        %v1160 = vadd.f32 %v1158, %v1159
        %v1161 = vadd.f32 %v951, %v953
        %v1162 = vrot.slane %v1161, 4
        %v1163 = vadd.f32 %v1161, %v1162
        %v1164 = vrot.slane %v1163, 2
        %v1165 = vadd.f32 %v1163, %v1164
        %v1166 = vrot.slane %v1165, 1
        %v1167 = vadd.f32 %v1165, %v1166
        %v1168 = vadd.f32 %v954, %v956
        %v1169 = vrot.slane %v1168, 4
        %v1170 = vadd.f32 %v1168, %v1169
        %v1171 = vrot.slane %v1170, 2
        %v1172 = vadd.f32 %v1170, %v1171
        %v1173 = vrot.slane %v1172, 1
        %v1174 = vadd.f32 %v1172, %v1173
        %v1175 = vadd.f32 %v955, %v957
        %v1176 = vrot.slane %v1175, 4
        %v1177 = vadd.f32 %v1175, %v1176
        %v1178 = vrot.slane %v1177, 2
        %v1179 = vadd.f32 %v1177, %v1178
        %v1180 = vrot.slane %v1179, 1
        %v1181 = vadd.f32 %v1179, %v1180
        %v1182 = vpack.c.bf16 %v964, %v964
        %v1183 = vpack.c.bf16 %v971, %v971
        %v1184 = vpack.c.bf16 %v978, %v978
        %v1185 = vpack.c.bf16 %v985, %v985
        %v1186 = vpack.c.bf16 %v992, %v992
        %v1187 = vpack.c.bf16 %v999, %v999
        %v1188 = vpack.c.bf16 %v1006, %v1006
        %v1189 = vpack.c.bf16 %v1013, %v1013
        %v1190 = vpack.c.bf16 %v1020, %v1020
        %v1191 = vpack.c.bf16 %v1027, %v1027
        %v1192 = vpack.c.bf16 %v1034, %v1034
        %v1193 = vpack.c.bf16 %v1041, %v1041
        %v1194 = vpack.c.bf16 %v1048, %v1048
        %v1195 = vpack.c.bf16 %v1055, %v1055
        %v1196 = vpack.c.bf16 %v1062, %v1062
        %v1197 = vpack.c.bf16 %v1069, %v1069
        %v1198 = vpack.c.bf16 %v1076, %v1076
        %v1199 = vpack.c.bf16 %v1083, %v1083
        %v1200 = vpack.c.bf16 %v1090, %v1090
        %v1201 = vpack.c.bf16 %v1097, %v1097
        %v1202 = vpack.c.bf16 %v1104, %v1104
        %v1203 = vpack.c.bf16 %v1111, %v1111
        %v1204 = vpack.c.bf16 %v1118, %v1118
        %v1205 = vpack.c.bf16 %v1125, %v1125
        %v1206 = vpack.c.bf16 %v1132, %v1132
        %v1207 = vpack.c.bf16 %v1139, %v1139
        %v1208 = vpack.c.bf16 %v1146, %v1146
        %v1209 = vpack.c.bf16 %v1153, %v1153
        %v1210 = vpack.c.bf16 %v1160, %v1160
        %v1211 = vpack.c.bf16 %v1167, %v1167
        %v1212 = vpack.c.bf16 %v1174, %v1174
        %v1213 = vpack.c.bf16 %v1181, %v1181
        %v1246 = vunpack.c.l.b16 %v1182
        %v1247 = vunpack.c.l.b16 %v1183
        %v1248 = vunpack.c.l.b16 %v1184
        %v1249 = vunpack.c.l.b16 %v1185
        %v1250 = vunpack.c.l.b16 %v1186
        %v1251 = vunpack.c.l.b16 %v1187
        %v1252 = vunpack.c.l.b16 %v1188
        %v1253 = vunpack.c.l.b16 %v1189
        %v1254 = vunpack.c.l.b16 %v1190
        %v1255 = vunpack.c.l.b16 %v1191
        %v1256 = vunpack.c.l.b16 %v1192
        %v1257 = vunpack.c.l.b16 %v1193
        %v1258 = vunpack.c.l.b16 %v1194
        %v1259 = vunpack.c.l.b16 %v1195
        %v1260 = vunpack.c.l.b16 %v1196
        %v1261 = vunpack.c.l.b16 %v1197
        %v1262 = vunpack.c.l.b16 %v1198
        %v1263 = vunpack.c.l.b16 %v1199
        %v1264 = vunpack.c.l.b16 %v1200
        %v1265 = vunpack.c.l.b16 %v1201
        %v1266 = vunpack.c.l.b16 %v1202
        %v1267 = vunpack.c.l.b16 %v1203
        %v1268 = vunpack.c.l.b16 %v1204
        %v1269 = vunpack.c.l.b16 %v1205
        %v1270 = vunpack.c.l.b16 %v1206
        %v1271 = vunpack.c.l.b16 %v1207
        %v1272 = vunpack.c.l.b16 %v1208
        %v1273 = vunpack.c.l.b16 %v1209
        %v1274 = vunpack.c.l.b16 %v1210
        %v1275 = vunpack.c.l.b16 %v1211
        %v1276 = vunpack.c.l.b16 %v1212
        %v1277 = vunpack.c.l.b16 %v1213
        %vm1278 = vcmask 1041409
        %v1279 = vsel %vm1278, %v1248, %v1246
        %vm1280 = vcmask 1042434
        %v1281 = vsel %vm1280, %v1250, %v1279
        %vm1282 = vcmask 1043459
        %v1283 = vsel %vm1282, %v1252, %v1281
        %vm1284 = vcmask 1044484
        %v1285 = vsel %vm1284, %v1254, %v1283
        %vm1286 = vcmask 1045509
        %v1287 = vsel %vm1286, %v1256, %v1285
        %vm1288 = vcmask 1046534
        %v1289 = vsel %vm1288, %v1258, %v1287
        %vm1290 = vcmask 1047559
        %v1291 = vsel %vm1290, %v1260, %v1289
        %v1292 = vsel %vm1278, %v1249, %v1247
        %v1293 = vsel %vm1280, %v1251, %v1292
        %v1294 = vsel %vm1282, %v1253, %v1293
        %v1295 = vsel %vm1284, %v1255, %v1294
        %v1296 = vsel %vm1286, %v1257, %v1295
        %v1297 = vsel %vm1288, %v1259, %v1296
        %v1298 = vsel %vm1290, %v1261, %v1297
        %v1299 = vsel %vm1278, %v1264, %v1262
        %v1300 = vsel %vm1280, %v1266, %v1299
        %v1301 = vsel %vm1282, %v1268, %v1300
        %v1302 = vsel %vm1284, %v1270, %v1301
        %v1303 = vsel %vm1286, %v1272, %v1302
        %v1304 = vsel %vm1288, %v1274, %v1303
        %v1305 = vsel %vm1290, %v1276, %v1304
        %v1306 = vsel %vm1278, %v1265, %v1263
        %v1307 = vsel %vm1280, %v1267, %v1306
        %v1308 = vsel %vm1282, %v1269, %v1307
        %v1309 = vsel %vm1284, %v1271, %v1308
        %v1310 = vsel %vm1286, %v1273, %v1309
        %v1311 = vsel %vm1288, %v1275, %v1310
        %v1312 = vsel %vm1290, %v1277, %v1311
        %v1313 = vpack.c.b16 %v1305, %v1291
        %v1314 = vpack.c.b16 %v1312, %v1298
        %1317 = vst [vmem:[#allocation2] sm:$0xff] %v1313
        %1318 = vst [vmem:[#allocation2 + $0x8] sm:$0xff] %v1314
        %v1319 = vcombine.high %v384, %v384
        %v1321 = vadd.f32 %v367, %v1319
        %v1322 = vadd.f32 %v339, 1.0
        %v1323 = vcombine.high %v395, %v395
        %v1325 = vadd.f32 %v1322, %v1323
        %vm1326 = vcmp.gt.f32.partialorder %v1321, -1.0
        %vm1327 = vcmp.lt.f32.partialorder %v1321, 16.0
        %vm1328 = vmand %vm1326, %vm1327
        %vm1329 = vcmp.gt.f32.partialorder %v1325, -1.0
        %vm1330 = vcmp.lt.f32.partialorder %v1325, 16.0
        %vm1331 = vmand %vm1329, %vm1330
        %v1332 = vfloor.f32 %v1321
        %v1333 = vfloor.f32 %v1325
        %v1334 = vsub.f32 %v1321, %v1332
        %v1335 = vsub.f32 %v1325, %v1333
        %v1336 = vcvt.f32.s32.to.zero.pseudo %v1332
        %v1337 = vcvt.f32.s32.to.zero.pseudo %v1333
        %v1338 = vadd.s32 %v1336, 1
        %v1339 = vadd.s32 %v1337, 1
        %vm1340 = vcmp.ge.s32.totalorder %v1336, 0
        %vm1341 = vmand %vm1328, %vm1340
        %v1342 = vsub.f32 1.0, %v1334
        %v1343 = vsel %vm1341, %v1342, 0.0
        %vm1344 = vcmp.le.s32.totalorder %v1338, 15
        %vm1345 = vmand %vm1328, %vm1344
        %v1346 = vsel %vm1345, %v1334, 0.0
        %vm1347 = vcmp.ge.s32.totalorder %v1337, 0
        %vm1348 = vmand %vm1331, %vm1347
        %v1349 = vsub.f32 1.0, %v1335
        %v1350 = vsel %vm1348, %v1349, 0.0
        %vm1351 = vcmp.le.s32.totalorder %v1339, 15
        %vm1352 = vmand %vm1331, %vm1351
        %v1353 = vsel %vm1352, %v1335, 0.0
        %vm1354 = vcmp.gt.s32.totalorder %v1336, 0
        %v1355 = vsel %vm1354, %v1336, 0
        %vm1356 = vcmp.lt.s32.totalorder %v1355, 15
        %v1357 = vsel %vm1356, %v1355, 15
        %v1358 = vlaneseq
        %v1359 = vshrl.u32 %v1358, 7
        %v1360 = vsub.s32 0, %v1359
        %v1361 = vrot.slane %v1357, %v1360
        %v1362 = vlaneseq
        %v1363 = vshrl.u32 %v1362, 7
        %v1364 = vsub.s32 1, %v1363
        %v1365 = vrot.slane %v1357, %v1364
        %vm1366 = vcmp.eq.s32.totalorder %v365, %v1361
        %vm1367 = vcmp.eq.s32.totalorder %v365, %v1365
        %vm1368 = vcmp.eq.s32.totalorder %v366, %v1361
        %vm1369 = vcmp.eq.s32.totalorder %v366, %v1365
        %v1371 = vlaneseq
        %v1372 = vshrl.u32 %v1371, 7
        %v1373 = vsub.s32 0, %v1372
        %v1374 = vrot.slane %v1343, %v1373
        %v1375 = vlaneseq
        %v1376 = vshrl.u32 %v1375, 7
        %v1377 = vsub.s32 1, %v1376
        %v1378 = vrot.slane %v1343, %v1377
        %v1381 = vsel %vm1366, %v1374, 0.0
        %v1382 = vsel %vm1367, %v1378, 0.0
        %v1383 = vsel %vm1368, %v1374, 0.0
        %v1384 = vsel %vm1369, %v1378, 0.0
        %vm1385 = vcmp.gt.s32.totalorder %v1338, 0
        %v1386 = vsel %vm1385, %v1338, 0
        %vm1387 = vcmp.lt.s32.totalorder %v1386, 15
        %v1388 = vsel %vm1387, %v1386, 15
        %v1389 = vlaneseq
        %v1390 = vshrl.u32 %v1389, 7
        %v1391 = vsub.s32 0, %v1390
        %v1392 = vrot.slane %v1388, %v1391
        %v1393 = vlaneseq
        %v1394 = vshrl.u32 %v1393, 7
        %v1395 = vsub.s32 1, %v1394
        %v1396 = vrot.slane %v1388, %v1395
        %vm1397 = vcmp.eq.s32.totalorder %v365, %v1392
        %vm1398 = vcmp.eq.s32.totalorder %v365, %v1396
        %vm1399 = vcmp.eq.s32.totalorder %v366, %v1392
        %vm1400 = vcmp.eq.s32.totalorder %v366, %v1396
        %v1402 = vlaneseq
        %v1403 = vshrl.u32 %v1402, 7
        %v1404 = vsub.s32 0, %v1403
        %v1405 = vrot.slane %v1346, %v1404
        %v1406 = vlaneseq
        %v1407 = vshrl.u32 %v1406, 7
        %v1408 = vsub.s32 1, %v1407
        %v1409 = vrot.slane %v1346, %v1408
        %v1412 = vsel %vm1397, %v1405, 0.0
        %v1413 = vsel %vm1398, %v1409, 0.0
        %v1414 = vsel %vm1399, %v1405, 0.0
        %v1415 = vsel %vm1400, %v1409, 0.0
        %v1416 = vadd.f32 %v1381, %v1412
        %v1417 = vadd.f32 %v1382, %v1413
        %v1418 = vadd.f32 %v1383, %v1414
        %v1419 = vadd.f32 %v1384, %v1415
        %vm1420 = vcmp.gt.s32.totalorder %v1337, 0
        %v1421 = vsel %vm1420, %v1337, 0
        %vm1422 = vcmp.lt.s32.totalorder %v1421, 15
        %v1423 = vsel %vm1422, %v1421, 15
        %v1424 = vlaneseq
        %v1425 = vshrl.u32 %v1424, 7
        %v1426 = vsub.s32 0, %v1425
        %v1427 = vrot.slane %v1423, %v1426
        %v1428 = vlaneseq
        %v1429 = vshrl.u32 %v1428, 7
        %v1430 = vsub.s32 1, %v1429
        %v1431 = vrot.slane %v1423, %v1430
        %vm1432 = vcmp.eq.s32.totalorder %v365, %v1427
        %vm1433 = vcmp.eq.s32.totalorder %v365, %v1431
        %vm1434 = vcmp.eq.s32.totalorder %v366, %v1427
        %vm1435 = vcmp.eq.s32.totalorder %v366, %v1431
        %v1437 = vlaneseq
        %v1438 = vshrl.u32 %v1437, 7
        %v1439 = vsub.s32 0, %v1438
        %v1440 = vrot.slane %v1350, %v1439
        %v1441 = vlaneseq
        %v1442 = vshrl.u32 %v1441, 7
        %v1443 = vsub.s32 1, %v1442
        %v1444 = vrot.slane %v1350, %v1443
        %v1447 = vsel %vm1432, %v1440, 0.0
        %v1448 = vsel %vm1433, %v1444, 0.0
        %v1449 = vsel %vm1434, %v1440, 0.0
        %v1450 = vsel %vm1435, %v1444, 0.0
        %vm1451 = vcmp.gt.s32.totalorder %v1339, 0
        %v1452 = vsel %vm1451, %v1339, 0
        %vm1453 = vcmp.lt.s32.totalorder %v1452, 15
        %v1454 = vsel %vm1453, %v1452, 15
        %v1455 = vlaneseq
        %v1456 = vshrl.u32 %v1455, 7
        %v1457 = vsub.s32 0, %v1456
        %v1458 = vrot.slane %v1454, %v1457
        %v1459 = vlaneseq
        %v1460 = vshrl.u32 %v1459, 7
        %v1461 = vsub.s32 1, %v1460
        %v1462 = vrot.slane %v1454, %v1461
        %vm1463 = vcmp.eq.s32.totalorder %v365, %v1458
        %vm1464 = vcmp.eq.s32.totalorder %v365, %v1462
        %vm1465 = vcmp.eq.s32.totalorder %v366, %v1458
        %vm1466 = vcmp.eq.s32.totalorder %v366, %v1462
        %v1468 = vlaneseq
        %v1469 = vshrl.u32 %v1468, 7
        %v1470 = vsub.s32 0, %v1469
        %v1471 = vrot.slane %v1353, %v1470
        %v1472 = vlaneseq
        %v1473 = vshrl.u32 %v1472, 7
        %v1474 = vsub.s32 1, %v1473
        %v1475 = vrot.slane %v1353, %v1474
        %v1478 = vsel %vm1463, %v1471, 0.0
        %v1479 = vsel %vm1464, %v1475, 0.0
        %v1480 = vsel %vm1465, %v1471, 0.0
        %v1481 = vsel %vm1466, %v1475, 0.0
        %v1482 = vadd.f32 %v1447, %v1478
        %v1483 = vadd.f32 %v1448, %v1479
        %v1484 = vadd.f32 %v1449, %v1480
        %v1485 = vadd.f32 %v1450, %v1481
        %v1486 = vlaneseq
        %v1487 = vshrl.u32 %v1486, 7
        %v1488 = vsub.s32 3, %v1487
        %v1489 = vrot.slane %v357, %v1488
        %v1490 = vlaneseq
        %v1491 = vshrl.u32 %v1490, 7
        %v1492 = vsub.s32 3, %v1491
        %v1493 = vrot.slane %v359, %v1492
        %v1494 = vmul.f32 %v1416, %v1489
        %v1495 = vmul.f32 %v1417, %v1493
        %v1496 = vmul.f32 %v1418, %v1489
        %v1497 = vmul.f32 %v1419, %v1493
        %v1498 = vpack.c.bf16 %v1484, %v1482
        %v1499 = vpack.c.bf16 %v1485, %v1483
        %1500 = vmatprep.subr.bf16.mxu0 %v1499
        %1501 = vmatpush1.bf16.msra.mxu0 %v1498
        %1502 = vmatprep.subr.bf16.mxu0 0
        %1503 = vmatpush1.bf16.msra.mxu0 0
        %1504 = vmatprep.subr.bf16.mxu0 0
        %1505 = vmatpush1.bf16.msra.mxu0 0
        %1506 = vmatprep.subr.bf16.mxu0 0
        %1507 = vmatpush1.bf16.msra.mxu0 0
        %1508 = vmatprep.subr.bf16.mxu0 0
        %1509 = vmatpush1.bf16.msra.mxu0 0
        %1510 = vmatprep.subr.bf16.mxu0 0
        %1511 = vmatpush1.bf16.msra.mxu0 0
        %1512 = vmatprep.subr.bf16.mxu0 0
        %1513 = vmatpush1.bf16.msra.mxu0 0
        %1514 = vmatprep.subr.bf16.mxu0 0
        %1515 = vmatpush1.bf16.msra.mxu0 0
        %1516 = vmatprep.subr.bf16.mxu0 0
        %1517 = vmatpush1.bf16.msra.mxu0 0
        %1518 = vmatprep.subr.bf16.mxu0 0
        %1519 = vmatpush1.bf16.msra.mxu0 0
        %1520 = vmatprep.subr.bf16.mxu0 0
        %1521 = vmatpush1.bf16.msra.mxu0 0
        %1522 = vmatprep.subr.bf16.mxu0 0
        %1523 = vmatpush1.bf16.msra.mxu0 0
        %1524 = vmatprep.subr.bf16.mxu0 0
        %1525 = vmatpush1.bf16.msra.mxu0 0
        %1526 = vmatprep.subr.bf16.mxu0 0
        %1527 = vmatpush1.bf16.msra.mxu0 0
        %1528 = vmatprep.subr.bf16.mxu0 0
        %1529 = vmatpush1.bf16.msra.mxu0 0
        %1530 = vmatprep.subr.bf16.mxu0 0
        %1531 = vmatpush1.bf16.msra.mxu0 0
        %1532 = vmatprep.mubr.bf16.mxu0 0
        %1533 = vmatmul.mubr.bf16.gmra.mrb[0].mxu0 %v654
        %v1534 = vpop.f32.mrb[0].mxu0
        %v1535 = vadd.f32 0.0, %v1534
        %v1536 = vpop.f32.mrb[0].mxu0
        %v1537 = vadd.f32 0.0, %v1536
        %v1538 = vpop.f32.mrb[0].mxu0
        %v1539 = vadd.f32 0.0, %v1538
        %v1540 = vpop.f32.mrb[0].mxu0
        %v1541 = vadd.f32 0.0, %v1540
        %1542 = vmatprep.mubr.bf16.mxu0 0
        %1543 = vmatmul.mubr.bf16.gmra.mrb[0].mxu0 %v657
        %v1544 = vpop.f32.mrb[0].mxu0
        %v1545 = vadd.f32 0.0, %v1544
        %v1546 = vpop.f32.mrb[0].mxu0
        %v1547 = vadd.f32 0.0, %v1546
        %v1548 = vpop.f32.mrb[0].mxu0
        %v1549 = vadd.f32 0.0, %v1548
        %v1550 = vpop.f32.mrb[0].mxu0
        %v1551 = vadd.f32 0.0, %v1550
        %1552 = vmatprep.mubr.bf16.mxu0 0
        %1553 = vmatmul.mubr.bf16.gmra.mrb[0].mxu0 %v660
        %v1554 = vpop.f32.mrb[0].mxu0
        %v1555 = vadd.f32 0.0, %v1554
        %v1556 = vpop.f32.mrb[0].mxu0
        %v1557 = vadd.f32 0.0, %v1556
        %v1558 = vpop.f32.mrb[0].mxu0
        %v1559 = vadd.f32 0.0, %v1558
        %v1560 = vpop.f32.mrb[0].mxu0
        %v1561 = vadd.f32 0.0, %v1560
        %1562 = vmatprep.mubr.bf16.mxu0 0
        %1563 = vmatmul.mubr.bf16.gmra.mrb[0].mxu0 %v663
        %v1564 = vpop.f32.mrb[0].mxu0
        %v1565 = vadd.f32 0.0, %v1564
        %v1566 = vpop.f32.mrb[0].mxu0
        %v1567 = vadd.f32 0.0, %v1566
        %v1568 = vpop.f32.mrb[0].mxu0
        %v1569 = vadd.f32 0.0, %v1568
        %v1570 = vpop.f32.mrb[0].mxu0
        %v1571 = vadd.f32 0.0, %v1570
        %1572 = vmatprep.mubr.bf16.mxu0 0
        %1573 = vmatmul.mubr.bf16.gmra.mrb[0].mxu0 %v666
        %v1574 = vpop.f32.mrb[0].mxu0
        %v1575 = vadd.f32 0.0, %v1574
        %v1576 = vpop.f32.mrb[0].mxu0
        %v1577 = vadd.f32 0.0, %v1576
        %v1578 = vpop.f32.mrb[0].mxu0
        %v1579 = vadd.f32 0.0, %v1578
        %v1580 = vpop.f32.mrb[0].mxu0
        %v1581 = vadd.f32 0.0, %v1580
        %1582 = vmatprep.mubr.bf16.mxu0 0
        %1583 = vmatmul.mubr.bf16.gmra.mrb[0].mxu0 %v669
        %v1584 = vpop.f32.mrb[0].mxu0
        %v1585 = vadd.f32 0.0, %v1584
        %v1586 = vpop.f32.mrb[0].mxu0
        %v1587 = vadd.f32 0.0, %v1586
        %v1588 = vpop.f32.mrb[0].mxu0
        %v1589 = vadd.f32 0.0, %v1588
        %v1590 = vpop.f32.mrb[0].mxu0
        %v1591 = vadd.f32 0.0, %v1590
        %1592 = vmatprep.mubr.bf16.mxu0 0
        %1593 = vmatmul.mubr.bf16.gmra.mrb[0].mxu0 %v672
        %v1594 = vpop.f32.mrb[0].mxu0
        %v1595 = vadd.f32 0.0, %v1594
        %v1596 = vpop.f32.mrb[0].mxu0
        %v1597 = vadd.f32 0.0, %v1596
        %v1598 = vpop.f32.mrb[0].mxu0
        %v1599 = vadd.f32 0.0, %v1598
        %v1600 = vpop.f32.mrb[0].mxu0
        %v1601 = vadd.f32 0.0, %v1600
        %1602 = vmatprep.mubr.bf16.mxu0 0
        %1603 = vmatmul.mubr.bf16.gmra.mrb[0].mxu0 %v675
        %v1604 = vpop.f32.mrb[0].mxu0
        %v1605 = vadd.f32 0.0, %v1604
        %v1606 = vpop.f32.mrb[0].mxu0
        %v1607 = vadd.f32 0.0, %v1606
        %v1608 = vpop.f32.mrb[0].mxu0
        %v1609 = vadd.f32 0.0, %v1608
        %v1610 = vpop.f32.mrb[0].mxu0
        %v1611 = vadd.f32 0.0, %v1610
        %1612 = vmatprep.mubr.bf16.mxu0 0
        %1613 = vmatmul.mubr.bf16.gmra.mrb[0].mxu0 %v678
        %v1614 = vpop.f32.mrb[0].mxu0
        %v1615 = vadd.f32 0.0, %v1614
        %v1616 = vpop.f32.mrb[0].mxu0
        %v1617 = vadd.f32 0.0, %v1616
        %v1618 = vpop.f32.mrb[0].mxu0
        %v1619 = vadd.f32 0.0, %v1618
        %v1620 = vpop.f32.mrb[0].mxu0
        %v1621 = vadd.f32 0.0, %v1620
        %1622 = vmatprep.mubr.bf16.mxu0 0
        %1623 = vmatmul.mubr.bf16.gmra.mrb[0].mxu0 %v681
        %v1624 = vpop.f32.mrb[0].mxu0
        %v1625 = vadd.f32 0.0, %v1624
        %v1626 = vpop.f32.mrb[0].mxu0
        %v1627 = vadd.f32 0.0, %v1626
        %v1628 = vpop.f32.mrb[0].mxu0
        %v1629 = vadd.f32 0.0, %v1628
        %v1630 = vpop.f32.mrb[0].mxu0
        %v1631 = vadd.f32 0.0, %v1630
        %1632 = vmatprep.mubr.bf16.mxu0 0
        %1633 = vmatmul.mubr.bf16.gmra.mrb[0].mxu0 %v684
        %v1634 = vpop.f32.mrb[0].mxu0
        %v1635 = vadd.f32 0.0, %v1634
        %v1636 = vpop.f32.mrb[0].mxu0
        %v1637 = vadd.f32 0.0, %v1636
        %v1638 = vpop.f32.mrb[0].mxu0
        %v1639 = vadd.f32 0.0, %v1638
        %v1640 = vpop.f32.mrb[0].mxu0
        %v1641 = vadd.f32 0.0, %v1640
        %1642 = vmatprep.mubr.bf16.mxu0 0
        %1643 = vmatmul.mubr.bf16.gmra.mrb[0].mxu0 %v687
        %v1644 = vpop.f32.mrb[0].mxu0
        %v1645 = vadd.f32 0.0, %v1644
        %v1646 = vpop.f32.mrb[0].mxu0
        %v1647 = vadd.f32 0.0, %v1646
        %v1648 = vpop.f32.mrb[0].mxu0
        %v1649 = vadd.f32 0.0, %v1648
        %v1650 = vpop.f32.mrb[0].mxu0
        %v1651 = vadd.f32 0.0, %v1650
        %1652 = vmatprep.mubr.bf16.mxu0 0
        %1653 = vmatmul.mubr.bf16.gmra.mrb[0].mxu0 %v690
        %v1654 = vpop.f32.mrb[0].mxu0
        %v1655 = vadd.f32 0.0, %v1654
        %v1656 = vpop.f32.mrb[0].mxu0
        %v1657 = vadd.f32 0.0, %v1656
        %v1658 = vpop.f32.mrb[0].mxu0
        %v1659 = vadd.f32 0.0, %v1658
        %v1660 = vpop.f32.mrb[0].mxu0
        %v1661 = vadd.f32 0.0, %v1660
        %1662 = vmatprep.mubr.bf16.mxu0 0
        %1663 = vmatmul.mubr.bf16.gmra.mrb[0].mxu0 %v693
        %v1664 = vpop.f32.mrb[0].mxu0
        %v1665 = vadd.f32 0.0, %v1664
        %v1666 = vpop.f32.mrb[0].mxu0
        %v1667 = vadd.f32 0.0, %v1666
        %v1668 = vpop.f32.mrb[0].mxu0
        %v1669 = vadd.f32 0.0, %v1668
        %v1670 = vpop.f32.mrb[0].mxu0
        %v1671 = vadd.f32 0.0, %v1670
        %1672 = vmatprep.mubr.bf16.mxu0 0
        %1673 = vmatmul.mubr.bf16.gmra.mrb[0].mxu0 %v696
        %v1674 = vpop.f32.mrb[0].mxu0
        %v1675 = vadd.f32 0.0, %v1674
        %v1676 = vpop.f32.mrb[0].mxu0
        %v1677 = vadd.f32 0.0, %v1676
        %v1678 = vpop.f32.mrb[0].mxu0
        %v1679 = vadd.f32 0.0, %v1678
        %v1680 = vpop.f32.mrb[0].mxu0
        %v1681 = vadd.f32 0.0, %v1680
        %1682 = vmatprep.mubr.bf16.mxu0 0
        %1683 = vmatmul.mubr.bf16.gmra.mrb[0].mxu0 %v699
        %v1684 = vpop.f32.mrb[0].mxu0
        %v1685 = vadd.f32 0.0, %v1684
        %v1686 = vpop.f32.mrb[0].mxu0
        %v1687 = vadd.f32 0.0, %v1686
        %v1688 = vpop.f32.mrb[0].mxu0
        %v1689 = vadd.f32 0.0, %v1688
        %v1690 = vpop.f32.mrb[0].mxu0
        %v1691 = vadd.f32 0.0, %v1690
        %1692 = vdwg.mxu0
        %v1693 = vmul.f32 %v1535, %v1494
        %v1694 = vmul.f32 %v1537, %v1495
        %v1695 = vmul.f32 %v1539, %v1496
        %v1696 = vmul.f32 %v1541, %v1497
        %v1697 = vmul.f32 %v1545, %v1494
        %v1698 = vmul.f32 %v1547, %v1495
        %v1699 = vmul.f32 %v1549, %v1496
        %v1700 = vmul.f32 %v1551, %v1497
        %v1701 = vmul.f32 %v1555, %v1494
        %v1702 = vmul.f32 %v1557, %v1495
        %v1703 = vmul.f32 %v1559, %v1496
        %v1704 = vmul.f32 %v1561, %v1497
        %v1705 = vmul.f32 %v1565, %v1494
        %v1706 = vmul.f32 %v1567, %v1495
        %v1707 = vmul.f32 %v1569, %v1496
        %v1708 = vmul.f32 %v1571, %v1497
        %v1709 = vmul.f32 %v1575, %v1494
        %v1710 = vmul.f32 %v1577, %v1495
        %v1711 = vmul.f32 %v1579, %v1496
        %v1712 = vmul.f32 %v1581, %v1497
        %v1713 = vmul.f32 %v1585, %v1494
        %v1714 = vmul.f32 %v1587, %v1495
        %v1715 = vmul.f32 %v1589, %v1496
        %v1716 = vmul.f32 %v1591, %v1497
        %v1717 = vmul.f32 %v1595, %v1494
        %v1718 = vmul.f32 %v1597, %v1495
        %v1719 = vmul.f32 %v1599, %v1496
        %v1720 = vmul.f32 %v1601, %v1497
        %v1721 = vmul.f32 %v1605, %v1494
        %v1722 = vmul.f32 %v1607, %v1495
        %v1723 = vmul.f32 %v1609, %v1496
        %v1724 = vmul.f32 %v1611, %v1497
        %v1725 = vmul.f32 %v1615, %v1494
        %v1726 = vmul.f32 %v1617, %v1495
        %v1727 = vmul.f32 %v1619, %v1496
        %v1728 = vmul.f32 %v1621, %v1497
        %v1729 = vmul.f32 %v1625, %v1494
        %v1730 = vmul.f32 %v1627, %v1495
        %v1731 = vmul.f32 %v1629, %v1496
        %v1732 = vmul.f32 %v1631, %v1497
        %v1733 = vmul.f32 %v1635, %v1494
        %v1734 = vmul.f32 %v1637, %v1495
        %v1735 = vmul.f32 %v1639, %v1496
        %v1736 = vmul.f32 %v1641, %v1497
        %v1737 = vmul.f32 %v1645, %v1494
        %v1738 = vmul.f32 %v1647, %v1495
        %v1739 = vmul.f32 %v1649, %v1496
        %v1740 = vmul.f32 %v1651, %v1497
        %v1741 = vmul.f32 %v1655, %v1494
        %v1742 = vmul.f32 %v1657, %v1495
        %v1743 = vmul.f32 %v1659, %v1496
        %v1744 = vmul.f32 %v1661, %v1497
        %v1745 = vmul.f32 %v1665, %v1494
        %v1746 = vmul.f32 %v1667, %v1495
        %v1747 = vmul.f32 %v1669, %v1496
        %v1748 = vmul.f32 %v1671, %v1497
        %v1749 = vmul.f32 %v1675, %v1494
        %v1750 = vmul.f32 %v1677, %v1495
        %v1751 = vmul.f32 %v1679, %v1496
        %v1752 = vmul.f32 %v1681, %v1497
        %v1753 = vmul.f32 %v1685, %v1494
        %v1754 = vmul.f32 %v1687, %v1495
        %v1755 = vmul.f32 %v1689, %v1496
        %v1756 = vmul.f32 %v1691, %v1497
        %v1757 = vadd.f32 %v1693, %v1695
        %v1758 = vrot.slane %v1757, 4
        %v1759 = vadd.f32 %v1757, %v1758
        %v1760 = vrot.slane %v1759, 2
        %v1761 = vadd.f32 %v1759, %v1760
        %v1762 = vrot.slane %v1761, 1
        %v1763 = vadd.f32 %v1761, %v1762
        %v1764 = vadd.f32 %v1694, %v1696
        %v1765 = vrot.slane %v1764, 4
        %v1766 = vadd.f32 %v1764, %v1765
        %v1767 = vrot.slane %v1766, 2
        %v1768 = vadd.f32 %v1766, %v1767
        %v1769 = vrot.slane %v1768, 1
        %v1770 = vadd.f32 %v1768, %v1769
        %v1771 = vadd.f32 %v1697, %v1699
        %v1772 = vrot.slane %v1771, 4
        %v1773 = vadd.f32 %v1771, %v1772
        %v1774 = vrot.slane %v1773, 2
        %v1775 = vadd.f32 %v1773, %v1774
        %v1776 = vrot.slane %v1775, 1
        %v1777 = vadd.f32 %v1775, %v1776
        %v1778 = vadd.f32 %v1698, %v1700
        %v1779 = vrot.slane %v1778, 4
        %v1780 = vadd.f32 %v1778, %v1779
        %v1781 = vrot.slane %v1780, 2
        %v1782 = vadd.f32 %v1780, %v1781
        %v1783 = vrot.slane %v1782, 1
        %v1784 = vadd.f32 %v1782, %v1783
        %v1785 = vadd.f32 %v1701, %v1703
        %v1786 = vrot.slane %v1785, 4
        %v1787 = vadd.f32 %v1785, %v1786
        %v1788 = vrot.slane %v1787, 2
        %v1789 = vadd.f32 %v1787, %v1788
        %v1790 = vrot.slane %v1789, 1
        %v1791 = vadd.f32 %v1789, %v1790
        %v1792 = vadd.f32 %v1702, %v1704
        %v1793 = vrot.slane %v1792, 4
        %v1794 = vadd.f32 %v1792, %v1793
        %v1795 = vrot.slane %v1794, 2
        %v1796 = vadd.f32 %v1794, %v1795
        %v1797 = vrot.slane %v1796, 1
        %v1798 = vadd.f32 %v1796, %v1797
        %v1799 = vadd.f32 %v1705, %v1707
        %v1800 = vrot.slane %v1799, 4
        %v1801 = vadd.f32 %v1799, %v1800
        %v1802 = vrot.slane %v1801, 2
        %v1803 = vadd.f32 %v1801, %v1802
        %v1804 = vrot.slane %v1803, 1
        %v1805 = vadd.f32 %v1803, %v1804
        %v1806 = vadd.f32 %v1706, %v1708
        %v1807 = vrot.slane %v1806, 4
        %v1808 = vadd.f32 %v1806, %v1807
        %v1809 = vrot.slane %v1808, 2
        %v1810 = vadd.f32 %v1808, %v1809
        %v1811 = vrot.slane %v1810, 1
        %v1812 = vadd.f32 %v1810, %v1811
        %v1813 = vadd.f32 %v1709, %v1711
        %v1814 = vrot.slane %v1813, 4
        %v1815 = vadd.f32 %v1813, %v1814
        %v1816 = vrot.slane %v1815, 2
        %v1817 = vadd.f32 %v1815, %v1816
        %v1818 = vrot.slane %v1817, 1
        %v1819 = vadd.f32 %v1817, %v1818
        %v1820 = vadd.f32 %v1710, %v1712
        %v1821 = vrot.slane %v1820, 4
        %v1822 = vadd.f32 %v1820, %v1821
        %v1823 = vrot.slane %v1822, 2
        %v1824 = vadd.f32 %v1822, %v1823
        %v1825 = vrot.slane %v1824, 1
        %v1826 = vadd.f32 %v1824, %v1825
        %v1827 = vadd.f32 %v1713, %v1715
        %v1828 = vrot.slane %v1827, 4
        %v1829 = vadd.f32 %v1827, %v1828
        %v1830 = vrot.slane %v1829, 2
        %v1831 = vadd.f32 %v1829, %v1830
        %v1832 = vrot.slane %v1831, 1
        %v1833 = vadd.f32 %v1831, %v1832
        %v1834 = vadd.f32 %v1714, %v1716
        %v1835 = vrot.slane %v1834, 4
        %v1836 = vadd.f32 %v1834, %v1835
        %v1837 = vrot.slane %v1836, 2
        %v1838 = vadd.f32 %v1836, %v1837
        %v1839 = vrot.slane %v1838, 1
        %v1840 = vadd.f32 %v1838, %v1839
        %v1841 = vadd.f32 %v1717, %v1719
        %v1842 = vrot.slane %v1841, 4
        %v1843 = vadd.f32 %v1841, %v1842
        %v1844 = vrot.slane %v1843, 2
        %v1845 = vadd.f32 %v1843, %v1844
        %v1846 = vrot.slane %v1845, 1
        %v1847 = vadd.f32 %v1845, %v1846
        %v1848 = vadd.f32 %v1718, %v1720
        %v1849 = vrot.slane %v1848, 4
        %v1850 = vadd.f32 %v1848, %v1849
        %v1851 = vrot.slane %v1850, 2
        %v1852 = vadd.f32 %v1850, %v1851
        %v1853 = vrot.slane %v1852, 1
        %v1854 = vadd.f32 %v1852, %v1853
        %v1855 = vadd.f32 %v1721, %v1723
        %v1856 = vrot.slane %v1855, 4
        %v1857 = vadd.f32 %v1855, %v1856
        %v1858 = vrot.slane %v1857, 2
        %v1859 = vadd.f32 %v1857, %v1858
        %v1860 = vrot.slane %v1859, 1
        %v1861 = vadd.f32 %v1859, %v1860
        %v1862 = vadd.f32 %v1722, %v1724
        %v1863 = vrot.slane %v1862, 4
        %v1864 = vadd.f32 %v1862, %v1863
        %v1865 = vrot.slane %v1864, 2
        %v1866 = vadd.f32 %v1864, %v1865
        %v1867 = vrot.slane %v1866, 1
        %v1868 = vadd.f32 %v1866, %v1867
        %v1869 = vadd.f32 %v1725, %v1727
        %v1870 = vrot.slane %v1869, 4
        %v1871 = vadd.f32 %v1869, %v1870
        %v1872 = vrot.slane %v1871, 2
        %v1873 = vadd.f32 %v1871, %v1872
        %v1874 = vrot.slane %v1873, 1
        %v1875 = vadd.f32 %v1873, %v1874
        %v1876 = vadd.f32 %v1726, %v1728
        %v1877 = vrot.slane %v1876, 4
        %v1878 = vadd.f32 %v1876, %v1877
        %v1879 = vrot.slane %v1878, 2
        %v1880 = vadd.f32 %v1878, %v1879
        %v1881 = vrot.slane %v1880, 1
        %v1882 = vadd.f32 %v1880, %v1881
        %v1883 = vadd.f32 %v1729, %v1731
        %v1884 = vrot.slane %v1883, 4
        %v1885 = vadd.f32 %v1883, %v1884
        %v1886 = vrot.slane %v1885, 2
        %v1887 = vadd.f32 %v1885, %v1886
        %v1888 = vrot.slane %v1887, 1
        %v1889 = vadd.f32 %v1887, %v1888
        %v1890 = vadd.f32 %v1730, %v1732
        %v1891 = vrot.slane %v1890, 4
        %v1892 = vadd.f32 %v1890, %v1891
        %v1893 = vrot.slane %v1892, 2
        %v1894 = vadd.f32 %v1892, %v1893
        %v1895 = vrot.slane %v1894, 1
        %v1896 = vadd.f32 %v1894, %v1895
        %v1897 = vadd.f32 %v1733, %v1735
        %v1898 = vrot.slane %v1897, 4
        %v1899 = vadd.f32 %v1897, %v1898
        %v1900 = vrot.slane %v1899, 2
        %v1901 = vadd.f32 %v1899, %v1900
        %v1902 = vrot.slane %v1901, 1
        %v1903 = vadd.f32 %v1901, %v1902
        %v1904 = vadd.f32 %v1734, %v1736
        %v1905 = vrot.slane %v1904, 4
        %v1906 = vadd.f32 %v1904, %v1905
        %v1907 = vrot.slane %v1906, 2
        %v1908 = vadd.f32 %v1906, %v1907
        %v1909 = vrot.slane %v1908, 1
        %v1910 = vadd.f32 %v1908, %v1909
        %v1911 = vadd.f32 %v1737, %v1739
        %v1912 = vrot.slane %v1911, 4
        %v1913 = vadd.f32 %v1911, %v1912
        %v1914 = vrot.slane %v1913, 2
        %v1915 = vadd.f32 %v1913, %v1914
        %v1916 = vrot.slane %v1915, 1
        %v1917 = vadd.f32 %v1915, %v1916
        %v1918 = vadd.f32 %v1738, %v1740
        %v1919 = vrot.slane %v1918, 4
        %v1920 = vadd.f32 %v1918, %v1919
        %v1921 = vrot.slane %v1920, 2
        %v1922 = vadd.f32 %v1920, %v1921
        %v1923 = vrot.slane %v1922, 1
        %v1924 = vadd.f32 %v1922, %v1923
        %v1925 = vadd.f32 %v1741, %v1743
        %v1926 = vrot.slane %v1925, 4
        %v1927 = vadd.f32 %v1925, %v1926
        %v1928 = vrot.slane %v1927, 2
        %v1929 = vadd.f32 %v1927, %v1928
        %v1930 = vrot.slane %v1929, 1
        %v1931 = vadd.f32 %v1929, %v1930
        %v1932 = vadd.f32 %v1742, %v1744
        %v1933 = vrot.slane %v1932, 4
        %v1934 = vadd.f32 %v1932, %v1933
        %v1935 = vrot.slane %v1934, 2
        %v1936 = vadd.f32 %v1934, %v1935
        %v1937 = vrot.slane %v1936, 1
        %v1938 = vadd.f32 %v1936, %v1937
        %v1939 = vadd.f32 %v1745, %v1747
        %v1940 = vrot.slane %v1939, 4
        %v1941 = vadd.f32 %v1939, %v1940
        %v1942 = vrot.slane %v1941, 2
        %v1943 = vadd.f32 %v1941, %v1942
        %v1944 = vrot.slane %v1943, 1
        %v1945 = vadd.f32 %v1943, %v1944
        %v1946 = vadd.f32 %v1746, %v1748
        %v1947 = vrot.slane %v1946, 4
        %v1948 = vadd.f32 %v1946, %v1947
        %v1949 = vrot.slane %v1948, 2
        %v1950 = vadd.f32 %v1948, %v1949
        %v1951 = vrot.slane %v1950, 1
        %v1952 = vadd.f32 %v1950, %v1951
        %v1953 = vadd.f32 %v1749, %v1751
        %v1954 = vrot.slane %v1953, 4
        %v1955 = vadd.f32 %v1953, %v1954
        %v1956 = vrot.slane %v1955, 2
        %v1957 = vadd.f32 %v1955, %v1956
        %v1958 = vrot.slane %v1957, 1
        %v1959 = vadd.f32 %v1957, %v1958
        %v1960 = vadd.f32 %v1750, %v1752
        %v1961 = vrot.slane %v1960, 4
        %v1962 = vadd.f32 %v1960, %v1961
        %v1963 = vrot.slane %v1962, 2
        %v1964 = vadd.f32 %v1962, %v1963
        %v1965 = vrot.slane %v1964, 1
        %v1966 = vadd.f32 %v1964, %v1965
        %v1967 = vadd.f32 %v1753, %v1755
        %v1968 = vrot.slane %v1967, 4
        %v1969 = vadd.f32 %v1967, %v1968
        %v1970 = vrot.slane %v1969, 2
        %v1971 = vadd.f32 %v1969, %v1970
        %v1972 = vrot.slane %v1971, 1
        %v1973 = vadd.f32 %v1971, %v1972
        %v1974 = vadd.f32 %v1754, %v1756
        %v1975 = vrot.slane %v1974, 4
        %v1976 = vadd.f32 %v1974, %v1975
        %v1977 = vrot.slane %v1976, 2
        %v1978 = vadd.f32 %v1976, %v1977
        %v1979 = vrot.slane %v1978, 1
        %v1980 = vadd.f32 %v1978, %v1979
        %v1981 = vpack.c.bf16 %v1763, %v1763
        %v1982 = vpack.c.bf16 %v1770, %v1770
        %v1983 = vpack.c.bf16 %v1777, %v1777
        %v1984 = vpack.c.bf16 %v1784, %v1784
        %v1985 = vpack.c.bf16 %v1791, %v1791
        %v1986 = vpack.c.bf16 %v1798, %v1798
        %v1987 = vpack.c.bf16 %v1805, %v1805
        %v1988 = vpack.c.bf16 %v1812, %v1812
        %v1989 = vpack.c.bf16 %v1819, %v1819
        %v1990 = vpack.c.bf16 %v1826, %v1826
        %v1991 = vpack.c.bf16 %v1833, %v1833
        %v1992 = vpack.c.bf16 %v1840, %v1840
        %v1993 = vpack.c.bf16 %v1847, %v1847
        %v1994 = vpack.c.bf16 %v1854, %v1854
        %v1995 = vpack.c.bf16 %v1861, %v1861
        %v1996 = vpack.c.bf16 %v1868, %v1868
        %v1997 = vpack.c.bf16 %v1875, %v1875
        %v1998 = vpack.c.bf16 %v1882, %v1882
        %v1999 = vpack.c.bf16 %v1889, %v1889
        %v2000 = vpack.c.bf16 %v1896, %v1896
        %v2001 = vpack.c.bf16 %v1903, %v1903
        %v2002 = vpack.c.bf16 %v1910, %v1910
        %v2003 = vpack.c.bf16 %v1917, %v1917
        %v2004 = vpack.c.bf16 %v1924, %v1924
        %v2005 = vpack.c.bf16 %v1931, %v1931
        %v2006 = vpack.c.bf16 %v1938, %v1938
        %v2007 = vpack.c.bf16 %v1945, %v1945
        %v2008 = vpack.c.bf16 %v1952, %v1952
        %v2009 = vpack.c.bf16 %v1959, %v1959
        %v2010 = vpack.c.bf16 %v1966, %v1966
        %v2011 = vpack.c.bf16 %v1973, %v1973
        %v2012 = vpack.c.bf16 %v1980, %v1980
        %v2045 = vunpack.c.l.b16 %v1981
        %v2046 = vunpack.c.l.b16 %v1982
        %v2047 = vunpack.c.l.b16 %v1983
        %v2048 = vunpack.c.l.b16 %v1984
        %v2049 = vunpack.c.l.b16 %v1985
        %v2050 = vunpack.c.l.b16 %v1986
        %v2051 = vunpack.c.l.b16 %v1987
        %v2052 = vunpack.c.l.b16 %v1988
        %v2053 = vunpack.c.l.b16 %v1989
        %v2054 = vunpack.c.l.b16 %v1990
        %v2055 = vunpack.c.l.b16 %v1991
        %v2056 = vunpack.c.l.b16 %v1992
        %v2057 = vunpack.c.l.b16 %v1993
        %v2058 = vunpack.c.l.b16 %v1994
        %v2059 = vunpack.c.l.b16 %v1995
        %v2060 = vunpack.c.l.b16 %v1996
        %v2061 = vunpack.c.l.b16 %v1997
        %v2062 = vunpack.c.l.b16 %v1998
        %v2063 = vunpack.c.l.b16 %v1999
        %v2064 = vunpack.c.l.b16 %v2000
        %v2065 = vunpack.c.l.b16 %v2001
        %v2066 = vunpack.c.l.b16 %v2002
        %v2067 = vunpack.c.l.b16 %v2003
        %v2068 = vunpack.c.l.b16 %v2004
        %v2069 = vunpack.c.l.b16 %v2005
        %v2070 = vunpack.c.l.b16 %v2006
        %v2071 = vunpack.c.l.b16 %v2007
        %v2072 = vunpack.c.l.b16 %v2008
        %v2073 = vunpack.c.l.b16 %v2009
        %v2074 = vunpack.c.l.b16 %v2010
        %v2075 = vunpack.c.l.b16 %v2011
        %v2076 = vunpack.c.l.b16 %v2012
        %v2077 = vsel %vm1278, %v2047, %v2045
        %v2078 = vsel %vm1280, %v2049, %v2077
        %v2079 = vsel %vm1282, %v2051, %v2078
        %v2080 = vsel %vm1284, %v2053, %v2079
        %v2081 = vsel %vm1286, %v2055, %v2080
        %v2082 = vsel %vm1288, %v2057, %v2081
        %v2083 = vsel %vm1290, %v2059, %v2082
        %v2084 = vsel %vm1278, %v2048, %v2046
        %v2085 = vsel %vm1280, %v2050, %v2084
        %v2086 = vsel %vm1282, %v2052, %v2085
        %v2087 = vsel %vm1284, %v2054, %v2086
        %v2088 = vsel %vm1286, %v2056, %v2087
        %v2089 = vsel %vm1288, %v2058, %v2088
        %v2090 = vsel %vm1290, %v2060, %v2089
        %v2091 = vsel %vm1278, %v2063, %v2061
        %v2092 = vsel %vm1280, %v2065, %v2091
        %v2093 = vsel %vm1282, %v2067, %v2092
        %v2094 = vsel %vm1284, %v2069, %v2093
        %v2095 = vsel %vm1286, %v2071, %v2094
        %v2096 = vsel %vm1288, %v2073, %v2095
        %v2097 = vsel %vm1290, %v2075, %v2096
        %v2098 = vsel %vm1278, %v2064, %v2062
        %v2099 = vsel %vm1280, %v2066, %v2098
        %v2100 = vsel %vm1282, %v2068, %v2099
        %v2101 = vsel %vm1284, %v2070, %v2100
        %v2102 = vsel %vm1286, %v2072, %v2101
        %v2103 = vsel %vm1288, %v2074, %v2102
        %v2104 = vsel %vm1290, %v2076, %v2103
        %v2105 = vpack.c.b16 %v2097, %v2083
        %v2106 = vpack.c.b16 %v2104, %v2090
        %2109 = vst [vmem:[#allocation2 + $0x10] sm:$0xff] %v2105
        %2110 = vst [vmem:[#allocation2 + $0x18] sm:$0xff] %v2106
        %v2111 = vcombine.high %v297, %v298
        %v2113 = vunpack.c.l.s4 1966171168
        %v2114 = vunpack.c.0.s8 %v2113
        %v2115 = vlaneseq
        %v2116 = vshrl.u32 %v2115, 7
        %v2117 = vsub.s32 %v2114, %v2116
        %v2118 = vrot.slane %v2111, %v2117
        %v2120 = vunpack.c.l.s4 1966171168
        %v2121 = vunpack.c.0.s8 %v2120
        %v2122 = vlaneseq
        %v2123 = vshrl.u32 %v2122, 7
        %v2124 = vsub.s32 %v2121, %v2123
        %v2125 = vrot.slane %v2118, %v2124
        %v2127 = vadd.f32 %v367, %v2125
        %v2128 = vadd.f32 %v339, 2.0
        %v2129 = vcombine.high %v2118, %v2118
        %v2131 = vunpack.c.l.s4 1966171168
        %v2132 = vunpack.c.0.s8 %v2131
        %v2133 = vlaneseq
        %v2134 = vshrl.u32 %v2133, 7
        %v2135 = vsub.s32 %v2132, %v2134
        %v2136 = vrot.slane %v2129, %v2135
        %v2138 = vadd.f32 %v2128, %v2136
        %vm2139 = vcmp.gt.f32.partialorder %v2127, -1.0
        %vm2140 = vcmp.lt.f32.partialorder %v2127, 16.0
        %vm2141 = vmand %vm2139, %vm2140
        %vm2142 = vcmp.gt.f32.partialorder %v2138, -1.0
        %vm2143 = vcmp.lt.f32.partialorder %v2138, 16.0
        %vm2144 = vmand %vm2142, %vm2143
        %v2145 = vfloor.f32 %v2127
        %v2146 = vfloor.f32 %v2138
        %v2147 = vsub.f32 %v2127, %v2145
        %v2148 = vsub.f32 %v2138, %v2146
        %v2149 = vcvt.f32.s32.to.zero.pseudo %v2145
        %v2150 = vcvt.f32.s32.to.zero.pseudo %v2146
        %v2151 = vadd.s32 %v2149, 1
        %v2152 = vadd.s32 %v2150, 1
        %vm2153 = vcmp.ge.s32.totalorder %v2149, 0
        %vm2154 = vmand %vm2141, %vm2153
        %v2155 = vsub.f32 1.0, %v2147
        %v2156 = vsel %vm2154, %v2155, 0.0
        %vm2157 = vcmp.le.s32.totalorder %v2151, 15
        %vm2158 = vmand %vm2141, %vm2157
        %v2159 = vsel %vm2158, %v2147, 0.0
        %vm2160 = vcmp.ge.s32.totalorder %v2150, 0
        %vm2161 = vmand %vm2144, %vm2160
        %v2162 = vsub.f32 1.0, %v2148
        %v2163 = vsel %vm2161, %v2162, 0.0
        %vm2164 = vcmp.le.s32.totalorder %v2152, 15
        %vm2165 = vmand %vm2144, %vm2164
        %v2166 = vsel %vm2165, %v2148, 0.0
        %vm2167 = vcmp.gt.s32.totalorder %v2149, 0
        %v2168 = vsel %vm2167, %v2149, 0
        %vm2169 = vcmp.lt.s32.totalorder %v2168, 15
        %v2170 = vsel %vm2169, %v2168, 15
        %v2171 = vlaneseq
        %v2172 = vshrl.u32 %v2171, 7
        %v2173 = vsub.s32 0, %v2172
        %v2174 = vrot.slane %v2170, %v2173
        %v2175 = vlaneseq
        %v2176 = vshrl.u32 %v2175, 7
        %v2177 = vsub.s32 1, %v2176
        %v2178 = vrot.slane %v2170, %v2177
        %vm2179 = vcmp.eq.s32.totalorder %v365, %v2174
        %vm2180 = vcmp.eq.s32.totalorder %v365, %v2178
        %vm2181 = vcmp.eq.s32.totalorder %v366, %v2174
        %vm2182 = vcmp.eq.s32.totalorder %v366, %v2178
        %v2184 = vlaneseq
        %v2185 = vshrl.u32 %v2184, 7
        %v2186 = vsub.s32 0, %v2185
        %v2187 = vrot.slane %v2156, %v2186
        %v2188 = vlaneseq
        %v2189 = vshrl.u32 %v2188, 7
        %v2190 = vsub.s32 1, %v2189
        %v2191 = vrot.slane %v2156, %v2190
        %v2194 = vsel %vm2179, %v2187, 0.0
        %v2195 = vsel %vm2180, %v2191, 0.0
        %v2196 = vsel %vm2181, %v2187, 0.0
        %v2197 = vsel %vm2182, %v2191, 0.0
        %vm2198 = vcmp.gt.s32.totalorder %v2151, 0
        %v2199 = vsel %vm2198, %v2151, 0
        %vm2200 = vcmp.lt.s32.totalorder %v2199, 15
        %v2201 = vsel %vm2200, %v2199, 15
        %v2202 = vlaneseq
        %v2203 = vshrl.u32 %v2202, 7
        %v2204 = vsub.s32 0, %v2203
        %v2205 = vrot.slane %v2201, %v2204
        %v2206 = vlaneseq
        %v2207 = vshrl.u32 %v2206, 7
        %v2208 = vsub.s32 1, %v2207
        %v2209 = vrot.slane %v2201, %v2208
        %vm2210 = vcmp.eq.s32.totalorder %v365, %v2205
        %vm2211 = vcmp.eq.s32.totalorder %v365, %v2209
        %vm2212 = vcmp.eq.s32.totalorder %v366, %v2205
        %vm2213 = vcmp.eq.s32.totalorder %v366, %v2209
        %v2215 = vlaneseq
        %v2216 = vshrl.u32 %v2215, 7
        %v2217 = vsub.s32 0, %v2216
        %v2218 = vrot.slane %v2159, %v2217
        %v2219 = vlaneseq
        %v2220 = vshrl.u32 %v2219, 7
        %v2221 = vsub.s32 1, %v2220
        %v2222 = vrot.slane %v2159, %v2221
        %v2225 = vsel %vm2210, %v2218, 0.0
        %v2226 = vsel %vm2211, %v2222, 0.0
        %v2227 = vsel %vm2212, %v2218, 0.0
        %v2228 = vsel %vm2213, %v2222, 0.0
        %v2229 = vadd.f32 %v2194, %v2225
        %v2230 = vadd.f32 %v2195, %v2226
        %v2231 = vadd.f32 %v2196, %v2227
        %v2232 = vadd.f32 %v2197, %v2228
        %vm2233 = vcmp.gt.s32.totalorder %v2150, 0
        %v2234 = vsel %vm2233, %v2150, 0
        %vm2235 = vcmp.lt.s32.totalorder %v2234, 15
        %v2236 = vsel %vm2235, %v2234, 15
        %v2237 = vlaneseq
        %v2238 = vshrl.u32 %v2237, 7
        %v2239 = vsub.s32 0, %v2238
        %v2240 = vrot.slane %v2236, %v2239
        %v2241 = vlaneseq
        %v2242 = vshrl.u32 %v2241, 7
        %v2243 = vsub.s32 1, %v2242
        %v2244 = vrot.slane %v2236, %v2243
        %vm2245 = vcmp.eq.s32.totalorder %v365, %v2240
        %vm2246 = vcmp.eq.s32.totalorder %v365, %v2244
        %vm2247 = vcmp.eq.s32.totalorder %v366, %v2240
        %vm2248 = vcmp.eq.s32.totalorder %v366, %v2244
        %v2250 = vlaneseq
        %v2251 = vshrl.u32 %v2250, 7
        %v2252 = vsub.s32 0, %v2251
        %v2253 = vrot.slane %v2163, %v2252
        %v2254 = vlaneseq
        %v2255 = vshrl.u32 %v2254, 7
        %v2256 = vsub.s32 1, %v2255
        %v2257 = vrot.slane %v2163, %v2256
        %v2260 = vsel %vm2245, %v2253, 0.0
        %v2261 = vsel %vm2246, %v2257, 0.0
        %v2262 = vsel %vm2247, %v2253, 0.0
        %v2263 = vsel %vm2248, %v2257, 0.0
        %vm2264 = vcmp.gt.s32.totalorder %v2152, 0
        %v2265 = vsel %vm2264, %v2152, 0
        %vm2266 = vcmp.lt.s32.totalorder %v2265, 15
        %v2267 = vsel %vm2266, %v2265, 15
        %v2268 = vlaneseq
        %v2269 = vshrl.u32 %v2268, 7
        %v2270 = vsub.s32 0, %v2269
        %v2271 = vrot.slane %v2267, %v2270
        %v2272 = vlaneseq
        %v2273 = vshrl.u32 %v2272, 7
        %v2274 = vsub.s32 1, %v2273
        %v2275 = vrot.slane %v2267, %v2274
        %vm2276 = vcmp.eq.s32.totalorder %v365, %v2271
        %vm2277 = vcmp.eq.s32.totalorder %v365, %v2275
        %vm2278 = vcmp.eq.s32.totalorder %v366, %v2271
        %vm2279 = vcmp.eq.s32.totalorder %v366, %v2275
        %v2281 = vlaneseq
        %v2282 = vshrl.u32 %v2281, 7
        %v2283 = vsub.s32 0, %v2282
        %v2284 = vrot.slane %v2166, %v2283
        %v2285 = vlaneseq
        %v2286 = vshrl.u32 %v2285, 7
        %v2287 = vsub.s32 1, %v2286
        %v2288 = vrot.slane %v2166, %v2287
        %v2291 = vsel %vm2276, %v2284, 0.0
        %v2292 = vsel %vm2277, %v2288, 0.0
        %v2293 = vsel %vm2278, %v2284, 0.0
        %v2294 = vsel %vm2279, %v2288, 0.0
        %v2295 = vadd.f32 %v2260, %v2291
        %v2296 = vadd.f32 %v2261, %v2292
        %v2297 = vadd.f32 %v2262, %v2293
        %v2298 = vadd.f32 %v2263, %v2294
        %v2299 = vlaneseq
        %v2300 = vshrl.u32 %v2299, 7
        %v2301 = vsub.s32 4, %v2300
        %v2302 = vrot.slane %v357, %v2301
        %v2303 = vlaneseq
        %v2304 = vshrl.u32 %v2303, 7
        %v2305 = vsub.s32 4, %v2304
        %v2306 = vrot.slane %v359, %v2305
        %v2307 = vmul.f32 %v2229, %v2302
        %v2308 = vmul.f32 %v2230, %v2306
        %v2309 = vmul.f32 %v2231, %v2302
        %v2310 = vmul.f32 %v2232, %v2306
        %v2311 = vpack.c.bf16 %v2297, %v2295
        %v2312 = vpack.c.bf16 %v2298, %v2296
        %2313 = vmatprep.subr.bf16.mxu0 %v2312
        %2314 = vmatpush1.bf16.msra.mxu0 %v2311
        %2315 = vmatprep.subr.bf16.mxu0 0
        %2316 = vmatpush1.bf16.msra.mxu0 0
        %2317 = vmatprep.subr.bf16.mxu0 0
        %2318 = vmatpush1.bf16.msra.mxu0 0
        %2319 = vmatprep.subr.bf16.mxu0 0
        %2320 = vmatpush1.bf16.msra.mxu0 0
        %2321 = vmatprep.subr.bf16.mxu0 0
        %2322 = vmatpush1.bf16.msra.mxu0 0
        %2323 = vmatprep.subr.bf16.mxu0 0
        %2324 = vmatpush1.bf16.msra.mxu0 0
        %2325 = vmatprep.subr.bf16.mxu0 0
        %2326 = vmatpush1.bf16.msra.mxu0 0
        %2327 = vmatprep.subr.bf16.mxu0 0
        %2328 = vmatpush1.bf16.msra.mxu0 0
        %2329 = vmatprep.subr.bf16.mxu0 0
        %2330 = vmatpush1.bf16.msra.mxu0 0
        %2331 = vmatprep.subr.bf16.mxu0 0
        %2332 = vmatpush1.bf16.msra.mxu0 0
        %2333 = vmatprep.subr.bf16.mxu0 0
        %2334 = vmatpush1.bf16.msra.mxu0 0
        %2335 = vmatprep.subr.bf16.mxu0 0
        %2336 = vmatpush1.bf16.msra.mxu0 0
        %2337 = vmatprep.subr.bf16.mxu0 0
        %2338 = vmatpush1.bf16.msra.mxu0 0
        %2339 = vmatprep.subr.bf16.mxu0 0
        %2340 = vmatpush1.bf16.msra.mxu0 0
        %2341 = vmatprep.subr.bf16.mxu0 0
        %2342 = vmatpush1.bf16.msra.mxu0 0
        %2343 = vmatprep.subr.bf16.mxu0 0
        %2344 = vmatpush1.bf16.msra.mxu0 0
        %2345 = vmatprep.mubr.bf16.mxu0 0
        %2346 = vmatmul.mubr.bf16.gmra.mrb[0].mxu0 %v654
        %v2347 = vpop.f32.mrb[0].mxu0
        %v2348 = vadd.f32 0.0, %v2347
        %v2349 = vpop.f32.mrb[0].mxu0
        %v2350 = vadd.f32 0.0, %v2349
        %v2351 = vpop.f32.mrb[0].mxu0
        %v2352 = vadd.f32 0.0, %v2351
        %v2353 = vpop.f32.mrb[0].mxu0
        %v2354 = vadd.f32 0.0, %v2353
        %2355 = vmatprep.mubr.bf16.mxu0 0
        %2356 = vmatmul.mubr.bf16.gmra.mrb[0].mxu0 %v657
        %v2357 = vpop.f32.mrb[0].mxu0
        %v2358 = vadd.f32 0.0, %v2357
        %v2359 = vpop.f32.mrb[0].mxu0
        %v2360 = vadd.f32 0.0, %v2359
        %v2361 = vpop.f32.mrb[0].mxu0
        %v2362 = vadd.f32 0.0, %v2361
        %v2363 = vpop.f32.mrb[0].mxu0
        %v2364 = vadd.f32 0.0, %v2363
        %2365 = vmatprep.mubr.bf16.mxu0 0
        %2366 = vmatmul.mubr.bf16.gmra.mrb[0].mxu0 %v660
        %v2367 = vpop.f32.mrb[0].mxu0
        %v2368 = vadd.f32 0.0, %v2367
        %v2369 = vpop.f32.mrb[0].mxu0
        %v2370 = vadd.f32 0.0, %v2369
        %v2371 = vpop.f32.mrb[0].mxu0
        %v2372 = vadd.f32 0.0, %v2371
        %v2373 = vpop.f32.mrb[0].mxu0
        %v2374 = vadd.f32 0.0, %v2373
        %2375 = vmatprep.mubr.bf16.mxu0 0
        %2376 = vmatmul.mubr.bf16.gmra.mrb[0].mxu0 %v663
        %v2377 = vpop.f32.mrb[0].mxu0
        %v2378 = vadd.f32 0.0, %v2377
        %v2379 = vpop.f32.mrb[0].mxu0
        %v2380 = vadd.f32 0.0, %v2379
        %v2381 = vpop.f32.mrb[0].mxu0
        %v2382 = vadd.f32 0.0, %v2381
        %v2383 = vpop.f32.mrb[0].mxu0
        %v2384 = vadd.f32 0.0, %v2383
        %2385 = vmatprep.mubr.bf16.mxu0 0
        %2386 = vmatmul.mubr.bf16.gmra.mrb[0].mxu0 %v666
        %v2387 = vpop.f32.mrb[0].mxu0
        %v2388 = vadd.f32 0.0, %v2387
        %v2389 = vpop.f32.mrb[0].mxu0
        %v2390 = vadd.f32 0.0, %v2389
        %v2391 = vpop.f32.mrb[0].mxu0
        %v2392 = vadd.f32 0.0, %v2391
        %v2393 = vpop.f32.mrb[0].mxu0
        %v2394 = vadd.f32 0.0, %v2393
        %2395 = vmatprep.mubr.bf16.mxu0 0
        %2396 = vmatmul.mubr.bf16.gmra.mrb[0].mxu0 %v669
        %v2397 = vpop.f32.mrb[0].mxu0
        %v2398 = vadd.f32 0.0, %v2397
        %v2399 = vpop.f32.mrb[0].mxu0
        %v2400 = vadd.f32 0.0, %v2399
        %v2401 = vpop.f32.mrb[0].mxu0
        %v2402 = vadd.f32 0.0, %v2401
        %v2403 = vpop.f32.mrb[0].mxu0
        %v2404 = vadd.f32 0.0, %v2403
        %2405 = vmatprep.mubr.bf16.mxu0 0
        %2406 = vmatmul.mubr.bf16.gmra.mrb[0].mxu0 %v672
        %v2407 = vpop.f32.mrb[0].mxu0
        %v2408 = vadd.f32 0.0, %v2407
        %v2409 = vpop.f32.mrb[0].mxu0
        %v2410 = vadd.f32 0.0, %v2409
        %v2411 = vpop.f32.mrb[0].mxu0
        %v2412 = vadd.f32 0.0, %v2411
        %v2413 = vpop.f32.mrb[0].mxu0
        %v2414 = vadd.f32 0.0, %v2413
        %2415 = vmatprep.mubr.bf16.mxu0 0
        %2416 = vmatmul.mubr.bf16.gmra.mrb[0].mxu0 %v675
        %v2417 = vpop.f32.mrb[0].mxu0
        %v2418 = vadd.f32 0.0, %v2417
        %v2419 = vpop.f32.mrb[0].mxu0
        %v2420 = vadd.f32 0.0, %v2419
        %v2421 = vpop.f32.mrb[0].mxu0
        %v2422 = vadd.f32 0.0, %v2421
        %v2423 = vpop.f32.mrb[0].mxu0
        %v2424 = vadd.f32 0.0, %v2423
        %2425 = vmatprep.mubr.bf16.mxu0 0
        %2426 = vmatmul.mubr.bf16.gmra.mrb[0].mxu0 %v678
        %v2427 = vpop.f32.mrb[0].mxu0
        %v2428 = vadd.f32 0.0, %v2427
        %v2429 = vpop.f32.mrb[0].mxu0
        %v2430 = vadd.f32 0.0, %v2429
        %v2431 = vpop.f32.mrb[0].mxu0
        %v2432 = vadd.f32 0.0, %v2431
        %v2433 = vpop.f32.mrb[0].mxu0
        %v2434 = vadd.f32 0.0, %v2433
        %2435 = vmatprep.mubr.bf16.mxu0 0
        %2436 = vmatmul.mubr.bf16.gmra.mrb[0].mxu0 %v681
        %v2437 = vpop.f32.mrb[0].mxu0
        %v2438 = vadd.f32 0.0, %v2437
        %v2439 = vpop.f32.mrb[0].mxu0
        %v2440 = vadd.f32 0.0, %v2439
        %v2441 = vpop.f32.mrb[0].mxu0
        %v2442 = vadd.f32 0.0, %v2441
        %v2443 = vpop.f32.mrb[0].mxu0
        %v2444 = vadd.f32 0.0, %v2443
        %2445 = vmatprep.mubr.bf16.mxu0 0
        %2446 = vmatmul.mubr.bf16.gmra.mrb[0].mxu0 %v684
        %v2447 = vpop.f32.mrb[0].mxu0
        %v2448 = vadd.f32 0.0, %v2447
        %v2449 = vpop.f32.mrb[0].mxu0
        %v2450 = vadd.f32 0.0, %v2449
        %v2451 = vpop.f32.mrb[0].mxu0
        %v2452 = vadd.f32 0.0, %v2451
        %v2453 = vpop.f32.mrb[0].mxu0
        %v2454 = vadd.f32 0.0, %v2453
        %2455 = vmatprep.mubr.bf16.mxu0 0
        %2456 = vmatmul.mubr.bf16.gmra.mrb[0].mxu0 %v687
        %v2457 = vpop.f32.mrb[0].mxu0
        %v2458 = vadd.f32 0.0, %v2457
        %v2459 = vpop.f32.mrb[0].mxu0
        %v2460 = vadd.f32 0.0, %v2459
        %v2461 = vpop.f32.mrb[0].mxu0
        %v2462 = vadd.f32 0.0, %v2461
        %v2463 = vpop.f32.mrb[0].mxu0
        %v2464 = vadd.f32 0.0, %v2463
        %2465 = vmatprep.mubr.bf16.mxu0 0
        %2466 = vmatmul.mubr.bf16.gmra.mrb[0].mxu0 %v690
        %v2467 = vpop.f32.mrb[0].mxu0
        %v2468 = vadd.f32 0.0, %v2467
        %v2469 = vpop.f32.mrb[0].mxu0
        %v2470 = vadd.f32 0.0, %v2469
        %v2471 = vpop.f32.mrb[0].mxu0
        %v2472 = vadd.f32 0.0, %v2471
        %v2473 = vpop.f32.mrb[0].mxu0
        %v2474 = vadd.f32 0.0, %v2473
        %2475 = vmatprep.mubr.bf16.mxu0 0
        %2476 = vmatmul.mubr.bf16.gmra.mrb[0].mxu0 %v693
        %v2477 = vpop.f32.mrb[0].mxu0
        %v2478 = vadd.f32 0.0, %v2477
        %v2479 = vpop.f32.mrb[0].mxu0
        %v2480 = vadd.f32 0.0, %v2479
        %v2481 = vpop.f32.mrb[0].mxu0
        %v2482 = vadd.f32 0.0, %v2481
        %v2483 = vpop.f32.mrb[0].mxu0
        %v2484 = vadd.f32 0.0, %v2483
        %2485 = vmatprep.mubr.bf16.mxu0 0
        %2486 = vmatmul.mubr.bf16.gmra.mrb[0].mxu0 %v696
        %v2487 = vpop.f32.mrb[0].mxu0
        %v2488 = vadd.f32 0.0, %v2487
        %v2489 = vpop.f32.mrb[0].mxu0
        %v2490 = vadd.f32 0.0, %v2489
        %v2491 = vpop.f32.mrb[0].mxu0
        %v2492 = vadd.f32 0.0, %v2491
        %v2493 = vpop.f32.mrb[0].mxu0
        %v2494 = vadd.f32 0.0, %v2493
        %2495 = vmatprep.mubr.bf16.mxu0 0
        %2496 = vmatmul.mubr.bf16.gmra.mrb[0].mxu0 %v699
        %v2497 = vpop.f32.mrb[0].mxu0
        %v2498 = vadd.f32 0.0, %v2497
        %v2499 = vpop.f32.mrb[0].mxu0
        %v2500 = vadd.f32 0.0, %v2499
        %v2501 = vpop.f32.mrb[0].mxu0
        %v2502 = vadd.f32 0.0, %v2501
        %v2503 = vpop.f32.mrb[0].mxu0
        %v2504 = vadd.f32 0.0, %v2503
        %2505 = vdwg.mxu0
        %v2506 = vmul.f32 %v2348, %v2307
        %v2507 = vmul.f32 %v2350, %v2308
        %v2508 = vmul.f32 %v2352, %v2309
        %v2509 = vmul.f32 %v2354, %v2310
        %v2510 = vmul.f32 %v2358, %v2307
        %v2511 = vmul.f32 %v2360, %v2308
        %v2512 = vmul.f32 %v2362, %v2309
        %v2513 = vmul.f32 %v2364, %v2310
        %v2514 = vmul.f32 %v2368, %v2307
        %v2515 = vmul.f32 %v2370, %v2308
        %v2516 = vmul.f32 %v2372, %v2309
        %v2517 = vmul.f32 %v2374, %v2310
        %v2518 = vmul.f32 %v2378, %v2307
        %v2519 = vmul.f32 %v2380, %v2308
        %v2520 = vmul.f32 %v2382, %v2309
        %v2521 = vmul.f32 %v2384, %v2310
        %v2522 = vmul.f32 %v2388, %v2307
        %v2523 = vmul.f32 %v2390, %v2308
        %v2524 = vmul.f32 %v2392, %v2309
        %v2525 = vmul.f32 %v2394, %v2310
        %v2526 = vmul.f32 %v2398, %v2307
        %v2527 = vmul.f32 %v2400, %v2308
        %v2528 = vmul.f32 %v2402, %v2309
        %v2529 = vmul.f32 %v2404, %v2310
        %v2530 = vmul.f32 %v2408, %v2307
        %v2531 = vmul.f32 %v2410, %v2308
        %v2532 = vmul.f32 %v2412, %v2309
        %v2533 = vmul.f32 %v2414, %v2310
        %v2534 = vmul.f32 %v2418, %v2307
        %v2535 = vmul.f32 %v2420, %v2308
        %v2536 = vmul.f32 %v2422, %v2309
        %v2537 = vmul.f32 %v2424, %v2310
        %v2538 = vmul.f32 %v2428, %v2307
        %v2539 = vmul.f32 %v2430, %v2308
        %v2540 = vmul.f32 %v2432, %v2309
        %v2541 = vmul.f32 %v2434, %v2310
        %v2542 = vmul.f32 %v2438, %v2307
        %v2543 = vmul.f32 %v2440, %v2308
        %v2544 = vmul.f32 %v2442, %v2309
        %v2545 = vmul.f32 %v2444, %v2310
        %v2546 = vmul.f32 %v2448, %v2307
        %v2547 = vmul.f32 %v2450, %v2308
        %v2548 = vmul.f32 %v2452, %v2309
        %v2549 = vmul.f32 %v2454, %v2310
        %v2550 = vmul.f32 %v2458, %v2307
        %v2551 = vmul.f32 %v2460, %v2308
        %v2552 = vmul.f32 %v2462, %v2309
        %v2553 = vmul.f32 %v2464, %v2310
        %v2554 = vmul.f32 %v2468, %v2307
        %v2555 = vmul.f32 %v2470, %v2308
        %v2556 = vmul.f32 %v2472, %v2309
        %v2557 = vmul.f32 %v2474, %v2310
        %v2558 = vmul.f32 %v2478, %v2307
        %v2559 = vmul.f32 %v2480, %v2308
        %v2560 = vmul.f32 %v2482, %v2309
        %v2561 = vmul.f32 %v2484, %v2310
        %v2562 = vmul.f32 %v2488, %v2307
        %v2563 = vmul.f32 %v2490, %v2308
        %v2564 = vmul.f32 %v2492, %v2309
        %v2565 = vmul.f32 %v2494, %v2310
        %v2566 = vmul.f32 %v2498, %v2307
        %v2567 = vmul.f32 %v2500, %v2308
        %v2568 = vmul.f32 %v2502, %v2309
        %v2569 = vmul.f32 %v2504, %v2310
        %v2570 = vadd.f32 %v2506, %v2508
        %v2571 = vrot.slane %v2570, 4
        %v2572 = vadd.f32 %v2570, %v2571
        %v2573 = vrot.slane %v2572, 2
        %v2574 = vadd.f32 %v2572, %v2573
        %v2575 = vrot.slane %v2574, 1
        %v2576 = vadd.f32 %v2574, %v2575
        %v2577 = vadd.f32 %v2507, %v2509
        %v2578 = vrot.slane %v2577, 4
        %v2579 = vadd.f32 %v2577, %v2578
        %v2580 = vrot.slane %v2579, 2
        %v2581 = vadd.f32 %v2579, %v2580
        %v2582 = vrot.slane %v2581, 1
        %v2583 = vadd.f32 %v2581, %v2582
        %v2584 = vadd.f32 %v2510, %v2512
        %v2585 = vrot.slane %v2584, 4
        %v2586 = vadd.f32 %v2584, %v2585
        %v2587 = vrot.slane %v2586, 2
        %v2588 = vadd.f32 %v2586, %v2587
        %v2589 = vrot.slane %v2588, 1
        %v2590 = vadd.f32 %v2588, %v2589
        %v2591 = vadd.f32 %v2511, %v2513
        %v2592 = vrot.slane %v2591, 4
        %v2593 = vadd.f32 %v2591, %v2592
        %v2594 = vrot.slane %v2593, 2
        %v2595 = vadd.f32 %v2593, %v2594
        %v2596 = vrot.slane %v2595, 1
        %v2597 = vadd.f32 %v2595, %v2596
        %v2598 = vadd.f32 %v2514, %v2516
        %v2599 = vrot.slane %v2598, 4
        %v2600 = vadd.f32 %v2598, %v2599
        %v2601 = vrot.slane %v2600, 2
        %v2602 = vadd.f32 %v2600, %v2601
        %v2603 = vrot.slane %v2602, 1
        %v2604 = vadd.f32 %v2602, %v2603
        %v2605 = vadd.f32 %v2515, %v2517
        %v2606 = vrot.slane %v2605, 4
        %v2607 = vadd.f32 %v2605, %v2606
        %v2608 = vrot.slane %v2607, 2
        %v2609 = vadd.f32 %v2607, %v2608
        %v2610 = vrot.slane %v2609, 1
        %v2611 = vadd.f32 %v2609, %v2610
        %v2612 = vadd.f32 %v2518, %v2520
        %v2613 = vrot.slane %v2612, 4
        %v2614 = vadd.f32 %v2612, %v2613
        %v2615 = vrot.slane %v2614, 2
        %v2616 = vadd.f32 %v2614, %v2615
        %v2617 = vrot.slane %v2616, 1
        %v2618 = vadd.f32 %v2616, %v2617
        %v2619 = vadd.f32 %v2519, %v2521
        %v2620 = vrot.slane %v2619, 4
        %v2621 = vadd.f32 %v2619, %v2620
        %v2622 = vrot.slane %v2621, 2
        %v2623 = vadd.f32 %v2621, %v2622
        %v2624 = vrot.slane %v2623, 1
        %v2625 = vadd.f32 %v2623, %v2624
        %v2626 = vadd.f32 %v2522, %v2524
        %v2627 = vrot.slane %v2626, 4
        %v2628 = vadd.f32 %v2626, %v2627
        %v2629 = vrot.slane %v2628, 2
        %v2630 = vadd.f32 %v2628, %v2629
        %v2631 = vrot.slane %v2630, 1
        %v2632 = vadd.f32 %v2630, %v2631
        %v2633 = vadd.f32 %v2523, %v2525
        %v2634 = vrot.slane %v2633, 4
        %v2635 = vadd.f32 %v2633, %v2634
        %v2636 = vrot.slane %v2635, 2
        %v2637 = vadd.f32 %v2635, %v2636
        %v2638 = vrot.slane %v2637, 1
        %v2639 = vadd.f32 %v2637, %v2638
        %v2640 = vadd.f32 %v2526, %v2528
        %v2641 = vrot.slane %v2640, 4
        %v2642 = vadd.f32 %v2640, %v2641
        %v2643 = vrot.slane %v2642, 2
        %v2644 = vadd.f32 %v2642, %v2643
        %v2645 = vrot.slane %v2644, 1
        %v2646 = vadd.f32 %v2644, %v2645
        %v2647 = vadd.f32 %v2527, %v2529
        %v2648 = vrot.slane %v2647, 4
        %v2649 = vadd.f32 %v2647, %v2648
        %v2650 = vrot.slane %v2649, 2
        %v2651 = vadd.f32 %v2649, %v2650
        %v2652 = vrot.slane %v2651, 1
        %v2653 = vadd.f32 %v2651, %v2652
        %v2654 = vadd.f32 %v2530, %v2532
        %v2655 = vrot.slane %v2654, 4
        %v2656 = vadd.f32 %v2654, %v2655
        %v2657 = vrot.slane %v2656, 2
        %v2658 = vadd.f32 %v2656, %v2657
        %v2659 = vrot.slane %v2658, 1
        %v2660 = vadd.f32 %v2658, %v2659
        %v2661 = vadd.f32 %v2531, %v2533
        %v2662 = vrot.slane %v2661, 4
        %v2663 = vadd.f32 %v2661, %v2662
        %v2664 = vrot.slane %v2663, 2
        %v2665 = vadd.f32 %v2663, %v2664
        %v2666 = vrot.slane %v2665, 1
        %v2667 = vadd.f32 %v2665, %v2666
        %v2668 = vadd.f32 %v2534, %v2536
        %v2669 = vrot.slane %v2668, 4
        %v2670 = vadd.f32 %v2668, %v2669
        %v2671 = vrot.slane %v2670, 2
        %v2672 = vadd.f32 %v2670, %v2671
        %v2673 = vrot.slane %v2672, 1
        %v2674 = vadd.f32 %v2672, %v2673
        %v2675 = vadd.f32 %v2535, %v2537
        %v2676 = vrot.slane %v2675, 4
        %v2677 = vadd.f32 %v2675, %v2676
        %v2678 = vrot.slane %v2677, 2
        %v2679 = vadd.f32 %v2677, %v2678
        %v2680 = vrot.slane %v2679, 1
        %v2681 = vadd.f32 %v2679, %v2680
        %v2682 = vadd.f32 %v2538, %v2540
        %v2683 = vrot.slane %v2682, 4
        %v2684 = vadd.f32 %v2682, %v2683
        %v2685 = vrot.slane %v2684, 2
        %v2686 = vadd.f32 %v2684, %v2685
        %v2687 = vrot.slane %v2686, 1
        %v2688 = vadd.f32 %v2686, %v2687
        %v2689 = vadd.f32 %v2539, %v2541
        %v2690 = vrot.slane %v2689, 4
        %v2691 = vadd.f32 %v2689, %v2690
        %v2692 = vrot.slane %v2691, 2
        %v2693 = vadd.f32 %v2691, %v2692
        %v2694 = vrot.slane %v2693, 1
        %v2695 = vadd.f32 %v2693, %v2694
        %v2696 = vadd.f32 %v2542, %v2544
        %v2697 = vrot.slane %v2696, 4
        %v2698 = vadd.f32 %v2696, %v2697
        %v2699 = vrot.slane %v2698, 2
        %v2700 = vadd.f32 %v2698, %v2699
        %v2701 = vrot.slane %v2700, 1
        %v2702 = vadd.f32 %v2700, %v2701
        %v2703 = vadd.f32 %v2543, %v2545
        %v2704 = vrot.slane %v2703, 4
        %v2705 = vadd.f32 %v2703, %v2704
        %v2706 = vrot.slane %v2705, 2
        %v2707 = vadd.f32 %v2705, %v2706
        %v2708 = vrot.slane %v2707, 1
        %v2709 = vadd.f32 %v2707, %v2708
        %v2710 = vadd.f32 %v2546, %v2548
        %v2711 = vrot.slane %v2710, 4
        %v2712 = vadd.f32 %v2710, %v2711
        %v2713 = vrot.slane %v2712, 2
        %v2714 = vadd.f32 %v2712, %v2713
        %v2715 = vrot.slane %v2714, 1
        %v2716 = vadd.f32 %v2714, %v2715
        %v2717 = vadd.f32 %v2547, %v2549
        %v2718 = vrot.slane %v2717, 4
        %v2719 = vadd.f32 %v2717, %v2718
        %v2720 = vrot.slane %v2719, 2
        %v2721 = vadd.f32 %v2719, %v2720
        %v2722 = vrot.slane %v2721, 1
        %v2723 = vadd.f32 %v2721, %v2722
        %v2724 = vadd.f32 %v2550, %v2552
        %v2725 = vrot.slane %v2724, 4
        %v2726 = vadd.f32 %v2724, %v2725
        %v2727 = vrot.slane %v2726, 2
        %v2728 = vadd.f32 %v2726, %v2727
        %v2729 = vrot.slane %v2728, 1
        %v2730 = vadd.f32 %v2728, %v2729
        %v2731 = vadd.f32 %v2551, %v2553
        %v2732 = vrot.slane %v2731, 4
        %v2733 = vadd.f32 %v2731, %v2732
        %v2734 = vrot.slane %v2733, 2
        %v2735 = vadd.f32 %v2733, %v2734
        %v2736 = vrot.slane %v2735, 1
        %v2737 = vadd.f32 %v2735, %v2736
        %v2738 = vadd.f32 %v2554, %v2556
        %v2739 = vrot.slane %v2738, 4
        %v2740 = vadd.f32 %v2738, %v2739
        %v2741 = vrot.slane %v2740, 2
        %v2742 = vadd.f32 %v2740, %v2741
        %v2743 = vrot.slane %v2742, 1
        %v2744 = vadd.f32 %v2742, %v2743
        %v2745 = vadd.f32 %v2555, %v2557
        %v2746 = vrot.slane %v2745, 4
        %v2747 = vadd.f32 %v2745, %v2746
        %v2748 = vrot.slane %v2747, 2
        %v2749 = vadd.f32 %v2747, %v2748
        %v2750 = vrot.slane %v2749, 1
        %v2751 = vadd.f32 %v2749, %v2750
        %v2752 = vadd.f32 %v2558, %v2560
        %v2753 = vrot.slane %v2752, 4
        %v2754 = vadd.f32 %v2752, %v2753
        %v2755 = vrot.slane %v2754, 2
        %v2756 = vadd.f32 %v2754, %v2755
        %v2757 = vrot.slane %v2756, 1
        %v2758 = vadd.f32 %v2756, %v2757
        %v2759 = vadd.f32 %v2559, %v2561
        %v2760 = vrot.slane %v2759, 4
        %v2761 = vadd.f32 %v2759, %v2760
        %v2762 = vrot.slane %v2761, 2
        %v2763 = vadd.f32 %v2761, %v2762
        %v2764 = vrot.slane %v2763, 1
        %v2765 = vadd.f32 %v2763, %v2764
        %v2766 = vadd.f32 %v2562, %v2564
        %v2767 = vrot.slane %v2766, 4
        %v2768 = vadd.f32 %v2766, %v2767
        %v2769 = vrot.slane %v2768, 2
        %v2770 = vadd.f32 %v2768, %v2769
        %v2771 = vrot.slane %v2770, 1
        %v2772 = vadd.f32 %v2770, %v2771
        %v2773 = vadd.f32 %v2563, %v2565
        %v2774 = vrot.slane %v2773, 4
        %v2775 = vadd.f32 %v2773, %v2774
        %v2776 = vrot.slane %v2775, 2
        %v2777 = vadd.f32 %v2775, %v2776
        %v2778 = vrot.slane %v2777, 1
        %v2779 = vadd.f32 %v2777, %v2778
        %v2780 = vadd.f32 %v2566, %v2568
        %v2781 = vrot.slane %v2780, 4
        %v2782 = vadd.f32 %v2780, %v2781
        %v2783 = vrot.slane %v2782, 2
        %v2784 = vadd.f32 %v2782, %v2783
        %v2785 = vrot.slane %v2784, 1
        %v2786 = vadd.f32 %v2784, %v2785
        %v2787 = vadd.f32 %v2567, %v2569
        %v2788 = vrot.slane %v2787, 4
        %v2789 = vadd.f32 %v2787, %v2788
        %v2790 = vrot.slane %v2789, 2
        %v2791 = vadd.f32 %v2789, %v2790
        %v2792 = vrot.slane %v2791, 1
        %v2793 = vadd.f32 %v2791, %v2792
        %v2794 = vpack.c.bf16 %v2576, %v2576
        %v2795 = vpack.c.bf16 %v2583, %v2583
        %v2796 = vpack.c.bf16 %v2590, %v2590
        %v2797 = vpack.c.bf16 %v2597, %v2597
        %v2798 = vpack.c.bf16 %v2604, %v2604
        %v2799 = vpack.c.bf16 %v2611, %v2611
        %v2800 = vpack.c.bf16 %v2618, %v2618
        %v2801 = vpack.c.bf16 %v2625, %v2625
        %v2802 = vpack.c.bf16 %v2632, %v2632
        %v2803 = vpack.c.bf16 %v2639, %v2639
        %v2804 = vpack.c.bf16 %v2646, %v2646
        %v2805 = vpack.c.bf16 %v2653, %v2653
        %v2806 = vpack.c.bf16 %v2660, %v2660
        %v2807 = vpack.c.bf16 %v2667, %v2667
        %v2808 = vpack.c.bf16 %v2674, %v2674
        %v2809 = vpack.c.bf16 %v2681, %v2681
        %v2810 = vpack.c.bf16 %v2688, %v2688
        %v2811 = vpack.c.bf16 %v2695, %v2695
        %v2812 = vpack.c.bf16 %v2702, %v2702
        %v2813 = vpack.c.bf16 %v2709, %v2709
        %v2814 = vpack.c.bf16 %v2716, %v2716
        %v2815 = vpack.c.bf16 %v2723, %v2723
        %v2816 = vpack.c.bf16 %v2730, %v2730
        %v2817 = vpack.c.bf16 %v2737, %v2737
        %v2818 = vpack.c.bf16 %v2744, %v2744
        %v2819 = vpack.c.bf16 %v2751, %v2751
        %v2820 = vpack.c.bf16 %v2758, %v2758
        %v2821 = vpack.c.bf16 %v2765, %v2765
        %v2822 = vpack.c.bf16 %v2772, %v2772
        %v2823 = vpack.c.bf16 %v2779, %v2779
        %v2824 = vpack.c.bf16 %v2786, %v2786
        %v2825 = vpack.c.bf16 %v2793, %v2793
        %v2858 = vunpack.c.l.b16 %v2794
        %v2859 = vunpack.c.l.b16 %v2795
        %v2860 = vunpack.c.l.b16 %v2796
        %v2861 = vunpack.c.l.b16 %v2797
        %v2862 = vunpack.c.l.b16 %v2798
        %v2863 = vunpack.c.l.b16 %v2799
        %v2864 = vunpack.c.l.b16 %v2800
        %v2865 = vunpack.c.l.b16 %v2801
        %v2866 = vunpack.c.l.b16 %v2802
        %v2867 = vunpack.c.l.b16 %v2803
        %v2868 = vunpack.c.l.b16 %v2804
        %v2869 = vunpack.c.l.b16 %v2805
        %v2870 = vunpack.c.l.b16 %v2806
        %v2871 = vunpack.c.l.b16 %v2807
        %v2872 = vunpack.c.l.b16 %v2808
        %v2873 = vunpack.c.l.b16 %v2809
        %v2874 = vunpack.c.l.b16 %v2810
        %v2875 = vunpack.c.l.b16 %v2811
        %v2876 = vunpack.c.l.b16 %v2812
        %v2877 = vunpack.c.l.b16 %v2813
        %v2878 = vunpack.c.l.b16 %v2814
        %v2879 = vunpack.c.l.b16 %v2815
        %v2880 = vunpack.c.l.b16 %v2816
        %v2881 = vunpack.c.l.b16 %v2817
        %v2882 = vunpack.c.l.b16 %v2818
        %v2883 = vunpack.c.l.b16 %v2819
        %v2884 = vunpack.c.l.b16 %v2820
        %v2885 = vunpack.c.l.b16 %v2821
        %v2886 = vunpack.c.l.b16 %v2822
        %v2887 = vunpack.c.l.b16 %v2823
        %v2888 = vunpack.c.l.b16 %v2824
        %v2889 = vunpack.c.l.b16 %v2825
        %v2890 = vsel %vm1278, %v2860, %v2858
        %v2891 = vsel %vm1280, %v2862, %v2890
        %v2892 = vsel %vm1282, %v2864, %v2891
        %v2893 = vsel %vm1284, %v2866, %v2892
        %v2894 = vsel %vm1286, %v2868, %v2893
        %v2895 = vsel %vm1288, %v2870, %v2894
        %v2896 = vsel %vm1290, %v2872, %v2895
        %v2897 = vsel %vm1278, %v2861, %v2859
        %v2898 = vsel %vm1280, %v2863, %v2897
        %v2899 = vsel %vm1282, %v2865, %v2898
        %v2900 = vsel %vm1284, %v2867, %v2899
        %v2901 = vsel %vm1286, %v2869, %v2900
        %v2902 = vsel %vm1288, %v2871, %v2901
        %v2903 = vsel %vm1290, %v2873, %v2902
        %v2904 = vsel %vm1278, %v2876, %v2874
        %v2905 = vsel %vm1280, %v2878, %v2904
        %v2906 = vsel %vm1282, %v2880, %v2905
        %v2907 = vsel %vm1284, %v2882, %v2906
        %v2908 = vsel %vm1286, %v2884, %v2907
        %v2909 = vsel %vm1288, %v2886, %v2908
        %v2910 = vsel %vm1290, %v2888, %v2909
        %v2911 = vsel %vm1278, %v2877, %v2875
        %v2912 = vsel %vm1280, %v2879, %v2911
        %v2913 = vsel %vm1282, %v2881, %v2912
        %v2914 = vsel %vm1284, %v2883, %v2913
        %v2915 = vsel %vm1286, %v2885, %v2914
        %v2916 = vsel %vm1288, %v2887, %v2915
        %v2917 = vsel %vm1290, %v2889, %v2916
        %v2918 = vpack.c.b16 %v2910, %v2896
        %v2919 = vpack.c.b16 %v2917, %v2903
        %2922 = vst [vmem:[#allocation2 + $0x20] sm:$0xff] %v2918
        %2923 = vst [vmem:[#allocation2 + $0x28] sm:$0xff] %v2919
        %v2924 = vadd.f32 %v337, 1.0
        %v2925 = vcombine.high %v2125, %v2125
        %v2927 = vadd.f32 %v2924, %v2925
        %v2928 = vcombine.high %v2136, %v2136
        %v2930 = vadd.f32 %v387, %v2928
        %vm2931 = vcmp.gt.f32.partialorder %v2927, -1.0
        %vm2932 = vcmp.lt.f32.partialorder %v2927, 16.0
        %vm2933 = vmand %vm2931, %vm2932
        %vm2934 = vcmp.gt.f32.partialorder %v2930, -1.0
        %vm2935 = vcmp.lt.f32.partialorder %v2930, 16.0
        %vm2936 = vmand %vm2934, %vm2935
        %v2937 = vfloor.f32 %v2927
        %v2938 = vfloor.f32 %v2930
        %v2939 = vsub.f32 %v2927, %v2937
        %v2940 = vsub.f32 %v2930, %v2938
        %v2941 = vcvt.f32.s32.to.zero.pseudo %v2937
        %v2942 = vcvt.f32.s32.to.zero.pseudo %v2938
        %v2943 = vadd.s32 %v2941, 1
        %v2944 = vadd.s32 %v2942, 1
        %vm2945 = vcmp.ge.s32.totalorder %v2941, 0
        %vm2946 = vmand %vm2933, %vm2945
        %v2947 = vsub.f32 1.0, %v2939
        %v2948 = vsel %vm2946, %v2947, 0.0
        %vm2949 = vcmp.le.s32.totalorder %v2943, 15
        %vm2950 = vmand %vm2933, %vm2949
        %v2951 = vsel %vm2950, %v2939, 0.0
        %vm2952 = vcmp.ge.s32.totalorder %v2942, 0
        %vm2953 = vmand %vm2936, %vm2952
        %v2954 = vsub.f32 1.0, %v2940
        %v2955 = vsel %vm2953, %v2954, 0.0
        %vm2956 = vcmp.le.s32.totalorder %v2944, 15
        %vm2957 = vmand %vm2936, %vm2956
        %v2958 = vsel %vm2957, %v2940, 0.0
        %vm2959 = vcmp.gt.s32.totalorder %v2941, 0
        %v2960 = vsel %vm2959, %v2941, 0
        %vm2961 = vcmp.lt.s32.totalorder %v2960, 15
        %v2962 = vsel %vm2961, %v2960, 15
        %v2963 = vlaneseq
        %v2964 = vshrl.u32 %v2963, 7
        %v2965 = vsub.s32 0, %v2964
        %v2966 = vrot.slane %v2962, %v2965
        %v2967 = vlaneseq
        %v2968 = vshrl.u32 %v2967, 7
        %v2969 = vsub.s32 1, %v2968
        %v2970 = vrot.slane %v2962, %v2969
        %vm2971 = vcmp.eq.s32.totalorder %v365, %v2966
        %vm2972 = vcmp.eq.s32.totalorder %v365, %v2970
        %vm2973 = vcmp.eq.s32.totalorder %v366, %v2966
        %vm2974 = vcmp.eq.s32.totalorder %v366, %v2970
        %v2976 = vlaneseq
        %v2977 = vshrl.u32 %v2976, 7
        %v2978 = vsub.s32 0, %v2977
        %v2979 = vrot.slane %v2948, %v2978
        %v2980 = vlaneseq
        %v2981 = vshrl.u32 %v2980, 7
        %v2982 = vsub.s32 1, %v2981
        %v2983 = vrot.slane %v2948, %v2982
        %v2986 = vsel %vm2971, %v2979, 0.0
        %v2987 = vsel %vm2972, %v2983, 0.0
        %v2988 = vsel %vm2973, %v2979, 0.0
        %v2989 = vsel %vm2974, %v2983, 0.0
        %vm2990 = vcmp.gt.s32.totalorder %v2943, 0
        %v2991 = vsel %vm2990, %v2943, 0
        %vm2992 = vcmp.lt.s32.totalorder %v2991, 15
        %v2993 = vsel %vm2992, %v2991, 15
        %v2994 = vlaneseq
        %v2995 = vshrl.u32 %v2994, 7
        %v2996 = vsub.s32 0, %v2995
        %v2997 = vrot.slane %v2993, %v2996
        %v2998 = vlaneseq
        %v2999 = vshrl.u32 %v2998, 7
        %v3000 = vsub.s32 1, %v2999
        %v3001 = vrot.slane %v2993, %v3000
        %vm3002 = vcmp.eq.s32.totalorder %v365, %v2997
        %vm3003 = vcmp.eq.s32.totalorder %v365, %v3001
        %vm3004 = vcmp.eq.s32.totalorder %v366, %v2997
        %vm3005 = vcmp.eq.s32.totalorder %v366, %v3001
        %v3007 = vlaneseq
        %v3008 = vshrl.u32 %v3007, 7
        %v3009 = vsub.s32 0, %v3008
        %v3010 = vrot.slane %v2951, %v3009
        %v3011 = vlaneseq
        %v3012 = vshrl.u32 %v3011, 7
        %v3013 = vsub.s32 1, %v3012
        %v3014 = vrot.slane %v2951, %v3013
        %v3017 = vsel %vm3002, %v3010, 0.0
        %v3018 = vsel %vm3003, %v3014, 0.0
        %v3019 = vsel %vm3004, %v3010, 0.0
        %v3020 = vsel %vm3005, %v3014, 0.0
        %v3021 = vadd.f32 %v2986, %v3017
        %v3022 = vadd.f32 %v2987, %v3018
        %v3023 = vadd.f32 %v2988, %v3019
        %v3024 = vadd.f32 %v2989, %v3020
        %vm3025 = vcmp.gt.s32.totalorder %v2942, 0
        %v3026 = vsel %vm3025, %v2942, 0
        %vm3027 = vcmp.lt.s32.totalorder %v3026, 15
        %v3028 = vsel %vm3027, %v3026, 15
        %v3029 = vlaneseq
        %v3030 = vshrl.u32 %v3029, 7
        %v3031 = vsub.s32 0, %v3030
        %v3032 = vrot.slane %v3028, %v3031
        %v3033 = vlaneseq
        %v3034 = vshrl.u32 %v3033, 7
        %v3035 = vsub.s32 1, %v3034
        %v3036 = vrot.slane %v3028, %v3035
        %vm3037 = vcmp.eq.s32.totalorder %v365, %v3032
        %vm3038 = vcmp.eq.s32.totalorder %v365, %v3036
        %vm3039 = vcmp.eq.s32.totalorder %v366, %v3032
        %vm3040 = vcmp.eq.s32.totalorder %v366, %v3036
        %v3042 = vlaneseq
        %v3043 = vshrl.u32 %v3042, 7
        %v3044 = vsub.s32 0, %v3043
        %v3045 = vrot.slane %v2955, %v3044
        %v3046 = vlaneseq
        %v3047 = vshrl.u32 %v3046, 7
        %v3048 = vsub.s32 1, %v3047
        %v3049 = vrot.slane %v2955, %v3048
        %v3052 = vsel %vm3037, %v3045, 0.0
        %v3053 = vsel %vm3038, %v3049, 0.0
        %v3054 = vsel %vm3039, %v3045, 0.0
        %v3055 = vsel %vm3040, %v3049, 0.0
        %vm3056 = vcmp.gt.s32.totalorder %v2944, 0
        %v3057 = vsel %vm3056, %v2944, 0
        %vm3058 = vcmp.lt.s32.totalorder %v3057, 15
        %v3059 = vsel %vm3058, %v3057, 15
        %v3060 = vlaneseq
        %v3061 = vshrl.u32 %v3060, 7
        %v3062 = vsub.s32 0, %v3061
        %v3063 = vrot.slane %v3059, %v3062
        %v3064 = vlaneseq
        %v3065 = vshrl.u32 %v3064, 7
        %v3066 = vsub.s32 1, %v3065
        %v3067 = vrot.slane %v3059, %v3066
        %vm3068 = vcmp.eq.s32.totalorder %v365, %v3063
        %vm3069 = vcmp.eq.s32.totalorder %v365, %v3067
        %vm3070 = vcmp.eq.s32.totalorder %v366, %v3063
        %vm3071 = vcmp.eq.s32.totalorder %v366, %v3067
        %v3073 = vlaneseq
        %v3074 = vshrl.u32 %v3073, 7
        %v3075 = vsub.s32 0, %v3074
        %v3076 = vrot.slane %v2958, %v3075
        %v3077 = vlaneseq
        %v3078 = vshrl.u32 %v3077, 7
        %v3079 = vsub.s32 1, %v3078
        %v3080 = vrot.slane %v2958, %v3079
        %v3083 = vsel %vm3068, %v3076, 0.0
        %v3084 = vsel %vm3069, %v3080, 0.0
        %v3085 = vsel %vm3070, %v3076, 0.0
        %v3086 = vsel %vm3071, %v3080, 0.0
        %v3087 = vadd.f32 %v3052, %v3083
        %v3088 = vadd.f32 %v3053, %v3084
        %v3089 = vadd.f32 %v3054, %v3085
        %v3090 = vadd.f32 %v3055, %v3086
        %v3091 = vlaneseq
        %v3092 = vshrl.u32 %v3091, 7
        %v3093 = vsub.s32 5, %v3092
        %v3094 = vrot.slane %v357, %v3093
        %v3095 = vlaneseq
        %v3096 = vshrl.u32 %v3095, 7
        %v3097 = vsub.s32 5, %v3096
        %v3098 = vrot.slane %v359, %v3097
        %v3099 = vmul.f32 %v3021, %v3094
        %v3100 = vmul.f32 %v3022, %v3098
        %v3101 = vmul.f32 %v3023, %v3094
        %v3102 = vmul.f32 %v3024, %v3098
        %v3103 = vpack.c.bf16 %v3089, %v3087
        %v3104 = vpack.c.bf16 %v3090, %v3088
        %3105 = vmatprep.subr.bf16.mxu0 %v3104
        %3106 = vmatpush1.bf16.msra.mxu0 %v3103
        %3107 = vmatprep.subr.bf16.mxu0 0
        %3108 = vmatpush1.bf16.msra.mxu0 0
        %3109 = vmatprep.subr.bf16.mxu0 0
        %3110 = vmatpush1.bf16.msra.mxu0 0
        %3111 = vmatprep.subr.bf16.mxu0 0
        %3112 = vmatpush1.bf16.msra.mxu0 0
        %3113 = vmatprep.subr.bf16.mxu0 0
        %3114 = vmatpush1.bf16.msra.mxu0 0
        %3115 = vmatprep.subr.bf16.mxu0 0
        %3116 = vmatpush1.bf16.msra.mxu0 0
        %3117 = vmatprep.subr.bf16.mxu0 0
        %3118 = vmatpush1.bf16.msra.mxu0 0
        %3119 = vmatprep.subr.bf16.mxu0 0
        %3120 = vmatpush1.bf16.msra.mxu0 0
        %3121 = vmatprep.subr.bf16.mxu0 0
        %3122 = vmatpush1.bf16.msra.mxu0 0
        %3123 = vmatprep.subr.bf16.mxu0 0
        %3124 = vmatpush1.bf16.msra.mxu0 0
        %3125 = vmatprep.subr.bf16.mxu0 0
        %3126 = vmatpush1.bf16.msra.mxu0 0
        %3127 = vmatprep.subr.bf16.mxu0 0
        %3128 = vmatpush1.bf16.msra.mxu0 0
        %3129 = vmatprep.subr.bf16.mxu0 0
        %3130 = vmatpush1.bf16.msra.mxu0 0
        %3131 = vmatprep.subr.bf16.mxu0 0
        %3132 = vmatpush1.bf16.msra.mxu0 0
        %3133 = vmatprep.subr.bf16.mxu0 0
        %3134 = vmatpush1.bf16.msra.mxu0 0
        %3135 = vmatprep.subr.bf16.mxu0 0
        %3136 = vmatpush1.bf16.msra.mxu0 0
        %3137 = vmatprep.mubr.bf16.mxu0 0
        %3138 = vmatmul.mubr.bf16.gmra.mrb[0].mxu0 %v654
        %v3139 = vpop.f32.mrb[0].mxu0
        %v3140 = vadd.f32 0.0, %v3139
        %v3141 = vpop.f32.mrb[0].mxu0
        %v3142 = vadd.f32 0.0, %v3141
        %v3143 = vpop.f32.mrb[0].mxu0
        %v3144 = vadd.f32 0.0, %v3143
        %v3145 = vpop.f32.mrb[0].mxu0
        %v3146 = vadd.f32 0.0, %v3145
        %3147 = vmatprep.mubr.bf16.mxu0 0
        %3148 = vmatmul.mubr.bf16.gmra.mrb[0].mxu0 %v657
        %v3149 = vpop.f32.mrb[0].mxu0
        %v3150 = vadd.f32 0.0, %v3149
        %v3151 = vpop.f32.mrb[0].mxu0
        %v3152 = vadd.f32 0.0, %v3151
        %v3153 = vpop.f32.mrb[0].mxu0
        %v3154 = vadd.f32 0.0, %v3153
        %v3155 = vpop.f32.mrb[0].mxu0
        %v3156 = vadd.f32 0.0, %v3155
        %3157 = vmatprep.mubr.bf16.mxu0 0
        %3158 = vmatmul.mubr.bf16.gmra.mrb[0].mxu0 %v660
        %v3159 = vpop.f32.mrb[0].mxu0
        %v3160 = vadd.f32 0.0, %v3159
        %v3161 = vpop.f32.mrb[0].mxu0
        %v3162 = vadd.f32 0.0, %v3161
        %v3163 = vpop.f32.mrb[0].mxu0
        %v3164 = vadd.f32 0.0, %v3163
        %v3165 = vpop.f32.mrb[0].mxu0
        %v3166 = vadd.f32 0.0, %v3165
        %3167 = vmatprep.mubr.bf16.mxu0 0
        %3168 = vmatmul.mubr.bf16.gmra.mrb[0].mxu0 %v663
        %v3169 = vpop.f32.mrb[0].mxu0
        %v3170 = vadd.f32 0.0, %v3169
        %v3171 = vpop.f32.mrb[0].mxu0
        %v3172 = vadd.f32 0.0, %v3171
        %v3173 = vpop.f32.mrb[0].mxu0
        %v3174 = vadd.f32 0.0, %v3173
        %v3175 = vpop.f32.mrb[0].mxu0
        %v3176 = vadd.f32 0.0, %v3175
        %3177 = vmatprep.mubr.bf16.mxu0 0
        %3178 = vmatmul.mubr.bf16.gmra.mrb[0].mxu0 %v666
        %v3179 = vpop.f32.mrb[0].mxu0
        %v3180 = vadd.f32 0.0, %v3179
        %v3181 = vpop.f32.mrb[0].mxu0
        %v3182 = vadd.f32 0.0, %v3181
        %v3183 = vpop.f32.mrb[0].mxu0
        %v3184 = vadd.f32 0.0, %v3183
        %v3185 = vpop.f32.mrb[0].mxu0
        %v3186 = vadd.f32 0.0, %v3185
        %3187 = vmatprep.mubr.bf16.mxu0 0
        %3188 = vmatmul.mubr.bf16.gmra.mrb[0].mxu0 %v669
        %v3189 = vpop.f32.mrb[0].mxu0
        %v3190 = vadd.f32 0.0, %v3189
        %v3191 = vpop.f32.mrb[0].mxu0
        %v3192 = vadd.f32 0.0, %v3191
        %v3193 = vpop.f32.mrb[0].mxu0
        %v3194 = vadd.f32 0.0, %v3193
        %v3195 = vpop.f32.mrb[0].mxu0
        %v3196 = vadd.f32 0.0, %v3195
        %3197 = vmatprep.mubr.bf16.mxu0 0
        %3198 = vmatmul.mubr.bf16.gmra.mrb[0].mxu0 %v672
        %v3199 = vpop.f32.mrb[0].mxu0
        %v3200 = vadd.f32 0.0, %v3199
        %v3201 = vpop.f32.mrb[0].mxu0
        %v3202 = vadd.f32 0.0, %v3201
        %v3203 = vpop.f32.mrb[0].mxu0
        %v3204 = vadd.f32 0.0, %v3203
        %v3205 = vpop.f32.mrb[0].mxu0
        %v3206 = vadd.f32 0.0, %v3205
        %3207 = vmatprep.mubr.bf16.mxu0 0
        %3208 = vmatmul.mubr.bf16.gmra.mrb[0].mxu0 %v675
        %v3209 = vpop.f32.mrb[0].mxu0
        %v3210 = vadd.f32 0.0, %v3209
        %v3211 = vpop.f32.mrb[0].mxu0
        %v3212 = vadd.f32 0.0, %v3211
        %v3213 = vpop.f32.mrb[0].mxu0
        %v3214 = vadd.f32 0.0, %v3213
        %v3215 = vpop.f32.mrb[0].mxu0
        %v3216 = vadd.f32 0.0, %v3215
        %3217 = vmatprep.mubr.bf16.mxu0 0
        %3218 = vmatmul.mubr.bf16.gmra.mrb[0].mxu0 %v678
        %v3219 = vpop.f32.mrb[0].mxu0
        %v3220 = vadd.f32 0.0, %v3219
        %v3221 = vpop.f32.mrb[0].mxu0
        %v3222 = vadd.f32 0.0, %v3221
        %v3223 = vpop.f32.mrb[0].mxu0
        %v3224 = vadd.f32 0.0, %v3223
        %v3225 = vpop.f32.mrb[0].mxu0
        %v3226 = vadd.f32 0.0, %v3225
        %3227 = vmatprep.mubr.bf16.mxu0 0
        %3228 = vmatmul.mubr.bf16.gmra.mrb[0].mxu0 %v681
        %v3229 = vpop.f32.mrb[0].mxu0
        %v3230 = vadd.f32 0.0, %v3229
        %v3231 = vpop.f32.mrb[0].mxu0
        %v3232 = vadd.f32 0.0, %v3231
        %v3233 = vpop.f32.mrb[0].mxu0
        %v3234 = vadd.f32 0.0, %v3233
        %v3235 = vpop.f32.mrb[0].mxu0
        %v3236 = vadd.f32 0.0, %v3235
        %3237 = vmatprep.mubr.bf16.mxu0 0
        %3238 = vmatmul.mubr.bf16.gmra.mrb[0].mxu0 %v684
        %v3239 = vpop.f32.mrb[0].mxu0
        %v3240 = vadd.f32 0.0, %v3239
        %v3241 = vpop.f32.mrb[0].mxu0
        %v3242 = vadd.f32 0.0, %v3241
        %v3243 = vpop.f32.mrb[0].mxu0
        %v3244 = vadd.f32 0.0, %v3243
        %v3245 = vpop.f32.mrb[0].mxu0
        %v3246 = vadd.f32 0.0, %v3245
        %3247 = vmatprep.mubr.bf16.mxu0 0
        %3248 = vmatmul.mubr.bf16.gmra.mrb[0].mxu0 %v687
        %v3249 = vpop.f32.mrb[0].mxu0
        %v3250 = vadd.f32 0.0, %v3249
        %v3251 = vpop.f32.mrb[0].mxu0
        %v3252 = vadd.f32 0.0, %v3251
        %v3253 = vpop.f32.mrb[0].mxu0
        %v3254 = vadd.f32 0.0, %v3253
        %v3255 = vpop.f32.mrb[0].mxu0
        %v3256 = vadd.f32 0.0, %v3255
        %3257 = vmatprep.mubr.bf16.mxu0 0
        %3258 = vmatmul.mubr.bf16.gmra.mrb[0].mxu0 %v690
        %v3259 = vpop.f32.mrb[0].mxu0
        %v3260 = vadd.f32 0.0, %v3259
        %v3261 = vpop.f32.mrb[0].mxu0
        %v3262 = vadd.f32 0.0, %v3261
        %v3263 = vpop.f32.mrb[0].mxu0
        %v3264 = vadd.f32 0.0, %v3263
        %v3265 = vpop.f32.mrb[0].mxu0
        %v3266 = vadd.f32 0.0, %v3265
        %3267 = vmatprep.mubr.bf16.mxu0 0
        %3268 = vmatmul.mubr.bf16.gmra.mrb[0].mxu0 %v693
        %v3269 = vpop.f32.mrb[0].mxu0
        %v3270 = vadd.f32 0.0, %v3269
        %v3271 = vpop.f32.mrb[0].mxu0
        %v3272 = vadd.f32 0.0, %v3271
        %v3273 = vpop.f32.mrb[0].mxu0
        %v3274 = vadd.f32 0.0, %v3273
        %v3275 = vpop.f32.mrb[0].mxu0
        %v3276 = vadd.f32 0.0, %v3275
        %3277 = vmatprep.mubr.bf16.mxu0 0
        %3278 = vmatmul.mubr.bf16.gmra.mrb[0].mxu0 %v696
        %v3279 = vpop.f32.mrb[0].mxu0
        %v3280 = vadd.f32 0.0, %v3279
        %v3281 = vpop.f32.mrb[0].mxu0
        %v3282 = vadd.f32 0.0, %v3281
        %v3283 = vpop.f32.mrb[0].mxu0
        %v3284 = vadd.f32 0.0, %v3283
        %v3285 = vpop.f32.mrb[0].mxu0
        %v3286 = vadd.f32 0.0, %v3285
        %3287 = vmatprep.mubr.bf16.mxu0 0
        %3288 = vmatmul.mubr.bf16.gmra.mrb[0].mxu0 %v699
        %v3289 = vpop.f32.mrb[0].mxu0
        %v3290 = vadd.f32 0.0, %v3289
        %v3291 = vpop.f32.mrb[0].mxu0
        %v3292 = vadd.f32 0.0, %v3291
        %v3293 = vpop.f32.mrb[0].mxu0
        %v3294 = vadd.f32 0.0, %v3293
        %v3295 = vpop.f32.mrb[0].mxu0
        %v3296 = vadd.f32 0.0, %v3295
        %3297 = vdwg.mxu0
        %v3298 = vmul.f32 %v3140, %v3099
        %v3299 = vmul.f32 %v3142, %v3100
        %v3300 = vmul.f32 %v3144, %v3101
        %v3301 = vmul.f32 %v3146, %v3102
        %v3302 = vmul.f32 %v3150, %v3099
        %v3303 = vmul.f32 %v3152, %v3100
        %v3304 = vmul.f32 %v3154, %v3101
        %v3305 = vmul.f32 %v3156, %v3102
        %v3306 = vmul.f32 %v3160, %v3099
        %v3307 = vmul.f32 %v3162, %v3100
        %v3308 = vmul.f32 %v3164, %v3101
        %v3309 = vmul.f32 %v3166, %v3102
        %v3310 = vmul.f32 %v3170, %v3099
        %v3311 = vmul.f32 %v3172, %v3100
        %v3312 = vmul.f32 %v3174, %v3101
        %v3313 = vmul.f32 %v3176, %v3102
        %v3314 = vmul.f32 %v3180, %v3099
        %v3315 = vmul.f32 %v3182, %v3100
        %v3316 = vmul.f32 %v3184, %v3101
        %v3317 = vmul.f32 %v3186, %v3102
        %v3318 = vmul.f32 %v3190, %v3099
        %v3319 = vmul.f32 %v3192, %v3100
        %v3320 = vmul.f32 %v3194, %v3101
        %v3321 = vmul.f32 %v3196, %v3102
        %v3322 = vmul.f32 %v3200, %v3099
        %v3323 = vmul.f32 %v3202, %v3100
        %v3324 = vmul.f32 %v3204, %v3101
        %v3325 = vmul.f32 %v3206, %v3102
        %v3326 = vmul.f32 %v3210, %v3099
        %v3327 = vmul.f32 %v3212, %v3100
        %v3328 = vmul.f32 %v3214, %v3101
        %v3329 = vmul.f32 %v3216, %v3102
        %v3330 = vmul.f32 %v3220, %v3099
        %v3331 = vmul.f32 %v3222, %v3100
        %v3332 = vmul.f32 %v3224, %v3101
        %v3333 = vmul.f32 %v3226, %v3102
        %v3334 = vmul.f32 %v3230, %v3099
        %v3335 = vmul.f32 %v3232, %v3100
        %v3336 = vmul.f32 %v3234, %v3101
        %v3337 = vmul.f32 %v3236, %v3102
        %v3338 = vmul.f32 %v3240, %v3099
        %v3339 = vmul.f32 %v3242, %v3100
        %v3340 = vmul.f32 %v3244, %v3101
        %v3341 = vmul.f32 %v3246, %v3102
        %v3342 = vmul.f32 %v3250, %v3099
        %v3343 = vmul.f32 %v3252, %v3100
        %v3344 = vmul.f32 %v3254, %v3101
        %v3345 = vmul.f32 %v3256, %v3102
        %v3346 = vmul.f32 %v3260, %v3099
        %v3347 = vmul.f32 %v3262, %v3100
        %v3348 = vmul.f32 %v3264, %v3101
        %v3349 = vmul.f32 %v3266, %v3102
        %v3350 = vmul.f32 %v3270, %v3099
        %v3351 = vmul.f32 %v3272, %v3100
        %v3352 = vmul.f32 %v3274, %v3101
        %v3353 = vmul.f32 %v3276, %v3102
        %v3354 = vmul.f32 %v3280, %v3099
        %v3355 = vmul.f32 %v3282, %v3100
        %v3356 = vmul.f32 %v3284, %v3101
        %v3357 = vmul.f32 %v3286, %v3102
        %v3358 = vmul.f32 %v3290, %v3099
        %v3359 = vmul.f32 %v3292, %v3100
        %v3360 = vmul.f32 %v3294, %v3101
        %v3361 = vmul.f32 %v3296, %v3102
        %v3362 = vadd.f32 %v3298, %v3300
        %v3363 = vrot.slane %v3362, 4
        %v3364 = vadd.f32 %v3362, %v3363
        %v3365 = vrot.slane %v3364, 2
        %v3366 = vadd.f32 %v3364, %v3365
        %v3367 = vrot.slane %v3366, 1
        %v3368 = vadd.f32 %v3366, %v3367
        %v3369 = vadd.f32 %v3299, %v3301
        %v3370 = vrot.slane %v3369, 4
        %v3371 = vadd.f32 %v3369, %v3370
        %v3372 = vrot.slane %v3371, 2
        %v3373 = vadd.f32 %v3371, %v3372
        %v3374 = vrot.slane %v3373, 1
        %v3375 = vadd.f32 %v3373, %v3374
        %v3376 = vadd.f32 %v3302, %v3304
        %v3377 = vrot.slane %v3376, 4
        %v3378 = vadd.f32 %v3376, %v3377
        %v3379 = vrot.slane %v3378, 2
        %v3380 = vadd.f32 %v3378, %v3379
        %v3381 = vrot.slane %v3380, 1
        %v3382 = vadd.f32 %v3380, %v3381
        %v3383 = vadd.f32 %v3303, %v3305
        %v3384 = vrot.slane %v3383, 4
        %v3385 = vadd.f32 %v3383, %v3384
        %v3386 = vrot.slane %v3385, 2
        %v3387 = vadd.f32 %v3385, %v3386
        %v3388 = vrot.slane %v3387, 1
        %v3389 = vadd.f32 %v3387, %v3388
        %v3390 = vadd.f32 %v3306, %v3308
        %v3391 = vrot.slane %v3390, 4
        %v3392 = vadd.f32 %v3390, %v3391
        %v3393 = vrot.slane %v3392, 2
        %v3394 = vadd.f32 %v3392, %v3393
        %v3395 = vrot.slane %v3394, 1
        %v3396 = vadd.f32 %v3394, %v3395
        %v3397 = vadd.f32 %v3307, %v3309
        %v3398 = vrot.slane %v3397, 4
        %v3399 = vadd.f32 %v3397, %v3398
        %v3400 = vrot.slane %v3399, 2
        %v3401 = vadd.f32 %v3399, %v3400
        %v3402 = vrot.slane %v3401, 1
        %v3403 = vadd.f32 %v3401, %v3402
        %v3404 = vadd.f32 %v3310, %v3312
        %v3405 = vrot.slane %v3404, 4
        %v3406 = vadd.f32 %v3404, %v3405
        %v3407 = vrot.slane %v3406, 2
        %v3408 = vadd.f32 %v3406, %v3407
        %v3409 = vrot.slane %v3408, 1
        %v3410 = vadd.f32 %v3408, %v3409
        %v3411 = vadd.f32 %v3311, %v3313
        %v3412 = vrot.slane %v3411, 4
        %v3413 = vadd.f32 %v3411, %v3412
        %v3414 = vrot.slane %v3413, 2
        %v3415 = vadd.f32 %v3413, %v3414
        %v3416 = vrot.slane %v3415, 1
        %v3417 = vadd.f32 %v3415, %v3416
        %v3418 = vadd.f32 %v3314, %v3316
        %v3419 = vrot.slane %v3418, 4
        %v3420 = vadd.f32 %v3418, %v3419
        %v3421 = vrot.slane %v3420, 2
        %v3422 = vadd.f32 %v3420, %v3421
        %v3423 = vrot.slane %v3422, 1
        %v3424 = vadd.f32 %v3422, %v3423
        %v3425 = vadd.f32 %v3315, %v3317
        %v3426 = vrot.slane %v3425, 4
        %v3427 = vadd.f32 %v3425, %v3426
        %v3428 = vrot.slane %v3427, 2
        %v3429 = vadd.f32 %v3427, %v3428
        %v3430 = vrot.slane %v3429, 1
        %v3431 = vadd.f32 %v3429, %v3430
        %v3432 = vadd.f32 %v3318, %v3320
        %v3433 = vrot.slane %v3432, 4
        %v3434 = vadd.f32 %v3432, %v3433
        %v3435 = vrot.slane %v3434, 2
        %v3436 = vadd.f32 %v3434, %v3435
        %v3437 = vrot.slane %v3436, 1
        %v3438 = vadd.f32 %v3436, %v3437
        %v3439 = vadd.f32 %v3319, %v3321
        %v3440 = vrot.slane %v3439, 4
        %v3441 = vadd.f32 %v3439, %v3440
        %v3442 = vrot.slane %v3441, 2
        %v3443 = vadd.f32 %v3441, %v3442
        %v3444 = vrot.slane %v3443, 1
        %v3445 = vadd.f32 %v3443, %v3444
        %v3446 = vadd.f32 %v3322, %v3324
        %v3447 = vrot.slane %v3446, 4
        %v3448 = vadd.f32 %v3446, %v3447
        %v3449 = vrot.slane %v3448, 2
        %v3450 = vadd.f32 %v3448, %v3449
        %v3451 = vrot.slane %v3450, 1
        %v3452 = vadd.f32 %v3450, %v3451
        %v3453 = vadd.f32 %v3323, %v3325
        %v3454 = vrot.slane %v3453, 4
        %v3455 = vadd.f32 %v3453, %v3454
        %v3456 = vrot.slane %v3455, 2
        %v3457 = vadd.f32 %v3455, %v3456
        %v3458 = vrot.slane %v3457, 1
        %v3459 = vadd.f32 %v3457, %v3458
        %v3460 = vadd.f32 %v3326, %v3328
        %v3461 = vrot.slane %v3460, 4
        %v3462 = vadd.f32 %v3460, %v3461
        %v3463 = vrot.slane %v3462, 2
        %v3464 = vadd.f32 %v3462, %v3463
        %v3465 = vrot.slane %v3464, 1
        %v3466 = vadd.f32 %v3464, %v3465
        %v3467 = vadd.f32 %v3327, %v3329
        %v3468 = vrot.slane %v3467, 4
        %v3469 = vadd.f32 %v3467, %v3468
        %v3470 = vrot.slane %v3469, 2
        %v3471 = vadd.f32 %v3469, %v3470
        %v3472 = vrot.slane %v3471, 1
        %v3473 = vadd.f32 %v3471, %v3472
        %v3474 = vadd.f32 %v3330, %v3332
        %v3475 = vrot.slane %v3474, 4
        %v3476 = vadd.f32 %v3474, %v3475
        %v3477 = vrot.slane %v3476, 2
        %v3478 = vadd.f32 %v3476, %v3477
        %v3479 = vrot.slane %v3478, 1
        %v3480 = vadd.f32 %v3478, %v3479
        %v3481 = vadd.f32 %v3331, %v3333
        %v3482 = vrot.slane %v3481, 4
        %v3483 = vadd.f32 %v3481, %v3482
        %v3484 = vrot.slane %v3483, 2
        %v3485 = vadd.f32 %v3483, %v3484
        %v3486 = vrot.slane %v3485, 1
        %v3487 = vadd.f32 %v3485, %v3486
        %v3488 = vadd.f32 %v3334, %v3336
        %v3489 = vrot.slane %v3488, 4
        %v3490 = vadd.f32 %v3488, %v3489
        %v3491 = vrot.slane %v3490, 2
        %v3492 = vadd.f32 %v3490, %v3491
        %v3493 = vrot.slane %v3492, 1
        %v3494 = vadd.f32 %v3492, %v3493
        %v3495 = vadd.f32 %v3335, %v3337
        %v3496 = vrot.slane %v3495, 4
        %v3497 = vadd.f32 %v3495, %v3496
        %v3498 = vrot.slane %v3497, 2
        %v3499 = vadd.f32 %v3497, %v3498
        %v3500 = vrot.slane %v3499, 1
        %v3501 = vadd.f32 %v3499, %v3500
        %v3502 = vadd.f32 %v3338, %v3340
        %v3503 = vrot.slane %v3502, 4
        %v3504 = vadd.f32 %v3502, %v3503
        %v3505 = vrot.slane %v3504, 2
        %v3506 = vadd.f32 %v3504, %v3505
        %v3507 = vrot.slane %v3506, 1
        %v3508 = vadd.f32 %v3506, %v3507
        %v3509 = vadd.f32 %v3339, %v3341
        %v3510 = vrot.slane %v3509, 4
        %v3511 = vadd.f32 %v3509, %v3510
        %v3512 = vrot.slane %v3511, 2
        %v3513 = vadd.f32 %v3511, %v3512
        %v3514 = vrot.slane %v3513, 1
        %v3515 = vadd.f32 %v3513, %v3514
        %v3516 = vadd.f32 %v3342, %v3344
        %v3517 = vrot.slane %v3516, 4
        %v3518 = vadd.f32 %v3516, %v3517
        %v3519 = vrot.slane %v3518, 2
        %v3520 = vadd.f32 %v3518, %v3519
        %v3521 = vrot.slane %v3520, 1
        %v3522 = vadd.f32 %v3520, %v3521
        %v3523 = vadd.f32 %v3343, %v3345
        %v3524 = vrot.slane %v3523, 4
        %v3525 = vadd.f32 %v3523, %v3524
        %v3526 = vrot.slane %v3525, 2
        %v3527 = vadd.f32 %v3525, %v3526
        %v3528 = vrot.slane %v3527, 1
        %v3529 = vadd.f32 %v3527, %v3528
        %v3530 = vadd.f32 %v3346, %v3348
        %v3531 = vrot.slane %v3530, 4
        %v3532 = vadd.f32 %v3530, %v3531
        %v3533 = vrot.slane %v3532, 2
        %v3534 = vadd.f32 %v3532, %v3533
        %v3535 = vrot.slane %v3534, 1
        %v3536 = vadd.f32 %v3534, %v3535
        %v3537 = vadd.f32 %v3347, %v3349
        %v3538 = vrot.slane %v3537, 4
        %v3539 = vadd.f32 %v3537, %v3538
        %v3540 = vrot.slane %v3539, 2
        %v3541 = vadd.f32 %v3539, %v3540
        %v3542 = vrot.slane %v3541, 1
        %v3543 = vadd.f32 %v3541, %v3542
        %v3544 = vadd.f32 %v3350, %v3352
        %v3545 = vrot.slane %v3544, 4
        %v3546 = vadd.f32 %v3544, %v3545
        %v3547 = vrot.slane %v3546, 2
        %v3548 = vadd.f32 %v3546, %v3547
        %v3549 = vrot.slane %v3548, 1
        %v3550 = vadd.f32 %v3548, %v3549
        %v3551 = vadd.f32 %v3351, %v3353
        %v3552 = vrot.slane %v3551, 4
        %v3553 = vadd.f32 %v3551, %v3552
        %v3554 = vrot.slane %v3553, 2
        %v3555 = vadd.f32 %v3553, %v3554
        %v3556 = vrot.slane %v3555, 1
        %v3557 = vadd.f32 %v3555, %v3556
        %v3558 = vadd.f32 %v3354, %v3356
        %v3559 = vrot.slane %v3558, 4
        %v3560 = vadd.f32 %v3558, %v3559
        %v3561 = vrot.slane %v3560, 2
        %v3562 = vadd.f32 %v3560, %v3561
        %v3563 = vrot.slane %v3562, 1
        %v3564 = vadd.f32 %v3562, %v3563
        %v3565 = vadd.f32 %v3355, %v3357
        %v3566 = vrot.slane %v3565, 4
        %v3567 = vadd.f32 %v3565, %v3566
        %v3568 = vrot.slane %v3567, 2
        %v3569 = vadd.f32 %v3567, %v3568
        %v3570 = vrot.slane %v3569, 1
        %v3571 = vadd.f32 %v3569, %v3570
        %v3572 = vadd.f32 %v3358, %v3360
        %v3573 = vrot.slane %v3572, 4
        %v3574 = vadd.f32 %v3572, %v3573
        %v3575 = vrot.slane %v3574, 2
        %v3576 = vadd.f32 %v3574, %v3575
        %v3577 = vrot.slane %v3576, 1
        %v3578 = vadd.f32 %v3576, %v3577
        %v3579 = vadd.f32 %v3359, %v3361
        %v3580 = vrot.slane %v3579, 4
        %v3581 = vadd.f32 %v3579, %v3580
        %v3582 = vrot.slane %v3581, 2
        %v3583 = vadd.f32 %v3581, %v3582
        %v3584 = vrot.slane %v3583, 1
        %v3585 = vadd.f32 %v3583, %v3584
        %v3586 = vpack.c.bf16 %v3368, %v3368
        %v3587 = vpack.c.bf16 %v3375, %v3375
        %v3588 = vpack.c.bf16 %v3382, %v3382
        %v3589 = vpack.c.bf16 %v3389, %v3389
        %v3590 = vpack.c.bf16 %v3396, %v3396
        %v3591 = vpack.c.bf16 %v3403, %v3403
        %v3592 = vpack.c.bf16 %v3410, %v3410
        %v3593 = vpack.c.bf16 %v3417, %v3417
        %v3594 = vpack.c.bf16 %v3424, %v3424
        %v3595 = vpack.c.bf16 %v3431, %v3431
        %v3596 = vpack.c.bf16 %v3438, %v3438
        %v3597 = vpack.c.bf16 %v3445, %v3445
        %v3598 = vpack.c.bf16 %v3452, %v3452
        %v3599 = vpack.c.bf16 %v3459, %v3459
        %v3600 = vpack.c.bf16 %v3466, %v3466
        %v3601 = vpack.c.bf16 %v3473, %v3473
        %v3602 = vpack.c.bf16 %v3480, %v3480
        %v3603 = vpack.c.bf16 %v3487, %v3487
        %v3604 = vpack.c.bf16 %v3494, %v3494
        %v3605 = vpack.c.bf16 %v3501, %v3501
        %v3606 = vpack.c.bf16 %v3508, %v3508
        %v3607 = vpack.c.bf16 %v3515, %v3515
        %v3608 = vpack.c.bf16 %v3522, %v3522
        %v3609 = vpack.c.bf16 %v3529, %v3529
        %v3610 = vpack.c.bf16 %v3536, %v3536
        %v3611 = vpack.c.bf16 %v3543, %v3543
        %v3612 = vpack.c.bf16 %v3550, %v3550
        %v3613 = vpack.c.bf16 %v3557, %v3557
        %v3614 = vpack.c.bf16 %v3564, %v3564
        %v3615 = vpack.c.bf16 %v3571, %v3571
        %v3616 = vpack.c.bf16 %v3578, %v3578
        %v3617 = vpack.c.bf16 %v3585, %v3585
        %v3650 = vunpack.c.l.b16 %v3586
        %v3651 = vunpack.c.l.b16 %v3587
        %v3652 = vunpack.c.l.b16 %v3588
        %v3653 = vunpack.c.l.b16 %v3589
        %v3654 = vunpack.c.l.b16 %v3590
        %v3655 = vunpack.c.l.b16 %v3591
        %v3656 = vunpack.c.l.b16 %v3592
        %v3657 = vunpack.c.l.b16 %v3593
        %v3658 = vunpack.c.l.b16 %v3594
        %v3659 = vunpack.c.l.b16 %v3595
        %v3660 = vunpack.c.l.b16 %v3596
        %v3661 = vunpack.c.l.b16 %v3597
        %v3662 = vunpack.c.l.b16 %v3598
        %v3663 = vunpack.c.l.b16 %v3599
        %v3664 = vunpack.c.l.b16 %v3600
        %v3665 = vunpack.c.l.b16 %v3601
        %v3666 = vunpack.c.l.b16 %v3602
        %v3667 = vunpack.c.l.b16 %v3603
        %v3668 = vunpack.c.l.b16 %v3604
        %v3669 = vunpack.c.l.b16 %v3605
        %v3670 = vunpack.c.l.b16 %v3606
        %v3671 = vunpack.c.l.b16 %v3607
        %v3672 = vunpack.c.l.b16 %v3608
        %v3673 = vunpack.c.l.b16 %v3609
        %v3674 = vunpack.c.l.b16 %v3610
        %v3675 = vunpack.c.l.b16 %v3611
        %v3676 = vunpack.c.l.b16 %v3612
        %v3677 = vunpack.c.l.b16 %v3613
        %v3678 = vunpack.c.l.b16 %v3614
        %v3679 = vunpack.c.l.b16 %v3615
        %v3680 = vunpack.c.l.b16 %v3616
        %v3681 = vunpack.c.l.b16 %v3617
        %v3682 = vsel %vm1278, %v3652, %v3650
        %v3683 = vsel %vm1280, %v3654, %v3682
        %v3684 = vsel %vm1282, %v3656, %v3683
        %v3685 = vsel %vm1284, %v3658, %v3684
        %v3686 = vsel %vm1286, %v3660, %v3685
        %v3687 = vsel %vm1288, %v3662, %v3686
        %v3688 = vsel %vm1290, %v3664, %v3687
        %v3689 = vsel %vm1278, %v3653, %v3651
        %v3690 = vsel %vm1280, %v3655, %v3689
        %v3691 = vsel %vm1282, %v3657, %v3690
        %v3692 = vsel %vm1284, %v3659, %v3691
        %v3693 = vsel %vm1286, %v3661, %v3692
        %v3694 = vsel %vm1288, %v3663, %v3693
        %v3695 = vsel %vm1290, %v3665, %v3694
        %v3696 = vsel %vm1278, %v3668, %v3666
        %v3697 = vsel %vm1280, %v3670, %v3696
        %v3698 = vsel %vm1282, %v3672, %v3697
        %v3699 = vsel %vm1284, %v3674, %v3698
        %v3700 = vsel %vm1286, %v3676, %v3699
        %v3701 = vsel %vm1288, %v3678, %v3700
        %v3702 = vsel %vm1290, %v3680, %v3701
        %v3703 = vsel %vm1278, %v3669, %v3667
        %v3704 = vsel %vm1280, %v3671, %v3703
        %v3705 = vsel %vm1282, %v3673, %v3704
        %v3706 = vsel %vm1284, %v3675, %v3705
        %v3707 = vsel %vm1286, %v3677, %v3706
        %v3708 = vsel %vm1288, %v3679, %v3707
        %v3709 = vsel %vm1290, %v3681, %v3708
        %v3710 = vpack.c.b16 %v3702, %v3688
        %v3711 = vpack.c.b16 %v3709, %v3695
        %3714 = vst [vmem:[#allocation2 + $0x30] sm:$0xff] %v3710
        %3715 = vst [vmem:[#allocation2 + $0x38] sm:$0xff] %v3711
        %v3718 = vcombine.low %v299, %v300
        %v3720 = vunpack.c.l.s4 1966171168
        %v3721 = vunpack.c.0.s8 %v3720
        %v3722 = vlaneseq
        %v3723 = vshrl.u32 %v3722, 7
        %v3724 = vsub.s32 %v3721, %v3723
        %v3725 = vrot.slane %v3718, %v3724
        %v3727 = vunpack.c.l.s4 1966171168
        %v3728 = vunpack.c.0.s8 %v3727
        %v3729 = vlaneseq
        %v3730 = vshrl.u32 %v3729, 7
        %v3731 = vsub.s32 %v3728, %v3730
        %v3732 = vrot.slane %v3725, %v3731
        %v3734 = vadd.f32 %v2924, %v3732
        %v3735 = vcombine.high %v3725, %v3725
        %v3737 = vunpack.c.l.s4 1966171168
        %v3738 = vunpack.c.0.s8 %v3737
        %v3739 = vlaneseq
        %v3740 = vshrl.u32 %v3739, 7
        %v3741 = vsub.s32 %v3738, %v3740
        %v3742 = vrot.slane %v3735, %v3741
        %v3744 = vadd.f32 %v1322, %v3742
        %vm3745 = vcmp.gt.f32.partialorder %v3734, -1.0
        %vm3746 = vcmp.lt.f32.partialorder %v3734, 16.0
        %vm3747 = vmand %vm3745, %vm3746
        %vm3748 = vcmp.gt.f32.partialorder %v3744, -1.0
        %vm3749 = vcmp.lt.f32.partialorder %v3744, 16.0
        %vm3750 = vmand %vm3748, %vm3749
        %v3751 = vfloor.f32 %v3734
        %v3752 = vfloor.f32 %v3744
        %v3753 = vsub.f32 %v3734, %v3751
        %v3754 = vsub.f32 %v3744, %v3752
        %v3755 = vcvt.f32.s32.to.zero.pseudo %v3751
        %v3756 = vcvt.f32.s32.to.zero.pseudo %v3752
        %v3757 = vadd.s32 %v3755, 1
        %v3758 = vadd.s32 %v3756, 1
        %vm3759 = vcmp.ge.s32.totalorder %v3755, 0
        %vm3760 = vmand %vm3747, %vm3759
        %v3761 = vsub.f32 1.0, %v3753
        %v3762 = vsel %vm3760, %v3761, 0.0
        %vm3763 = vcmp.le.s32.totalorder %v3757, 15
        %vm3764 = vmand %vm3747, %vm3763
        %v3765 = vsel %vm3764, %v3753, 0.0
        %vm3766 = vcmp.ge.s32.totalorder %v3756, 0
        %vm3767 = vmand %vm3750, %vm3766
        %v3768 = vsub.f32 1.0, %v3754
        %v3769 = vsel %vm3767, %v3768, 0.0
        %vm3770 = vcmp.le.s32.totalorder %v3758, 15
        %vm3771 = vmand %vm3750, %vm3770
        %v3772 = vsel %vm3771, %v3754, 0.0
        %vm3773 = vcmp.gt.s32.totalorder %v3755, 0
        %v3774 = vsel %vm3773, %v3755, 0
        %vm3775 = vcmp.lt.s32.totalorder %v3774, 15
        %v3776 = vsel %vm3775, %v3774, 15
        %v3777 = vlaneseq
        %v3778 = vshrl.u32 %v3777, 7
        %v3779 = vsub.s32 0, %v3778
        %v3780 = vrot.slane %v3776, %v3779
        %v3781 = vlaneseq
        %v3782 = vshrl.u32 %v3781, 7
        %v3783 = vsub.s32 1, %v3782
        %v3784 = vrot.slane %v3776, %v3783
        %vm3785 = vcmp.eq.s32.totalorder %v365, %v3780
        %vm3786 = vcmp.eq.s32.totalorder %v365, %v3784
        %vm3787 = vcmp.eq.s32.totalorder %v366, %v3780
        %vm3788 = vcmp.eq.s32.totalorder %v366, %v3784
        %v3790 = vlaneseq
        %v3791 = vshrl.u32 %v3790, 7
        %v3792 = vsub.s32 0, %v3791
        %v3793 = vrot.slane %v3762, %v3792
        %v3794 = vlaneseq
        %v3795 = vshrl.u32 %v3794, 7
        %v3796 = vsub.s32 1, %v3795
        %v3797 = vrot.slane %v3762, %v3796
        %v3800 = vsel %vm3785, %v3793, 0.0
        %v3801 = vsel %vm3786, %v3797, 0.0
        %v3802 = vsel %vm3787, %v3793, 0.0
        %v3803 = vsel %vm3788, %v3797, 0.0
        %vm3804 = vcmp.gt.s32.totalorder %v3757, 0
        %v3805 = vsel %vm3804, %v3757, 0
        %vm3806 = vcmp.lt.s32.totalorder %v3805, 15
        %v3807 = vsel %vm3806, %v3805, 15
        %v3808 = vlaneseq
        %v3809 = vshrl.u32 %v3808, 7
        %v3810 = vsub.s32 0, %v3809
        %v3811 = vrot.slane %v3807, %v3810
        %v3812 = vlaneseq
        %v3813 = vshrl.u32 %v3812, 7
        %v3814 = vsub.s32 1, %v3813
        %v3815 = vrot.slane %v3807, %v3814
        %vm3816 = vcmp.eq.s32.totalorder %v365, %v3811
        %vm3817 = vcmp.eq.s32.totalorder %v365, %v3815
        %vm3818 = vcmp.eq.s32.totalorder %v366, %v3811
        %vm3819 = vcmp.eq.s32.totalorder %v366, %v3815
        %v3821 = vlaneseq
        %v3822 = vshrl.u32 %v3821, 7
        %v3823 = vsub.s32 0, %v3822
        %v3824 = vrot.slane %v3765, %v3823
        %v3825 = vlaneseq
        %v3826 = vshrl.u32 %v3825, 7
        %v3827 = vsub.s32 1, %v3826
        %v3828 = vrot.slane %v3765, %v3827
        %v3831 = vsel %vm3816, %v3824, 0.0
        %v3832 = vsel %vm3817, %v3828, 0.0
        %v3833 = vsel %vm3818, %v3824, 0.0
        %v3834 = vsel %vm3819, %v3828, 0.0
        %v3835 = vadd.f32 %v3800, %v3831
        %v3836 = vadd.f32 %v3801, %v3832
        %v3837 = vadd.f32 %v3802, %v3833
        %v3838 = vadd.f32 %v3803, %v3834
        %vm3839 = vcmp.gt.s32.totalorder %v3756, 0
        %v3840 = vsel %vm3839, %v3756, 0
        %vm3841 = vcmp.lt.s32.totalorder %v3840, 15
        %v3842 = vsel %vm3841, %v3840, 15
        %v3843 = vlaneseq
        %v3844 = vshrl.u32 %v3843, 7
        %v3845 = vsub.s32 0, %v3844
        %v3846 = vrot.slane %v3842, %v3845
        %v3847 = vlaneseq
        %v3848 = vshrl.u32 %v3847, 7
        %v3849 = vsub.s32 1, %v3848
        %v3850 = vrot.slane %v3842, %v3849
        %vm3851 = vcmp.eq.s32.totalorder %v365, %v3846
        %vm3852 = vcmp.eq.s32.totalorder %v365, %v3850
        %vm3853 = vcmp.eq.s32.totalorder %v366, %v3846
        %vm3854 = vcmp.eq.s32.totalorder %v366, %v3850
        %v3856 = vlaneseq
        %v3857 = vshrl.u32 %v3856, 7
        %v3858 = vsub.s32 0, %v3857
        %v3859 = vrot.slane %v3769, %v3858
        %v3860 = vlaneseq
        %v3861 = vshrl.u32 %v3860, 7
        %v3862 = vsub.s32 1, %v3861
        %v3863 = vrot.slane %v3769, %v3862
        %v3866 = vsel %vm3851, %v3859, 0.0
        %v3867 = vsel %vm3852, %v3863, 0.0
        %v3868 = vsel %vm3853, %v3859, 0.0
        %v3869 = vsel %vm3854, %v3863, 0.0
        %vm3870 = vcmp.gt.s32.totalorder %v3758, 0
        %v3871 = vsel %vm3870, %v3758, 0
        %vm3872 = vcmp.lt.s32.totalorder %v3871, 15
        %v3873 = vsel %vm3872, %v3871, 15
        %v3874 = vlaneseq
        %v3875 = vshrl.u32 %v3874, 7
        %v3876 = vsub.s32 0, %v3875
        %v3877 = vrot.slane %v3873, %v3876
        %v3878 = vlaneseq
        %v3879 = vshrl.u32 %v3878, 7
        %v3880 = vsub.s32 1, %v3879
        %v3881 = vrot.slane %v3873, %v3880
        %vm3882 = vcmp.eq.s32.totalorder %v365, %v3877
        %vm3883 = vcmp.eq.s32.totalorder %v365, %v3881
        %vm3884 = vcmp.eq.s32.totalorder %v366, %v3877
        %vm3885 = vcmp.eq.s32.totalorder %v366, %v3881
        %v3887 = vlaneseq
        %v3888 = vshrl.u32 %v3887, 7
        %v3889 = vsub.s32 0, %v3888
        %v3890 = vrot.slane %v3772, %v3889
        %v3891 = vlaneseq
        %v3892 = vshrl.u32 %v3891, 7
        %v3893 = vsub.s32 1, %v3892
        %v3894 = vrot.slane %v3772, %v3893
        %v3897 = vsel %vm3882, %v3890, 0.0
        %v3898 = vsel %vm3883, %v3894, 0.0
        %v3899 = vsel %vm3884, %v3890, 0.0
        %v3900 = vsel %vm3885, %v3894, 0.0
        %v3901 = vadd.f32 %v3866, %v3897
        %v3902 = vadd.f32 %v3867, %v3898
        %v3903 = vadd.f32 %v3868, %v3899
        %v3904 = vadd.f32 %v3869, %v3900
        %v3905 = vlaneseq
        %v3906 = vshrl.u32 %v3905, 7
        %v3907 = vsub.s32 6, %v3906
        %v3908 = vrot.slane %v357, %v3907
        %v3909 = vlaneseq
        %v3910 = vshrl.u32 %v3909, 7
        %v3911 = vsub.s32 6, %v3910
        %v3912 = vrot.slane %v359, %v3911
        %v3913 = vmul.f32 %v3835, %v3908
        %v3914 = vmul.f32 %v3836, %v3912
        %v3915 = vmul.f32 %v3837, %v3908
        %v3916 = vmul.f32 %v3838, %v3912
        %v3917 = vpack.c.bf16 %v3903, %v3901
        %v3918 = vpack.c.bf16 %v3904, %v3902
        %3919 = vmatprep.subr.bf16.mxu0 %v3918
        %3920 = vmatpush1.bf16.msra.mxu0 %v3917
        %3921 = vmatprep.subr.bf16.mxu0 0
        %3922 = vmatpush1.bf16.msra.mxu0 0
        %3923 = vmatprep.subr.bf16.mxu0 0
        %3924 = vmatpush1.bf16.msra.mxu0 0
        %3925 = vmatprep.subr.bf16.mxu0 0
        %3926 = vmatpush1.bf16.msra.mxu0 0
        %3927 = vmatprep.subr.bf16.mxu0 0
        %3928 = vmatpush1.bf16.msra.mxu0 0
        %3929 = vmatprep.subr.bf16.mxu0 0
        %3930 = vmatpush1.bf16.msra.mxu0 0
        %3931 = vmatprep.subr.bf16.mxu0 0
        %3932 = vmatpush1.bf16.msra.mxu0 0
        %3933 = vmatprep.subr.bf16.mxu0 0
        %3934 = vmatpush1.bf16.msra.mxu0 0
        %3935 = vmatprep.subr.bf16.mxu0 0
        %3936 = vmatpush1.bf16.msra.mxu0 0
        %3937 = vmatprep.subr.bf16.mxu0 0
        %3938 = vmatpush1.bf16.msra.mxu0 0
        %3939 = vmatprep.subr.bf16.mxu0 0
        %3940 = vmatpush1.bf16.msra.mxu0 0
        %3941 = vmatprep.subr.bf16.mxu0 0
        %3942 = vmatpush1.bf16.msra.mxu0 0
        %3943 = vmatprep.subr.bf16.mxu0 0
        %3944 = vmatpush1.bf16.msra.mxu0 0
        %3945 = vmatprep.subr.bf16.mxu0 0
        %3946 = vmatpush1.bf16.msra.mxu0 0
        %3947 = vmatprep.subr.bf16.mxu0 0
        %3948 = vmatpush1.bf16.msra.mxu0 0
        %3949 = vmatprep.subr.bf16.mxu0 0
        %3950 = vmatpush1.bf16.msra.mxu0 0
        %3951 = vmatprep.mubr.bf16.mxu0 0
        %3952 = vmatmul.mubr.bf16.gmra.mrb[0].mxu0 %v654
        %v3953 = vpop.f32.mrb[0].mxu0
        %v3954 = vadd.f32 0.0, %v3953
        %v3955 = vpop.f32.mrb[0].mxu0
        %v3956 = vadd.f32 0.0, %v3955
        %v3957 = vpop.f32.mrb[0].mxu0
        %v3958 = vadd.f32 0.0, %v3957
        %v3959 = vpop.f32.mrb[0].mxu0
        %v3960 = vadd.f32 0.0, %v3959
        %3961 = vmatprep.mubr.bf16.mxu0 0
        %3962 = vmatmul.mubr.bf16.gmra.mrb[0].mxu0 %v657
        %v3963 = vpop.f32.mrb[0].mxu0
        %v3964 = vadd.f32 0.0, %v3963
        %v3965 = vpop.f32.mrb[0].mxu0
        %v3966 = vadd.f32 0.0, %v3965
        %v3967 = vpop.f32.mrb[0].mxu0
        %v3968 = vadd.f32 0.0, %v3967
        %v3969 = vpop.f32.mrb[0].mxu0
        %v3970 = vadd.f32 0.0, %v3969
        %3971 = vmatprep.mubr.bf16.mxu0 0
        %3972 = vmatmul.mubr.bf16.gmra.mrb[0].mxu0 %v660
        %v3973 = vpop.f32.mrb[0].mxu0
        %v3974 = vadd.f32 0.0, %v3973
        %v3975 = vpop.f32.mrb[0].mxu0
        %v3976 = vadd.f32 0.0, %v3975
        %v3977 = vpop.f32.mrb[0].mxu0
        %v3978 = vadd.f32 0.0, %v3977
        %v3979 = vpop.f32.mrb[0].mxu0
        %v3980 = vadd.f32 0.0, %v3979
        %3981 = vmatprep.mubr.bf16.mxu0 0
        %3982 = vmatmul.mubr.bf16.gmra.mrb[0].mxu0 %v663
        %v3983 = vpop.f32.mrb[0].mxu0
        %v3984 = vadd.f32 0.0, %v3983
        %v3985 = vpop.f32.mrb[0].mxu0
        %v3986 = vadd.f32 0.0, %v3985
        %v3987 = vpop.f32.mrb[0].mxu0
        %v3988 = vadd.f32 0.0, %v3987
        %v3989 = vpop.f32.mrb[0].mxu0
        %v3990 = vadd.f32 0.0, %v3989
        %3991 = vmatprep.mubr.bf16.mxu0 0
        %3992 = vmatmul.mubr.bf16.gmra.mrb[0].mxu0 %v666
        %v3993 = vpop.f32.mrb[0].mxu0
        %v3994 = vadd.f32 0.0, %v3993
        %v3995 = vpop.f32.mrb[0].mxu0
        %v3996 = vadd.f32 0.0, %v3995
        %v3997 = vpop.f32.mrb[0].mxu0
        %v3998 = vadd.f32 0.0, %v3997
        %v3999 = vpop.f32.mrb[0].mxu0
        %v4000 = vadd.f32 0.0, %v3999
        %4001 = vmatprep.mubr.bf16.mxu0 0
        %4002 = vmatmul.mubr.bf16.gmra.mrb[0].mxu0 %v669
        %v4003 = vpop.f32.mrb[0].mxu0
        %v4004 = vadd.f32 0.0, %v4003
        %v4005 = vpop.f32.mrb[0].mxu0
        %v4006 = vadd.f32 0.0, %v4005
        %v4007 = vpop.f32.mrb[0].mxu0
        %v4008 = vadd.f32 0.0, %v4007
        %v4009 = vpop.f32.mrb[0].mxu0
        %v4010 = vadd.f32 0.0, %v4009
        %4011 = vmatprep.mubr.bf16.mxu0 0
        %4012 = vmatmul.mubr.bf16.gmra.mrb[0].mxu0 %v672
        %v4013 = vpop.f32.mrb[0].mxu0
        %v4014 = vadd.f32 0.0, %v4013
        %v4015 = vpop.f32.mrb[0].mxu0
        %v4016 = vadd.f32 0.0, %v4015
        %v4017 = vpop.f32.mrb[0].mxu0
        %v4018 = vadd.f32 0.0, %v4017
        %v4019 = vpop.f32.mrb[0].mxu0
        %v4020 = vadd.f32 0.0, %v4019
        %4021 = vmatprep.mubr.bf16.mxu0 0
        %4022 = vmatmul.mubr.bf16.gmra.mrb[0].mxu0 %v675
        %v4023 = vpop.f32.mrb[0].mxu0
        %v4024 = vadd.f32 0.0, %v4023
        %v4025 = vpop.f32.mrb[0].mxu0
        %v4026 = vadd.f32 0.0, %v4025
        %v4027 = vpop.f32.mrb[0].mxu0
        %v4028 = vadd.f32 0.0, %v4027
        %v4029 = vpop.f32.mrb[0].mxu0
        %v4030 = vadd.f32 0.0, %v4029
        %4031 = vmatprep.mubr.bf16.mxu0 0
        %4032 = vmatmul.mubr.bf16.gmra.mrb[0].mxu0 %v678
        %v4033 = vpop.f32.mrb[0].mxu0
        %v4034 = vadd.f32 0.0, %v4033
        %v4035 = vpop.f32.mrb[0].mxu0
        %v4036 = vadd.f32 0.0, %v4035
        %v4037 = vpop.f32.mrb[0].mxu0
        %v4038 = vadd.f32 0.0, %v4037
        %v4039 = vpop.f32.mrb[0].mxu0
        %v4040 = vadd.f32 0.0, %v4039
        %4041 = vmatprep.mubr.bf16.mxu0 0
        %4042 = vmatmul.mubr.bf16.gmra.mrb[0].mxu0 %v681
        %v4043 = vpop.f32.mrb[0].mxu0
        %v4044 = vadd.f32 0.0, %v4043
        %v4045 = vpop.f32.mrb[0].mxu0
        %v4046 = vadd.f32 0.0, %v4045
        %v4047 = vpop.f32.mrb[0].mxu0
        %v4048 = vadd.f32 0.0, %v4047
        %v4049 = vpop.f32.mrb[0].mxu0
        %v4050 = vadd.f32 0.0, %v4049
        %4051 = vmatprep.mubr.bf16.mxu0 0
        %4052 = vmatmul.mubr.bf16.gmra.mrb[0].mxu0 %v684
        %v4053 = vpop.f32.mrb[0].mxu0
        %v4054 = vadd.f32 0.0, %v4053
        %v4055 = vpop.f32.mrb[0].mxu0
        %v4056 = vadd.f32 0.0, %v4055
        %v4057 = vpop.f32.mrb[0].mxu0
        %v4058 = vadd.f32 0.0, %v4057
        %v4059 = vpop.f32.mrb[0].mxu0
        %v4060 = vadd.f32 0.0, %v4059
        %4061 = vmatprep.mubr.bf16.mxu0 0
        %4062 = vmatmul.mubr.bf16.gmra.mrb[0].mxu0 %v687
        %v4063 = vpop.f32.mrb[0].mxu0
        %v4064 = vadd.f32 0.0, %v4063
        %v4065 = vpop.f32.mrb[0].mxu0
        %v4066 = vadd.f32 0.0, %v4065
        %v4067 = vpop.f32.mrb[0].mxu0
        %v4068 = vadd.f32 0.0, %v4067
        %v4069 = vpop.f32.mrb[0].mxu0
        %v4070 = vadd.f32 0.0, %v4069
        %4071 = vmatprep.mubr.bf16.mxu0 0
        %4072 = vmatmul.mubr.bf16.gmra.mrb[0].mxu0 %v690
        %v4073 = vpop.f32.mrb[0].mxu0
        %v4074 = vadd.f32 0.0, %v4073
        %v4075 = vpop.f32.mrb[0].mxu0
        %v4076 = vadd.f32 0.0, %v4075
        %v4077 = vpop.f32.mrb[0].mxu0
        %v4078 = vadd.f32 0.0, %v4077
        %v4079 = vpop.f32.mrb[0].mxu0
        %v4080 = vadd.f32 0.0, %v4079
        %4081 = vmatprep.mubr.bf16.mxu0 0
        %4082 = vmatmul.mubr.bf16.gmra.mrb[0].mxu0 %v693
        %v4083 = vpop.f32.mrb[0].mxu0
        %v4084 = vadd.f32 0.0, %v4083
        %v4085 = vpop.f32.mrb[0].mxu0
        %v4086 = vadd.f32 0.0, %v4085
        %v4087 = vpop.f32.mrb[0].mxu0
        %v4088 = vadd.f32 0.0, %v4087
        %v4089 = vpop.f32.mrb[0].mxu0
        %v4090 = vadd.f32 0.0, %v4089
        %4091 = vmatprep.mubr.bf16.mxu0 0
        %4092 = vmatmul.mubr.bf16.gmra.mrb[0].mxu0 %v696
        %v4093 = vpop.f32.mrb[0].mxu0
        %v4094 = vadd.f32 0.0, %v4093
        %v4095 = vpop.f32.mrb[0].mxu0
        %v4096 = vadd.f32 0.0, %v4095
        %v4097 = vpop.f32.mrb[0].mxu0
        %v4098 = vadd.f32 0.0, %v4097
        %v4099 = vpop.f32.mrb[0].mxu0
        %v4100 = vadd.f32 0.0, %v4099
        %4101 = vmatprep.mubr.bf16.mxu0 0
        %4102 = vmatmul.mubr.bf16.gmra.mrb[0].mxu0 %v699
        %v4103 = vpop.f32.mrb[0].mxu0
        %v4104 = vadd.f32 0.0, %v4103
        %v4105 = vpop.f32.mrb[0].mxu0
        %v4106 = vadd.f32 0.0, %v4105
        %v4107 = vpop.f32.mrb[0].mxu0
        %v4108 = vadd.f32 0.0, %v4107
        %v4109 = vpop.f32.mrb[0].mxu0
        %v4110 = vadd.f32 0.0, %v4109
        %4111 = vdwg.mxu0
        %v4112 = vmul.f32 %v3954, %v3913
        %v4113 = vmul.f32 %v3956, %v3914
        %v4114 = vmul.f32 %v3958, %v3915
        %v4115 = vmul.f32 %v3960, %v3916
        %v4116 = vmul.f32 %v3964, %v3913
        %v4117 = vmul.f32 %v3966, %v3914
        %v4118 = vmul.f32 %v3968, %v3915
        %v4119 = vmul.f32 %v3970, %v3916
        %v4120 = vmul.f32 %v3974, %v3913
        %v4121 = vmul.f32 %v3976, %v3914
        %v4122 = vmul.f32 %v3978, %v3915
        %v4123 = vmul.f32 %v3980, %v3916
        %v4124 = vmul.f32 %v3984, %v3913
        %v4125 = vmul.f32 %v3986, %v3914
        %v4126 = vmul.f32 %v3988, %v3915
        %v4127 = vmul.f32 %v3990, %v3916
        %v4128 = vmul.f32 %v3994, %v3913
        %v4129 = vmul.f32 %v3996, %v3914
        %v4130 = vmul.f32 %v3998, %v3915
        %v4131 = vmul.f32 %v4000, %v3916
        %v4132 = vmul.f32 %v4004, %v3913
        %v4133 = vmul.f32 %v4006, %v3914
        %v4134 = vmul.f32 %v4008, %v3915
        %v4135 = vmul.f32 %v4010, %v3916
        %v4136 = vmul.f32 %v4014, %v3913
        %v4137 = vmul.f32 %v4016, %v3914
        %v4138 = vmul.f32 %v4018, %v3915
        %v4139 = vmul.f32 %v4020, %v3916
        %v4140 = vmul.f32 %v4024, %v3913
        %v4141 = vmul.f32 %v4026, %v3914
        %v4142 = vmul.f32 %v4028, %v3915
        %v4143 = vmul.f32 %v4030, %v3916
        %v4144 = vmul.f32 %v4034, %v3913
        %v4145 = vmul.f32 %v4036, %v3914
        %v4146 = vmul.f32 %v4038, %v3915
        %v4147 = vmul.f32 %v4040, %v3916
        %v4148 = vmul.f32 %v4044, %v3913
        %v4149 = vmul.f32 %v4046, %v3914
        %v4150 = vmul.f32 %v4048, %v3915
        %v4151 = vmul.f32 %v4050, %v3916
        %v4152 = vmul.f32 %v4054, %v3913
        %v4153 = vmul.f32 %v4056, %v3914
        %v4154 = vmul.f32 %v4058, %v3915
        %v4155 = vmul.f32 %v4060, %v3916
        %v4156 = vmul.f32 %v4064, %v3913
        %v4157 = vmul.f32 %v4066, %v3914
        %v4158 = vmul.f32 %v4068, %v3915
        %v4159 = vmul.f32 %v4070, %v3916
        %v4160 = vmul.f32 %v4074, %v3913
        %v4161 = vmul.f32 %v4076, %v3914
        %v4162 = vmul.f32 %v4078, %v3915
        %v4163 = vmul.f32 %v4080, %v3916
        %v4164 = vmul.f32 %v4084, %v3913
        %v4165 = vmul.f32 %v4086, %v3914
        %v4166 = vmul.f32 %v4088, %v3915
        %v4167 = vmul.f32 %v4090, %v3916
        %v4168 = vmul.f32 %v4094, %v3913
        %v4169 = vmul.f32 %v4096, %v3914
        %v4170 = vmul.f32 %v4098, %v3915
        %v4171 = vmul.f32 %v4100, %v3916
        %v4172 = vmul.f32 %v4104, %v3913
        %v4173 = vmul.f32 %v4106, %v3914
        %v4174 = vmul.f32 %v4108, %v3915
        %v4175 = vmul.f32 %v4110, %v3916
        %v4176 = vadd.f32 %v4112, %v4114
        %v4177 = vrot.slane %v4176, 4
        %v4178 = vadd.f32 %v4176, %v4177
        %v4179 = vrot.slane %v4178, 2
        %v4180 = vadd.f32 %v4178, %v4179
        %v4181 = vrot.slane %v4180, 1
        %v4182 = vadd.f32 %v4180, %v4181
        %v4183 = vadd.f32 %v4113, %v4115
        %v4184 = vrot.slane %v4183, 4
        %v4185 = vadd.f32 %v4183, %v4184
        %v4186 = vrot.slane %v4185, 2
        %v4187 = vadd.f32 %v4185, %v4186
        %v4188 = vrot.slane %v4187, 1
        %v4189 = vadd.f32 %v4187, %v4188
        %v4190 = vadd.f32 %v4116, %v4118
        %v4191 = vrot.slane %v4190, 4
        %v4192 = vadd.f32 %v4190, %v4191
        %v4193 = vrot.slane %v4192, 2
        %v4194 = vadd.f32 %v4192, %v4193
        %v4195 = vrot.slane %v4194, 1
        %v4196 = vadd.f32 %v4194, %v4195
        %v4197 = vadd.f32 %v4117, %v4119
        %v4198 = vrot.slane %v4197, 4
        %v4199 = vadd.f32 %v4197, %v4198
        %v4200 = vrot.slane %v4199, 2
        %v4201 = vadd.f32 %v4199, %v4200
        %v4202 = vrot.slane %v4201, 1
        %v4203 = vadd.f32 %v4201, %v4202
        %v4204 = vadd.f32 %v4120, %v4122
        %v4205 = vrot.slane %v4204, 4
        %v4206 = vadd.f32 %v4204, %v4205
        %v4207 = vrot.slane %v4206, 2
        %v4208 = vadd.f32 %v4206, %v4207
        %v4209 = vrot.slane %v4208, 1
        %v4210 = vadd.f32 %v4208, %v4209
        %v4211 = vadd.f32 %v4121, %v4123
        %v4212 = vrot.slane %v4211, 4
        %v4213 = vadd.f32 %v4211, %v4212
        %v4214 = vrot.slane %v4213, 2
        %v4215 = vadd.f32 %v4213, %v4214
        %v4216 = vrot.slane %v4215, 1
        %v4217 = vadd.f32 %v4215, %v4216
        %v4218 = vadd.f32 %v4124, %v4126
        %v4219 = vrot.slane %v4218, 4
        %v4220 = vadd.f32 %v4218, %v4219
        %v4221 = vrot.slane %v4220, 2
        %v4222 = vadd.f32 %v4220, %v4221
        %v4223 = vrot.slane %v4222, 1
        %v4224 = vadd.f32 %v4222, %v4223
        %v4225 = vadd.f32 %v4125, %v4127
        %v4226 = vrot.slane %v4225, 4
        %v4227 = vadd.f32 %v4225, %v4226
        %v4228 = vrot.slane %v4227, 2
        %v4229 = vadd.f32 %v4227, %v4228
        %v4230 = vrot.slane %v4229, 1
        %v4231 = vadd.f32 %v4229, %v4230
        %v4232 = vadd.f32 %v4128, %v4130
        %v4233 = vrot.slane %v4232, 4
        %v4234 = vadd.f32 %v4232, %v4233
        %v4235 = vrot.slane %v4234, 2
        %v4236 = vadd.f32 %v4234, %v4235
        %v4237 = vrot.slane %v4236, 1
        %v4238 = vadd.f32 %v4236, %v4237
        %v4239 = vadd.f32 %v4129, %v4131
        %v4240 = vrot.slane %v4239, 4
        %v4241 = vadd.f32 %v4239, %v4240
        %v4242 = vrot.slane %v4241, 2
        %v4243 = vadd.f32 %v4241, %v4242
        %v4244 = vrot.slane %v4243, 1
        %v4245 = vadd.f32 %v4243, %v4244
        %v4246 = vadd.f32 %v4132, %v4134
        %v4247 = vrot.slane %v4246, 4
        %v4248 = vadd.f32 %v4246, %v4247
        %v4249 = vrot.slane %v4248, 2
        %v4250 = vadd.f32 %v4248, %v4249
        %v4251 = vrot.slane %v4250, 1
        %v4252 = vadd.f32 %v4250, %v4251
        %v4253 = vadd.f32 %v4133, %v4135
        %v4254 = vrot.slane %v4253, 4
        %v4255 = vadd.f32 %v4253, %v4254
        %v4256 = vrot.slane %v4255, 2
        %v4257 = vadd.f32 %v4255, %v4256
        %v4258 = vrot.slane %v4257, 1
        %v4259 = vadd.f32 %v4257, %v4258
        %v4260 = vadd.f32 %v4136, %v4138
        %v4261 = vrot.slane %v4260, 4
        %v4262 = vadd.f32 %v4260, %v4261
        %v4263 = vrot.slane %v4262, 2
        %v4264 = vadd.f32 %v4262, %v4263
        %v4265 = vrot.slane %v4264, 1
        %v4266 = vadd.f32 %v4264, %v4265
        %v4267 = vadd.f32 %v4137, %v4139
        %v4268 = vrot.slane %v4267, 4
        %v4269 = vadd.f32 %v4267, %v4268
        %v4270 = vrot.slane %v4269, 2
        %v4271 = vadd.f32 %v4269, %v4270
        %v4272 = vrot.slane %v4271, 1
        %v4273 = vadd.f32 %v4271, %v4272
        %v4274 = vadd.f32 %v4140, %v4142
        %v4275 = vrot.slane %v4274, 4
        %v4276 = vadd.f32 %v4274, %v4275
        %v4277 = vrot.slane %v4276, 2
        %v4278 = vadd.f32 %v4276, %v4277
        %v4279 = vrot.slane %v4278, 1
        %v4280 = vadd.f32 %v4278, %v4279
        %v4281 = vadd.f32 %v4141, %v4143
        %v4282 = vrot.slane %v4281, 4
        %v4283 = vadd.f32 %v4281, %v4282
        %v4284 = vrot.slane %v4283, 2
        %v4285 = vadd.f32 %v4283, %v4284
        %v4286 = vrot.slane %v4285, 1
        %v4287 = vadd.f32 %v4285, %v4286
        %v4288 = vadd.f32 %v4144, %v4146
        %v4289 = vrot.slane %v4288, 4
        %v4290 = vadd.f32 %v4288, %v4289
        %v4291 = vrot.slane %v4290, 2
        %v4292 = vadd.f32 %v4290, %v4291
        %v4293 = vrot.slane %v4292, 1
        %v4294 = vadd.f32 %v4292, %v4293
        %v4295 = vadd.f32 %v4145, %v4147
        %v4296 = vrot.slane %v4295, 4
        %v4297 = vadd.f32 %v4295, %v4296
        %v4298 = vrot.slane %v4297, 2
        %v4299 = vadd.f32 %v4297, %v4298
        %v4300 = vrot.slane %v4299, 1
        %v4301 = vadd.f32 %v4299, %v4300
        %v4302 = vadd.f32 %v4148, %v4150
        %v4303 = vrot.slane %v4302, 4
        %v4304 = vadd.f32 %v4302, %v4303
        %v4305 = vrot.slane %v4304, 2
        %v4306 = vadd.f32 %v4304, %v4305
        %v4307 = vrot.slane %v4306, 1
        %v4308 = vadd.f32 %v4306, %v4307
        %v4309 = vadd.f32 %v4149, %v4151
        %v4310 = vrot.slane %v4309, 4
        %v4311 = vadd.f32 %v4309, %v4310
        %v4312 = vrot.slane %v4311, 2
        %v4313 = vadd.f32 %v4311, %v4312
        %v4314 = vrot.slane %v4313, 1
        %v4315 = vadd.f32 %v4313, %v4314
        %v4316 = vadd.f32 %v4152, %v4154
        %v4317 = vrot.slane %v4316, 4
        %v4318 = vadd.f32 %v4316, %v4317
        %v4319 = vrot.slane %v4318, 2
        %v4320 = vadd.f32 %v4318, %v4319
        %v4321 = vrot.slane %v4320, 1
        %v4322 = vadd.f32 %v4320, %v4321
        %v4323 = vadd.f32 %v4153, %v4155
        %v4324 = vrot.slane %v4323, 4
        %v4325 = vadd.f32 %v4323, %v4324
        %v4326 = vrot.slane %v4325, 2
        %v4327 = vadd.f32 %v4325, %v4326
        %v4328 = vrot.slane %v4327, 1
        %v4329 = vadd.f32 %v4327, %v4328
        %v4330 = vadd.f32 %v4156, %v4158
        %v4331 = vrot.slane %v4330, 4
        %v4332 = vadd.f32 %v4330, %v4331
        %v4333 = vrot.slane %v4332, 2
        %v4334 = vadd.f32 %v4332, %v4333
        %v4335 = vrot.slane %v4334, 1
        %v4336 = vadd.f32 %v4334, %v4335
        %v4337 = vadd.f32 %v4157, %v4159
        %v4338 = vrot.slane %v4337, 4
        %v4339 = vadd.f32 %v4337, %v4338
        %v4340 = vrot.slane %v4339, 2
        %v4341 = vadd.f32 %v4339, %v4340
        %v4342 = vrot.slane %v4341, 1
        %v4343 = vadd.f32 %v4341, %v4342
        %v4344 = vadd.f32 %v4160, %v4162
        %v4345 = vrot.slane %v4344, 4
        %v4346 = vadd.f32 %v4344, %v4345
        %v4347 = vrot.slane %v4346, 2
        %v4348 = vadd.f32 %v4346, %v4347
        %v4349 = vrot.slane %v4348, 1
        %v4350 = vadd.f32 %v4348, %v4349
        %v4351 = vadd.f32 %v4161, %v4163
        %v4352 = vrot.slane %v4351, 4
        %v4353 = vadd.f32 %v4351, %v4352
        %v4354 = vrot.slane %v4353, 2
        %v4355 = vadd.f32 %v4353, %v4354
        %v4356 = vrot.slane %v4355, 1
        %v4357 = vadd.f32 %v4355, %v4356
        %v4358 = vadd.f32 %v4164, %v4166
        %v4359 = vrot.slane %v4358, 4
        %v4360 = vadd.f32 %v4358, %v4359
        %v4361 = vrot.slane %v4360, 2
        %v4362 = vadd.f32 %v4360, %v4361
        %v4363 = vrot.slane %v4362, 1
        %v4364 = vadd.f32 %v4362, %v4363
        %v4365 = vadd.f32 %v4165, %v4167
        %v4366 = vrot.slane %v4365, 4
        %v4367 = vadd.f32 %v4365, %v4366
        %v4368 = vrot.slane %v4367, 2
        %v4369 = vadd.f32 %v4367, %v4368
        %v4370 = vrot.slane %v4369, 1
        %v4371 = vadd.f32 %v4369, %v4370
        %v4372 = vadd.f32 %v4168, %v4170
        %v4373 = vrot.slane %v4372, 4
        %v4374 = vadd.f32 %v4372, %v4373
        %v4375 = vrot.slane %v4374, 2
        %v4376 = vadd.f32 %v4374, %v4375
        %v4377 = vrot.slane %v4376, 1
        %v4378 = vadd.f32 %v4376, %v4377
        %v4379 = vadd.f32 %v4169, %v4171
        %v4380 = vrot.slane %v4379, 4
        %v4381 = vadd.f32 %v4379, %v4380
        %v4382 = vrot.slane %v4381, 2
        %v4383 = vadd.f32 %v4381, %v4382
        %v4384 = vrot.slane %v4383, 1
        %v4385 = vadd.f32 %v4383, %v4384
        %v4386 = vadd.f32 %v4172, %v4174
        %v4387 = vrot.slane %v4386, 4
        %v4388 = vadd.f32 %v4386, %v4387
        %v4389 = vrot.slane %v4388, 2
        %v4390 = vadd.f32 %v4388, %v4389
        %v4391 = vrot.slane %v4390, 1
        %v4392 = vadd.f32 %v4390, %v4391
        %v4393 = vadd.f32 %v4173, %v4175
        %v4394 = vrot.slane %v4393, 4
        %v4395 = vadd.f32 %v4393, %v4394
        %v4396 = vrot.slane %v4395, 2
        %v4397 = vadd.f32 %v4395, %v4396
        %v4398 = vrot.slane %v4397, 1
        %v4399 = vadd.f32 %v4397, %v4398
        %v4400 = vpack.c.bf16 %v4182, %v4182
        %v4401 = vpack.c.bf16 %v4189, %v4189
        %v4402 = vpack.c.bf16 %v4196, %v4196
        %v4403 = vpack.c.bf16 %v4203, %v4203
        %v4404 = vpack.c.bf16 %v4210, %v4210
        %v4405 = vpack.c.bf16 %v4217, %v4217
        %v4406 = vpack.c.bf16 %v4224, %v4224
        %v4407 = vpack.c.bf16 %v4231, %v4231
        %v4408 = vpack.c.bf16 %v4238, %v4238
        %v4409 = vpack.c.bf16 %v4245, %v4245
        %v4410 = vpack.c.bf16 %v4252, %v4252
        %v4411 = vpack.c.bf16 %v4259, %v4259
        %v4412 = vpack.c.bf16 %v4266, %v4266
        %v4413 = vpack.c.bf16 %v4273, %v4273
        %v4414 = vpack.c.bf16 %v4280, %v4280
        %v4415 = vpack.c.bf16 %v4287, %v4287
        %v4416 = vpack.c.bf16 %v4294, %v4294
        %v4417 = vpack.c.bf16 %v4301, %v4301
        %v4418 = vpack.c.bf16 %v4308, %v4308
        %v4419 = vpack.c.bf16 %v4315, %v4315
        %v4420 = vpack.c.bf16 %v4322, %v4322
        %v4421 = vpack.c.bf16 %v4329, %v4329
        %v4422 = vpack.c.bf16 %v4336, %v4336
        %v4423 = vpack.c.bf16 %v4343, %v4343
        %v4424 = vpack.c.bf16 %v4350, %v4350
        %v4425 = vpack.c.bf16 %v4357, %v4357
        %v4426 = vpack.c.bf16 %v4364, %v4364
        %v4427 = vpack.c.bf16 %v4371, %v4371
        %v4428 = vpack.c.bf16 %v4378, %v4378
        %v4429 = vpack.c.bf16 %v4385, %v4385
        %v4430 = vpack.c.bf16 %v4392, %v4392
        %v4431 = vpack.c.bf16 %v4399, %v4399
        %v4464 = vunpack.c.l.b16 %v4400
        %v4465 = vunpack.c.l.b16 %v4401
        %v4466 = vunpack.c.l.b16 %v4402
        %v4467 = vunpack.c.l.b16 %v4403
        %v4468 = vunpack.c.l.b16 %v4404
        %v4469 = vunpack.c.l.b16 %v4405
        %v4470 = vunpack.c.l.b16 %v4406
        %v4471 = vunpack.c.l.b16 %v4407
        %v4472 = vunpack.c.l.b16 %v4408
        %v4473 = vunpack.c.l.b16 %v4409
        %v4474 = vunpack.c.l.b16 %v4410
        %v4475 = vunpack.c.l.b16 %v4411
        %v4476 = vunpack.c.l.b16 %v4412
        %v4477 = vunpack.c.l.b16 %v4413
        %v4478 = vunpack.c.l.b16 %v4414
        %v4479 = vunpack.c.l.b16 %v4415
        %v4480 = vunpack.c.l.b16 %v4416
        %v4481 = vunpack.c.l.b16 %v4417
        %v4482 = vunpack.c.l.b16 %v4418
        %v4483 = vunpack.c.l.b16 %v4419
        %v4484 = vunpack.c.l.b16 %v4420
        %v4485 = vunpack.c.l.b16 %v4421
        %v4486 = vunpack.c.l.b16 %v4422
        %v4487 = vunpack.c.l.b16 %v4423
        %v4488 = vunpack.c.l.b16 %v4424
        %v4489 = vunpack.c.l.b16 %v4425
        %v4490 = vunpack.c.l.b16 %v4426
        %v4491 = vunpack.c.l.b16 %v4427
        %v4492 = vunpack.c.l.b16 %v4428
        %v4493 = vunpack.c.l.b16 %v4429
        %v4494 = vunpack.c.l.b16 %v4430
        %v4495 = vunpack.c.l.b16 %v4431
        %v4496 = vsel %vm1278, %v4466, %v4464
        %v4497 = vsel %vm1280, %v4468, %v4496
        %v4498 = vsel %vm1282, %v4470, %v4497
        %v4499 = vsel %vm1284, %v4472, %v4498
        %v4500 = vsel %vm1286, %v4474, %v4499
        %v4501 = vsel %vm1288, %v4476, %v4500
        %v4502 = vsel %vm1290, %v4478, %v4501
        %v4503 = vsel %vm1278, %v4467, %v4465
        %v4504 = vsel %vm1280, %v4469, %v4503
        %v4505 = vsel %vm1282, %v4471, %v4504
        %v4506 = vsel %vm1284, %v4473, %v4505
        %v4507 = vsel %vm1286, %v4475, %v4506
        %v4508 = vsel %vm1288, %v4477, %v4507
        %v4509 = vsel %vm1290, %v4479, %v4508
        %v4510 = vsel %vm1278, %v4482, %v4480
        %v4511 = vsel %vm1280, %v4484, %v4510
        %v4512 = vsel %vm1282, %v4486, %v4511
        %v4513 = vsel %vm1284, %v4488, %v4512
        %v4514 = vsel %vm1286, %v4490, %v4513
        %v4515 = vsel %vm1288, %v4492, %v4514
        %v4516 = vsel %vm1290, %v4494, %v4515
        %v4517 = vsel %vm1278, %v4483, %v4481
        %v4518 = vsel %vm1280, %v4485, %v4517
        %v4519 = vsel %vm1282, %v4487, %v4518
        %v4520 = vsel %vm1284, %v4489, %v4519
        %v4521 = vsel %vm1286, %v4491, %v4520
        %v4522 = vsel %vm1288, %v4493, %v4521
        %v4523 = vsel %vm1290, %v4495, %v4522
        %v4524 = vpack.c.b16 %v4516, %v4502
        %v4525 = vpack.c.b16 %v4523, %v4509
        %4528 = vst [vmem:[#allocation2 + $0x40] sm:$0xff] %v4524
        %4529 = vst [vmem:[#allocation2 + $0x48] sm:$0xff] %v4525
        %v4530 = vcombine.high %v3732, %v3732
        %v4532 = vadd.f32 %v2924, %v4530
        %v4533 = vcombine.high %v3742, %v3742
        %v4535 = vadd.f32 %v2128, %v4533
        %vm4536 = vcmp.gt.f32.partialorder %v4532, -1.0
        %vm4537 = vcmp.lt.f32.partialorder %v4532, 16.0
        %vm4538 = vmand %vm4536, %vm4537
        %vm4539 = vcmp.gt.f32.partialorder %v4535, -1.0
        %vm4540 = vcmp.lt.f32.partialorder %v4535, 16.0
        %vm4541 = vmand %vm4539, %vm4540
        %v4542 = vfloor.f32 %v4532
        %v4543 = vfloor.f32 %v4535
        %v4544 = vsub.f32 %v4532, %v4542
        %v4545 = vsub.f32 %v4535, %v4543
        %v4546 = vcvt.f32.s32.to.zero.pseudo %v4542
        %v4547 = vcvt.f32.s32.to.zero.pseudo %v4543
        %v4548 = vadd.s32 %v4546, 1
        %v4549 = vadd.s32 %v4547, 1
        %vm4550 = vcmp.ge.s32.totalorder %v4546, 0
        %vm4551 = vmand %vm4538, %vm4550
        %v4552 = vsub.f32 1.0, %v4544
        %v4553 = vsel %vm4551, %v4552, 0.0
        %vm4554 = vcmp.le.s32.totalorder %v4548, 15
        %vm4555 = vmand %vm4538, %vm4554
        %v4556 = vsel %vm4555, %v4544, 0.0
        %vm4557 = vcmp.ge.s32.totalorder %v4547, 0
        %vm4558 = vmand %vm4541, %vm4557
        %v4559 = vsub.f32 1.0, %v4545
        %v4560 = vsel %vm4558, %v4559, 0.0
        %vm4561 = vcmp.le.s32.totalorder %v4549, 15
        %vm4562 = vmand %vm4541, %vm4561
        %v4563 = vsel %vm4562, %v4545, 0.0
        %vm4564 = vcmp.gt.s32.totalorder %v4546, 0
        %v4565 = vsel %vm4564, %v4546, 0
        %vm4566 = vcmp.lt.s32.totalorder %v4565, 15
        %v4567 = vsel %vm4566, %v4565, 15
        %v4568 = vlaneseq
        %v4569 = vshrl.u32 %v4568, 7
        %v4570 = vsub.s32 0, %v4569
        %v4571 = vrot.slane %v4567, %v4570
        %v4572 = vlaneseq
        %v4573 = vshrl.u32 %v4572, 7
        %v4574 = vsub.s32 1, %v4573
        %v4575 = vrot.slane %v4567, %v4574
        %vm4576 = vcmp.eq.s32.totalorder %v365, %v4571
        %vm4577 = vcmp.eq.s32.totalorder %v365, %v4575
        %vm4578 = vcmp.eq.s32.totalorder %v366, %v4571
        %vm4579 = vcmp.eq.s32.totalorder %v366, %v4575
        %v4581 = vlaneseq
        %v4582 = vshrl.u32 %v4581, 7
        %v4583 = vsub.s32 0, %v4582
        %v4584 = vrot.slane %v4553, %v4583
        %v4585 = vlaneseq
        %v4586 = vshrl.u32 %v4585, 7
        %v4587 = vsub.s32 1, %v4586
        %v4588 = vrot.slane %v4553, %v4587
        %v4591 = vsel %vm4576, %v4584, 0.0
        %v4592 = vsel %vm4577, %v4588, 0.0
        %v4593 = vsel %vm4578, %v4584, 0.0
        %v4594 = vsel %vm4579, %v4588, 0.0
        %vm4595 = vcmp.gt.s32.totalorder %v4548, 0
        %v4596 = vsel %vm4595, %v4548, 0
        %vm4597 = vcmp.lt.s32.totalorder %v4596, 15
        %v4598 = vsel %vm4597, %v4596, 15
        %v4599 = vlaneseq
        %v4600 = vshrl.u32 %v4599, 7
        %v4601 = vsub.s32 0, %v4600
        %v4602 = vrot.slane %v4598, %v4601
        %v4603 = vlaneseq
        %v4604 = vshrl.u32 %v4603, 7
        %v4605 = vsub.s32 1, %v4604
        %v4606 = vrot.slane %v4598, %v4605
        %vm4607 = vcmp.eq.s32.totalorder %v365, %v4602
        %vm4608 = vcmp.eq.s32.totalorder %v365, %v4606
        %vm4609 = vcmp.eq.s32.totalorder %v366, %v4602
        %vm4610 = vcmp.eq.s32.totalorder %v366, %v4606
        %v4612 = vlaneseq
        %v4613 = vshrl.u32 %v4612, 7
        %v4614 = vsub.s32 0, %v4613
        %v4615 = vrot.slane %v4556, %v4614
        %v4616 = vlaneseq
        %v4617 = vshrl.u32 %v4616, 7
        %v4618 = vsub.s32 1, %v4617
        %v4619 = vrot.slane %v4556, %v4618
        %v4622 = vsel %vm4607, %v4615, 0.0
        %v4623 = vsel %vm4608, %v4619, 0.0
        %v4624 = vsel %vm4609, %v4615, 0.0
        %v4625 = vsel %vm4610, %v4619, 0.0
        %v4626 = vadd.f32 %v4591, %v4622
        %v4627 = vadd.f32 %v4592, %v4623
        %v4628 = vadd.f32 %v4593, %v4624
        %v4629 = vadd.f32 %v4594, %v4625
        %vm4630 = vcmp.gt.s32.totalorder %v4547, 0
        %v4631 = vsel %vm4630, %v4547, 0
        %vm4632 = vcmp.lt.s32.totalorder %v4631, 15
        %v4633 = vsel %vm4632, %v4631, 15
        %v4634 = vlaneseq
        %v4635 = vshrl.u32 %v4634, 7
        %v4636 = vsub.s32 0, %v4635
        %v4637 = vrot.slane %v4633, %v4636
        %v4638 = vlaneseq
        %v4639 = vshrl.u32 %v4638, 7
        %v4640 = vsub.s32 1, %v4639
        %v4641 = vrot.slane %v4633, %v4640
        %vm4642 = vcmp.eq.s32.totalorder %v365, %v4637
        %vm4643 = vcmp.eq.s32.totalorder %v365, %v4641
        %vm4644 = vcmp.eq.s32.totalorder %v366, %v4637
        %vm4645 = vcmp.eq.s32.totalorder %v366, %v4641
        %v4647 = vlaneseq
        %v4648 = vshrl.u32 %v4647, 7
        %v4649 = vsub.s32 0, %v4648
        %v4650 = vrot.slane %v4560, %v4649
        %v4651 = vlaneseq
        %v4652 = vshrl.u32 %v4651, 7
        %v4653 = vsub.s32 1, %v4652
        %v4654 = vrot.slane %v4560, %v4653
        %v4657 = vsel %vm4642, %v4650, 0.0
        %v4658 = vsel %vm4643, %v4654, 0.0
        %v4659 = vsel %vm4644, %v4650, 0.0
        %v4660 = vsel %vm4645, %v4654, 0.0
        %vm4661 = vcmp.gt.s32.totalorder %v4549, 0
        %v4662 = vsel %vm4661, %v4549, 0
        %vm4663 = vcmp.lt.s32.totalorder %v4662, 15
        %v4664 = vsel %vm4663, %v4662, 15
        %v4665 = vlaneseq
        %v4666 = vshrl.u32 %v4665, 7
        %v4667 = vsub.s32 0, %v4666
        %v4668 = vrot.slane %v4664, %v4667
        %v4669 = vlaneseq
        %v4670 = vshrl.u32 %v4669, 7
        %v4671 = vsub.s32 1, %v4670
        %v4672 = vrot.slane %v4664, %v4671
        %vm4673 = vcmp.eq.s32.totalorder %v365, %v4668
        %vm4674 = vcmp.eq.s32.totalorder %v365, %v4672
        %vm4675 = vcmp.eq.s32.totalorder %v366, %v4668
        %vm4676 = vcmp.eq.s32.totalorder %v366, %v4672
        %v4678 = vlaneseq
        %v4679 = vshrl.u32 %v4678, 7
        %v4680 = vsub.s32 0, %v4679
        %v4681 = vrot.slane %v4563, %v4680
        %v4682 = vlaneseq
        %v4683 = vshrl.u32 %v4682, 7
        %v4684 = vsub.s32 1, %v4683
        %v4685 = vrot.slane %v4563, %v4684
        %v4688 = vsel %vm4673, %v4681, 0.0
        %v4689 = vsel %vm4674, %v4685, 0.0
        %v4690 = vsel %vm4675, %v4681, 0.0
        %v4691 = vsel %vm4676, %v4685, 0.0
        %v4692 = vadd.f32 %v4657, %v4688
        %v4693 = vadd.f32 %v4658, %v4689
        %v4694 = vadd.f32 %v4659, %v4690
        %v4695 = vadd.f32 %v4660, %v4691
        %v4696 = vlaneseq
        %v4697 = vshrl.u32 %v4696, 7
        %v4698 = vsub.s32 7, %v4697
        %v4699 = vrot.slane %v357, %v4698
        %v4700 = vlaneseq
        %v4701 = vshrl.u32 %v4700, 7
        %v4702 = vsub.s32 7, %v4701
        %v4703 = vrot.slane %v359, %v4702
        %v4704 = vmul.f32 %v4626, %v4699
        %v4705 = vmul.f32 %v4627, %v4703
        %v4706 = vmul.f32 %v4628, %v4699
        %v4707 = vmul.f32 %v4629, %v4703
        %v4708 = vpack.c.bf16 %v4694, %v4692
        %v4709 = vpack.c.bf16 %v4695, %v4693
        %4710 = vmatprep.subr.bf16.mxu0 %v4709
        %4711 = vmatpush1.bf16.msra.mxu0 %v4708
        %4712 = vmatprep.subr.bf16.mxu0 0
        %4713 = vmatpush1.bf16.msra.mxu0 0
        %4714 = vmatprep.subr.bf16.mxu0 0
        %4715 = vmatpush1.bf16.msra.mxu0 0
        %4716 = vmatprep.subr.bf16.mxu0 0
        %4717 = vmatpush1.bf16.msra.mxu0 0
        %4718 = vmatprep.subr.bf16.mxu0 0
        %4719 = vmatpush1.bf16.msra.mxu0 0
        %4720 = vmatprep.subr.bf16.mxu0 0
        %4721 = vmatpush1.bf16.msra.mxu0 0
        %4722 = vmatprep.subr.bf16.mxu0 0
        %4723 = vmatpush1.bf16.msra.mxu0 0
        %4724 = vmatprep.subr.bf16.mxu0 0
        %4725 = vmatpush1.bf16.msra.mxu0 0
        %4726 = vmatprep.subr.bf16.mxu0 0
        %4727 = vmatpush1.bf16.msra.mxu0 0
        %4728 = vmatprep.subr.bf16.mxu0 0
        %4729 = vmatpush1.bf16.msra.mxu0 0
        %4730 = vmatprep.subr.bf16.mxu0 0
        %4731 = vmatpush1.bf16.msra.mxu0 0
        %4732 = vmatprep.subr.bf16.mxu0 0
        %4733 = vmatpush1.bf16.msra.mxu0 0
        %4734 = vmatprep.subr.bf16.mxu0 0
        %4735 = vmatpush1.bf16.msra.mxu0 0
        %4736 = vmatprep.subr.bf16.mxu0 0
        %4737 = vmatpush1.bf16.msra.mxu0 0
        %4738 = vmatprep.subr.bf16.mxu0 0
        %4739 = vmatpush1.bf16.msra.mxu0 0
        %4740 = vmatprep.subr.bf16.mxu0 0
        %4741 = vmatpush1.bf16.msra.mxu0 0
        %4742 = vmatprep.mubr.bf16.mxu0 0
        %4743 = vmatmul.mubr.bf16.gmra.mrb[0].mxu0 %v654
        %v4744 = vpop.f32.mrb[0].mxu0
        %v4745 = vadd.f32 0.0, %v4744
        %v4746 = vpop.f32.mrb[0].mxu0
        %v4747 = vadd.f32 0.0, %v4746
        %v4748 = vpop.f32.mrb[0].mxu0
        %v4749 = vadd.f32 0.0, %v4748
        %v4750 = vpop.f32.mrb[0].mxu0
        %v4751 = vadd.f32 0.0, %v4750
        %4752 = vmatprep.mubr.bf16.mxu0 0
        %4753 = vmatmul.mubr.bf16.gmra.mrb[0].mxu0 %v657
        %v4754 = vpop.f32.mrb[0].mxu0
        %v4755 = vadd.f32 0.0, %v4754
        %v4756 = vpop.f32.mrb[0].mxu0
        %v4757 = vadd.f32 0.0, %v4756
        %v4758 = vpop.f32.mrb[0].mxu0
        %v4759 = vadd.f32 0.0, %v4758
        %v4760 = vpop.f32.mrb[0].mxu0
        %v4761 = vadd.f32 0.0, %v4760
        %4762 = vmatprep.mubr.bf16.mxu0 0
        %4763 = vmatmul.mubr.bf16.gmra.mrb[0].mxu0 %v660
        %v4764 = vpop.f32.mrb[0].mxu0
        %v4765 = vadd.f32 0.0, %v4764
        %v4766 = vpop.f32.mrb[0].mxu0
        %v4767 = vadd.f32 0.0, %v4766
        %v4768 = vpop.f32.mrb[0].mxu0
        %v4769 = vadd.f32 0.0, %v4768
        %v4770 = vpop.f32.mrb[0].mxu0
        %v4771 = vadd.f32 0.0, %v4770
        %4772 = vmatprep.mubr.bf16.mxu0 0
        %4773 = vmatmul.mubr.bf16.gmra.mrb[0].mxu0 %v663
        %v4774 = vpop.f32.mrb[0].mxu0
        %v4775 = vadd.f32 0.0, %v4774
        %v4776 = vpop.f32.mrb[0].mxu0
        %v4777 = vadd.f32 0.0, %v4776
        %v4778 = vpop.f32.mrb[0].mxu0
        %v4779 = vadd.f32 0.0, %v4778
        %v4780 = vpop.f32.mrb[0].mxu0
        %v4781 = vadd.f32 0.0, %v4780
        %4782 = vmatprep.mubr.bf16.mxu0 0
        %4783 = vmatmul.mubr.bf16.gmra.mrb[0].mxu0 %v666
        %v4784 = vpop.f32.mrb[0].mxu0
        %v4785 = vadd.f32 0.0, %v4784
        %v4786 = vpop.f32.mrb[0].mxu0
        %v4787 = vadd.f32 0.0, %v4786
        %v4788 = vpop.f32.mrb[0].mxu0
        %v4789 = vadd.f32 0.0, %v4788
        %v4790 = vpop.f32.mrb[0].mxu0
        %v4791 = vadd.f32 0.0, %v4790
        %4792 = vmatprep.mubr.bf16.mxu0 0
        %4793 = vmatmul.mubr.bf16.gmra.mrb[0].mxu0 %v669
        %v4794 = vpop.f32.mrb[0].mxu0
        %v4795 = vadd.f32 0.0, %v4794
        %v4796 = vpop.f32.mrb[0].mxu0
        %v4797 = vadd.f32 0.0, %v4796
        %v4798 = vpop.f32.mrb[0].mxu0
        %v4799 = vadd.f32 0.0, %v4798
        %v4800 = vpop.f32.mrb[0].mxu0
        %v4801 = vadd.f32 0.0, %v4800
        %4802 = vmatprep.mubr.bf16.mxu0 0
        %4803 = vmatmul.mubr.bf16.gmra.mrb[0].mxu0 %v672
        %v4804 = vpop.f32.mrb[0].mxu0
        %v4805 = vadd.f32 0.0, %v4804
        %v4806 = vpop.f32.mrb[0].mxu0
        %v4807 = vadd.f32 0.0, %v4806
        %v4808 = vpop.f32.mrb[0].mxu0
        %v4809 = vadd.f32 0.0, %v4808
        %v4810 = vpop.f32.mrb[0].mxu0
        %v4811 = vadd.f32 0.0, %v4810
        %4812 = vmatprep.mubr.bf16.mxu0 0
        %4813 = vmatmul.mubr.bf16.gmra.mrb[0].mxu0 %v675
        %v4814 = vpop.f32.mrb[0].mxu0
        %v4815 = vadd.f32 0.0, %v4814
        %v4816 = vpop.f32.mrb[0].mxu0
        %v4817 = vadd.f32 0.0, %v4816
        %v4818 = vpop.f32.mrb[0].mxu0
        %v4819 = vadd.f32 0.0, %v4818
        %v4820 = vpop.f32.mrb[0].mxu0
        %v4821 = vadd.f32 0.0, %v4820
        %4822 = vmatprep.mubr.bf16.mxu0 0
        %4823 = vmatmul.mubr.bf16.gmra.mrb[0].mxu0 %v678
        %v4824 = vpop.f32.mrb[0].mxu0
        %v4825 = vadd.f32 0.0, %v4824
        %v4826 = vpop.f32.mrb[0].mxu0
        %v4827 = vadd.f32 0.0, %v4826
        %v4828 = vpop.f32.mrb[0].mxu0
        %v4829 = vadd.f32 0.0, %v4828
        %v4830 = vpop.f32.mrb[0].mxu0
        %v4831 = vadd.f32 0.0, %v4830
        %4832 = vmatprep.mubr.bf16.mxu0 0
        %4833 = vmatmul.mubr.bf16.gmra.mrb[0].mxu0 %v681
        %v4834 = vpop.f32.mrb[0].mxu0
        %v4835 = vadd.f32 0.0, %v4834
        %v4836 = vpop.f32.mrb[0].mxu0
        %v4837 = vadd.f32 0.0, %v4836
        %v4838 = vpop.f32.mrb[0].mxu0
        %v4839 = vadd.f32 0.0, %v4838
        %v4840 = vpop.f32.mrb[0].mxu0
        %v4841 = vadd.f32 0.0, %v4840
        %4842 = vmatprep.mubr.bf16.mxu0 0
        %4843 = vmatmul.mubr.bf16.gmra.mrb[0].mxu0 %v684
        %v4844 = vpop.f32.mrb[0].mxu0
        %v4845 = vadd.f32 0.0, %v4844
        %v4846 = vpop.f32.mrb[0].mxu0
        %v4847 = vadd.f32 0.0, %v4846
        %v4848 = vpop.f32.mrb[0].mxu0
        %v4849 = vadd.f32 0.0, %v4848
        %v4850 = vpop.f32.mrb[0].mxu0
        %v4851 = vadd.f32 0.0, %v4850
        %4852 = vmatprep.mubr.bf16.mxu0 0
        %4853 = vmatmul.mubr.bf16.gmra.mrb[0].mxu0 %v687
        %v4854 = vpop.f32.mrb[0].mxu0
        %v4855 = vadd.f32 0.0, %v4854
        %v4856 = vpop.f32.mrb[0].mxu0
        %v4857 = vadd.f32 0.0, %v4856
        %v4858 = vpop.f32.mrb[0].mxu0
        %v4859 = vadd.f32 0.0, %v4858
        %v4860 = vpop.f32.mrb[0].mxu0
        %v4861 = vadd.f32 0.0, %v4860
        %4862 = vmatprep.mubr.bf16.mxu0 0
        %4863 = vmatmul.mubr.bf16.gmra.mrb[0].mxu0 %v690
        %v4864 = vpop.f32.mrb[0].mxu0
        %v4865 = vadd.f32 0.0, %v4864
        %v4866 = vpop.f32.mrb[0].mxu0
        %v4867 = vadd.f32 0.0, %v4866
        %v4868 = vpop.f32.mrb[0].mxu0
        %v4869 = vadd.f32 0.0, %v4868
        %v4870 = vpop.f32.mrb[0].mxu0
        %v4871 = vadd.f32 0.0, %v4870
        %4872 = vmatprep.mubr.bf16.mxu0 0
        %4873 = vmatmul.mubr.bf16.gmra.mrb[0].mxu0 %v693
        %v4874 = vpop.f32.mrb[0].mxu0
        %v4875 = vadd.f32 0.0, %v4874
        %v4876 = vpop.f32.mrb[0].mxu0
        %v4877 = vadd.f32 0.0, %v4876
        %v4878 = vpop.f32.mrb[0].mxu0
        %v4879 = vadd.f32 0.0, %v4878
        %v4880 = vpop.f32.mrb[0].mxu0
        %v4881 = vadd.f32 0.0, %v4880
        %4882 = vmatprep.mubr.bf16.mxu0 0
        %4883 = vmatmul.mubr.bf16.gmra.mrb[0].mxu0 %v696
        %v4884 = vpop.f32.mrb[0].mxu0
        %v4885 = vadd.f32 0.0, %v4884
        %v4886 = vpop.f32.mrb[0].mxu0
        %v4887 = vadd.f32 0.0, %v4886
        %v4888 = vpop.f32.mrb[0].mxu0
        %v4889 = vadd.f32 0.0, %v4888
        %v4890 = vpop.f32.mrb[0].mxu0
        %v4891 = vadd.f32 0.0, %v4890
        %4892 = vmatprep.mubr.bf16.mxu0 0
        %4893 = vmatmul.mubr.bf16.gmra.mrb[0].mxu0 %v699
        %v4894 = vpop.f32.mrb[0].mxu0
        %v4895 = vadd.f32 0.0, %v4894
        %v4896 = vpop.f32.mrb[0].mxu0
        %v4897 = vadd.f32 0.0, %v4896
        %v4898 = vpop.f32.mrb[0].mxu0
        %v4899 = vadd.f32 0.0, %v4898
        %v4900 = vpop.f32.mrb[0].mxu0
        %v4901 = vadd.f32 0.0, %v4900
        %4902 = vdwg.mxu0
        %v4903 = vmul.f32 %v4745, %v4704
        %v4904 = vmul.f32 %v4747, %v4705
        %v4905 = vmul.f32 %v4749, %v4706
        %v4906 = vmul.f32 %v4751, %v4707
        %v4907 = vmul.f32 %v4755, %v4704
        %v4908 = vmul.f32 %v4757, %v4705
        %v4909 = vmul.f32 %v4759, %v4706
        %v4910 = vmul.f32 %v4761, %v4707
        %v4911 = vmul.f32 %v4765, %v4704
        %v4912 = vmul.f32 %v4767, %v4705
        %v4913 = vmul.f32 %v4769, %v4706
        %v4914 = vmul.f32 %v4771, %v4707
        %v4915 = vmul.f32 %v4775, %v4704
        %v4916 = vmul.f32 %v4777, %v4705
        %v4917 = vmul.f32 %v4779, %v4706
        %v4918 = vmul.f32 %v4781, %v4707
        %v4919 = vmul.f32 %v4785, %v4704
        %v4920 = vmul.f32 %v4787, %v4705
        %v4921 = vmul.f32 %v4789, %v4706
        %v4922 = vmul.f32 %v4791, %v4707
        %v4923 = vmul.f32 %v4795, %v4704
        %v4924 = vmul.f32 %v4797, %v4705
        %v4925 = vmul.f32 %v4799, %v4706
        %v4926 = vmul.f32 %v4801, %v4707
        %v4927 = vmul.f32 %v4805, %v4704
        %v4928 = vmul.f32 %v4807, %v4705
        %v4929 = vmul.f32 %v4809, %v4706
        %v4930 = vmul.f32 %v4811, %v4707
        %v4931 = vmul.f32 %v4815, %v4704
        %v4932 = vmul.f32 %v4817, %v4705
        %v4933 = vmul.f32 %v4819, %v4706
        %v4934 = vmul.f32 %v4821, %v4707
        %v4935 = vmul.f32 %v4825, %v4704
        %v4936 = vmul.f32 %v4827, %v4705
        %v4937 = vmul.f32 %v4829, %v4706
        %v4938 = vmul.f32 %v4831, %v4707
        %v4939 = vmul.f32 %v4835, %v4704
        %v4940 = vmul.f32 %v4837, %v4705
        %v4941 = vmul.f32 %v4839, %v4706
        %v4942 = vmul.f32 %v4841, %v4707
        %v4943 = vmul.f32 %v4845, %v4704
        %v4944 = vmul.f32 %v4847, %v4705
        %v4945 = vmul.f32 %v4849, %v4706
        %v4946 = vmul.f32 %v4851, %v4707
        %v4947 = vmul.f32 %v4855, %v4704
        %v4948 = vmul.f32 %v4857, %v4705
        %v4949 = vmul.f32 %v4859, %v4706
        %v4950 = vmul.f32 %v4861, %v4707
        %v4951 = vmul.f32 %v4865, %v4704
        %v4952 = vmul.f32 %v4867, %v4705
        %v4953 = vmul.f32 %v4869, %v4706
        %v4954 = vmul.f32 %v4871, %v4707
        %v4955 = vmul.f32 %v4875, %v4704
        %v4956 = vmul.f32 %v4877, %v4705
        %v4957 = vmul.f32 %v4879, %v4706
        %v4958 = vmul.f32 %v4881, %v4707
        %v4959 = vmul.f32 %v4885, %v4704
        %v4960 = vmul.f32 %v4887, %v4705
        %v4961 = vmul.f32 %v4889, %v4706
        %v4962 = vmul.f32 %v4891, %v4707
        %v4963 = vmul.f32 %v4895, %v4704
        %v4964 = vmul.f32 %v4897, %v4705
        %v4965 = vmul.f32 %v4899, %v4706
        %v4966 = vmul.f32 %v4901, %v4707
        %v4967 = vadd.f32 %v4903, %v4905
        %v4968 = vrot.slane %v4967, 4
        %v4969 = vadd.f32 %v4967, %v4968
        %v4970 = vrot.slane %v4969, 2
        %v4971 = vadd.f32 %v4969, %v4970
        %v4972 = vrot.slane %v4971, 1
        %v4973 = vadd.f32 %v4971, %v4972
        %v4974 = vadd.f32 %v4904, %v4906
        %v4975 = vrot.slane %v4974, 4
        %v4976 = vadd.f32 %v4974, %v4975
        %v4977 = vrot.slane %v4976, 2
        %v4978 = vadd.f32 %v4976, %v4977
        %v4979 = vrot.slane %v4978, 1
        %v4980 = vadd.f32 %v4978, %v4979
        %v4981 = vadd.f32 %v4907, %v4909
        %v4982 = vrot.slane %v4981, 4
        %v4983 = vadd.f32 %v4981, %v4982
        %v4984 = vrot.slane %v4983, 2
        %v4985 = vadd.f32 %v4983, %v4984
        %v4986 = vrot.slane %v4985, 1
        %v4987 = vadd.f32 %v4985, %v4986
        %v4988 = vadd.f32 %v4908, %v4910
        %v4989 = vrot.slane %v4988, 4
        %v4990 = vadd.f32 %v4988, %v4989
        %v4991 = vrot.slane %v4990, 2
        %v4992 = vadd.f32 %v4990, %v4991
        %v4993 = vrot.slane %v4992, 1
        %v4994 = vadd.f32 %v4992, %v4993
        %v4995 = vadd.f32 %v4911, %v4913
        %v4996 = vrot.slane %v4995, 4
        %v4997 = vadd.f32 %v4995, %v4996
        %v4998 = vrot.slane %v4997, 2
        %v4999 = vadd.f32 %v4997, %v4998
        %v5000 = vrot.slane %v4999, 1
        %v5001 = vadd.f32 %v4999, %v5000
        %v5002 = vadd.f32 %v4912, %v4914
        %v5003 = vrot.slane %v5002, 4
        %v5004 = vadd.f32 %v5002, %v5003
        %v5005 = vrot.slane %v5004, 2
        %v5006 = vadd.f32 %v5004, %v5005
        %v5007 = vrot.slane %v5006, 1
        %v5008 = vadd.f32 %v5006, %v5007
        %v5009 = vadd.f32 %v4915, %v4917
        %v5010 = vrot.slane %v5009, 4
        %v5011 = vadd.f32 %v5009, %v5010
        %v5012 = vrot.slane %v5011, 2
        %v5013 = vadd.f32 %v5011, %v5012
        %v5014 = vrot.slane %v5013, 1
        %v5015 = vadd.f32 %v5013, %v5014
        %v5016 = vadd.f32 %v4916, %v4918
        %v5017 = vrot.slane %v5016, 4
        %v5018 = vadd.f32 %v5016, %v5017
        %v5019 = vrot.slane %v5018, 2
        %v5020 = vadd.f32 %v5018, %v5019
        %v5021 = vrot.slane %v5020, 1
        %v5022 = vadd.f32 %v5020, %v5021
        %v5023 = vadd.f32 %v4919, %v4921
        %v5024 = vrot.slane %v5023, 4
        %v5025 = vadd.f32 %v5023, %v5024
        %v5026 = vrot.slane %v5025, 2
        %v5027 = vadd.f32 %v5025, %v5026
        %v5028 = vrot.slane %v5027, 1
        %v5029 = vadd.f32 %v5027, %v5028
        %v5030 = vadd.f32 %v4920, %v4922
        %v5031 = vrot.slane %v5030, 4
        %v5032 = vadd.f32 %v5030, %v5031
        %v5033 = vrot.slane %v5032, 2
        %v5034 = vadd.f32 %v5032, %v5033
        %v5035 = vrot.slane %v5034, 1
        %v5036 = vadd.f32 %v5034, %v5035
        %v5037 = vadd.f32 %v4923, %v4925
        %v5038 = vrot.slane %v5037, 4
        %v5039 = vadd.f32 %v5037, %v5038
        %v5040 = vrot.slane %v5039, 2
        %v5041 = vadd.f32 %v5039, %v5040
        %v5042 = vrot.slane %v5041, 1
        %v5043 = vadd.f32 %v5041, %v5042
        %v5044 = vadd.f32 %v4924, %v4926
        %v5045 = vrot.slane %v5044, 4
        %v5046 = vadd.f32 %v5044, %v5045
        %v5047 = vrot.slane %v5046, 2
        %v5048 = vadd.f32 %v5046, %v5047
        %v5049 = vrot.slane %v5048, 1
        %v5050 = vadd.f32 %v5048, %v5049
        %v5051 = vadd.f32 %v4927, %v4929
        %v5052 = vrot.slane %v5051, 4
        %v5053 = vadd.f32 %v5051, %v5052
        %v5054 = vrot.slane %v5053, 2
        %v5055 = vadd.f32 %v5053, %v5054
        %v5056 = vrot.slane %v5055, 1
        %v5057 = vadd.f32 %v5055, %v5056
        %v5058 = vadd.f32 %v4928, %v4930
        %v5059 = vrot.slane %v5058, 4
        %v5060 = vadd.f32 %v5058, %v5059
        %v5061 = vrot.slane %v5060, 2
        %v5062 = vadd.f32 %v5060, %v5061
        %v5063 = vrot.slane %v5062, 1
        %v5064 = vadd.f32 %v5062, %v5063
        %v5065 = vadd.f32 %v4931, %v4933
        %v5066 = vrot.slane %v5065, 4
        %v5067 = vadd.f32 %v5065, %v5066
        %v5068 = vrot.slane %v5067, 2
        %v5069 = vadd.f32 %v5067, %v5068
        %v5070 = vrot.slane %v5069, 1
        %v5071 = vadd.f32 %v5069, %v5070
        %v5072 = vadd.f32 %v4932, %v4934
        %v5073 = vrot.slane %v5072, 4
        %v5074 = vadd.f32 %v5072, %v5073
        %v5075 = vrot.slane %v5074, 2
        %v5076 = vadd.f32 %v5074, %v5075
        %v5077 = vrot.slane %v5076, 1
        %v5078 = vadd.f32 %v5076, %v5077
        %v5079 = vadd.f32 %v4935, %v4937
        %v5080 = vrot.slane %v5079, 4
        %v5081 = vadd.f32 %v5079, %v5080
        %v5082 = vrot.slane %v5081, 2
        %v5083 = vadd.f32 %v5081, %v5082
        %v5084 = vrot.slane %v5083, 1
        %v5085 = vadd.f32 %v5083, %v5084
        %v5086 = vadd.f32 %v4936, %v4938
        %v5087 = vrot.slane %v5086, 4
        %v5088 = vadd.f32 %v5086, %v5087
        %v5089 = vrot.slane %v5088, 2
        %v5090 = vadd.f32 %v5088, %v5089
        %v5091 = vrot.slane %v5090, 1
        %v5092 = vadd.f32 %v5090, %v5091
        %v5093 = vadd.f32 %v4939, %v4941
        %v5094 = vrot.slane %v5093, 4
        %v5095 = vadd.f32 %v5093, %v5094
        %v5096 = vrot.slane %v5095, 2
        %v5097 = vadd.f32 %v5095, %v5096
        %v5098 = vrot.slane %v5097, 1
        %v5099 = vadd.f32 %v5097, %v5098
        %v5100 = vadd.f32 %v4940, %v4942
        %v5101 = vrot.slane %v5100, 4
        %v5102 = vadd.f32 %v5100, %v5101
        %v5103 = vrot.slane %v5102, 2
        %v5104 = vadd.f32 %v5102, %v5103
        %v5105 = vrot.slane %v5104, 1
        %v5106 = vadd.f32 %v5104, %v5105
        %v5107 = vadd.f32 %v4943, %v4945
        %v5108 = vrot.slane %v5107, 4
        %v5109 = vadd.f32 %v5107, %v5108
        %v5110 = vrot.slane %v5109, 2
        %v5111 = vadd.f32 %v5109, %v5110
        %v5112 = vrot.slane %v5111, 1
        %v5113 = vadd.f32 %v5111, %v5112
        %v5114 = vadd.f32 %v4944, %v4946
        %v5115 = vrot.slane %v5114, 4
        %v5116 = vadd.f32 %v5114, %v5115
        %v5117 = vrot.slane %v5116, 2
        %v5118 = vadd.f32 %v5116, %v5117
        %v5119 = vrot.slane %v5118, 1
        %v5120 = vadd.f32 %v5118, %v5119
        %v5121 = vadd.f32 %v4947, %v4949
        %v5122 = vrot.slane %v5121, 4
        %v5123 = vadd.f32 %v5121, %v5122
        %v5124 = vrot.slane %v5123, 2
        %v5125 = vadd.f32 %v5123, %v5124
        %v5126 = vrot.slane %v5125, 1
        %v5127 = vadd.f32 %v5125, %v5126
        %v5128 = vadd.f32 %v4948, %v4950
        %v5129 = vrot.slane %v5128, 4
        %v5130 = vadd.f32 %v5128, %v5129
        %v5131 = vrot.slane %v5130, 2
        %v5132 = vadd.f32 %v5130, %v5131
        %v5133 = vrot.slane %v5132, 1
        %v5134 = vadd.f32 %v5132, %v5133
        %v5135 = vadd.f32 %v4951, %v4953
        %v5136 = vrot.slane %v5135, 4
        %v5137 = vadd.f32 %v5135, %v5136
        %v5138 = vrot.slane %v5137, 2
        %v5139 = vadd.f32 %v5137, %v5138
        %v5140 = vrot.slane %v5139, 1
        %v5141 = vadd.f32 %v5139, %v5140
        %v5142 = vadd.f32 %v4952, %v4954
        %v5143 = vrot.slane %v5142, 4
        %v5144 = vadd.f32 %v5142, %v5143
        %v5145 = vrot.slane %v5144, 2
        %v5146 = vadd.f32 %v5144, %v5145
        %v5147 = vrot.slane %v5146, 1
        %v5148 = vadd.f32 %v5146, %v5147
        %v5149 = vadd.f32 %v4955, %v4957
        %v5150 = vrot.slane %v5149, 4
        %v5151 = vadd.f32 %v5149, %v5150
        %v5152 = vrot.slane %v5151, 2
        %v5153 = vadd.f32 %v5151, %v5152
        %v5154 = vrot.slane %v5153, 1
        %v5155 = vadd.f32 %v5153, %v5154
        %v5156 = vadd.f32 %v4956, %v4958
        %v5157 = vrot.slane %v5156, 4
        %v5158 = vadd.f32 %v5156, %v5157
        %v5159 = vrot.slane %v5158, 2
        %v5160 = vadd.f32 %v5158, %v5159
        %v5161 = vrot.slane %v5160, 1
        %v5162 = vadd.f32 %v5160, %v5161
        %v5163 = vadd.f32 %v4959, %v4961
        %v5164 = vrot.slane %v5163, 4
        %v5165 = vadd.f32 %v5163, %v5164
        %v5166 = vrot.slane %v5165, 2
        %v5167 = vadd.f32 %v5165, %v5166
        %v5168 = vrot.slane %v5167, 1
        %v5169 = vadd.f32 %v5167, %v5168
        %v5170 = vadd.f32 %v4960, %v4962
        %v5171 = vrot.slane %v5170, 4
        %v5172 = vadd.f32 %v5170, %v5171
        %v5173 = vrot.slane %v5172, 2
        %v5174 = vadd.f32 %v5172, %v5173
        %v5175 = vrot.slane %v5174, 1
        %v5176 = vadd.f32 %v5174, %v5175
        %v5177 = vadd.f32 %v4963, %v4965
        %v5178 = vrot.slane %v5177, 4
        %v5179 = vadd.f32 %v5177, %v5178
        %v5180 = vrot.slane %v5179, 2
        %v5181 = vadd.f32 %v5179, %v5180
        %v5182 = vrot.slane %v5181, 1
        %v5183 = vadd.f32 %v5181, %v5182
        %v5184 = vadd.f32 %v4964, %v4966
        %v5185 = vrot.slane %v5184, 4
        %v5186 = vadd.f32 %v5184, %v5185
        %v5187 = vrot.slane %v5186, 2
        %v5188 = vadd.f32 %v5186, %v5187
        %v5189 = vrot.slane %v5188, 1
        %v5190 = vadd.f32 %v5188, %v5189
        %v5191 = vpack.c.bf16 %v4973, %v4973
        %v5192 = vpack.c.bf16 %v4980, %v4980
        %v5193 = vpack.c.bf16 %v4987, %v4987
        %v5194 = vpack.c.bf16 %v4994, %v4994
        %v5195 = vpack.c.bf16 %v5001, %v5001
        %v5196 = vpack.c.bf16 %v5008, %v5008
        %v5197 = vpack.c.bf16 %v5015, %v5015
        %v5198 = vpack.c.bf16 %v5022, %v5022
        %v5199 = vpack.c.bf16 %v5029, %v5029
        %v5200 = vpack.c.bf16 %v5036, %v5036
        %v5201 = vpack.c.bf16 %v5043, %v5043
        %v5202 = vpack.c.bf16 %v5050, %v5050
        %v5203 = vpack.c.bf16 %v5057, %v5057
        %v5204 = vpack.c.bf16 %v5064, %v5064
        %v5205 = vpack.c.bf16 %v5071, %v5071
        %v5206 = vpack.c.bf16 %v5078, %v5078
        %v5207 = vpack.c.bf16 %v5085, %v5085
        %v5208 = vpack.c.bf16 %v5092, %v5092
        %v5209 = vpack.c.bf16 %v5099, %v5099
        %v5210 = vpack.c.bf16 %v5106, %v5106
        %v5211 = vpack.c.bf16 %v5113, %v5113
        %v5212 = vpack.c.bf16 %v5120, %v5120
        %v5213 = vpack.c.bf16 %v5127, %v5127
        %v5214 = vpack.c.bf16 %v5134, %v5134
        %v5215 = vpack.c.bf16 %v5141, %v5141
        %v5216 = vpack.c.bf16 %v5148, %v5148
        %v5217 = vpack.c.bf16 %v5155, %v5155
        %v5218 = vpack.c.bf16 %v5162, %v5162
        %v5219 = vpack.c.bf16 %v5169, %v5169
        %v5220 = vpack.c.bf16 %v5176, %v5176
        %v5221 = vpack.c.bf16 %v5183, %v5183
        %v5222 = vpack.c.bf16 %v5190, %v5190
        %v5255 = vunpack.c.l.b16 %v5191
        %v5256 = vunpack.c.l.b16 %v5192
        %v5257 = vunpack.c.l.b16 %v5193
        %v5258 = vunpack.c.l.b16 %v5194
        %v5259 = vunpack.c.l.b16 %v5195
        %v5260 = vunpack.c.l.b16 %v5196
        %v5261 = vunpack.c.l.b16 %v5197
        %v5262 = vunpack.c.l.b16 %v5198
        %v5263 = vunpack.c.l.b16 %v5199
        %v5264 = vunpack.c.l.b16 %v5200
        %v5265 = vunpack.c.l.b16 %v5201
        %v5266 = vunpack.c.l.b16 %v5202
        %v5267 = vunpack.c.l.b16 %v5203
        %v5268 = vunpack.c.l.b16 %v5204
        %v5269 = vunpack.c.l.b16 %v5205
        %v5270 = vunpack.c.l.b16 %v5206
        %v5271 = vunpack.c.l.b16 %v5207
        %v5272 = vunpack.c.l.b16 %v5208
        %v5273 = vunpack.c.l.b16 %v5209
        %v5274 = vunpack.c.l.b16 %v5210
        %v5275 = vunpack.c.l.b16 %v5211
        %v5276 = vunpack.c.l.b16 %v5212
        %v5277 = vunpack.c.l.b16 %v5213
        %v5278 = vunpack.c.l.b16 %v5214
        %v5279 = vunpack.c.l.b16 %v5215
        %v5280 = vunpack.c.l.b16 %v5216
        %v5281 = vunpack.c.l.b16 %v5217
        %v5282 = vunpack.c.l.b16 %v5218
        %v5283 = vunpack.c.l.b16 %v5219
        %v5284 = vunpack.c.l.b16 %v5220
        %v5285 = vunpack.c.l.b16 %v5221
        %v5286 = vunpack.c.l.b16 %v5222
        %v5287 = vsel %vm1278, %v5257, %v5255
        %v5288 = vsel %vm1280, %v5259, %v5287
        %v5289 = vsel %vm1282, %v5261, %v5288
        %v5290 = vsel %vm1284, %v5263, %v5289
        %v5291 = vsel %vm1286, %v5265, %v5290
        %v5292 = vsel %vm1288, %v5267, %v5291
        %v5293 = vsel %vm1290, %v5269, %v5292
        %v5294 = vsel %vm1278, %v5258, %v5256
        %v5295 = vsel %vm1280, %v5260, %v5294
        %v5296 = vsel %vm1282, %v5262, %v5295
        %v5297 = vsel %vm1284, %v5264, %v5296
        %v5298 = vsel %vm1286, %v5266, %v5297
        %v5299 = vsel %vm1288, %v5268, %v5298
        %v5300 = vsel %vm1290, %v5270, %v5299
        %v5301 = vsel %vm1278, %v5273, %v5271
        %v5302 = vsel %vm1280, %v5275, %v5301
        %v5303 = vsel %vm1282, %v5277, %v5302
        %v5304 = vsel %vm1284, %v5279, %v5303
        %v5305 = vsel %vm1286, %v5281, %v5304
        %v5306 = vsel %vm1288, %v5283, %v5305
        %v5307 = vsel %vm1290, %v5285, %v5306
        %v5308 = vsel %vm1278, %v5274, %v5272
        %v5309 = vsel %vm1280, %v5276, %v5308
        %v5310 = vsel %vm1282, %v5278, %v5309
        %v5311 = vsel %vm1284, %v5280, %v5310
        %v5312 = vsel %vm1286, %v5282, %v5311
        %v5313 = vsel %vm1288, %v5284, %v5312
        %v5314 = vsel %vm1290, %v5286, %v5313
        %v5315 = vpack.c.b16 %v5307, %v5293
        %v5316 = vpack.c.b16 %v5314, %v5300
        %5319 = vst [vmem:[#allocation2 + $0x50] sm:$0xff] %v5315
        %5320 = vst [vmem:[#allocation2 + $0x58] sm:$0xff] %v5316
        %v5321 = vadd.f32 %v337, 2.0
        %v5322 = vcombine.high %v299, %v300
        %v5324 = vunpack.c.l.s4 1966171168
        %v5325 = vunpack.c.0.s8 %v5324
        %v5326 = vlaneseq
        %v5327 = vshrl.u32 %v5326, 7
        %v5328 = vsub.s32 %v5325, %v5327
        %v5329 = vrot.slane %v5322, %v5328
        %v5331 = vunpack.c.l.s4 1966171168
        %v5332 = vunpack.c.0.s8 %v5331
        %v5333 = vlaneseq
        %v5334 = vshrl.u32 %v5333, 7
        %v5335 = vsub.s32 %v5332, %v5334
        %v5336 = vrot.slane %v5329, %v5335
        %v5338 = vadd.f32 %v5321, %v5336
        %v5339 = vcombine.high %v5329, %v5329
        %v5341 = vunpack.c.l.s4 1966171168
        %v5342 = vunpack.c.0.s8 %v5341
        %v5343 = vlaneseq
        %v5344 = vshrl.u32 %v5343, 7
        %v5345 = vsub.s32 %v5342, %v5344
        %v5346 = vrot.slane %v5339, %v5345
        %v5348 = vadd.f32 %v387, %v5346
        %vm5349 = vcmp.gt.f32.partialorder %v5338, -1.0
        %vm5350 = vcmp.lt.f32.partialorder %v5338, 16.0
        %vm5351 = vmand %vm5349, %vm5350
        %vm5352 = vcmp.gt.f32.partialorder %v5348, -1.0
        %vm5353 = vcmp.lt.f32.partialorder %v5348, 16.0
        %vm5354 = vmand %vm5352, %vm5353
        %v5355 = vfloor.f32 %v5338
        %v5356 = vfloor.f32 %v5348
        %v5357 = vsub.f32 %v5338, %v5355
        %v5358 = vsub.f32 %v5348, %v5356
        %v5359 = vcvt.f32.s32.to.zero.pseudo %v5355
        %v5360 = vcvt.f32.s32.to.zero.pseudo %v5356
        %v5361 = vadd.s32 %v5359, 1
        %v5362 = vadd.s32 %v5360, 1
        %vm5363 = vcmp.ge.s32.totalorder %v5359, 0
        %vm5364 = vmand %vm5351, %vm5363
        %v5365 = vsub.f32 1.0, %v5357
        %v5366 = vsel %vm5364, %v5365, 0.0
        %vm5367 = vcmp.le.s32.totalorder %v5361, 15
        %vm5368 = vmand %vm5351, %vm5367
        %v5369 = vsel %vm5368, %v5357, 0.0
        %vm5370 = vcmp.ge.s32.totalorder %v5360, 0
        %vm5371 = vmand %vm5354, %vm5370
        %v5372 = vsub.f32 1.0, %v5358
        %v5373 = vsel %vm5371, %v5372, 0.0
        %vm5374 = vcmp.le.s32.totalorder %v5362, 15
        %vm5375 = vmand %vm5354, %vm5374
        %v5376 = vsel %vm5375, %v5358, 0.0
        %vm5377 = vcmp.gt.s32.totalorder %v5359, 0
        %v5378 = vsel %vm5377, %v5359, 0
        %vm5379 = vcmp.lt.s32.totalorder %v5378, 15
        %v5380 = vsel %vm5379, %v5378, 15
        %v5381 = vlaneseq
        %v5382 = vshrl.u32 %v5381, 7
        %v5383 = vsub.s32 0, %v5382
        %v5384 = vrot.slane %v5380, %v5383
        %v5385 = vlaneseq
        %v5386 = vshrl.u32 %v5385, 7
        %v5387 = vsub.s32 1, %v5386
        %v5388 = vrot.slane %v5380, %v5387
        %vm5389 = vcmp.eq.s32.totalorder %v365, %v5384
        %vm5390 = vcmp.eq.s32.totalorder %v365, %v5388
        %vm5391 = vcmp.eq.s32.totalorder %v366, %v5384
        %vm5392 = vcmp.eq.s32.totalorder %v366, %v5388
        %v5394 = vlaneseq
        %v5395 = vshrl.u32 %v5394, 7
        %v5396 = vsub.s32 0, %v5395
        %v5397 = vrot.slane %v5366, %v5396
        %v5398 = vlaneseq
        %v5399 = vshrl.u32 %v5398, 7
        %v5400 = vsub.s32 1, %v5399
        %v5401 = vrot.slane %v5366, %v5400
        %v5404 = vsel %vm5389, %v5397, 0.0
        %v5405 = vsel %vm5390, %v5401, 0.0
        %v5406 = vsel %vm5391, %v5397, 0.0
        %v5407 = vsel %vm5392, %v5401, 0.0
        %vm5408 = vcmp.gt.s32.totalorder %v5361, 0
        %v5409 = vsel %vm5408, %v5361, 0
        %vm5410 = vcmp.lt.s32.totalorder %v5409, 15
        %v5411 = vsel %vm5410, %v5409, 15
        %v5412 = vlaneseq
        %v5413 = vshrl.u32 %v5412, 7
        %v5414 = vsub.s32 0, %v5413
        %v5415 = vrot.slane %v5411, %v5414
        %v5416 = vlaneseq
        %v5417 = vshrl.u32 %v5416, 7
        %v5418 = vsub.s32 1, %v5417
        %v5419 = vrot.slane %v5411, %v5418
        %vm5420 = vcmp.eq.s32.totalorder %v365, %v5415
        %vm5421 = vcmp.eq.s32.totalorder %v365, %v5419
        %vm5422 = vcmp.eq.s32.totalorder %v366, %v5415
        %vm5423 = vcmp.eq.s32.totalorder %v366, %v5419
        %v5425 = vlaneseq
        %v5426 = vshrl.u32 %v5425, 7
        %v5427 = vsub.s32 0, %v5426
        %v5428 = vrot.slane %v5369, %v5427
        %v5429 = vlaneseq
        %v5430 = vshrl.u32 %v5429, 7
        %v5431 = vsub.s32 1, %v5430
        %v5432 = vrot.slane %v5369, %v5431
        %v5435 = vsel %vm5420, %v5428, 0.0
        %v5436 = vsel %vm5421, %v5432, 0.0
        %v5437 = vsel %vm5422, %v5428, 0.0
        %v5438 = vsel %vm5423, %v5432, 0.0
        %v5439 = vadd.f32 %v5404, %v5435
        %v5440 = vadd.f32 %v5405, %v5436
        %v5441 = vadd.f32 %v5406, %v5437
        %v5442 = vadd.f32 %v5407, %v5438
        %vm5443 = vcmp.gt.s32.totalorder %v5360, 0
        %v5444 = vsel %vm5443, %v5360, 0
        %vm5445 = vcmp.lt.s32.totalorder %v5444, 15
        %v5446 = vsel %vm5445, %v5444, 15
        %v5447 = vlaneseq
        %v5448 = vshrl.u32 %v5447, 7
        %v5449 = vsub.s32 0, %v5448
        %v5450 = vrot.slane %v5446, %v5449
        %v5451 = vlaneseq
        %v5452 = vshrl.u32 %v5451, 7
        %v5453 = vsub.s32 1, %v5452
        %v5454 = vrot.slane %v5446, %v5453
        %vm5455 = vcmp.eq.s32.totalorder %v365, %v5450
        %vm5456 = vcmp.eq.s32.totalorder %v365, %v5454
        %vm5457 = vcmp.eq.s32.totalorder %v366, %v5450
        %vm5458 = vcmp.eq.s32.totalorder %v366, %v5454
        %v5460 = vlaneseq
        %v5461 = vshrl.u32 %v5460, 7
        %v5462 = vsub.s32 0, %v5461
        %v5463 = vrot.slane %v5373, %v5462
        %v5464 = vlaneseq
        %v5465 = vshrl.u32 %v5464, 7
        %v5466 = vsub.s32 1, %v5465
        %v5467 = vrot.slane %v5373, %v5466
        %v5470 = vsel %vm5455, %v5463, 0.0
        %v5471 = vsel %vm5456, %v5467, 0.0
        %v5472 = vsel %vm5457, %v5463, 0.0
        %v5473 = vsel %vm5458, %v5467, 0.0
        %vm5474 = vcmp.gt.s32.totalorder %v5362, 0
        %v5475 = vsel %vm5474, %v5362, 0
        %vm5476 = vcmp.lt.s32.totalorder %v5475, 15
        %v5477 = vsel %vm5476, %v5475, 15
        %v5478 = vlaneseq
        %v5479 = vshrl.u32 %v5478, 7
        %v5480 = vsub.s32 0, %v5479
        %v5481 = vrot.slane %v5477, %v5480
        %v5482 = vlaneseq
        %v5483 = vshrl.u32 %v5482, 7
        %v5484 = vsub.s32 1, %v5483
        %v5485 = vrot.slane %v5477, %v5484
        %vm5486 = vcmp.eq.s32.totalorder %v365, %v5481
        %vm5487 = vcmp.eq.s32.totalorder %v365, %v5485
        %vm5488 = vcmp.eq.s32.totalorder %v366, %v5481
        %vm5489 = vcmp.eq.s32.totalorder %v366, %v5485
        %v5491 = vlaneseq
        %v5492 = vshrl.u32 %v5491, 7
        %v5493 = vsub.s32 0, %v5492
        %v5494 = vrot.slane %v5376, %v5493
        %v5495 = vlaneseq
        %v5496 = vshrl.u32 %v5495, 7
        %v5497 = vsub.s32 1, %v5496
        %v5498 = vrot.slane %v5376, %v5497
        %v5501 = vsel %vm5486, %v5494, 0.0
        %v5502 = vsel %vm5487, %v5498, 0.0
        %v5503 = vsel %vm5488, %v5494, 0.0
        %v5504 = vsel %vm5489, %v5498, 0.0
        %v5505 = vadd.f32 %v5470, %v5501
        %v5506 = vadd.f32 %v5471, %v5502
        %v5507 = vadd.f32 %v5472, %v5503
        %v5508 = vadd.f32 %v5473, %v5504
        %v5509 = vlaneseq
        %v5510 = vshrl.u32 %v5509, 7
        %v5511 = vsub.s32 0, %v5510
        %v5512 = vrot.slane %v361, %v5511
        %v5513 = vlaneseq
        %v5514 = vshrl.u32 %v5513, 7
        %v5515 = vsub.s32 0, %v5514
        %v5516 = vrot.slane %v363, %v5515
        %v5517 = vmul.f32 %v5439, %v5512
        %v5518 = vmul.f32 %v5440, %v5516
        %v5519 = vmul.f32 %v5441, %v5512
        %v5520 = vmul.f32 %v5442, %v5516
        %v5521 = vpack.c.bf16 %v5507, %v5505
        %v5522 = vpack.c.bf16 %v5508, %v5506
        %5523 = vmatprep.subr.bf16.mxu0 %v5522
        %5524 = vmatpush1.bf16.msra.mxu0 %v5521
        %5525 = vmatprep.subr.bf16.mxu0 0
        %5526 = vmatpush1.bf16.msra.mxu0 0
        %5527 = vmatprep.subr.bf16.mxu0 0
        %5528 = vmatpush1.bf16.msra.mxu0 0
        %5529 = vmatprep.subr.bf16.mxu0 0
        %5530 = vmatpush1.bf16.msra.mxu0 0
        %5531 = vmatprep.subr.bf16.mxu0 0
        %5532 = vmatpush1.bf16.msra.mxu0 0
        %5533 = vmatprep.subr.bf16.mxu0 0
        %5534 = vmatpush1.bf16.msra.mxu0 0
        %5535 = vmatprep.subr.bf16.mxu0 0
        %5536 = vmatpush1.bf16.msra.mxu0 0
        %5537 = vmatprep.subr.bf16.mxu0 0
        %5538 = vmatpush1.bf16.msra.mxu0 0
        %5539 = vmatprep.subr.bf16.mxu0 0
        %5540 = vmatpush1.bf16.msra.mxu0 0
        %5541 = vmatprep.subr.bf16.mxu0 0
        %5542 = vmatpush1.bf16.msra.mxu0 0
        %5543 = vmatprep.subr.bf16.mxu0 0
        %5544 = vmatpush1.bf16.msra.mxu0 0
        %5545 = vmatprep.subr.bf16.mxu0 0
        %5546 = vmatpush1.bf16.msra.mxu0 0
        %5547 = vmatprep.subr.bf16.mxu0 0
        %5548 = vmatpush1.bf16.msra.mxu0 0
        %5549 = vmatprep.subr.bf16.mxu0 0
        %5550 = vmatpush1.bf16.msra.mxu0 0
        %5551 = vmatprep.subr.bf16.mxu0 0
        %5552 = vmatpush1.bf16.msra.mxu0 0
        %5553 = vmatprep.subr.bf16.mxu0 0
        %5554 = vmatpush1.bf16.msra.mxu0 0
        %5555 = vmatprep.mubr.bf16.mxu0 0
        %5556 = vmatmul.mubr.bf16.gmra.mrb[0].mxu0 %v654
        %v5557 = vpop.f32.mrb[0].mxu0
        %v5558 = vadd.f32 0.0, %v5557
        %v5559 = vpop.f32.mrb[0].mxu0
        %v5560 = vadd.f32 0.0, %v5559
        %v5561 = vpop.f32.mrb[0].mxu0
        %v5562 = vadd.f32 0.0, %v5561
        %v5563 = vpop.f32.mrb[0].mxu0
        %v5564 = vadd.f32 0.0, %v5563
        %5565 = vmatprep.mubr.bf16.mxu0 0
        %5566 = vmatmul.mubr.bf16.gmra.mrb[0].mxu0 %v657
        %v5567 = vpop.f32.mrb[0].mxu0
        %v5568 = vadd.f32 0.0, %v5567
        %v5569 = vpop.f32.mrb[0].mxu0
        %v5570 = vadd.f32 0.0, %v5569
        %v5571 = vpop.f32.mrb[0].mxu0
        %v5572 = vadd.f32 0.0, %v5571
        %v5573 = vpop.f32.mrb[0].mxu0
        %v5574 = vadd.f32 0.0, %v5573
        %5575 = vmatprep.mubr.bf16.mxu0 0
        %5576 = vmatmul.mubr.bf16.gmra.mrb[0].mxu0 %v660
        %v5577 = vpop.f32.mrb[0].mxu0
        %v5578 = vadd.f32 0.0, %v5577
        %v5579 = vpop.f32.mrb[0].mxu0
        %v5580 = vadd.f32 0.0, %v5579
        %v5581 = vpop.f32.mrb[0].mxu0
        %v5582 = vadd.f32 0.0, %v5581
        %v5583 = vpop.f32.mrb[0].mxu0
        %v5584 = vadd.f32 0.0, %v5583
        %5585 = vmatprep.mubr.bf16.mxu0 0
        %5586 = vmatmul.mubr.bf16.gmra.mrb[0].mxu0 %v663
        %v5587 = vpop.f32.mrb[0].mxu0
        %v5588 = vadd.f32 0.0, %v5587
        %v5589 = vpop.f32.mrb[0].mxu0
        %v5590 = vadd.f32 0.0, %v5589
        %v5591 = vpop.f32.mrb[0].mxu0
        %v5592 = vadd.f32 0.0, %v5591
        %v5593 = vpop.f32.mrb[0].mxu0
        %v5594 = vadd.f32 0.0, %v5593
        %5595 = vmatprep.mubr.bf16.mxu0 0
        %5596 = vmatmul.mubr.bf16.gmra.mrb[0].mxu0 %v666
        %v5597 = vpop.f32.mrb[0].mxu0
        %v5598 = vadd.f32 0.0, %v5597
        %v5599 = vpop.f32.mrb[0].mxu0
        %v5600 = vadd.f32 0.0, %v5599
        %v5601 = vpop.f32.mrb[0].mxu0
        %v5602 = vadd.f32 0.0, %v5601
        %v5603 = vpop.f32.mrb[0].mxu0
        %v5604 = vadd.f32 0.0, %v5603
        %5605 = vmatprep.mubr.bf16.mxu0 0
        %5606 = vmatmul.mubr.bf16.gmra.mrb[0].mxu0 %v669
        %v5607 = vpop.f32.mrb[0].mxu0
        %v5608 = vadd.f32 0.0, %v5607
        %v5609 = vpop.f32.mrb[0].mxu0
        %v5610 = vadd.f32 0.0, %v5609
        %v5611 = vpop.f32.mrb[0].mxu0
        %v5612 = vadd.f32 0.0, %v5611
        %v5613 = vpop.f32.mrb[0].mxu0
        %v5614 = vadd.f32 0.0, %v5613
        %5615 = vmatprep.mubr.bf16.mxu0 0
        %5616 = vmatmul.mubr.bf16.gmra.mrb[0].mxu0 %v672
        %v5617 = vpop.f32.mrb[0].mxu0
        %v5618 = vadd.f32 0.0, %v5617
        %v5619 = vpop.f32.mrb[0].mxu0
        %v5620 = vadd.f32 0.0, %v5619
        %v5621 = vpop.f32.mrb[0].mxu0
        %v5622 = vadd.f32 0.0, %v5621
        %v5623 = vpop.f32.mrb[0].mxu0
        %v5624 = vadd.f32 0.0, %v5623
        %5625 = vmatprep.mubr.bf16.mxu0 0
        %5626 = vmatmul.mubr.bf16.gmra.mrb[0].mxu0 %v675
        %v5627 = vpop.f32.mrb[0].mxu0
        %v5628 = vadd.f32 0.0, %v5627
        %v5629 = vpop.f32.mrb[0].mxu0
        %v5630 = vadd.f32 0.0, %v5629
        %v5631 = vpop.f32.mrb[0].mxu0
        %v5632 = vadd.f32 0.0, %v5631
        %v5633 = vpop.f32.mrb[0].mxu0
        %v5634 = vadd.f32 0.0, %v5633
        %5635 = vmatprep.mubr.bf16.mxu0 0
        %5636 = vmatmul.mubr.bf16.gmra.mrb[0].mxu0 %v678
        %v5637 = vpop.f32.mrb[0].mxu0
        %v5638 = vadd.f32 0.0, %v5637
        %v5639 = vpop.f32.mrb[0].mxu0
        %v5640 = vadd.f32 0.0, %v5639
        %v5641 = vpop.f32.mrb[0].mxu0
        %v5642 = vadd.f32 0.0, %v5641
        %v5643 = vpop.f32.mrb[0].mxu0
        %v5644 = vadd.f32 0.0, %v5643
        %5645 = vmatprep.mubr.bf16.mxu0 0
        %5646 = vmatmul.mubr.bf16.gmra.mrb[0].mxu0 %v681
        %v5647 = vpop.f32.mrb[0].mxu0
        %v5648 = vadd.f32 0.0, %v5647
        %v5649 = vpop.f32.mrb[0].mxu0
        %v5650 = vadd.f32 0.0, %v5649
        %v5651 = vpop.f32.mrb[0].mxu0
        %v5652 = vadd.f32 0.0, %v5651
        %v5653 = vpop.f32.mrb[0].mxu0
        %v5654 = vadd.f32 0.0, %v5653
        %5655 = vmatprep.mubr.bf16.mxu0 0
        %5656 = vmatmul.mubr.bf16.gmra.mrb[0].mxu0 %v684
        %v5657 = vpop.f32.mrb[0].mxu0
        %v5658 = vadd.f32 0.0, %v5657
        %v5659 = vpop.f32.mrb[0].mxu0
        %v5660 = vadd.f32 0.0, %v5659
        %v5661 = vpop.f32.mrb[0].mxu0
        %v5662 = vadd.f32 0.0, %v5661
        %v5663 = vpop.f32.mrb[0].mxu0
        %v5664 = vadd.f32 0.0, %v5663
        %5665 = vmatprep.mubr.bf16.mxu0 0
        %5666 = vmatmul.mubr.bf16.gmra.mrb[0].mxu0 %v687
        %v5667 = vpop.f32.mrb[0].mxu0
        %v5668 = vadd.f32 0.0, %v5667
        %v5669 = vpop.f32.mrb[0].mxu0
        %v5670 = vadd.f32 0.0, %v5669
        %v5671 = vpop.f32.mrb[0].mxu0
        %v5672 = vadd.f32 0.0, %v5671
        %v5673 = vpop.f32.mrb[0].mxu0
        %v5674 = vadd.f32 0.0, %v5673
        %5675 = vmatprep.mubr.bf16.mxu0 0
        %5676 = vmatmul.mubr.bf16.gmra.mrb[0].mxu0 %v690
        %v5677 = vpop.f32.mrb[0].mxu0
        %v5678 = vadd.f32 0.0, %v5677
        %v5679 = vpop.f32.mrb[0].mxu0
        %v5680 = vadd.f32 0.0, %v5679
        %v5681 = vpop.f32.mrb[0].mxu0
        %v5682 = vadd.f32 0.0, %v5681
        %v5683 = vpop.f32.mrb[0].mxu0
        %v5684 = vadd.f32 0.0, %v5683
        %5685 = vmatprep.mubr.bf16.mxu0 0
        %5686 = vmatmul.mubr.bf16.gmra.mrb[0].mxu0 %v693
        %v5687 = vpop.f32.mrb[0].mxu0
        %v5688 = vadd.f32 0.0, %v5687
        %v5689 = vpop.f32.mrb[0].mxu0
        %v5690 = vadd.f32 0.0, %v5689
        %v5691 = vpop.f32.mrb[0].mxu0
        %v5692 = vadd.f32 0.0, %v5691
        %v5693 = vpop.f32.mrb[0].mxu0
        %v5694 = vadd.f32 0.0, %v5693
        %5695 = vmatprep.mubr.bf16.mxu0 0
        %5696 = vmatmul.mubr.bf16.gmra.mrb[0].mxu0 %v696
        %v5697 = vpop.f32.mrb[0].mxu0
        %v5698 = vadd.f32 0.0, %v5697
        %v5699 = vpop.f32.mrb[0].mxu0
        %v5700 = vadd.f32 0.0, %v5699
        %v5701 = vpop.f32.mrb[0].mxu0
        %v5702 = vadd.f32 0.0, %v5701
        %v5703 = vpop.f32.mrb[0].mxu0
        %v5704 = vadd.f32 0.0, %v5703
        %5705 = vmatprep.mubr.bf16.mxu0 0
        %5706 = vmatmul.mubr.bf16.gmra.mrb[0].mxu0 %v699
        %v5707 = vpop.f32.mrb[0].mxu0
        %v5708 = vadd.f32 0.0, %v5707
        %v5709 = vpop.f32.mrb[0].mxu0
        %v5710 = vadd.f32 0.0, %v5709
        %v5711 = vpop.f32.mrb[0].mxu0
        %v5712 = vadd.f32 0.0, %v5711
        %v5713 = vpop.f32.mrb[0].mxu0
        %v5714 = vadd.f32 0.0, %v5713
        %5715 = vdwg.mxu0
        %v5716 = vmul.f32 %v5558, %v5517
        %v5717 = vmul.f32 %v5560, %v5518
        %v5718 = vmul.f32 %v5562, %v5519
        %v5719 = vmul.f32 %v5564, %v5520
        %v5720 = vmul.f32 %v5568, %v5517
        %v5721 = vmul.f32 %v5570, %v5518
        %v5722 = vmul.f32 %v5572, %v5519
        %v5723 = vmul.f32 %v5574, %v5520
        %v5724 = vmul.f32 %v5578, %v5517
        %v5725 = vmul.f32 %v5580, %v5518
        %v5726 = vmul.f32 %v5582, %v5519
        %v5727 = vmul.f32 %v5584, %v5520
        %v5728 = vmul.f32 %v5588, %v5517
        %v5729 = vmul.f32 %v5590, %v5518
        %v5730 = vmul.f32 %v5592, %v5519
        %v5731 = vmul.f32 %v5594, %v5520
        %v5732 = vmul.f32 %v5598, %v5517
        %v5733 = vmul.f32 %v5600, %v5518
        %v5734 = vmul.f32 %v5602, %v5519
        %v5735 = vmul.f32 %v5604, %v5520
        %v5736 = vmul.f32 %v5608, %v5517
        %v5737 = vmul.f32 %v5610, %v5518
        %v5738 = vmul.f32 %v5612, %v5519
        %v5739 = vmul.f32 %v5614, %v5520
        %v5740 = vmul.f32 %v5618, %v5517
        %v5741 = vmul.f32 %v5620, %v5518
        %v5742 = vmul.f32 %v5622, %v5519
        %v5743 = vmul.f32 %v5624, %v5520
        %v5744 = vmul.f32 %v5628, %v5517
        %v5745 = vmul.f32 %v5630, %v5518
        %v5746 = vmul.f32 %v5632, %v5519
        %v5747 = vmul.f32 %v5634, %v5520
        %v5748 = vmul.f32 %v5638, %v5517
        %v5749 = vmul.f32 %v5640, %v5518
        %v5750 = vmul.f32 %v5642, %v5519
        %v5751 = vmul.f32 %v5644, %v5520
        %v5752 = vmul.f32 %v5648, %v5517
        %v5753 = vmul.f32 %v5650, %v5518
        %v5754 = vmul.f32 %v5652, %v5519
        %v5755 = vmul.f32 %v5654, %v5520
        %v5756 = vmul.f32 %v5658, %v5517
        %v5757 = vmul.f32 %v5660, %v5518
        %v5758 = vmul.f32 %v5662, %v5519
        %v5759 = vmul.f32 %v5664, %v5520
        %v5760 = vmul.f32 %v5668, %v5517
        %v5761 = vmul.f32 %v5670, %v5518
        %v5762 = vmul.f32 %v5672, %v5519
        %v5763 = vmul.f32 %v5674, %v5520
        %v5764 = vmul.f32 %v5678, %v5517
        %v5765 = vmul.f32 %v5680, %v5518
        %v5766 = vmul.f32 %v5682, %v5519
        %v5767 = vmul.f32 %v5684, %v5520
        %v5768 = vmul.f32 %v5688, %v5517
        %v5769 = vmul.f32 %v5690, %v5518
        %v5770 = vmul.f32 %v5692, %v5519
        %v5771 = vmul.f32 %v5694, %v5520
        %v5772 = vmul.f32 %v5698, %v5517
        %v5773 = vmul.f32 %v5700, %v5518
        %v5774 = vmul.f32 %v5702, %v5519
        %v5775 = vmul.f32 %v5704, %v5520
        %v5776 = vmul.f32 %v5708, %v5517
        %v5777 = vmul.f32 %v5710, %v5518
        %v5778 = vmul.f32 %v5712, %v5519
        %v5779 = vmul.f32 %v5714, %v5520
        %v5780 = vadd.f32 %v5716, %v5718
        %v5781 = vrot.slane %v5780, 4
        %v5782 = vadd.f32 %v5780, %v5781
        %v5783 = vrot.slane %v5782, 2
        %v5784 = vadd.f32 %v5782, %v5783
        %v5785 = vrot.slane %v5784, 1
        %v5786 = vadd.f32 %v5784, %v5785
        %v5787 = vadd.f32 %v5717, %v5719
        %v5788 = vrot.slane %v5787, 4
        %v5789 = vadd.f32 %v5787, %v5788
        %v5790 = vrot.slane %v5789, 2
        %v5791 = vadd.f32 %v5789, %v5790
        %v5792 = vrot.slane %v5791, 1
        %v5793 = vadd.f32 %v5791, %v5792
        %v5794 = vadd.f32 %v5720, %v5722
        %v5795 = vrot.slane %v5794, 4
        %v5796 = vadd.f32 %v5794, %v5795
        %v5797 = vrot.slane %v5796, 2
        %v5798 = vadd.f32 %v5796, %v5797
        %v5799 = vrot.slane %v5798, 1
        %v5800 = vadd.f32 %v5798, %v5799
        %v5801 = vadd.f32 %v5721, %v5723
        %v5802 = vrot.slane %v5801, 4
        %v5803 = vadd.f32 %v5801, %v5802
        %v5804 = vrot.slane %v5803, 2
        %v5805 = vadd.f32 %v5803, %v5804
        %v5806 = vrot.slane %v5805, 1
        %v5807 = vadd.f32 %v5805, %v5806
        %v5808 = vadd.f32 %v5724, %v5726
        %v5809 = vrot.slane %v5808, 4
        %v5810 = vadd.f32 %v5808, %v5809
        %v5811 = vrot.slane %v5810, 2
        %v5812 = vadd.f32 %v5810, %v5811
        %v5813 = vrot.slane %v5812, 1
        %v5814 = vadd.f32 %v5812, %v5813
        %v5815 = vadd.f32 %v5725, %v5727
        %v5816 = vrot.slane %v5815, 4
        %v5817 = vadd.f32 %v5815, %v5816
        %v5818 = vrot.slane %v5817, 2
        %v5819 = vadd.f32 %v5817, %v5818
        %v5820 = vrot.slane %v5819, 1
        %v5821 = vadd.f32 %v5819, %v5820
        %v5822 = vadd.f32 %v5728, %v5730
        %v5823 = vrot.slane %v5822, 4
        %v5824 = vadd.f32 %v5822, %v5823
        %v5825 = vrot.slane %v5824, 2
        %v5826 = vadd.f32 %v5824, %v5825
        %v5827 = vrot.slane %v5826, 1
        %v5828 = vadd.f32 %v5826, %v5827
        %v5829 = vadd.f32 %v5729, %v5731
        %v5830 = vrot.slane %v5829, 4
        %v5831 = vadd.f32 %v5829, %v5830
        %v5832 = vrot.slane %v5831, 2
        %v5833 = vadd.f32 %v5831, %v5832
        %v5834 = vrot.slane %v5833, 1
        %v5835 = vadd.f32 %v5833, %v5834
        %v5836 = vadd.f32 %v5732, %v5734
        %v5837 = vrot.slane %v5836, 4
        %v5838 = vadd.f32 %v5836, %v5837
        %v5839 = vrot.slane %v5838, 2
        %v5840 = vadd.f32 %v5838, %v5839
        %v5841 = vrot.slane %v5840, 1
        %v5842 = vadd.f32 %v5840, %v5841
        %v5843 = vadd.f32 %v5733, %v5735
        %v5844 = vrot.slane %v5843, 4
        %v5845 = vadd.f32 %v5843, %v5844
        %v5846 = vrot.slane %v5845, 2
        %v5847 = vadd.f32 %v5845, %v5846
        %v5848 = vrot.slane %v5847, 1
        %v5849 = vadd.f32 %v5847, %v5848
        %v5850 = vadd.f32 %v5736, %v5738
        %v5851 = vrot.slane %v5850, 4
        %v5852 = vadd.f32 %v5850, %v5851
        %v5853 = vrot.slane %v5852, 2
        %v5854 = vadd.f32 %v5852, %v5853
        %v5855 = vrot.slane %v5854, 1
        %v5856 = vadd.f32 %v5854, %v5855
        %v5857 = vadd.f32 %v5737, %v5739
        %v5858 = vrot.slane %v5857, 4
        %v5859 = vadd.f32 %v5857, %v5858
        %v5860 = vrot.slane %v5859, 2
        %v5861 = vadd.f32 %v5859, %v5860
        %v5862 = vrot.slane %v5861, 1
        %v5863 = vadd.f32 %v5861, %v5862
        %v5864 = vadd.f32 %v5740, %v5742
        %v5865 = vrot.slane %v5864, 4
        %v5866 = vadd.f32 %v5864, %v5865
        %v5867 = vrot.slane %v5866, 2
        %v5868 = vadd.f32 %v5866, %v5867
        %v5869 = vrot.slane %v5868, 1
        %v5870 = vadd.f32 %v5868, %v5869
        %v5871 = vadd.f32 %v5741, %v5743
        %v5872 = vrot.slane %v5871, 4
        %v5873 = vadd.f32 %v5871, %v5872
        %v5874 = vrot.slane %v5873, 2
        %v5875 = vadd.f32 %v5873, %v5874
        %v5876 = vrot.slane %v5875, 1
        %v5877 = vadd.f32 %v5875, %v5876
        %v5878 = vadd.f32 %v5744, %v5746
        %v5879 = vrot.slane %v5878, 4
        %v5880 = vadd.f32 %v5878, %v5879
        %v5881 = vrot.slane %v5880, 2
        %v5882 = vadd.f32 %v5880, %v5881
        %v5883 = vrot.slane %v5882, 1
        %v5884 = vadd.f32 %v5882, %v5883
        %v5885 = vadd.f32 %v5745, %v5747
        %v5886 = vrot.slane %v5885, 4
        %v5887 = vadd.f32 %v5885, %v5886
        %v5888 = vrot.slane %v5887, 2
        %v5889 = vadd.f32 %v5887, %v5888
        %v5890 = vrot.slane %v5889, 1
        %v5891 = vadd.f32 %v5889, %v5890
        %v5892 = vadd.f32 %v5748, %v5750
        %v5893 = vrot.slane %v5892, 4
        %v5894 = vadd.f32 %v5892, %v5893
        %v5895 = vrot.slane %v5894, 2
        %v5896 = vadd.f32 %v5894, %v5895
        %v5897 = vrot.slane %v5896, 1
        %v5898 = vadd.f32 %v5896, %v5897
        %v5899 = vadd.f32 %v5749, %v5751
        %v5900 = vrot.slane %v5899, 4
        %v5901 = vadd.f32 %v5899, %v5900
        %v5902 = vrot.slane %v5901, 2
        %v5903 = vadd.f32 %v5901, %v5902
        %v5904 = vrot.slane %v5903, 1
        %v5905 = vadd.f32 %v5903, %v5904
        %v5906 = vadd.f32 %v5752, %v5754
        %v5907 = vrot.slane %v5906, 4
        %v5908 = vadd.f32 %v5906, %v5907
        %v5909 = vrot.slane %v5908, 2
        %v5910 = vadd.f32 %v5908, %v5909
        %v5911 = vrot.slane %v5910, 1
        %v5912 = vadd.f32 %v5910, %v5911
        %v5913 = vadd.f32 %v5753, %v5755
        %v5914 = vrot.slane %v5913, 4
        %v5915 = vadd.f32 %v5913, %v5914
        %v5916 = vrot.slane %v5915, 2
        %v5917 = vadd.f32 %v5915, %v5916
        %v5918 = vrot.slane %v5917, 1
        %v5919 = vadd.f32 %v5917, %v5918
        %v5920 = vadd.f32 %v5756, %v5758
        %v5921 = vrot.slane %v5920, 4
        %v5922 = vadd.f32 %v5920, %v5921
        %v5923 = vrot.slane %v5922, 2
        %v5924 = vadd.f32 %v5922, %v5923
        %v5925 = vrot.slane %v5924, 1
        %v5926 = vadd.f32 %v5924, %v5925
        %v5927 = vadd.f32 %v5757, %v5759
        %v5928 = vrot.slane %v5927, 4
        %v5929 = vadd.f32 %v5927, %v5928
        %v5930 = vrot.slane %v5929, 2
        %v5931 = vadd.f32 %v5929, %v5930
        %v5932 = vrot.slane %v5931, 1
        %v5933 = vadd.f32 %v5931, %v5932
        %v5934 = vadd.f32 %v5760, %v5762
        %v5935 = vrot.slane %v5934, 4
        %v5936 = vadd.f32 %v5934, %v5935
        %v5937 = vrot.slane %v5936, 2
        %v5938 = vadd.f32 %v5936, %v5937
        %v5939 = vrot.slane %v5938, 1
        %v5940 = vadd.f32 %v5938, %v5939
        %v5941 = vadd.f32 %v5761, %v5763
        %v5942 = vrot.slane %v5941, 4
        %v5943 = vadd.f32 %v5941, %v5942
        %v5944 = vrot.slane %v5943, 2
        %v5945 = vadd.f32 %v5943, %v5944
        %v5946 = vrot.slane %v5945, 1
        %v5947 = vadd.f32 %v5945, %v5946
        %v5948 = vadd.f32 %v5764, %v5766
        %v5949 = vrot.slane %v5948, 4
        %v5950 = vadd.f32 %v5948, %v5949
        %v5951 = vrot.slane %v5950, 2
        %v5952 = vadd.f32 %v5950, %v5951
        %v5953 = vrot.slane %v5952, 1
        %v5954 = vadd.f32 %v5952, %v5953
        %v5955 = vadd.f32 %v5765, %v5767
        %v5956 = vrot.slane %v5955, 4
        %v5957 = vadd.f32 %v5955, %v5956
        %v5958 = vrot.slane %v5957, 2
        %v5959 = vadd.f32 %v5957, %v5958
        %v5960 = vrot.slane %v5959, 1
        %v5961 = vadd.f32 %v5959, %v5960
        %v5962 = vadd.f32 %v5768, %v5770
        %v5963 = vrot.slane %v5962, 4
        %v5964 = vadd.f32 %v5962, %v5963
        %v5965 = vrot.slane %v5964, 2
        %v5966 = vadd.f32 %v5964, %v5965
        %v5967 = vrot.slane %v5966, 1
        %v5968 = vadd.f32 %v5966, %v5967
        %v5969 = vadd.f32 %v5769, %v5771
        %v5970 = vrot.slane %v5969, 4
        %v5971 = vadd.f32 %v5969, %v5970
        %v5972 = vrot.slane %v5971, 2
        %v5973 = vadd.f32 %v5971, %v5972
        %v5974 = vrot.slane %v5973, 1
        %v5975 = vadd.f32 %v5973, %v5974
        %v5976 = vadd.f32 %v5772, %v5774
        %v5977 = vrot.slane %v5976, 4
        %v5978 = vadd.f32 %v5976, %v5977
        %v5979 = vrot.slane %v5978, 2
        %v5980 = vadd.f32 %v5978, %v5979
        %v5981 = vrot.slane %v5980, 1
        %v5982 = vadd.f32 %v5980, %v5981
        %v5983 = vadd.f32 %v5773, %v5775
        %v5984 = vrot.slane %v5983, 4
        %v5985 = vadd.f32 %v5983, %v5984
        %v5986 = vrot.slane %v5985, 2
        %v5987 = vadd.f32 %v5985, %v5986
        %v5988 = vrot.slane %v5987, 1
        %v5989 = vadd.f32 %v5987, %v5988
        %v5990 = vadd.f32 %v5776, %v5778
        %v5991 = vrot.slane %v5990, 4
        %v5992 = vadd.f32 %v5990, %v5991
        %v5993 = vrot.slane %v5992, 2
        %v5994 = vadd.f32 %v5992, %v5993
        %v5995 = vrot.slane %v5994, 1
        %v5996 = vadd.f32 %v5994, %v5995
        %v5997 = vadd.f32 %v5777, %v5779
        %v5998 = vrot.slane %v5997, 4
        %v5999 = vadd.f32 %v5997, %v5998
        %v6000 = vrot.slane %v5999, 2
        %v6001 = vadd.f32 %v5999, %v6000
        %v6002 = vrot.slane %v6001, 1
        %v6003 = vadd.f32 %v6001, %v6002
        %v6004 = vpack.c.bf16 %v5786, %v5786
        %v6005 = vpack.c.bf16 %v5793, %v5793
        %v6006 = vpack.c.bf16 %v5800, %v5800
        %v6007 = vpack.c.bf16 %v5807, %v5807
        %v6008 = vpack.c.bf16 %v5814, %v5814
        %v6009 = vpack.c.bf16 %v5821, %v5821
        %v6010 = vpack.c.bf16 %v5828, %v5828
        %v6011 = vpack.c.bf16 %v5835, %v5835
        %v6012 = vpack.c.bf16 %v5842, %v5842
        %v6013 = vpack.c.bf16 %v5849, %v5849
        %v6014 = vpack.c.bf16 %v5856, %v5856
        %v6015 = vpack.c.bf16 %v5863, %v5863
        %v6016 = vpack.c.bf16 %v5870, %v5870
        %v6017 = vpack.c.bf16 %v5877, %v5877
        %v6018 = vpack.c.bf16 %v5884, %v5884
        %v6019 = vpack.c.bf16 %v5891, %v5891
        %v6020 = vpack.c.bf16 %v5898, %v5898
        %v6021 = vpack.c.bf16 %v5905, %v5905
        %v6022 = vpack.c.bf16 %v5912, %v5912
        %v6023 = vpack.c.bf16 %v5919, %v5919
        %v6024 = vpack.c.bf16 %v5926, %v5926
        %v6025 = vpack.c.bf16 %v5933, %v5933
        %v6026 = vpack.c.bf16 %v5940, %v5940
        %v6027 = vpack.c.bf16 %v5947, %v5947
        %v6028 = vpack.c.bf16 %v5954, %v5954
        %v6029 = vpack.c.bf16 %v5961, %v5961
        %v6030 = vpack.c.bf16 %v5968, %v5968
        %v6031 = vpack.c.bf16 %v5975, %v5975
        %v6032 = vpack.c.bf16 %v5982, %v5982
        %v6033 = vpack.c.bf16 %v5989, %v5989
        %v6034 = vpack.c.bf16 %v5996, %v5996
        %v6035 = vpack.c.bf16 %v6003, %v6003
        %v6068 = vunpack.c.l.b16 %v6004
        %v6069 = vunpack.c.l.b16 %v6005
        %v6070 = vunpack.c.l.b16 %v6006
        %v6071 = vunpack.c.l.b16 %v6007
        %v6072 = vunpack.c.l.b16 %v6008
        %v6073 = vunpack.c.l.b16 %v6009
        %v6074 = vunpack.c.l.b16 %v6010
        %v6075 = vunpack.c.l.b16 %v6011
        %v6076 = vunpack.c.l.b16 %v6012
        %v6077 = vunpack.c.l.b16 %v6013
        %v6078 = vunpack.c.l.b16 %v6014
        %v6079 = vunpack.c.l.b16 %v6015
        %v6080 = vunpack.c.l.b16 %v6016
        %v6081 = vunpack.c.l.b16 %v6017
        %v6082 = vunpack.c.l.b16 %v6018
        %v6083 = vunpack.c.l.b16 %v6019
        %v6084 = vunpack.c.l.b16 %v6020
        %v6085 = vunpack.c.l.b16 %v6021
        %v6086 = vunpack.c.l.b16 %v6022
        %v6087 = vunpack.c.l.b16 %v6023
        %v6088 = vunpack.c.l.b16 %v6024
        %v6089 = vunpack.c.l.b16 %v6025
        %v6090 = vunpack.c.l.b16 %v6026
        %v6091 = vunpack.c.l.b16 %v6027
        %v6092 = vunpack.c.l.b16 %v6028
        %v6093 = vunpack.c.l.b16 %v6029
        %v6094 = vunpack.c.l.b16 %v6030
        %v6095 = vunpack.c.l.b16 %v6031
        %v6096 = vunpack.c.l.b16 %v6032
        %v6097 = vunpack.c.l.b16 %v6033
        %v6098 = vunpack.c.l.b16 %v6034
        %v6099 = vunpack.c.l.b16 %v6035
        %v6100 = vsel %vm1278, %v6070, %v6068
        %v6101 = vsel %vm1280, %v6072, %v6100
        %v6102 = vsel %vm1282, %v6074, %v6101
        %v6103 = vsel %vm1284, %v6076, %v6102
        %v6104 = vsel %vm1286, %v6078, %v6103
        %v6105 = vsel %vm1288, %v6080, %v6104
        %v6106 = vsel %vm1290, %v6082, %v6105
        %v6107 = vsel %vm1278, %v6071, %v6069
        %v6108 = vsel %vm1280, %v6073, %v6107
        %v6109 = vsel %vm1282, %v6075, %v6108
        %v6110 = vsel %vm1284, %v6077, %v6109
        %v6111 = vsel %vm1286, %v6079, %v6110
        %v6112 = vsel %vm1288, %v6081, %v6111
        %v6113 = vsel %vm1290, %v6083, %v6112
        %v6114 = vsel %vm1278, %v6086, %v6084
        %v6115 = vsel %vm1280, %v6088, %v6114
        %v6116 = vsel %vm1282, %v6090, %v6115
        %v6117 = vsel %vm1284, %v6092, %v6116
        %v6118 = vsel %vm1286, %v6094, %v6117
        %v6119 = vsel %vm1288, %v6096, %v6118
        %v6120 = vsel %vm1290, %v6098, %v6119
        %v6121 = vsel %vm1278, %v6087, %v6085
        %v6122 = vsel %vm1280, %v6089, %v6121
        %v6123 = vsel %vm1282, %v6091, %v6122
        %v6124 = vsel %vm1284, %v6093, %v6123
        %v6125 = vsel %vm1286, %v6095, %v6124
        %v6126 = vsel %vm1288, %v6097, %v6125
        %v6127 = vsel %vm1290, %v6099, %v6126
        %v6128 = vpack.c.b16 %v6120, %v6106
        %v6129 = vpack.c.b16 %v6127, %v6113
        %6132 = vst [vmem:[#allocation2 + $0x60] sm:$0xff] %v6128
        %6133 = vst [vmem:[#allocation2 + $0x68] sm:$0xff] %v6129
        %v6134 = vcombine.high %v5336, %v5336
        %v6136 = vadd.f32 %v5321, %v6134
        %v6137 = vcombine.high %v5346, %v5346
        %v6139 = vadd.f32 %v1322, %v6137
        %vm6140 = vcmp.gt.f32.partialorder %v6136, -1.0
        %vm6141 = vcmp.lt.f32.partialorder %v6136, 16.0
        %vm6142 = vmand %vm6140, %vm6141
        %vm6143 = vcmp.gt.f32.partialorder %v6139, -1.0
        %vm6144 = vcmp.lt.f32.partialorder %v6139, 16.0
        %vm6145 = vmand %vm6143, %vm6144
        %v6146 = vfloor.f32 %v6136
        %v6147 = vfloor.f32 %v6139
        %v6148 = vsub.f32 %v6136, %v6146
        %v6149 = vsub.f32 %v6139, %v6147
        %v6150 = vcvt.f32.s32.to.zero.pseudo %v6146
        %v6151 = vcvt.f32.s32.to.zero.pseudo %v6147
        %v6152 = vadd.s32 %v6150, 1
        %v6153 = vadd.s32 %v6151, 1
        %vm6154 = vcmp.ge.s32.totalorder %v6150, 0
        %vm6155 = vmand %vm6142, %vm6154
        %v6156 = vsub.f32 1.0, %v6148
        %v6157 = vsel %vm6155, %v6156, 0.0
        %vm6158 = vcmp.le.s32.totalorder %v6152, 15
        %vm6159 = vmand %vm6142, %vm6158
        %v6160 = vsel %vm6159, %v6148, 0.0
        %vm6161 = vcmp.ge.s32.totalorder %v6151, 0
        %vm6162 = vmand %vm6145, %vm6161
        %v6163 = vsub.f32 1.0, %v6149
        %v6164 = vsel %vm6162, %v6163, 0.0
        %vm6165 = vcmp.le.s32.totalorder %v6153, 15
        %vm6166 = vmand %vm6145, %vm6165
        %v6167 = vsel %vm6166, %v6149, 0.0
        %vm6168 = vcmp.gt.s32.totalorder %v6150, 0
        %v6169 = vsel %vm6168, %v6150, 0
        %vm6170 = vcmp.lt.s32.totalorder %v6169, 15
        %v6171 = vsel %vm6170, %v6169, 15
        %v6172 = vlaneseq
        %v6173 = vshrl.u32 %v6172, 7
        %v6174 = vsub.s32 0, %v6173
        %v6175 = vrot.slane %v6171, %v6174
        %v6176 = vlaneseq
        %v6177 = vshrl.u32 %v6176, 7
        %v6178 = vsub.s32 1, %v6177
        %v6179 = vrot.slane %v6171, %v6178
        %vm6180 = vcmp.eq.s32.totalorder %v365, %v6175
        %vm6181 = vcmp.eq.s32.totalorder %v365, %v6179
        %vm6182 = vcmp.eq.s32.totalorder %v366, %v6175
        %vm6183 = vcmp.eq.s32.totalorder %v366, %v6179
        %v6185 = vlaneseq
        %v6186 = vshrl.u32 %v6185, 7
        %v6187 = vsub.s32 0, %v6186
        %v6188 = vrot.slane %v6157, %v6187
        %v6189 = vlaneseq
        %v6190 = vshrl.u32 %v6189, 7
        %v6191 = vsub.s32 1, %v6190
        %v6192 = vrot.slane %v6157, %v6191
        %v6195 = vsel %vm6180, %v6188, 0.0
        %v6196 = vsel %vm6181, %v6192, 0.0
        %v6197 = vsel %vm6182, %v6188, 0.0
        %v6198 = vsel %vm6183, %v6192, 0.0
        %vm6199 = vcmp.gt.s32.totalorder %v6152, 0
        %v6200 = vsel %vm6199, %v6152, 0
        %vm6201 = vcmp.lt.s32.totalorder %v6200, 15
        %v6202 = vsel %vm6201, %v6200, 15
        %v6203 = vlaneseq
        %v6204 = vshrl.u32 %v6203, 7
        %v6205 = vsub.s32 0, %v6204
        %v6206 = vrot.slane %v6202, %v6205
        %v6207 = vlaneseq
        %v6208 = vshrl.u32 %v6207, 7
        %v6209 = vsub.s32 1, %v6208
        %v6210 = vrot.slane %v6202, %v6209
        %vm6211 = vcmp.eq.s32.totalorder %v365, %v6206
        %vm6212 = vcmp.eq.s32.totalorder %v365, %v6210
        %vm6213 = vcmp.eq.s32.totalorder %v366, %v6206
        %vm6214 = vcmp.eq.s32.totalorder %v366, %v6210
        %v6216 = vlaneseq
        %v6217 = vshrl.u32 %v6216, 7
        %v6218 = vsub.s32 0, %v6217
        %v6219 = vrot.slane %v6160, %v6218
        %v6220 = vlaneseq
        %v6221 = vshrl.u32 %v6220, 7
        %v6222 = vsub.s32 1, %v6221
        %v6223 = vrot.slane %v6160, %v6222
        %v6226 = vsel %vm6211, %v6219, 0.0
        %v6227 = vsel %vm6212, %v6223, 0.0
        %v6228 = vsel %vm6213, %v6219, 0.0
        %v6229 = vsel %vm6214, %v6223, 0.0
        %v6230 = vadd.f32 %v6195, %v6226
        %v6231 = vadd.f32 %v6196, %v6227
        %v6232 = vadd.f32 %v6197, %v6228
        %v6233 = vadd.f32 %v6198, %v6229
        %vm6234 = vcmp.gt.s32.totalorder %v6151, 0
        %v6235 = vsel %vm6234, %v6151, 0
        %vm6236 = vcmp.lt.s32.totalorder %v6235, 15
        %v6237 = vsel %vm6236, %v6235, 15
        %v6238 = vlaneseq
        %v6239 = vshrl.u32 %v6238, 7
        %v6240 = vsub.s32 0, %v6239
        %v6241 = vrot.slane %v6237, %v6240
        %v6242 = vlaneseq
        %v6243 = vshrl.u32 %v6242, 7
        %v6244 = vsub.s32 1, %v6243
        %v6245 = vrot.slane %v6237, %v6244
        %vm6246 = vcmp.eq.s32.totalorder %v365, %v6241
        %vm6247 = vcmp.eq.s32.totalorder %v365, %v6245
        %vm6248 = vcmp.eq.s32.totalorder %v366, %v6241
        %vm6249 = vcmp.eq.s32.totalorder %v366, %v6245
        %v6251 = vlaneseq
        %v6252 = vshrl.u32 %v6251, 7
        %v6253 = vsub.s32 0, %v6252
        %v6254 = vrot.slane %v6164, %v6253
        %v6255 = vlaneseq
        %v6256 = vshrl.u32 %v6255, 7
        %v6257 = vsub.s32 1, %v6256
        %v6258 = vrot.slane %v6164, %v6257
        %v6261 = vsel %vm6246, %v6254, 0.0
        %v6262 = vsel %vm6247, %v6258, 0.0
        %v6263 = vsel %vm6248, %v6254, 0.0
        %v6264 = vsel %vm6249, %v6258, 0.0
        %vm6265 = vcmp.gt.s32.totalorder %v6153, 0
        %v6266 = vsel %vm6265, %v6153, 0
        %vm6267 = vcmp.lt.s32.totalorder %v6266, 15
        %v6268 = vsel %vm6267, %v6266, 15
        %v6269 = vlaneseq
        %v6270 = vshrl.u32 %v6269, 7
        %v6271 = vsub.s32 0, %v6270
        %v6272 = vrot.slane %v6268, %v6271
        %v6273 = vlaneseq
        %v6274 = vshrl.u32 %v6273, 7
        %v6275 = vsub.s32 1, %v6274
        %v6276 = vrot.slane %v6268, %v6275
        %vm6277 = vcmp.eq.s32.totalorder %v365, %v6272
        %vm6278 = vcmp.eq.s32.totalorder %v365, %v6276
        %vm6279 = vcmp.eq.s32.totalorder %v366, %v6272
        %vm6280 = vcmp.eq.s32.totalorder %v366, %v6276
        %v6282 = vlaneseq
        %v6283 = vshrl.u32 %v6282, 7
        %v6284 = vsub.s32 0, %v6283
        %v6285 = vrot.slane %v6167, %v6284
        %v6286 = vlaneseq
        %v6287 = vshrl.u32 %v6286, 7
        %v6288 = vsub.s32 1, %v6287
        %v6289 = vrot.slane %v6167, %v6288
        %v6292 = vsel %vm6277, %v6285, 0.0
        %v6293 = vsel %vm6278, %v6289, 0.0
        %v6294 = vsel %vm6279, %v6285, 0.0
        %v6295 = vsel %vm6280, %v6289, 0.0
        %v6296 = vadd.f32 %v6261, %v6292
        %v6297 = vadd.f32 %v6262, %v6293
        %v6298 = vadd.f32 %v6263, %v6294
        %v6299 = vadd.f32 %v6264, %v6295
        %v6300 = vlaneseq
        %v6301 = vshrl.u32 %v6300, 7
        %v6302 = vsub.s32 1, %v6301
        %v6303 = vrot.slane %v361, %v6302
        %v6304 = vlaneseq
        %v6305 = vshrl.u32 %v6304, 7
        %v6306 = vsub.s32 1, %v6305
        %v6307 = vrot.slane %v363, %v6306
        %v6308 = vmul.f32 %v6230, %v6303
        %v6309 = vmul.f32 %v6231, %v6307
        %v6310 = vmul.f32 %v6232, %v6303
        %v6311 = vmul.f32 %v6233, %v6307
        %v6312 = vpack.c.bf16 %v6298, %v6296
        %v6313 = vpack.c.bf16 %v6299, %v6297
        %6314 = vmatprep.subr.bf16.mxu0 %v6313
        %6315 = vmatpush1.bf16.msra.mxu0 %v6312
        %6316 = vmatprep.subr.bf16.mxu0 0
        %6317 = vmatpush1.bf16.msra.mxu0 0
        %6318 = vmatprep.subr.bf16.mxu0 0
        %6319 = vmatpush1.bf16.msra.mxu0 0
        %6320 = vmatprep.subr.bf16.mxu0 0
        %6321 = vmatpush1.bf16.msra.mxu0 0
        %6322 = vmatprep.subr.bf16.mxu0 0
        %6323 = vmatpush1.bf16.msra.mxu0 0
        %6324 = vmatprep.subr.bf16.mxu0 0
        %6325 = vmatpush1.bf16.msra.mxu0 0
        %6326 = vmatprep.subr.bf16.mxu0 0
        %6327 = vmatpush1.bf16.msra.mxu0 0
        %6328 = vmatprep.subr.bf16.mxu0 0
        %6329 = vmatpush1.bf16.msra.mxu0 0
        %6330 = vmatprep.subr.bf16.mxu0 0
        %6331 = vmatpush1.bf16.msra.mxu0 0
        %6332 = vmatprep.subr.bf16.mxu0 0
        %6333 = vmatpush1.bf16.msra.mxu0 0
        %6334 = vmatprep.subr.bf16.mxu0 0
        %6335 = vmatpush1.bf16.msra.mxu0 0
        %6336 = vmatprep.subr.bf16.mxu0 0
        %6337 = vmatpush1.bf16.msra.mxu0 0
        %6338 = vmatprep.subr.bf16.mxu0 0
        %6339 = vmatpush1.bf16.msra.mxu0 0
        %6340 = vmatprep.subr.bf16.mxu0 0
        %6341 = vmatpush1.bf16.msra.mxu0 0
        %6342 = vmatprep.subr.bf16.mxu0 0
        %6343 = vmatpush1.bf16.msra.mxu0 0
        %6344 = vmatprep.subr.bf16.mxu0 0
        %6345 = vmatpush1.bf16.msra.mxu0 0
        %6346 = vmatprep.mubr.bf16.mxu0 0
        %6347 = vmatmul.mubr.bf16.gmra.mrb[0].mxu0 %v654
        %v6348 = vpop.f32.mrb[0].mxu0
        %v6349 = vadd.f32 0.0, %v6348
        %v6350 = vpop.f32.mrb[0].mxu0
        %v6351 = vadd.f32 0.0, %v6350
        %v6352 = vpop.f32.mrb[0].mxu0
        %v6353 = vadd.f32 0.0, %v6352
        %v6354 = vpop.f32.mrb[0].mxu0
        %v6355 = vadd.f32 0.0, %v6354
        %6356 = vmatprep.mubr.bf16.mxu0 0
        %6357 = vmatmul.mubr.bf16.gmra.mrb[0].mxu0 %v657
        %v6358 = vpop.f32.mrb[0].mxu0
        %v6359 = vadd.f32 0.0, %v6358
        %v6360 = vpop.f32.mrb[0].mxu0
        %v6361 = vadd.f32 0.0, %v6360
        %v6362 = vpop.f32.mrb[0].mxu0
        %v6363 = vadd.f32 0.0, %v6362
        %v6364 = vpop.f32.mrb[0].mxu0
        %v6365 = vadd.f32 0.0, %v6364
        %6366 = vmatprep.mubr.bf16.mxu0 0
        %6367 = vmatmul.mubr.bf16.gmra.mrb[0].mxu0 %v660
        %v6368 = vpop.f32.mrb[0].mxu0
        %v6369 = vadd.f32 0.0, %v6368
        %v6370 = vpop.f32.mrb[0].mxu0
        %v6371 = vadd.f32 0.0, %v6370
        %v6372 = vpop.f32.mrb[0].mxu0
        %v6373 = vadd.f32 0.0, %v6372
        %v6374 = vpop.f32.mrb[0].mxu0
        %v6375 = vadd.f32 0.0, %v6374
        %6376 = vmatprep.mubr.bf16.mxu0 0
        %6377 = vmatmul.mubr.bf16.gmra.mrb[0].mxu0 %v663
        %v6378 = vpop.f32.mrb[0].mxu0
        %v6379 = vadd.f32 0.0, %v6378
        %v6380 = vpop.f32.mrb[0].mxu0
        %v6381 = vadd.f32 0.0, %v6380
        %v6382 = vpop.f32.mrb[0].mxu0
        %v6383 = vadd.f32 0.0, %v6382
        %v6384 = vpop.f32.mrb[0].mxu0
        %v6385 = vadd.f32 0.0, %v6384
        %6386 = vmatprep.mubr.bf16.mxu0 0
        %6387 = vmatmul.mubr.bf16.gmra.mrb[0].mxu0 %v666
        %v6388 = vpop.f32.mrb[0].mxu0
        %v6389 = vadd.f32 0.0, %v6388
        %v6390 = vpop.f32.mrb[0].mxu0
        %v6391 = vadd.f32 0.0, %v6390
        %v6392 = vpop.f32.mrb[0].mxu0
        %v6393 = vadd.f32 0.0, %v6392
        %v6394 = vpop.f32.mrb[0].mxu0
        %v6395 = vadd.f32 0.0, %v6394
        %6396 = vmatprep.mubr.bf16.mxu0 0
        %6397 = vmatmul.mubr.bf16.gmra.mrb[0].mxu0 %v669
        %v6398 = vpop.f32.mrb[0].mxu0
        %v6399 = vadd.f32 0.0, %v6398
        %v6400 = vpop.f32.mrb[0].mxu0
        %v6401 = vadd.f32 0.0, %v6400
        %v6402 = vpop.f32.mrb[0].mxu0
        %v6403 = vadd.f32 0.0, %v6402
        %v6404 = vpop.f32.mrb[0].mxu0
        %v6405 = vadd.f32 0.0, %v6404
        %6406 = vmatprep.mubr.bf16.mxu0 0
        %6407 = vmatmul.mubr.bf16.gmra.mrb[0].mxu0 %v672
        %v6408 = vpop.f32.mrb[0].mxu0
        %v6409 = vadd.f32 0.0, %v6408
        %v6410 = vpop.f32.mrb[0].mxu0
        %v6411 = vadd.f32 0.0, %v6410
        %v6412 = vpop.f32.mrb[0].mxu0
        %v6413 = vadd.f32 0.0, %v6412
        %v6414 = vpop.f32.mrb[0].mxu0
        %v6415 = vadd.f32 0.0, %v6414
        %6416 = vmatprep.mubr.bf16.mxu0 0
        %6417 = vmatmul.mubr.bf16.gmra.mrb[0].mxu0 %v675
        %v6418 = vpop.f32.mrb[0].mxu0
        %v6419 = vadd.f32 0.0, %v6418
        %v6420 = vpop.f32.mrb[0].mxu0
        %v6421 = vadd.f32 0.0, %v6420
        %v6422 = vpop.f32.mrb[0].mxu0
        %v6423 = vadd.f32 0.0, %v6422
        %v6424 = vpop.f32.mrb[0].mxu0
        %v6425 = vadd.f32 0.0, %v6424
        %6426 = vmatprep.mubr.bf16.mxu0 0
        %6427 = vmatmul.mubr.bf16.gmra.mrb[0].mxu0 %v678
        %v6428 = vpop.f32.mrb[0].mxu0
        %v6429 = vadd.f32 0.0, %v6428
        %v6430 = vpop.f32.mrb[0].mxu0
        %v6431 = vadd.f32 0.0, %v6430
        %v6432 = vpop.f32.mrb[0].mxu0
        %v6433 = vadd.f32 0.0, %v6432
        %v6434 = vpop.f32.mrb[0].mxu0
        %v6435 = vadd.f32 0.0, %v6434
        %6436 = vmatprep.mubr.bf16.mxu0 0
        %6437 = vmatmul.mubr.bf16.gmra.mrb[0].mxu0 %v681
        %v6438 = vpop.f32.mrb[0].mxu0
        %v6439 = vadd.f32 0.0, %v6438
        %v6440 = vpop.f32.mrb[0].mxu0
        %v6441 = vadd.f32 0.0, %v6440
        %v6442 = vpop.f32.mrb[0].mxu0
        %v6443 = vadd.f32 0.0, %v6442
        %v6444 = vpop.f32.mrb[0].mxu0
        %v6445 = vadd.f32 0.0, %v6444
        %6446 = vmatprep.mubr.bf16.mxu0 0
        %6447 = vmatmul.mubr.bf16.gmra.mrb[0].mxu0 %v684
        %v6448 = vpop.f32.mrb[0].mxu0
        %v6449 = vadd.f32 0.0, %v6448
        %v6450 = vpop.f32.mrb[0].mxu0
        %v6451 = vadd.f32 0.0, %v6450
        %v6452 = vpop.f32.mrb[0].mxu0
        %v6453 = vadd.f32 0.0, %v6452
        %v6454 = vpop.f32.mrb[0].mxu0
        %v6455 = vadd.f32 0.0, %v6454
        %6456 = vmatprep.mubr.bf16.mxu0 0
        %6457 = vmatmul.mubr.bf16.gmra.mrb[0].mxu0 %v687
        %v6458 = vpop.f32.mrb[0].mxu0
        %v6459 = vadd.f32 0.0, %v6458
        %v6460 = vpop.f32.mrb[0].mxu0
        %v6461 = vadd.f32 0.0, %v6460
        %v6462 = vpop.f32.mrb[0].mxu0
        %v6463 = vadd.f32 0.0, %v6462
        %v6464 = vpop.f32.mrb[0].mxu0
        %v6465 = vadd.f32 0.0, %v6464
        %6466 = vmatprep.mubr.bf16.mxu0 0
        %6467 = vmatmul.mubr.bf16.gmra.mrb[0].mxu0 %v690
        %v6468 = vpop.f32.mrb[0].mxu0
        %v6469 = vadd.f32 0.0, %v6468
        %v6470 = vpop.f32.mrb[0].mxu0
        %v6471 = vadd.f32 0.0, %v6470
        %v6472 = vpop.f32.mrb[0].mxu0
        %v6473 = vadd.f32 0.0, %v6472
        %v6474 = vpop.f32.mrb[0].mxu0
        %v6475 = vadd.f32 0.0, %v6474
        %6476 = vmatprep.mubr.bf16.mxu0 0
        %6477 = vmatmul.mubr.bf16.gmra.mrb[0].mxu0 %v693
        %v6478 = vpop.f32.mrb[0].mxu0
        %v6479 = vadd.f32 0.0, %v6478
        %v6480 = vpop.f32.mrb[0].mxu0
        %v6481 = vadd.f32 0.0, %v6480
        %v6482 = vpop.f32.mrb[0].mxu0
        %v6483 = vadd.f32 0.0, %v6482
        %v6484 = vpop.f32.mrb[0].mxu0
        %v6485 = vadd.f32 0.0, %v6484
        %6486 = vmatprep.mubr.bf16.mxu0 0
        %6487 = vmatmul.mubr.bf16.gmra.mrb[0].mxu0 %v696
        %v6488 = vpop.f32.mrb[0].mxu0
        %v6489 = vadd.f32 0.0, %v6488
        %v6490 = vpop.f32.mrb[0].mxu0
        %v6491 = vadd.f32 0.0, %v6490
        %v6492 = vpop.f32.mrb[0].mxu0
        %v6493 = vadd.f32 0.0, %v6492
        %v6494 = vpop.f32.mrb[0].mxu0
        %v6495 = vadd.f32 0.0, %v6494
        %6496 = vmatprep.mubr.bf16.mxu0 0
        %6497 = vmatmul.mubr.bf16.gmra.mrb[0].mxu0 %v699
        %v6498 = vpop.f32.mrb[0].mxu0
        %v6499 = vadd.f32 0.0, %v6498
        %v6500 = vpop.f32.mrb[0].mxu0
        %v6501 = vadd.f32 0.0, %v6500
        %v6502 = vpop.f32.mrb[0].mxu0
        %v6503 = vadd.f32 0.0, %v6502
        %v6504 = vpop.f32.mrb[0].mxu0
        %v6505 = vadd.f32 0.0, %v6504
        %6506 = vdwg.mxu0
        %v6507 = vmul.f32 %v6349, %v6308
        %v6508 = vmul.f32 %v6351, %v6309
        %v6509 = vmul.f32 %v6353, %v6310
        %v6510 = vmul.f32 %v6355, %v6311
        %v6511 = vmul.f32 %v6359, %v6308
        %v6512 = vmul.f32 %v6361, %v6309
        %v6513 = vmul.f32 %v6363, %v6310
        %v6514 = vmul.f32 %v6365, %v6311
        %v6515 = vmul.f32 %v6369, %v6308
        %v6516 = vmul.f32 %v6371, %v6309
        %v6517 = vmul.f32 %v6373, %v6310
        %v6518 = vmul.f32 %v6375, %v6311
        %v6519 = vmul.f32 %v6379, %v6308
        %v6520 = vmul.f32 %v6381, %v6309
        %v6521 = vmul.f32 %v6383, %v6310
        %v6522 = vmul.f32 %v6385, %v6311
        %v6523 = vmul.f32 %v6389, %v6308
        %v6524 = vmul.f32 %v6391, %v6309
        %v6525 = vmul.f32 %v6393, %v6310
        %v6526 = vmul.f32 %v6395, %v6311
        %v6527 = vmul.f32 %v6399, %v6308
        %v6528 = vmul.f32 %v6401, %v6309
        %v6529 = vmul.f32 %v6403, %v6310
        %v6530 = vmul.f32 %v6405, %v6311
        %v6531 = vmul.f32 %v6409, %v6308
        %v6532 = vmul.f32 %v6411, %v6309
        %v6533 = vmul.f32 %v6413, %v6310
        %v6534 = vmul.f32 %v6415, %v6311
        %v6535 = vmul.f32 %v6419, %v6308
        %v6536 = vmul.f32 %v6421, %v6309
        %v6537 = vmul.f32 %v6423, %v6310
        %v6538 = vmul.f32 %v6425, %v6311
        %v6539 = vmul.f32 %v6429, %v6308
        %v6540 = vmul.f32 %v6431, %v6309
        %v6541 = vmul.f32 %v6433, %v6310
        %v6542 = vmul.f32 %v6435, %v6311
        %v6543 = vmul.f32 %v6439, %v6308
        %v6544 = vmul.f32 %v6441, %v6309
        %v6545 = vmul.f32 %v6443, %v6310
        %v6546 = vmul.f32 %v6445, %v6311
        %v6547 = vmul.f32 %v6449, %v6308
        %v6548 = vmul.f32 %v6451, %v6309
        %v6549 = vmul.f32 %v6453, %v6310
        %v6550 = vmul.f32 %v6455, %v6311
        %v6551 = vmul.f32 %v6459, %v6308
        %v6552 = vmul.f32 %v6461, %v6309
        %v6553 = vmul.f32 %v6463, %v6310
        %v6554 = vmul.f32 %v6465, %v6311
        %v6555 = vmul.f32 %v6469, %v6308
        %v6556 = vmul.f32 %v6471, %v6309
        %v6557 = vmul.f32 %v6473, %v6310
        %v6558 = vmul.f32 %v6475, %v6311
        %v6559 = vmul.f32 %v6479, %v6308
        %v6560 = vmul.f32 %v6481, %v6309
        %v6561 = vmul.f32 %v6483, %v6310
        %v6562 = vmul.f32 %v6485, %v6311
        %v6563 = vmul.f32 %v6489, %v6308
        %v6564 = vmul.f32 %v6491, %v6309
        %v6565 = vmul.f32 %v6493, %v6310
        %v6566 = vmul.f32 %v6495, %v6311
        %v6567 = vmul.f32 %v6499, %v6308
        %v6568 = vmul.f32 %v6501, %v6309
        %v6569 = vmul.f32 %v6503, %v6310
        %v6570 = vmul.f32 %v6505, %v6311
        %v6571 = vadd.f32 %v6507, %v6509
        %v6572 = vrot.slane %v6571, 4
        %v6573 = vadd.f32 %v6571, %v6572
        %v6574 = vrot.slane %v6573, 2
        %v6575 = vadd.f32 %v6573, %v6574
        %v6576 = vrot.slane %v6575, 1
        %v6577 = vadd.f32 %v6575, %v6576
        %v6578 = vadd.f32 %v6508, %v6510
        %v6579 = vrot.slane %v6578, 4
        %v6580 = vadd.f32 %v6578, %v6579
        %v6581 = vrot.slane %v6580, 2
        %v6582 = vadd.f32 %v6580, %v6581
        %v6583 = vrot.slane %v6582, 1
        %v6584 = vadd.f32 %v6582, %v6583
        %v6585 = vadd.f32 %v6511, %v6513
        %v6586 = vrot.slane %v6585, 4
        %v6587 = vadd.f32 %v6585, %v6586
        %v6588 = vrot.slane %v6587, 2
        %v6589 = vadd.f32 %v6587, %v6588
        %v6590 = vrot.slane %v6589, 1
        %v6591 = vadd.f32 %v6589, %v6590
        %v6592 = vadd.f32 %v6512, %v6514
        %v6593 = vrot.slane %v6592, 4
        %v6594 = vadd.f32 %v6592, %v6593
        %v6595 = vrot.slane %v6594, 2
        %v6596 = vadd.f32 %v6594, %v6595
        %v6597 = vrot.slane %v6596, 1
        %v6598 = vadd.f32 %v6596, %v6597
        %v6599 = vadd.f32 %v6515, %v6517
        %v6600 = vrot.slane %v6599, 4
        %v6601 = vadd.f32 %v6599, %v6600
        %v6602 = vrot.slane %v6601, 2
        %v6603 = vadd.f32 %v6601, %v6602
        %v6604 = vrot.slane %v6603, 1
        %v6605 = vadd.f32 %v6603, %v6604
        %v6606 = vadd.f32 %v6516, %v6518
        %v6607 = vrot.slane %v6606, 4
        %v6608 = vadd.f32 %v6606, %v6607
        %v6609 = vrot.slane %v6608, 2
        %v6610 = vadd.f32 %v6608, %v6609
        %v6611 = vrot.slane %v6610, 1
        %v6612 = vadd.f32 %v6610, %v6611
        %v6613 = vadd.f32 %v6519, %v6521
        %v6614 = vrot.slane %v6613, 4
        %v6615 = vadd.f32 %v6613, %v6614
        %v6616 = vrot.slane %v6615, 2
        %v6617 = vadd.f32 %v6615, %v6616
        %v6618 = vrot.slane %v6617, 1
        %v6619 = vadd.f32 %v6617, %v6618
        %v6620 = vadd.f32 %v6520, %v6522
        %v6621 = vrot.slane %v6620, 4
        %v6622 = vadd.f32 %v6620, %v6621
        %v6623 = vrot.slane %v6622, 2
        %v6624 = vadd.f32 %v6622, %v6623
        %v6625 = vrot.slane %v6624, 1
        %v6626 = vadd.f32 %v6624, %v6625
        %v6627 = vadd.f32 %v6523, %v6525
        %v6628 = vrot.slane %v6627, 4
        %v6629 = vadd.f32 %v6627, %v6628
        %v6630 = vrot.slane %v6629, 2
        %v6631 = vadd.f32 %v6629, %v6630
        %v6632 = vrot.slane %v6631, 1
        %v6633 = vadd.f32 %v6631, %v6632
        %v6634 = vadd.f32 %v6524, %v6526
        %v6635 = vrot.slane %v6634, 4
        %v6636 = vadd.f32 %v6634, %v6635
        %v6637 = vrot.slane %v6636, 2
        %v6638 = vadd.f32 %v6636, %v6637
        %v6639 = vrot.slane %v6638, 1
        %v6640 = vadd.f32 %v6638, %v6639
        %v6641 = vadd.f32 %v6527, %v6529
        %v6642 = vrot.slane %v6641, 4
        %v6643 = vadd.f32 %v6641, %v6642
        %v6644 = vrot.slane %v6643, 2
        %v6645 = vadd.f32 %v6643, %v6644
        %v6646 = vrot.slane %v6645, 1
        %v6647 = vadd.f32 %v6645, %v6646
        %v6648 = vadd.f32 %v6528, %v6530
        %v6649 = vrot.slane %v6648, 4
        %v6650 = vadd.f32 %v6648, %v6649
        %v6651 = vrot.slane %v6650, 2
        %v6652 = vadd.f32 %v6650, %v6651
        %v6653 = vrot.slane %v6652, 1
        %v6654 = vadd.f32 %v6652, %v6653
        %v6655 = vadd.f32 %v6531, %v6533
        %v6656 = vrot.slane %v6655, 4
        %v6657 = vadd.f32 %v6655, %v6656
        %v6658 = vrot.slane %v6657, 2
        %v6659 = vadd.f32 %v6657, %v6658
        %v6660 = vrot.slane %v6659, 1
        %v6661 = vadd.f32 %v6659, %v6660
        %v6662 = vadd.f32 %v6532, %v6534
        %v6663 = vrot.slane %v6662, 4
        %v6664 = vadd.f32 %v6662, %v6663
        %v6665 = vrot.slane %v6664, 2
        %v6666 = vadd.f32 %v6664, %v6665
        %v6667 = vrot.slane %v6666, 1
        %v6668 = vadd.f32 %v6666, %v6667
        %v6669 = vadd.f32 %v6535, %v6537
        %v6670 = vrot.slane %v6669, 4
        %v6671 = vadd.f32 %v6669, %v6670
        %v6672 = vrot.slane %v6671, 2
        %v6673 = vadd.f32 %v6671, %v6672
        %v6674 = vrot.slane %v6673, 1
        %v6675 = vadd.f32 %v6673, %v6674
        %v6676 = vadd.f32 %v6536, %v6538
        %v6677 = vrot.slane %v6676, 4
        %v6678 = vadd.f32 %v6676, %v6677
        %v6679 = vrot.slane %v6678, 2
        %v6680 = vadd.f32 %v6678, %v6679
        %v6681 = vrot.slane %v6680, 1
        %v6682 = vadd.f32 %v6680, %v6681
        %v6683 = vadd.f32 %v6539, %v6541
        %v6684 = vrot.slane %v6683, 4
        %v6685 = vadd.f32 %v6683, %v6684
        %v6686 = vrot.slane %v6685, 2
        %v6687 = vadd.f32 %v6685, %v6686
        %v6688 = vrot.slane %v6687, 1
        %v6689 = vadd.f32 %v6687, %v6688
        %v6690 = vadd.f32 %v6540, %v6542
        %v6691 = vrot.slane %v6690, 4
        %v6692 = vadd.f32 %v6690, %v6691
        %v6693 = vrot.slane %v6692, 2
        %v6694 = vadd.f32 %v6692, %v6693
        %v6695 = vrot.slane %v6694, 1
        %v6696 = vadd.f32 %v6694, %v6695
        %v6697 = vadd.f32 %v6543, %v6545
        %v6698 = vrot.slane %v6697, 4
        %v6699 = vadd.f32 %v6697, %v6698
        %v6700 = vrot.slane %v6699, 2
        %v6701 = vadd.f32 %v6699, %v6700
        %v6702 = vrot.slane %v6701, 1
        %v6703 = vadd.f32 %v6701, %v6702
        %v6704 = vadd.f32 %v6544, %v6546
        %v6705 = vrot.slane %v6704, 4
        %v6706 = vadd.f32 %v6704, %v6705
        %v6707 = vrot.slane %v6706, 2
        %v6708 = vadd.f32 %v6706, %v6707
        %v6709 = vrot.slane %v6708, 1
        %v6710 = vadd.f32 %v6708, %v6709
        %v6711 = vadd.f32 %v6547, %v6549
        %v6712 = vrot.slane %v6711, 4
        %v6713 = vadd.f32 %v6711, %v6712
        %v6714 = vrot.slane %v6713, 2
        %v6715 = vadd.f32 %v6713, %v6714
        %v6716 = vrot.slane %v6715, 1
        %v6717 = vadd.f32 %v6715, %v6716
        %v6718 = vadd.f32 %v6548, %v6550
        %v6719 = vrot.slane %v6718, 4
        %v6720 = vadd.f32 %v6718, %v6719
        %v6721 = vrot.slane %v6720, 2
        %v6722 = vadd.f32 %v6720, %v6721
        %v6723 = vrot.slane %v6722, 1
        %v6724 = vadd.f32 %v6722, %v6723
        %v6725 = vadd.f32 %v6551, %v6553
        %v6726 = vrot.slane %v6725, 4
        %v6727 = vadd.f32 %v6725, %v6726
        %v6728 = vrot.slane %v6727, 2
        %v6729 = vadd.f32 %v6727, %v6728
        %v6730 = vrot.slane %v6729, 1
        %v6731 = vadd.f32 %v6729, %v6730
        %v6732 = vadd.f32 %v6552, %v6554
        %v6733 = vrot.slane %v6732, 4
        %v6734 = vadd.f32 %v6732, %v6733
        %v6735 = vrot.slane %v6734, 2
        %v6736 = vadd.f32 %v6734, %v6735
        %v6737 = vrot.slane %v6736, 1
        %v6738 = vadd.f32 %v6736, %v6737
        %v6739 = vadd.f32 %v6555, %v6557
        %v6740 = vrot.slane %v6739, 4
        %v6741 = vadd.f32 %v6739, %v6740
        %v6742 = vrot.slane %v6741, 2
        %v6743 = vadd.f32 %v6741, %v6742
        %v6744 = vrot.slane %v6743, 1
        %v6745 = vadd.f32 %v6743, %v6744
        %v6746 = vadd.f32 %v6556, %v6558
        %v6747 = vrot.slane %v6746, 4
        %v6748 = vadd.f32 %v6746, %v6747
        %v6749 = vrot.slane %v6748, 2
        %v6750 = vadd.f32 %v6748, %v6749
        %v6751 = vrot.slane %v6750, 1
        %v6752 = vadd.f32 %v6750, %v6751
        %v6753 = vadd.f32 %v6559, %v6561
        %v6754 = vrot.slane %v6753, 4
        %v6755 = vadd.f32 %v6753, %v6754
        %v6756 = vrot.slane %v6755, 2
        %v6757 = vadd.f32 %v6755, %v6756
        %v6758 = vrot.slane %v6757, 1
        %v6759 = vadd.f32 %v6757, %v6758
        %v6760 = vadd.f32 %v6560, %v6562
        %v6761 = vrot.slane %v6760, 4
        %v6762 = vadd.f32 %v6760, %v6761
        %v6763 = vrot.slane %v6762, 2
        %v6764 = vadd.f32 %v6762, %v6763
        %v6765 = vrot.slane %v6764, 1
        %v6766 = vadd.f32 %v6764, %v6765
        %v6767 = vadd.f32 %v6563, %v6565
        %v6768 = vrot.slane %v6767, 4
        %v6769 = vadd.f32 %v6767, %v6768
        %v6770 = vrot.slane %v6769, 2
        %v6771 = vadd.f32 %v6769, %v6770
        %v6772 = vrot.slane %v6771, 1
        %v6773 = vadd.f32 %v6771, %v6772
        %v6774 = vadd.f32 %v6564, %v6566
        %v6775 = vrot.slane %v6774, 4
        %v6776 = vadd.f32 %v6774, %v6775
        %v6777 = vrot.slane %v6776, 2
        %v6778 = vadd.f32 %v6776, %v6777
        %v6779 = vrot.slane %v6778, 1
        %v6780 = vadd.f32 %v6778, %v6779
        %v6781 = vadd.f32 %v6567, %v6569
        %v6782 = vrot.slane %v6781, 4
        %v6783 = vadd.f32 %v6781, %v6782
        %v6784 = vrot.slane %v6783, 2
        %v6785 = vadd.f32 %v6783, %v6784
        %v6786 = vrot.slane %v6785, 1
        %v6787 = vadd.f32 %v6785, %v6786
        %v6788 = vadd.f32 %v6568, %v6570
        %v6789 = vrot.slane %v6788, 4
        %v6790 = vadd.f32 %v6788, %v6789
        %v6791 = vrot.slane %v6790, 2
        %v6792 = vadd.f32 %v6790, %v6791
        %v6793 = vrot.slane %v6792, 1
        %v6794 = vadd.f32 %v6792, %v6793
        %v6795 = vpack.c.bf16 %v6577, %v6577
        %v6796 = vpack.c.bf16 %v6584, %v6584
        %v6797 = vpack.c.bf16 %v6591, %v6591
        %v6798 = vpack.c.bf16 %v6598, %v6598
        %v6799 = vpack.c.bf16 %v6605, %v6605
        %v6800 = vpack.c.bf16 %v6612, %v6612
        %v6801 = vpack.c.bf16 %v6619, %v6619
        %v6802 = vpack.c.bf16 %v6626, %v6626
        %v6803 = vpack.c.bf16 %v6633, %v6633
        %v6804 = vpack.c.bf16 %v6640, %v6640
        %v6805 = vpack.c.bf16 %v6647, %v6647
        %v6806 = vpack.c.bf16 %v6654, %v6654
        %v6807 = vpack.c.bf16 %v6661, %v6661
        %v6808 = vpack.c.bf16 %v6668, %v6668
        %v6809 = vpack.c.bf16 %v6675, %v6675
        %v6810 = vpack.c.bf16 %v6682, %v6682
        %v6811 = vpack.c.bf16 %v6689, %v6689
        %v6812 = vpack.c.bf16 %v6696, %v6696
        %v6813 = vpack.c.bf16 %v6703, %v6703
        %v6814 = vpack.c.bf16 %v6710, %v6710
        %v6815 = vpack.c.bf16 %v6717, %v6717
        %v6816 = vpack.c.bf16 %v6724, %v6724
        %v6817 = vpack.c.bf16 %v6731, %v6731
        %v6818 = vpack.c.bf16 %v6738, %v6738
        %v6819 = vpack.c.bf16 %v6745, %v6745
        %v6820 = vpack.c.bf16 %v6752, %v6752
        %v6821 = vpack.c.bf16 %v6759, %v6759
        %v6822 = vpack.c.bf16 %v6766, %v6766
        %v6823 = vpack.c.bf16 %v6773, %v6773
        %v6824 = vpack.c.bf16 %v6780, %v6780
        %v6825 = vpack.c.bf16 %v6787, %v6787
        %v6826 = vpack.c.bf16 %v6794, %v6794
        %v6859 = vunpack.c.l.b16 %v6795
        %v6860 = vunpack.c.l.b16 %v6796
        %v6861 = vunpack.c.l.b16 %v6797
        %v6862 = vunpack.c.l.b16 %v6798
        %v6863 = vunpack.c.l.b16 %v6799
        %v6864 = vunpack.c.l.b16 %v6800
        %v6865 = vunpack.c.l.b16 %v6801
        %v6866 = vunpack.c.l.b16 %v6802
        %v6867 = vunpack.c.l.b16 %v6803
        %v6868 = vunpack.c.l.b16 %v6804
        %v6869 = vunpack.c.l.b16 %v6805
        %v6870 = vunpack.c.l.b16 %v6806
        %v6871 = vunpack.c.l.b16 %v6807
        %v6872 = vunpack.c.l.b16 %v6808
        %v6873 = vunpack.c.l.b16 %v6809
        %v6874 = vunpack.c.l.b16 %v6810
        %v6875 = vunpack.c.l.b16 %v6811
        %v6876 = vunpack.c.l.b16 %v6812
        %v6877 = vunpack.c.l.b16 %v6813
        %v6878 = vunpack.c.l.b16 %v6814
        %v6879 = vunpack.c.l.b16 %v6815
        %v6880 = vunpack.c.l.b16 %v6816
        %v6881 = vunpack.c.l.b16 %v6817
        %v6882 = vunpack.c.l.b16 %v6818
        %v6883 = vunpack.c.l.b16 %v6819
        %v6884 = vunpack.c.l.b16 %v6820
        %v6885 = vunpack.c.l.b16 %v6821
        %v6886 = vunpack.c.l.b16 %v6822
        %v6887 = vunpack.c.l.b16 %v6823
        %v6888 = vunpack.c.l.b16 %v6824
        %v6889 = vunpack.c.l.b16 %v6825
        %v6890 = vunpack.c.l.b16 %v6826
        %v6891 = vsel %vm1278, %v6861, %v6859
        %v6892 = vsel %vm1280, %v6863, %v6891
        %v6893 = vsel %vm1282, %v6865, %v6892
        %v6894 = vsel %vm1284, %v6867, %v6893
        %v6895 = vsel %vm1286, %v6869, %v6894
        %v6896 = vsel %vm1288, %v6871, %v6895
        %v6897 = vsel %vm1290, %v6873, %v6896
        %v6898 = vsel %vm1278, %v6862, %v6860
        %v6899 = vsel %vm1280, %v6864, %v6898
        %v6900 = vsel %vm1282, %v6866, %v6899
        %v6901 = vsel %vm1284, %v6868, %v6900
        %v6902 = vsel %vm1286, %v6870, %v6901
        %v6903 = vsel %vm1288, %v6872, %v6902
        %v6904 = vsel %vm1290, %v6874, %v6903
        %v6905 = vsel %vm1278, %v6877, %v6875
        %v6906 = vsel %vm1280, %v6879, %v6905
        %v6907 = vsel %vm1282, %v6881, %v6906
        %v6908 = vsel %vm1284, %v6883, %v6907
        %v6909 = vsel %vm1286, %v6885, %v6908
        %v6910 = vsel %vm1288, %v6887, %v6909
        %v6911 = vsel %vm1290, %v6889, %v6910
        %v6912 = vsel %vm1278, %v6878, %v6876
        %v6913 = vsel %vm1280, %v6880, %v6912
        %v6914 = vsel %vm1282, %v6882, %v6913
        %v6915 = vsel %vm1284, %v6884, %v6914
        %v6916 = vsel %vm1286, %v6886, %v6915
        %v6917 = vsel %vm1288, %v6888, %v6916
        %v6918 = vsel %vm1290, %v6890, %v6917
        %v6919 = vpack.c.b16 %v6911, %v6897
        %v6920 = vpack.c.b16 %v6918, %v6904
        %6923 = vst [vmem:[#allocation2 + $0x70] sm:$0xff] %v6919
        %6924 = vst [vmem:[#allocation2 + $0x78] sm:$0xff] %v6920
        %v6927 = vcombine.low %v301, %v302
        %v6929 = vunpack.c.l.s4 1966171168
        %v6930 = vunpack.c.0.s8 %v6929
        %v6931 = vlaneseq
        %v6932 = vshrl.u32 %v6931, 7
        %v6933 = vsub.s32 %v6930, %v6932
        %v6934 = vrot.slane %v6927, %v6933
        %v6936 = vunpack.c.l.s4 1966171168
        %v6937 = vunpack.c.0.s8 %v6936
        %v6938 = vlaneseq
        %v6939 = vshrl.u32 %v6938, 7
        %v6940 = vsub.s32 %v6937, %v6939
        %v6941 = vrot.slane %v6934, %v6940
        %v6943 = vadd.f32 %v5321, %v6941
        %v6944 = vcombine.high %v6934, %v6934
        %v6946 = vunpack.c.l.s4 1966171168
        %v6947 = vunpack.c.0.s8 %v6946
        %v6948 = vlaneseq
        %v6949 = vshrl.u32 %v6948, 7
        %v6950 = vsub.s32 %v6947, %v6949
        %v6951 = vrot.slane %v6944, %v6950
        %v6953 = vadd.f32 %v2128, %v6951
        %vm6954 = vcmp.gt.f32.partialorder %v6943, -1.0
        %vm6955 = vcmp.lt.f32.partialorder %v6943, 16.0
        %vm6956 = vmand %vm6954, %vm6955
        %vm6957 = vcmp.gt.f32.partialorder %v6953, -1.0
        %vm6958 = vcmp.lt.f32.partialorder %v6953, 16.0
        %vm6959 = vmand %vm6957, %vm6958
        %v6960 = vfloor.f32 %v6943
        %v6961 = vfloor.f32 %v6953
        %v6962 = vsub.f32 %v6943, %v6960
        %v6963 = vsub.f32 %v6953, %v6961
        %v6964 = vcvt.f32.s32.to.zero.pseudo %v6960
        %v6965 = vcvt.f32.s32.to.zero.pseudo %v6961
        %v6966 = vadd.s32 %v6964, 1
        %v6967 = vadd.s32 %v6965, 1
        %vm6968 = vcmp.ge.s32.totalorder %v6964, 0
        %vm6969 = vmand %vm6956, %vm6968
        %v6970 = vsub.f32 1.0, %v6962
        %v6971 = vsel %vm6969, %v6970, 0.0
        %vm6972 = vcmp.le.s32.totalorder %v6966, 15
        %vm6973 = vmand %vm6956, %vm6972
        %v6974 = vsel %vm6973, %v6962, 0.0
        %vm6975 = vcmp.ge.s32.totalorder %v6965, 0
        %vm6976 = vmand %vm6959, %vm6975
        %v6977 = vsub.f32 1.0, %v6963
        %v6978 = vsel %vm6976, %v6977, 0.0
        %vm6979 = vcmp.le.s32.totalorder %v6967, 15
        %vm6980 = vmand %vm6959, %vm6979
        %v6981 = vsel %vm6980, %v6963, 0.0
        %vm6982 = vcmp.gt.s32.totalorder %v6964, 0
        %v6983 = vsel %vm6982, %v6964, 0
        %vm6984 = vcmp.lt.s32.totalorder %v6983, 15
        %v6985 = vsel %vm6984, %v6983, 15
        %v6986 = vlaneseq
        %v6987 = vshrl.u32 %v6986, 7
        %v6988 = vsub.s32 0, %v6987
        %v6989 = vrot.slane %v6985, %v6988
        %v6990 = vlaneseq
        %v6991 = vshrl.u32 %v6990, 7
        %v6992 = vsub.s32 1, %v6991
        %v6993 = vrot.slane %v6985, %v6992
        %vm6994 = vcmp.eq.s32.totalorder %v365, %v6989
        %vm6995 = vcmp.eq.s32.totalorder %v365, %v6993
        %vm6996 = vcmp.eq.s32.totalorder %v366, %v6989
        %vm6997 = vcmp.eq.s32.totalorder %v366, %v6993
        %v6999 = vlaneseq
        %v7000 = vshrl.u32 %v6999, 7
        %v7001 = vsub.s32 0, %v7000
        %v7002 = vrot.slane %v6971, %v7001
        %v7003 = vlaneseq
        %v7004 = vshrl.u32 %v7003, 7
        %v7005 = vsub.s32 1, %v7004
        %v7006 = vrot.slane %v6971, %v7005
        %v7009 = vsel %vm6994, %v7002, 0.0
        %v7010 = vsel %vm6995, %v7006, 0.0
        %v7011 = vsel %vm6996, %v7002, 0.0
        %v7012 = vsel %vm6997, %v7006, 0.0
        %vm7013 = vcmp.gt.s32.totalorder %v6966, 0
        %v7014 = vsel %vm7013, %v6966, 0
        %vm7015 = vcmp.lt.s32.totalorder %v7014, 15
        %v7016 = vsel %vm7015, %v7014, 15
        %v7017 = vlaneseq
        %v7018 = vshrl.u32 %v7017, 7
        %v7019 = vsub.s32 0, %v7018
        %v7020 = vrot.slane %v7016, %v7019
        %v7021 = vlaneseq
        %v7022 = vshrl.u32 %v7021, 7
        %v7023 = vsub.s32 1, %v7022
        %v7024 = vrot.slane %v7016, %v7023
        %vm7025 = vcmp.eq.s32.totalorder %v365, %v7020
        %vm7026 = vcmp.eq.s32.totalorder %v365, %v7024
        %vm7027 = vcmp.eq.s32.totalorder %v366, %v7020
        %vm7028 = vcmp.eq.s32.totalorder %v366, %v7024
        %v7030 = vlaneseq
        %v7031 = vshrl.u32 %v7030, 7
        %v7032 = vsub.s32 0, %v7031
        %v7033 = vrot.slane %v6974, %v7032
        %v7034 = vlaneseq
        %v7035 = vshrl.u32 %v7034, 7
        %v7036 = vsub.s32 1, %v7035
        %v7037 = vrot.slane %v6974, %v7036
        %v7040 = vsel %vm7025, %v7033, 0.0
        %v7041 = vsel %vm7026, %v7037, 0.0
        %v7042 = vsel %vm7027, %v7033, 0.0
        %v7043 = vsel %vm7028, %v7037, 0.0
        %v7044 = vadd.f32 %v7009, %v7040
        %v7045 = vadd.f32 %v7010, %v7041
        %v7046 = vadd.f32 %v7011, %v7042
        %v7047 = vadd.f32 %v7012, %v7043
        %vm7048 = vcmp.gt.s32.totalorder %v6965, 0
        %v7049 = vsel %vm7048, %v6965, 0
        %vm7050 = vcmp.lt.s32.totalorder %v7049, 15
        %v7051 = vsel %vm7050, %v7049, 15
        %v7052 = vlaneseq
        %v7053 = vshrl.u32 %v7052, 7
        %v7054 = vsub.s32 0, %v7053
        %v7055 = vrot.slane %v7051, %v7054
        %v7056 = vlaneseq
        %v7057 = vshrl.u32 %v7056, 7
        %v7058 = vsub.s32 1, %v7057
        %v7059 = vrot.slane %v7051, %v7058
        %vm7060 = vcmp.eq.s32.totalorder %v365, %v7055
        %vm7061 = vcmp.eq.s32.totalorder %v365, %v7059
        %vm7062 = vcmp.eq.s32.totalorder %v366, %v7055
        %vm7063 = vcmp.eq.s32.totalorder %v366, %v7059
        %v7065 = vlaneseq
        %v7066 = vshrl.u32 %v7065, 7
        %v7067 = vsub.s32 0, %v7066
        %v7068 = vrot.slane %v6978, %v7067
        %v7069 = vlaneseq
        %v7070 = vshrl.u32 %v7069, 7
        %v7071 = vsub.s32 1, %v7070
        %v7072 = vrot.slane %v6978, %v7071
        %v7075 = vsel %vm7060, %v7068, 0.0
        %v7076 = vsel %vm7061, %v7072, 0.0
        %v7077 = vsel %vm7062, %v7068, 0.0
        %v7078 = vsel %vm7063, %v7072, 0.0
        %vm7079 = vcmp.gt.s32.totalorder %v6967, 0
        %v7080 = vsel %vm7079, %v6967, 0
        %vm7081 = vcmp.lt.s32.totalorder %v7080, 15
        %v7082 = vsel %vm7081, %v7080, 15
        %v7083 = vlaneseq
        %v7084 = vshrl.u32 %v7083, 7
        %v7085 = vsub.s32 0, %v7084
        %v7086 = vrot.slane %v7082, %v7085
        %v7087 = vlaneseq
        %v7088 = vshrl.u32 %v7087, 7
        %v7089 = vsub.s32 1, %v7088
        %v7090 = vrot.slane %v7082, %v7089
        %vm7091 = vcmp.eq.s32.totalorder %v365, %v7086
        %vm7092 = vcmp.eq.s32.totalorder %v365, %v7090
        %vm7093 = vcmp.eq.s32.totalorder %v366, %v7086
        %vm7094 = vcmp.eq.s32.totalorder %v366, %v7090
        %v7096 = vlaneseq
        %v7097 = vshrl.u32 %v7096, 7
        %v7098 = vsub.s32 0, %v7097
        %v7099 = vrot.slane %v6981, %v7098
        %v7100 = vlaneseq
        %v7101 = vshrl.u32 %v7100, 7
        %v7102 = vsub.s32 1, %v7101
        %v7103 = vrot.slane %v6981, %v7102
        %v7106 = vsel %vm7091, %v7099, 0.0
        %v7107 = vsel %vm7092, %v7103, 0.0
        %v7108 = vsel %vm7093, %v7099, 0.0
        %v7109 = vsel %vm7094, %v7103, 0.0
        %v7110 = vadd.f32 %v7075, %v7106
        %v7111 = vadd.f32 %v7076, %v7107
        %v7112 = vadd.f32 %v7077, %v7108
        %v7113 = vadd.f32 %v7078, %v7109
        %v7114 = vlaneseq
        %v7115 = vshrl.u32 %v7114, 7
        %v7116 = vsub.s32 2, %v7115
        %v7117 = vrot.slane %v361, %v7116
        %v7118 = vlaneseq
        %v7119 = vshrl.u32 %v7118, 7
        %v7120 = vsub.s32 2, %v7119
        %v7121 = vrot.slane %v363, %v7120
        %v7122 = vmul.f32 %v7044, %v7117
        %v7123 = vmul.f32 %v7045, %v7121
        %v7124 = vmul.f32 %v7046, %v7117
        %v7125 = vmul.f32 %v7047, %v7121
        %v7126 = vpack.c.bf16 %v7112, %v7110
        %v7127 = vpack.c.bf16 %v7113, %v7111
        %7128 = vmatprep.subr.bf16.mxu0 %v7127
        %7129 = vmatpush1.bf16.msra.mxu0 %v7126
        %7130 = vmatprep.subr.bf16.mxu0 0
        %7131 = vmatpush1.bf16.msra.mxu0 0
        %7132 = vmatprep.subr.bf16.mxu0 0
        %7133 = vmatpush1.bf16.msra.mxu0 0
        %7134 = vmatprep.subr.bf16.mxu0 0
        %7135 = vmatpush1.bf16.msra.mxu0 0
        %7136 = vmatprep.subr.bf16.mxu0 0
        %7137 = vmatpush1.bf16.msra.mxu0 0
        %7138 = vmatprep.subr.bf16.mxu0 0
        %7139 = vmatpush1.bf16.msra.mxu0 0
        %7140 = vmatprep.subr.bf16.mxu0 0
        %7141 = vmatpush1.bf16.msra.mxu0 0
        %7142 = vmatprep.subr.bf16.mxu0 0
        %7143 = vmatpush1.bf16.msra.mxu0 0
        %7144 = vmatprep.subr.bf16.mxu0 0
        %7145 = vmatpush1.bf16.msra.mxu0 0
        %7146 = vmatprep.subr.bf16.mxu0 0
        %7147 = vmatpush1.bf16.msra.mxu0 0
        %7148 = vmatprep.subr.bf16.mxu0 0
        %7149 = vmatpush1.bf16.msra.mxu0 0
        %7150 = vmatprep.subr.bf16.mxu0 0
        %7151 = vmatpush1.bf16.msra.mxu0 0
        %7152 = vmatprep.subr.bf16.mxu0 0
        %7153 = vmatpush1.bf16.msra.mxu0 0
        %7154 = vmatprep.subr.bf16.mxu0 0
        %7155 = vmatpush1.bf16.msra.mxu0 0
        %7156 = vmatprep.subr.bf16.mxu0 0
        %7157 = vmatpush1.bf16.msra.mxu0 0
        %7158 = vmatprep.subr.bf16.mxu0 0
        %7159 = vmatpush1.bf16.msra.mxu0 0
        %7160 = vmatprep.mubr.bf16.mxu0 0
        %7161 = vmatmul.mubr.bf16.gmra.mrb[0].mxu0 %v654
        %v7162 = vpop.f32.mrb[0].mxu0
        %v7163 = vadd.f32 0.0, %v7162
        %v7164 = vpop.f32.mrb[0].mxu0
        %v7165 = vadd.f32 0.0, %v7164
        %v7166 = vpop.f32.mrb[0].mxu0
        %v7167 = vadd.f32 0.0, %v7166
        %v7168 = vpop.f32.mrb[0].mxu0
        %v7169 = vadd.f32 0.0, %v7168
        %7170 = vmatprep.mubr.bf16.mxu0 0
        %7171 = vmatmul.mubr.bf16.gmra.mrb[0].mxu0 %v657
        %v7172 = vpop.f32.mrb[0].mxu0
        %v7173 = vadd.f32 0.0, %v7172
        %v7174 = vpop.f32.mrb[0].mxu0
        %v7175 = vadd.f32 0.0, %v7174
        %v7176 = vpop.f32.mrb[0].mxu0
        %v7177 = vadd.f32 0.0, %v7176
        %v7178 = vpop.f32.mrb[0].mxu0
        %v7179 = vadd.f32 0.0, %v7178
        %7180 = vmatprep.mubr.bf16.mxu0 0
        %7181 = vmatmul.mubr.bf16.gmra.mrb[0].mxu0 %v660
        %v7182 = vpop.f32.mrb[0].mxu0
        %v7183 = vadd.f32 0.0, %v7182
        %v7184 = vpop.f32.mrb[0].mxu0
        %v7185 = vadd.f32 0.0, %v7184
        %v7186 = vpop.f32.mrb[0].mxu0
        %v7187 = vadd.f32 0.0, %v7186
        %v7188 = vpop.f32.mrb[0].mxu0
        %v7189 = vadd.f32 0.0, %v7188
        %7190 = vmatprep.mubr.bf16.mxu0 0
        %7191 = vmatmul.mubr.bf16.gmra.mrb[0].mxu0 %v663
        %v7192 = vpop.f32.mrb[0].mxu0
        %v7193 = vadd.f32 0.0, %v7192
        %v7194 = vpop.f32.mrb[0].mxu0
        %v7195 = vadd.f32 0.0, %v7194
        %v7196 = vpop.f32.mrb[0].mxu0
        %v7197 = vadd.f32 0.0, %v7196
        %v7198 = vpop.f32.mrb[0].mxu0
        %v7199 = vadd.f32 0.0, %v7198
        %7200 = vmatprep.mubr.bf16.mxu0 0
        %7201 = vmatmul.mubr.bf16.gmra.mrb[0].mxu0 %v666
        %v7202 = vpop.f32.mrb[0].mxu0
        %v7203 = vadd.f32 0.0, %v7202
        %v7204 = vpop.f32.mrb[0].mxu0
        %v7205 = vadd.f32 0.0, %v7204
        %v7206 = vpop.f32.mrb[0].mxu0
        %v7207 = vadd.f32 0.0, %v7206
        %v7208 = vpop.f32.mrb[0].mxu0
        %v7209 = vadd.f32 0.0, %v7208
        %7210 = vmatprep.mubr.bf16.mxu0 0
        %7211 = vmatmul.mubr.bf16.gmra.mrb[0].mxu0 %v669
        %v7212 = vpop.f32.mrb[0].mxu0
        %v7213 = vadd.f32 0.0, %v7212
        %v7214 = vpop.f32.mrb[0].mxu0
        %v7215 = vadd.f32 0.0, %v7214
        %v7216 = vpop.f32.mrb[0].mxu0
        %v7217 = vadd.f32 0.0, %v7216
        %v7218 = vpop.f32.mrb[0].mxu0
        %v7219 = vadd.f32 0.0, %v7218
        %7220 = vmatprep.mubr.bf16.mxu0 0
        %7221 = vmatmul.mubr.bf16.gmra.mrb[0].mxu0 %v672
        %v7222 = vpop.f32.mrb[0].mxu0
        %v7223 = vadd.f32 0.0, %v7222
        %v7224 = vpop.f32.mrb[0].mxu0
        %v7225 = vadd.f32 0.0, %v7224
        %v7226 = vpop.f32.mrb[0].mxu0
        %v7227 = vadd.f32 0.0, %v7226
        %v7228 = vpop.f32.mrb[0].mxu0
        %v7229 = vadd.f32 0.0, %v7228
        %7230 = vmatprep.mubr.bf16.mxu0 0
        %7231 = vmatmul.mubr.bf16.gmra.mrb[0].mxu0 %v675
        %v7232 = vpop.f32.mrb[0].mxu0
        %v7233 = vadd.f32 0.0, %v7232
        %v7234 = vpop.f32.mrb[0].mxu0
        %v7235 = vadd.f32 0.0, %v7234
        %v7236 = vpop.f32.mrb[0].mxu0
        %v7237 = vadd.f32 0.0, %v7236
        %v7238 = vpop.f32.mrb[0].mxu0
        %v7239 = vadd.f32 0.0, %v7238
        %7240 = vmatprep.mubr.bf16.mxu0 0
        %7241 = vmatmul.mubr.bf16.gmra.mrb[0].mxu0 %v678
        %v7242 = vpop.f32.mrb[0].mxu0
        %v7243 = vadd.f32 0.0, %v7242
        %v7244 = vpop.f32.mrb[0].mxu0
        %v7245 = vadd.f32 0.0, %v7244
        %v7246 = vpop.f32.mrb[0].mxu0
        %v7247 = vadd.f32 0.0, %v7246
        %v7248 = vpop.f32.mrb[0].mxu0
        %v7249 = vadd.f32 0.0, %v7248
        %7250 = vmatprep.mubr.bf16.mxu0 0
        %7251 = vmatmul.mubr.bf16.gmra.mrb[0].mxu0 %v681
        %v7252 = vpop.f32.mrb[0].mxu0
        %v7253 = vadd.f32 0.0, %v7252
        %v7254 = vpop.f32.mrb[0].mxu0
        %v7255 = vadd.f32 0.0, %v7254
        %v7256 = vpop.f32.mrb[0].mxu0
        %v7257 = vadd.f32 0.0, %v7256
        %v7258 = vpop.f32.mrb[0].mxu0
        %v7259 = vadd.f32 0.0, %v7258
        %7260 = vmatprep.mubr.bf16.mxu0 0
        %7261 = vmatmul.mubr.bf16.gmra.mrb[0].mxu0 %v684
        %v7262 = vpop.f32.mrb[0].mxu0
        %v7263 = vadd.f32 0.0, %v7262
        %v7264 = vpop.f32.mrb[0].mxu0
        %v7265 = vadd.f32 0.0, %v7264
        %v7266 = vpop.f32.mrb[0].mxu0
        %v7267 = vadd.f32 0.0, %v7266
        %v7268 = vpop.f32.mrb[0].mxu0
        %v7269 = vadd.f32 0.0, %v7268
        %7270 = vmatprep.mubr.bf16.mxu0 0
        %7271 = vmatmul.mubr.bf16.gmra.mrb[0].mxu0 %v687
        %v7272 = vpop.f32.mrb[0].mxu0
        %v7273 = vadd.f32 0.0, %v7272
        %v7274 = vpop.f32.mrb[0].mxu0
        %v7275 = vadd.f32 0.0, %v7274
        %v7276 = vpop.f32.mrb[0].mxu0
        %v7277 = vadd.f32 0.0, %v7276
        %v7278 = vpop.f32.mrb[0].mxu0
        %v7279 = vadd.f32 0.0, %v7278
        %7280 = vmatprep.mubr.bf16.mxu0 0
        %7281 = vmatmul.mubr.bf16.gmra.mrb[0].mxu0 %v690
        %v7282 = vpop.f32.mrb[0].mxu0
        %v7283 = vadd.f32 0.0, %v7282
        %v7284 = vpop.f32.mrb[0].mxu0
        %v7285 = vadd.f32 0.0, %v7284
        %v7286 = vpop.f32.mrb[0].mxu0
        %v7287 = vadd.f32 0.0, %v7286
        %v7288 = vpop.f32.mrb[0].mxu0
        %v7289 = vadd.f32 0.0, %v7288
        %7290 = vmatprep.mubr.bf16.mxu0 0
        %7291 = vmatmul.mubr.bf16.gmra.mrb[0].mxu0 %v693
        %v7292 = vpop.f32.mrb[0].mxu0
        %v7293 = vadd.f32 0.0, %v7292
        %v7294 = vpop.f32.mrb[0].mxu0
        %v7295 = vadd.f32 0.0, %v7294
        %v7296 = vpop.f32.mrb[0].mxu0
        %v7297 = vadd.f32 0.0, %v7296
        %v7298 = vpop.f32.mrb[0].mxu0
        %v7299 = vadd.f32 0.0, %v7298
        %7300 = vmatprep.mubr.bf16.mxu0 0
        %7301 = vmatmul.mubr.bf16.gmra.mrb[0].mxu0 %v696
        %v7302 = vpop.f32.mrb[0].mxu0
        %v7303 = vadd.f32 0.0, %v7302
        %v7304 = vpop.f32.mrb[0].mxu0
        %v7305 = vadd.f32 0.0, %v7304
        %v7306 = vpop.f32.mrb[0].mxu0
        %v7307 = vadd.f32 0.0, %v7306
        %v7308 = vpop.f32.mrb[0].mxu0
        %v7309 = vadd.f32 0.0, %v7308
        %7310 = vmatprep.mubr.bf16.mxu0 0
        %7311 = vmatmul.mubr.bf16.gmra.mrb[0].mxu0 %v699
        %v7312 = vpop.f32.mrb[0].mxu0
        %v7313 = vadd.f32 0.0, %v7312
        %v7314 = vpop.f32.mrb[0].mxu0
        %v7315 = vadd.f32 0.0, %v7314
        %v7316 = vpop.f32.mrb[0].mxu0
        %v7317 = vadd.f32 0.0, %v7316
        %v7318 = vpop.f32.mrb[0].mxu0
        %v7319 = vadd.f32 0.0, %v7318
        %7320 = vdwg.mxu0
        %v7321 = vmul.f32 %v7163, %v7122
        %v7322 = vmul.f32 %v7165, %v7123
        %v7323 = vmul.f32 %v7167, %v7124
        %v7324 = vmul.f32 %v7169, %v7125
        %v7325 = vmul.f32 %v7173, %v7122
        %v7326 = vmul.f32 %v7175, %v7123
        %v7327 = vmul.f32 %v7177, %v7124
        %v7328 = vmul.f32 %v7179, %v7125
        %v7329 = vmul.f32 %v7183, %v7122
        %v7330 = vmul.f32 %v7185, %v7123
        %v7331 = vmul.f32 %v7187, %v7124
        %v7332 = vmul.f32 %v7189, %v7125
        %v7333 = vmul.f32 %v7193, %v7122
        %v7334 = vmul.f32 %v7195, %v7123
        %v7335 = vmul.f32 %v7197, %v7124
        %v7336 = vmul.f32 %v7199, %v7125
        %v7337 = vmul.f32 %v7203, %v7122
        %v7338 = vmul.f32 %v7205, %v7123
        %v7339 = vmul.f32 %v7207, %v7124
        %v7340 = vmul.f32 %v7209, %v7125
        %v7341 = vmul.f32 %v7213, %v7122
        %v7342 = vmul.f32 %v7215, %v7123
        %v7343 = vmul.f32 %v7217, %v7124
        %v7344 = vmul.f32 %v7219, %v7125
        %v7345 = vmul.f32 %v7223, %v7122
        %v7346 = vmul.f32 %v7225, %v7123
        %v7347 = vmul.f32 %v7227, %v7124
        %v7348 = vmul.f32 %v7229, %v7125
        %v7349 = vmul.f32 %v7233, %v7122
        %v7350 = vmul.f32 %v7235, %v7123
        %v7351 = vmul.f32 %v7237, %v7124
        %v7352 = vmul.f32 %v7239, %v7125
        %v7353 = vmul.f32 %v7243, %v7122
        %v7354 = vmul.f32 %v7245, %v7123
        %v7355 = vmul.f32 %v7247, %v7124
        %v7356 = vmul.f32 %v7249, %v7125
        %v7357 = vmul.f32 %v7253, %v7122
        %v7358 = vmul.f32 %v7255, %v7123
        %v7359 = vmul.f32 %v7257, %v7124
        %v7360 = vmul.f32 %v7259, %v7125
        %v7361 = vmul.f32 %v7263, %v7122
        %v7362 = vmul.f32 %v7265, %v7123
        %v7363 = vmul.f32 %v7267, %v7124
        %v7364 = vmul.f32 %v7269, %v7125
        %v7365 = vmul.f32 %v7273, %v7122
        %v7366 = vmul.f32 %v7275, %v7123
        %v7367 = vmul.f32 %v7277, %v7124
        %v7368 = vmul.f32 %v7279, %v7125
        %v7369 = vmul.f32 %v7283, %v7122
        %v7370 = vmul.f32 %v7285, %v7123
        %v7371 = vmul.f32 %v7287, %v7124
        %v7372 = vmul.f32 %v7289, %v7125
        %v7373 = vmul.f32 %v7293, %v7122
        %v7374 = vmul.f32 %v7295, %v7123
        %v7375 = vmul.f32 %v7297, %v7124
        %v7376 = vmul.f32 %v7299, %v7125
        %v7377 = vmul.f32 %v7303, %v7122
        %v7378 = vmul.f32 %v7305, %v7123
        %v7379 = vmul.f32 %v7307, %v7124
        %v7380 = vmul.f32 %v7309, %v7125
        %v7381 = vmul.f32 %v7313, %v7122
        %v7382 = vmul.f32 %v7315, %v7123
        %v7383 = vmul.f32 %v7317, %v7124
        %v7384 = vmul.f32 %v7319, %v7125
        %v7385 = vadd.f32 %v7321, %v7323
        %v7386 = vrot.slane %v7385, 4
        %v7387 = vadd.f32 %v7385, %v7386
        %v7388 = vrot.slane %v7387, 2
        %v7389 = vadd.f32 %v7387, %v7388
        %v7390 = vrot.slane %v7389, 1
        %v7391 = vadd.f32 %v7389, %v7390
        %v7392 = vadd.f32 %v7322, %v7324
        %v7393 = vrot.slane %v7392, 4
        %v7394 = vadd.f32 %v7392, %v7393
        %v7395 = vrot.slane %v7394, 2
        %v7396 = vadd.f32 %v7394, %v7395
        %v7397 = vrot.slane %v7396, 1
        %v7398 = vadd.f32 %v7396, %v7397
        %v7399 = vadd.f32 %v7325, %v7327
        %v7400 = vrot.slane %v7399, 4
        %v7401 = vadd.f32 %v7399, %v7400
        %v7402 = vrot.slane %v7401, 2
        %v7403 = vadd.f32 %v7401, %v7402
        %v7404 = vrot.slane %v7403, 1
        %v7405 = vadd.f32 %v7403, %v7404
        %v7406 = vadd.f32 %v7326, %v7328
        %v7407 = vrot.slane %v7406, 4
        %v7408 = vadd.f32 %v7406, %v7407
        %v7409 = vrot.slane %v7408, 2
        %v7410 = vadd.f32 %v7408, %v7409
        %v7411 = vrot.slane %v7410, 1
        %v7412 = vadd.f32 %v7410, %v7411
        %v7413 = vadd.f32 %v7329, %v7331
        %v7414 = vrot.slane %v7413, 4
        %v7415 = vadd.f32 %v7413, %v7414
        %v7416 = vrot.slane %v7415, 2
        %v7417 = vadd.f32 %v7415, %v7416
        %v7418 = vrot.slane %v7417, 1
        %v7419 = vadd.f32 %v7417, %v7418
        %v7420 = vadd.f32 %v7330, %v7332
        %v7421 = vrot.slane %v7420, 4
        %v7422 = vadd.f32 %v7420, %v7421
        %v7423 = vrot.slane %v7422, 2
        %v7424 = vadd.f32 %v7422, %v7423
        %v7425 = vrot.slane %v7424, 1
        %v7426 = vadd.f32 %v7424, %v7425
        %v7427 = vadd.f32 %v7333, %v7335
        %v7428 = vrot.slane %v7427, 4
        %v7429 = vadd.f32 %v7427, %v7428
        %v7430 = vrot.slane %v7429, 2
        %v7431 = vadd.f32 %v7429, %v7430
        %v7432 = vrot.slane %v7431, 1
        %v7433 = vadd.f32 %v7431, %v7432
        %v7434 = vadd.f32 %v7334, %v7336
        %v7435 = vrot.slane %v7434, 4
        %v7436 = vadd.f32 %v7434, %v7435
        %v7437 = vrot.slane %v7436, 2
        %v7438 = vadd.f32 %v7436, %v7437
        %v7439 = vrot.slane %v7438, 1
        %v7440 = vadd.f32 %v7438, %v7439
        %v7441 = vadd.f32 %v7337, %v7339
        %v7442 = vrot.slane %v7441, 4
        %v7443 = vadd.f32 %v7441, %v7442
        %v7444 = vrot.slane %v7443, 2
        %v7445 = vadd.f32 %v7443, %v7444
        %v7446 = vrot.slane %v7445, 1
        %v7447 = vadd.f32 %v7445, %v7446
        %v7448 = vadd.f32 %v7338, %v7340
        %v7449 = vrot.slane %v7448, 4
        %v7450 = vadd.f32 %v7448, %v7449
        %v7451 = vrot.slane %v7450, 2
        %v7452 = vadd.f32 %v7450, %v7451
        %v7453 = vrot.slane %v7452, 1
        %v7454 = vadd.f32 %v7452, %v7453
        %v7455 = vadd.f32 %v7341, %v7343
        %v7456 = vrot.slane %v7455, 4
        %v7457 = vadd.f32 %v7455, %v7456
        %v7458 = vrot.slane %v7457, 2
        %v7459 = vadd.f32 %v7457, %v7458
        %v7460 = vrot.slane %v7459, 1
        %v7461 = vadd.f32 %v7459, %v7460
        %v7462 = vadd.f32 %v7342, %v7344
        %v7463 = vrot.slane %v7462, 4
        %v7464 = vadd.f32 %v7462, %v7463
        %v7465 = vrot.slane %v7464, 2
        %v7466 = vadd.f32 %v7464, %v7465
        %v7467 = vrot.slane %v7466, 1
        %v7468 = vadd.f32 %v7466, %v7467
        %v7469 = vadd.f32 %v7345, %v7347
        %v7470 = vrot.slane %v7469, 4
        %v7471 = vadd.f32 %v7469, %v7470
        %v7472 = vrot.slane %v7471, 2
        %v7473 = vadd.f32 %v7471, %v7472
        %v7474 = vrot.slane %v7473, 1
        %v7475 = vadd.f32 %v7473, %v7474
        %v7476 = vadd.f32 %v7346, %v7348
        %v7477 = vrot.slane %v7476, 4
        %v7478 = vadd.f32 %v7476, %v7477
        %v7479 = vrot.slane %v7478, 2
        %v7480 = vadd.f32 %v7478, %v7479
        %v7481 = vrot.slane %v7480, 1
        %v7482 = vadd.f32 %v7480, %v7481
        %v7483 = vadd.f32 %v7349, %v7351
        %v7484 = vrot.slane %v7483, 4
        %v7485 = vadd.f32 %v7483, %v7484
        %v7486 = vrot.slane %v7485, 2
        %v7487 = vadd.f32 %v7485, %v7486
        %v7488 = vrot.slane %v7487, 1
        %v7489 = vadd.f32 %v7487, %v7488
        %v7490 = vadd.f32 %v7350, %v7352
        %v7491 = vrot.slane %v7490, 4
        %v7492 = vadd.f32 %v7490, %v7491
        %v7493 = vrot.slane %v7492, 2
        %v7494 = vadd.f32 %v7492, %v7493
        %v7495 = vrot.slane %v7494, 1
        %v7496 = vadd.f32 %v7494, %v7495
        %v7497 = vadd.f32 %v7353, %v7355
        %v7498 = vrot.slane %v7497, 4
        %v7499 = vadd.f32 %v7497, %v7498
        %v7500 = vrot.slane %v7499, 2
        %v7501 = vadd.f32 %v7499, %v7500
        %v7502 = vrot.slane %v7501, 1
        %v7503 = vadd.f32 %v7501, %v7502
        %v7504 = vadd.f32 %v7354, %v7356
        %v7505 = vrot.slane %v7504, 4
        %v7506 = vadd.f32 %v7504, %v7505
        %v7507 = vrot.slane %v7506, 2
        %v7508 = vadd.f32 %v7506, %v7507
        %v7509 = vrot.slane %v7508, 1
        %v7510 = vadd.f32 %v7508, %v7509
        %v7511 = vadd.f32 %v7357, %v7359
        %v7512 = vrot.slane %v7511, 4
        %v7513 = vadd.f32 %v7511, %v7512
        %v7514 = vrot.slane %v7513, 2
        %v7515 = vadd.f32 %v7513, %v7514
        %v7516 = vrot.slane %v7515, 1
        %v7517 = vadd.f32 %v7515, %v7516
        %v7518 = vadd.f32 %v7358, %v7360
        %v7519 = vrot.slane %v7518, 4
        %v7520 = vadd.f32 %v7518, %v7519
        %v7521 = vrot.slane %v7520, 2
        %v7522 = vadd.f32 %v7520, %v7521
        %v7523 = vrot.slane %v7522, 1
        %v7524 = vadd.f32 %v7522, %v7523
        %v7525 = vadd.f32 %v7361, %v7363
        %v7526 = vrot.slane %v7525, 4
        %v7527 = vadd.f32 %v7525, %v7526
        %v7528 = vrot.slane %v7527, 2
        %v7529 = vadd.f32 %v7527, %v7528
        %v7530 = vrot.slane %v7529, 1
        %v7531 = vadd.f32 %v7529, %v7530
        %v7532 = vadd.f32 %v7362, %v7364
        %v7533 = vrot.slane %v7532, 4
        %v7534 = vadd.f32 %v7532, %v7533
        %v7535 = vrot.slane %v7534, 2
        %v7536 = vadd.f32 %v7534, %v7535
        %v7537 = vrot.slane %v7536, 1
        %v7538 = vadd.f32 %v7536, %v7537
        %v7539 = vadd.f32 %v7365, %v7367
        %v7540 = vrot.slane %v7539, 4
        %v7541 = vadd.f32 %v7539, %v7540
        %v7542 = vrot.slane %v7541, 2
        %v7543 = vadd.f32 %v7541, %v7542
        %v7544 = vrot.slane %v7543, 1
        %v7545 = vadd.f32 %v7543, %v7544
        %v7546 = vadd.f32 %v7366, %v7368
        %v7547 = vrot.slane %v7546, 4
        %v7548 = vadd.f32 %v7546, %v7547
        %v7549 = vrot.slane %v7548, 2
        %v7550 = vadd.f32 %v7548, %v7549
        %v7551 = vrot.slane %v7550, 1
        %v7552 = vadd.f32 %v7550, %v7551
        %v7553 = vadd.f32 %v7369, %v7371
        %v7554 = vrot.slane %v7553, 4
        %v7555 = vadd.f32 %v7553, %v7554
        %v7556 = vrot.slane %v7555, 2
        %v7557 = vadd.f32 %v7555, %v7556
        %v7558 = vrot.slane %v7557, 1
        %v7559 = vadd.f32 %v7557, %v7558
        %v7560 = vadd.f32 %v7370, %v7372
        %v7561 = vrot.slane %v7560, 4
        %v7562 = vadd.f32 %v7560, %v7561
        %v7563 = vrot.slane %v7562, 2
        %v7564 = vadd.f32 %v7562, %v7563
        %v7565 = vrot.slane %v7564, 1
        %v7566 = vadd.f32 %v7564, %v7565
        %v7567 = vadd.f32 %v7373, %v7375
        %v7568 = vrot.slane %v7567, 4
        %v7569 = vadd.f32 %v7567, %v7568
        %v7570 = vrot.slane %v7569, 2
        %v7571 = vadd.f32 %v7569, %v7570
        %v7572 = vrot.slane %v7571, 1
        %v7573 = vadd.f32 %v7571, %v7572
        %v7574 = vadd.f32 %v7374, %v7376
        %v7575 = vrot.slane %v7574, 4
        %v7576 = vadd.f32 %v7574, %v7575
        %v7577 = vrot.slane %v7576, 2
        %v7578 = vadd.f32 %v7576, %v7577
        %v7579 = vrot.slane %v7578, 1
        %v7580 = vadd.f32 %v7578, %v7579
        %v7581 = vadd.f32 %v7377, %v7379
        %v7582 = vrot.slane %v7581, 4
        %v7583 = vadd.f32 %v7581, %v7582
        %v7584 = vrot.slane %v7583, 2
        %v7585 = vadd.f32 %v7583, %v7584
        %v7586 = vrot.slane %v7585, 1
        %v7587 = vadd.f32 %v7585, %v7586
        %v7588 = vadd.f32 %v7378, %v7380
        %v7589 = vrot.slane %v7588, 4
        %v7590 = vadd.f32 %v7588, %v7589
        %v7591 = vrot.slane %v7590, 2
        %v7592 = vadd.f32 %v7590, %v7591
        %v7593 = vrot.slane %v7592, 1
        %v7594 = vadd.f32 %v7592, %v7593
        %v7595 = vadd.f32 %v7381, %v7383
        %v7596 = vrot.slane %v7595, 4
        %v7597 = vadd.f32 %v7595, %v7596
        %v7598 = vrot.slane %v7597, 2
        %v7599 = vadd.f32 %v7597, %v7598
        %v7600 = vrot.slane %v7599, 1
        %v7601 = vadd.f32 %v7599, %v7600
        %v7602 = vadd.f32 %v7382, %v7384
        %v7603 = vrot.slane %v7602, 4
        %v7604 = vadd.f32 %v7602, %v7603
        %v7605 = vrot.slane %v7604, 2
        %v7606 = vadd.f32 %v7604, %v7605
        %v7607 = vrot.slane %v7606, 1
        %v7608 = vadd.f32 %v7606, %v7607
        %v7609 = vpack.c.bf16 %v7391, %v7391
        %v7610 = vpack.c.bf16 %v7398, %v7398
        %v7611 = vpack.c.bf16 %v7405, %v7405
        %v7612 = vpack.c.bf16 %v7412, %v7412
        %v7613 = vpack.c.bf16 %v7419, %v7419
        %v7614 = vpack.c.bf16 %v7426, %v7426
        %v7615 = vpack.c.bf16 %v7433, %v7433
        %v7616 = vpack.c.bf16 %v7440, %v7440
        %v7617 = vpack.c.bf16 %v7447, %v7447
        %v7618 = vpack.c.bf16 %v7454, %v7454
        %v7619 = vpack.c.bf16 %v7461, %v7461
        %v7620 = vpack.c.bf16 %v7468, %v7468
        %v7621 = vpack.c.bf16 %v7475, %v7475
        %v7622 = vpack.c.bf16 %v7482, %v7482
        %v7623 = vpack.c.bf16 %v7489, %v7489
        %v7624 = vpack.c.bf16 %v7496, %v7496
        %v7625 = vpack.c.bf16 %v7503, %v7503
        %v7626 = vpack.c.bf16 %v7510, %v7510
        %v7627 = vpack.c.bf16 %v7517, %v7517
        %v7628 = vpack.c.bf16 %v7524, %v7524
        %v7629 = vpack.c.bf16 %v7531, %v7531
        %v7630 = vpack.c.bf16 %v7538, %v7538
        %v7631 = vpack.c.bf16 %v7545, %v7545
        %v7632 = vpack.c.bf16 %v7552, %v7552
        %v7633 = vpack.c.bf16 %v7559, %v7559
        %v7634 = vpack.c.bf16 %v7566, %v7566
        %v7635 = vpack.c.bf16 %v7573, %v7573
        %v7636 = vpack.c.bf16 %v7580, %v7580
        %v7637 = vpack.c.bf16 %v7587, %v7587
        %v7638 = vpack.c.bf16 %v7594, %v7594
        %v7639 = vpack.c.bf16 %v7601, %v7601
        %v7640 = vpack.c.bf16 %v7608, %v7608
        %v7673 = vunpack.c.l.b16 %v7609
        %v7674 = vunpack.c.l.b16 %v7610
        %v7675 = vunpack.c.l.b16 %v7611
        %v7676 = vunpack.c.l.b16 %v7612
        %v7677 = vunpack.c.l.b16 %v7613
        %v7678 = vunpack.c.l.b16 %v7614
        %v7679 = vunpack.c.l.b16 %v7615
        %v7680 = vunpack.c.l.b16 %v7616
        %v7681 = vunpack.c.l.b16 %v7617
        %v7682 = vunpack.c.l.b16 %v7618
        %v7683 = vunpack.c.l.b16 %v7619
        %v7684 = vunpack.c.l.b16 %v7620
        %v7685 = vunpack.c.l.b16 %v7621
        %v7686 = vunpack.c.l.b16 %v7622
        %v7687 = vunpack.c.l.b16 %v7623
        %v7688 = vunpack.c.l.b16 %v7624
        %v7689 = vunpack.c.l.b16 %v7625
        %v7690 = vunpack.c.l.b16 %v7626
        %v7691 = vunpack.c.l.b16 %v7627
        %v7692 = vunpack.c.l.b16 %v7628
        %v7693 = vunpack.c.l.b16 %v7629
        %v7694 = vunpack.c.l.b16 %v7630
        %v7695 = vunpack.c.l.b16 %v7631
        %v7696 = vunpack.c.l.b16 %v7632
        %v7697 = vunpack.c.l.b16 %v7633
        %v7698 = vunpack.c.l.b16 %v7634
        %v7699 = vunpack.c.l.b16 %v7635
        %v7700 = vunpack.c.l.b16 %v7636
        %v7701 = vunpack.c.l.b16 %v7637
        %v7702 = vunpack.c.l.b16 %v7638
        %v7703 = vunpack.c.l.b16 %v7639
        %v7704 = vunpack.c.l.b16 %v7640
        %v7705 = vsel %vm1278, %v7675, %v7673
        %v7706 = vsel %vm1280, %v7677, %v7705
        %v7707 = vsel %vm1282, %v7679, %v7706
        %v7708 = vsel %vm1284, %v7681, %v7707
        %v7709 = vsel %vm1286, %v7683, %v7708
        %v7710 = vsel %vm1288, %v7685, %v7709
        %v7711 = vsel %vm1290, %v7687, %v7710
        %v7712 = vsel %vm1278, %v7676, %v7674
        %v7713 = vsel %vm1280, %v7678, %v7712
        %v7714 = vsel %vm1282, %v7680, %v7713
        %v7715 = vsel %vm1284, %v7682, %v7714
        %v7716 = vsel %vm1286, %v7684, %v7715
        %v7717 = vsel %vm1288, %v7686, %v7716
        %v7718 = vsel %vm1290, %v7688, %v7717
        %v7719 = vsel %vm1278, %v7691, %v7689
        %v7720 = vsel %vm1280, %v7693, %v7719
        %v7721 = vsel %vm1282, %v7695, %v7720
        %v7722 = vsel %vm1284, %v7697, %v7721
        %v7723 = vsel %vm1286, %v7699, %v7722
        %v7724 = vsel %vm1288, %v7701, %v7723
        %v7725 = vsel %vm1290, %v7703, %v7724
        %v7726 = vsel %vm1278, %v7692, %v7690
        %v7727 = vsel %vm1280, %v7694, %v7726
        %v7728 = vsel %vm1282, %v7696, %v7727
        %v7729 = vsel %vm1284, %v7698, %v7728
        %v7730 = vsel %vm1286, %v7700, %v7729
        %v7731 = vsel %vm1288, %v7702, %v7730
        %v7732 = vsel %vm1290, %v7704, %v7731
        %v7733 = vpack.c.b16 %v7725, %v7711
        %v7734 = vpack.c.b16 %v7732, %v7718
        %7737 = vst [vmem:[#allocation2 + $0x80] sm:$0xff] %v7733
        %7738 = vst [vmem:[#allocation2 + $0x88] sm:$0xff] %v7734
        %v7739 = vld [vmem:[%s3] sm:$0xff]
        %v7740 = vld [vmem:[#allocation2] sm:$0xff]
        %v7741 = vld [vmem:[#allocation2 + $0x8] sm:$0xff]
        %v7742 = vld [vmem:[#allocation2 + $0x10] sm:$0xff]
        %v7743 = vld [vmem:[#allocation2 + $0x18] sm:$0xff]
        %v7744 = vld [vmem:[#allocation2 + $0x20] sm:$0xff]
        %v7745 = vld [vmem:[#allocation2 + $0x28] sm:$0xff]
        %v7746 = vld [vmem:[#allocation2 + $0x30] sm:$0xff]
        %v7747 = vld [vmem:[#allocation2 + $0x38] sm:$0xff]
        %v7748 = vld [vmem:[#allocation2 + $0x40] sm:$0xff]
        %v7749 = vld [vmem:[#allocation2 + $0x48] sm:$0xff]
        %v7750 = vld [vmem:[#allocation2 + $0x50] sm:$0xff]
        %v7751 = vld [vmem:[#allocation2 + $0x58] sm:$0xff]
        %v7752 = vld [vmem:[#allocation2 + $0x60] sm:$0xff]
        %v7753 = vld [vmem:[#allocation2 + $0x68] sm:$0xff]
        %v7754 = vld [vmem:[#allocation2 + $0x70] sm:$0xff]
        %v7755 = vld [vmem:[#allocation2 + $0x78] sm:$0xff]
        %v7756 = vld [vmem:[#allocation2 + $0x80] sm:$0xff]
        %v7757 = vld [vmem:[#allocation2 + $0x88] sm:$0xff]
        %v7758 = vld [vmem:[%s4] sm:$0xff]
        %7760 = vset.pattern.permute.xlu0 0
        %7761 = vperm.xlu0 %7760, %v7758
        %v7762 = vpop.permute.xlu0 %7761
        %v7765 = vunpack.c.l.b16 %v7739
        %v7766 = vunpack.c.h.b16 %v7739
        %v7767 = vpack.c.b16 %v7765, %v7765
        %v7768 = vpack.c.b16 %v7766, %v7766
        %v7771 = vsel %vm652, %v7768, 0
        %7773 = vmatprep.subr.bf16.mxu0 %v7741
        %7774 = vmatpush1.bf16.msra.mxu0 %v7740
        %7775 = vmatprep.subr.bf16.mxu0 %v7743
        %7776 = vmatpush1.bf16.msra.mxu0 %v7742
        %7777 = vmatprep.subr.bf16.mxu0 %v7745
        %7778 = vmatpush1.bf16.msra.mxu0 %v7744
        %7779 = vmatprep.subr.bf16.mxu0 %v7747
        %7780 = vmatpush1.bf16.msra.mxu0 %v7746
        %7781 = vmatprep.subr.bf16.mxu0 %v7749
        %7782 = vmatpush1.bf16.msra.mxu0 %v7748
        %7783 = vmatprep.subr.bf16.mxu0 %v7751
        %7784 = vmatpush1.bf16.msra.mxu0 %v7750
        %7785 = vmatprep.subr.bf16.mxu0 %v7753
        %7786 = vmatpush1.bf16.msra.mxu0 %v7752
        %7787 = vmatprep.subr.bf16.mxu0 %v7755
        %7788 = vmatpush1.bf16.msra.mxu0 %v7754
        %7789 = vmatprep.subr.bf16.mxu0 %v7757
        %7790 = vmatpush1.bf16.msra.mxu0 %v7756
        %7791 = vmatprep.subr.bf16.mxu0 0
        %7792 = vmatpush1.bf16.msra.mxu0 0
        %7793 = vmatprep.subr.bf16.mxu0 0
        %7794 = vmatpush1.bf16.msra.mxu0 0
        %7795 = vmatprep.subr.bf16.mxu0 0
        %7796 = vmatpush1.bf16.msra.mxu0 0
        %7797 = vmatprep.subr.bf16.mxu0 0
        %7798 = vmatpush1.bf16.msra.mxu0 0
        %7799 = vmatprep.subr.bf16.mxu0 0
        %7800 = vmatpush1.bf16.msra.mxu0 0
        %7801 = vmatprep.subr.bf16.mxu0 0
        %7802 = vmatpush1.bf16.msra.mxu0 0
        %7803 = vmatprep.subr.bf16.mxu0 0
        %7804 = vmatpush1.bf16.msra.mxu0 0
        %7805 = vmatprep.mubr.bf16.mxu0 %v7771
        %7806 = vmatmul.mubr.bf16.gmra.mrb[0].mxu0 %v7767
        %v7807 = vpop.f32.mrb[0].mxu0
        %v7808 = vadd.f32 %v7762, %v7807
        %v7809 = vpop.f32.mrb[0].mxu0
        %v7810 = vadd.f32 %v7762, %v7809
        %v7811 = vpop.f32.mrb[0].mxu0
        %v7812 = vpop.f32.mrb[0].mxu0
        %7813 = vdwg.mxu0
        %v7814 = vxor.u32 %v7808, 2147483648
        %v7815 = vxor.u32 %v7810, 2147483648
        %v7816 = vmul.f32 %v7814, 1.442695
        %v7817 = vpow.pop %v7816
        %v7818 = vmul.f32 %v7815, 1.442695
        %v7819 = vpow.pop %v7818
        %v7820 = vadd.f32 %v7817, 1.0
        %v7821 = vadd.f32 %v7819, 1.0
        %v7822 = vrcp.pop %v7820
        %v7823 = vmul.f32 1.0, %v7822
        %v7824 = vrcp.pop %v7821
        %v7825 = vmul.f32 1.0, %v7824
        %v7826 = vmul.f32 %v7808, %v7823
        %v7827 = vmul.f32 %v7810, %v7825
        %7828 = vst [vmem:[%s273] sm:$0xff] %v7826
        %7829 = vst [vmem:[%s273 + $0x8] sm:$0xff] %v7827
        %s7830 = sand.u32 %s163, 1
        %s7831 = scalar_lea.sflag [#allocation4], %s7830
        %s7832 = sand.u32 %s163, 1
        %s7833 = smul.addr %s7832, 16
        %s7834 = scalar_lea.vmem [#allocation3], %s7833
        // Predicated region
        $region41: #{tpu_custom_call.1} parent=39 // pred_check
          %p7835 = pneg %p173
        $region42: #{tpu_custom_call.1} parent=39 // pred_check_branch
          %7837 = sbr.rel (%p7835) target = $region44
        $region43: #{tpu_custom_call.1} parent=39 // pred_region
          %s7838 = smul.u32 2, %s24
          %s7840 = ssub.s32 256, 256
          %7841 = vsyncadd %s7831, %s7840
          %s7842 = smul.addr %s23, 2
          %s7843 = sadd.s32 %s7838, %s7842
          %s7844 = smul.addr %s7843, 128
          %s7845 = scalar_lea.hbm %s5, %s7844
          %s7847 = sshll.u32 %s7834, 4
          %s7848 = int_to_ptr.vmem [resolvable:$true] %s7847
          %7850 = dma.vmem_to_hbm [thread:$0]  %s7848, 256, %s7845, %s7831
        $region44: #{tpu_custom_call.1} parent=39 // pred_fallthru
          _
      $region40: #{tpu_custom_call.1} parent=5 // pred_fallthru
        _
      %p7851 = scmp.le.s32.totalorder 2, %s14
      // Predicated region
      $region45: #{tpu_custom_call.1} parent=5 // pred_check
        %p7852 = pneg %p7851
      $region46: #{tpu_custom_call.1} parent=5 // pred_check_branch
        %7854 = sbr.rel (%p7852) target = $region48
      $region47: #{tpu_custom_call.1} parent=5 // pred_region
        %s7855 = ssub.s32 %s14, 2
        // Predicated region
        $region49: #{tpu_custom_call.1} parent=47 // pred_check
          %p7856 = pneg %p179
        $region50: #{tpu_custom_call.1} parent=47 // pred_check_branch
          %7858 = sbr.rel (%p7856) target = $region52
        $region51: #{tpu_custom_call.1} parent=47 // pred_region
          %s7859 = sand.u32 %s164, 1
          %s7860 = scalar_lea.sflag [#allocation4], %s7859
          %s7861 = sand.u32 %s164, 1
          %s7862 = smul.addr %s7861, 16
          %s7863 = scalar_lea.vmem [#allocation3], %s7862
          %7864 = dma.done %s7860, 256
        $region52: #{tpu_custom_call.1} parent=47 // pred_fallthru
          _
      $region48: #{tpu_custom_call.1} parent=5 // pred_fallthru
        _
    $region6: #{tpu_custom_call.1} parent=1 // loop_footer
      %s18 = sadd.s32 1, %s14
    $region7: #{tpu_custom_call.1} parent=1 // loop_footer_branch
      %13 = sbr.rel target = $region3
    $region8: #{tpu_custom_call.1} parent=1 // loop_exit
      _
    %7865 = vsyncpa [#allocation4], 1
    %s7866 = scalar_lea.sflag [#allocation4], 1
    %7867 = vsyncpa %s7866, 1

</llo_original>
